<compile_context>
chip_gen: v7x
topology: tpu7x:2x2x1
jax: 0.10.0
libtpu: 0.0.40
codegen_flags: <defaults>
</compile_context>

<pallas_src>
import math
import functools

import jax
import jax.numpy as jnp
from jax.experimental import pallas as pl
from jax.experimental.pallas import tpu as pltpu

LN_EPS = 1e-6  # norm_layer = partial(nn.LayerNorm, eps=1e-6)

# Haar (db1) analysis matrix: rows = [LL, LH, HL, HH], cols = 2x2 patch (TL, TR, BL, BR)
# TODO(synk): only the 'db1' wavelet (module default) is folded; other pytorch_wavelets
#             filters / padding modes are not reproduced.
HAAR = 0.5 * jnp.array([[ 1.,  1.,  1.,  1.],
                        [-1., -1.,  1.,  1.],
                        [-1.,  1., -1.,  1.],
                        [ 1., -1., -1.,  1.]], jnp.float32)


# ----------------------------------------------------------------------------
# in-kernel helpers (elementwise / reductions only -> lower cleanly on Mosaic)
# ----------------------------------------------------------------------------
def _layernorm(x, gamma, beta):
    mu = jnp.mean(x, axis=-1, keepdims=True)
    var = jnp.mean((x - mu) ** 2, axis=-1, keepdims=True)
    return (x - mu) * jax.lax.rsqrt(var + LN_EPS) * gamma + beta


def _gelu(x):
    # TODO(synk): tanh-form GELU (== torch.nn.GELU(approximate='tanh')); differs from
    #             the exact-erf nn.GELU() default at the ~1e-3 level, but runs on the
    #             EUP tanh slot instead of ~10 dependent VPU multiply-adds.
    c = math.sqrt(2.0 / math.pi)
    return 0.5 * x * (1.0 + jnp.tanh(c * (x + 0.044715 * x * x * x)))


# ----------------------------------------------------------------------------
# Fused per-level kernel: embed (d==0) + transformer block d (+ head epilogue)
# ----------------------------------------------------------------------------
def _level_kernel(*refs, num_heads, is_last):
    if is_last:
        (tin, pos, pw, pb, ng, nb,
         l1g, l1b, wqkv_r, bqkv_r, wpr_r, bpr_r,
         l2g, l2b, wf1, bf1, wf2, bf2,
         fng, fnb, hw, hb,
         o_ref, tok) = refs
    else:
        (tin, pos, pw, pb, ng, nb,
         l1g, l1b, wqkv_r, bqkv_r, wpr_r, bpr_r,
         l2g, l2b, wf1, bf1, wf2, bf2,
         o_ref, tok) = refs

    d = pl.program_id(1)
    n_blocks = pl.num_programs(1)

    # ---- WaveEmbed (Haar folded into pw) + LayerNorm + pos embedding, block 0 only ----
    @pl.when(d == 0)
    def _embed():
        xin = tin[0].astype(jnp.bfloat16)                                # (N, 4C)
        y = jnp.dot(xin, pw[...], preferred_element_type=jnp.float32) + pb[...]
        y = _layernorm(y, ng[...], nb[...])
        tok[...] = y + pos[...]

    x = tok[...]                                                         # (N, D) f32
    N, D = x.shape
    hd = D // num_heads

    # ---- pre-LN multi-head attention (scale pre-folded into wqkv/bqkv Q columns) ----
    h1 = _layernorm(x, l1g[0], l1b[0]).astype(jnp.bfloat16)
    qkv = jnp.dot(h1, wqkv_r[0], preferred_element_type=jnp.float32) + bqkv_r[0]
    wproj = wpr_r[0]                                                     # (D, D) bf16
    acc = jnp.zeros((N, D), jnp.float32)
    for h in range(num_heads):                                           # static unroll
        q = qkv[:, h * hd:(h + 1) * hd].astype(jnp.bfloat16)
        k = qkv[:, D + h * hd:D + (h + 1) * hd].astype(jnp.bfloat16)
        v = qkv[:, 2 * D + h * hd:2 * D + (h + 1) * hd].astype(jnp.bfloat16)
        s = jax.lax.dot_general(q, k, (((1,), (1,)), ((), ())),
                                preferred_element_type=jnp.float32)      # (N, N)
        s = s - jnp.max(s, axis=-1, keepdims=True)
        p = jnp.exp(s)
        p = p * pl.reciprocal(jnp.sum(p, axis=-1, keepdims=True), approx=True)
        oh = jnp.dot(p.astype(jnp.bfloat16), v, preferred_element_type=jnp.float32)
        # project this head's output straight through its slice of wproj (no concat)
        acc = acc + jnp.dot(oh.astype(jnp.bfloat16), wproj[h * hd:(h + 1) * hd, :],
                            preferred_element_type=jnp.float32)
    x = x + acc + bpr_r[0]

    # ---- pre-LN MLP ----
    h2 = _layernorm(x, l2g[0], l2b[0]).astype(jnp.bfloat16)
    m = jnp.dot(h2, wf1[0], preferred_element_type=jnp.float32) + bf1[0]
    m = _gelu(m).astype(jnp.bfloat16)
    y = jnp.dot(m, wf2[0], preferred_element_type=jnp.float32) + bf2[0]
    x = x + y
    tok[...] = x

    if is_last:
        # fused final LayerNorm + global average pool + classifier head epilogue
        @pl.when(d == n_blocks - 1)
        def _head():
            yl = _layernorm(x, fng[...], fnb[...])
            pooled = jnp.mean(yl, axis=0, keepdims=True).astype(jnp.bfloat16)  # (1, D)
            o_ref[0] = (jnp.dot(pooled, hw[...], preferred_element_type=jnp.float32)
                        + hb[...])
    else:
        @pl.when(d == n_blocks - 1)
        def _store():
            o_ref[0] = x.astype(o_ref.dtype)


def run_level(tokens, lp, prep, num_heads, is_last):
    B, N, C4 = tokens.shape
    depth, D, _ = lp["wqkv"].shape
    Hm = lp["wfc1"].shape[2]

    full = lambda r, c: pl.BlockSpec((r, c), lambda b, d: (0, 0))
    per_b = lambda n, c: pl.BlockSpec((1, n, c), lambda b, d: (b, 0, 0))
    per_d = lambda n, c: pl.BlockSpec((1, n, c), lambda b, d: (d, 0, 0))

    in_specs = [
        per_b(N, C4),                        # space-to-depth tokens
        full(N, D),                          # pos embedding
        full(C4, D), full(1, D),             # folded proj weight / bias
        full(1, D), full(1, D),              # embed LayerNorm gamma / beta
        per_d(1, D), per_d(1, D),            # ln1 gamma / beta
        per_d(D, 3 * D), per_d(1, 3 * D),    # wqkv (scale folded) / bqkv
        per_d(D, D), per_d(1, D),            # wproj / bproj
        per_d(1, D), per_d(1, D),            # ln2 gamma / beta
        per_d(D, Hm), per_d(1, Hm),          # wfc1 / bfc1
        per_d(Hm, D), per_d(1, D),           # wfc2 / bfc2
    ]
    args = [tokens, lp["pos"], lp["proj_w"], lp["proj_b"], lp["norm_g"], lp["norm_b"],
            lp["ln1_g"], lp["ln1_b"], lp["wqkv"], lp["bqkv"], lp["wproj"], lp["bproj"],
            lp["ln2_g"], lp["ln2_b"], lp["wfc1"], lp["bfc1"], lp["wfc2"], lp["bfc2"]]

    if is_last:
        NCp = prep["head_w"].shape[1]
        in_specs += [full(1, D), full(1, D), full(D, NCp), full(1, NCp)]
        args += [prep["norm_g"], prep["norm_b"], prep["head_w"], prep["head_b"]]
        out_shape = jax.ShapeDtypeStruct((B, 1, NCp), jnp.float32)
        out_spec = pl.BlockSpec((1, 1, NCp), lambda b, d: (b, 0, 0))
    else:
        out_shape = jax.ShapeDtypeStruct((B, N, D), jnp.bfloat16)
        out_spec = per_b(N, D)

    kern = functools.partial(_level_kernel, num_heads=num_heads, is_last=is_last)
    return pl.pallas_call(
        kern,
        out_shape=out_shape,
        grid=(B, depth),
        in_specs=in_specs,
        out_specs=out_spec,
        scratch_shapes=[pltpu.VMEM((N, D), jnp.float32)],   # token slab, resident across blocks
        compiler_params=pltpu.CompilerParams(
            dimension_semantics=("parallel", "arbitrary"),
            vmem_limit_bytes=32 * 1024 * 1024),
    )(*args)


# ----------------------------------------------------------------------------
# Plain-JAX glue: space-to-depth (the DWT arithmetic itself is folded into proj_w)
# ----------------------------------------------------------------------------
def space_to_depth(x_bhwc):
    B, H, W, C = x_bhwc.shape
    h, w = H // 2, W // 2
    y = x_bhwc.reshape(B, h, 2, w, 2, C)
    y = jnp.transpose(y, (0, 1, 3, 5, 2, 4))           # (B, h, w, C, 2, 2)
    return y.reshape(B, h * w, C * 4), h, w


def fold_haar_into_proj(proj_w, in_chans):
    # proj_w: (4*C, D), rows ordered c*4 + band [LL,LH,HL,HH]
    D = proj_w.shape[1]
    w = proj_w.reshape(in_chans, 4, D)
    w_fold = jnp.einsum("bp,cbd->cpd", HAAR, w)         # rows become c*4 + patch pos (a,b,c,d)
    return w_fold.reshape(4 * in_chans, D)


# ----------------------------------------------------------------------------
# Parameter init (deterministic, synthetic) + TPU-oriented preparation
# ----------------------------------------------------------------------------
class KeyGen:
    def __init__(self, key):
        self.key = key

    def __call__(self):
        self.key, sub = jax.random.split(self.key)
        return sub


def init_raw_params(key, in_chans, img_size, embed_dims, depths, num_heads,
                    mlp_ratio, num_classes):
    kg = KeyGen(key)
    levels = []
    prev, size = in_chans, img_size
    for lvl, D in enumerate(embed_dims):
        size = size // 2                       # patch_size=1/stride=1/pad=0 => DWT halving
        N = size * size
        C4 = 4 * prev
        Hm = int(D * mlp_ratio)
        blocks = []
        for _ in range(depths[lvl]):
            blocks.append(dict(
                ln1_g=jnp.ones((1, D), jnp.float32), ln1_b=jnp.zeros((1, D), jnp.float32),
                wqkv=0.02 * jax.random.normal(kg(), (D, 3 * D), jnp.float32),
                bqkv=jnp.zeros((1, 3 * D), jnp.float32),
                wproj=0.02 * jax.random.normal(kg(), (D, D), jnp.float32),
                bproj=jnp.zeros((1, D), jnp.float32),
                ln2_g=jnp.ones((1, D), jnp.float32), ln2_b=jnp.zeros((1, D), jnp.float32),
                wfc1=0.02 * jax.random.normal(kg(), (D, Hm), jnp.float32),
                bfc1=jnp.zeros((1, Hm), jnp.float32),
                wfc2=0.02 * jax.random.normal(kg(), (Hm, D), jnp.float32),
                bfc2=jnp.zeros((1, D), jnp.float32),
            ))
        levels.append(dict(
            in_chans=prev, num_heads=num_heads[lvl],
            pos=jax.random.normal(kg(), (N, D), jnp.float32),
            proj_w=0.02 * jax.random.normal(kg(), (C4, D), jnp.float32),
            proj_b=jnp.zeros((1, D), jnp.float32),
            norm_g=jnp.ones((1, D), jnp.float32), norm_b=jnp.zeros((1, D), jnp.float32),
            blocks=blocks,
        ))
        prev = D
    D_last = embed_dims[-1]
    return dict(levels=levels,
                norm_g=jnp.ones((1, D_last), jnp.float32),
                norm_b=jnp.zeros((1, D_last), jnp.float32),
                head_w=0.02 * jax.random.normal(kg(), (D_last, num_classes), jnp.float32),
                head_b=jnp.zeros((1, num_classes), jnp.float32))


def prepare_params(raw):
    """Fold Haar DWT + attention scale into weights, stack per-block params along a
    depth axis, cast matmul weights to bf16, pad the head to 128 lanes."""
    prep = {"levels": []}
    for lp in raw["levels"]:
        C = lp["in_chans"]
        D = lp["proj_w"].shape[1]
        scale = (D // lp["num_heads"]) ** -0.5
        blocks = lp["blocks"]
        stack = lambda name: jnp.stack([b[name] for b in blocks], axis=0)
        wqkv = stack("wqkv").at[:, :, :D].multiply(scale)      # fold attention scale into Q
        bqkv = stack("bqkv").at[:, :, :D].multiply(scale)
        prep["levels"].append(dict(
            pos=lp["pos"],
            proj_w=fold_haar_into_proj(lp["proj_w"], C).astype(jnp.bfloat16),
            proj_b=lp["proj_b"],
            norm_g=lp["norm_g"], norm_b=lp["norm_b"],
            ln1_g=stack("ln1_g"), ln1_b=stack("ln1_b"),
            wqkv=wqkv.astype(jnp.bfloat16), bqkv=bqkv,
            wproj=stack("wproj").astype(jnp.bfloat16), bproj=stack("bproj"),
            ln2_g=stack("ln2_g"), ln2_b=stack("ln2_b"),
            wfc1=stack("wfc1").astype(jnp.bfloat16), bfc1=stack("bfc1"),
            wfc2=stack("wfc2").astype(jnp.bfloat16), bfc2=stack("bfc2"),
        ))
    D_last, NC = raw["head_w"].shape
    NCp = ((NC + 127) // 128) * 128                            # lane-dense head store
    prep["norm_g"] = raw["norm_g"]
    prep["norm_b"] = raw["norm_b"]
    prep["head_w"] = (jnp.zeros((D_last, NCp), jnp.float32)
                      .at[:, :NC].set(raw["head_w"])).astype(jnp.bfloat16)
    prep["head_b"] = jnp.zeros((1, NCp), jnp.float32).at[:, :NC].set(raw["head_b"])
    return prep


# ----------------------------------------------------------------------------
# Full forward (one fused pallas_call per level)
# ----------------------------------------------------------------------------
def wavet_forward(x_nhwc, prep, num_heads, num_classes):
    x = x_nhwc.astype(jnp.bfloat16)
    n_levels = len(prep["levels"])
    for i, lp in enumerate(prep["levels"]):
        tokens, h, w = space_to_depth(x)           # Haar is folded into lp["proj_w"]
        is_last = (i == n_levels - 1)
        out = run_level(tokens, lp, prep, num_heads[i], is_last)
        if is_last:
            return out[:, 0, :num_classes]
        B, N, D = out.shape
        x = out.reshape(B, h, w, D)                # 'b (h w) c -> b c h w' kept channels-last


if __name__ == "__main__":
    # small config consistent with the module structure
    B, C, H, W = 2, 3, 16, 16
    embed_dims = (32, 64)
    num_heads = (4, 8)
    depths = (2, 2)
    mlp_ratio = 4.0
    num_classes = 10

    key = jax.random.PRNGKey(0)
    kx, kp = jax.random.split(key)
    x_nchw = jax.random.normal(kx, (B, C, H, W), jnp.float32)   # PyTorch-style NCHW input
    x_nhwc = jnp.transpose(x_nchw, (0, 2, 3, 1))                # kernel layout: channels-last

    raw = init_raw_params(kp, C, H, embed_dims, depths, num_heads, mlp_ratio, num_classes)
    prep = prepare_params(raw)

    fwd = jax.jit(wavet_forward, static_argnames=("num_heads", "num_classes"))
    out = fwd(x_nhwc, prep, num_heads=num_heads, num_classes=num_classes)
    out = jax.block_until_ready(out)

    assert out.shape == (B, num_classes), out.shape
    assert bool(jnp.all(jnp.isfinite(out)))
    print("KERNEL_OK")
</pallas_src>

<mosaic_0001>
module attributes {stable_mosaic.version = 11 : i64} {
  func.func @_level_kernel(%arg0: i32, %arg1: i32, %arg2: memref<1x64x12xbf16, #tpu.memory_space<vmem>>, %arg3: memref<64x32xf32, #tpu.memory_space<vmem>>, %arg4: memref<12x32xbf16, #tpu.memory_space<vmem>>, %arg5: memref<1x32xf32, #tpu.memory_space<vmem>>, %arg6: memref<1x32xf32, #tpu.memory_space<vmem>>, %arg7: memref<1x32xf32, #tpu.memory_space<vmem>>, %arg8: memref<1x1x32xf32, #tpu.memory_space<vmem>>, %arg9: memref<1x1x32xf32, #tpu.memory_space<vmem>>, %arg10: memref<1x32x96xbf16, #tpu.memory_space<vmem>>, %arg11: memref<1x1x96xf32, #tpu.memory_space<vmem>>, %arg12: memref<1x32x32xbf16, #tpu.memory_space<vmem>>, %arg13: memref<1x1x32xf32, #tpu.memory_space<vmem>>, %arg14: memref<1x1x32xf32, #tpu.memory_space<vmem>>, %arg15: memref<1x1x32xf32, #tpu.memory_space<vmem>>, %arg16: memref<1x32x128xbf16, #tpu.memory_space<vmem>>, %arg17: memref<1x1x128xf32, #tpu.memory_space<vmem>>, %arg18: memref<1x128x32xbf16, #tpu.memory_space<vmem>>, %arg19: memref<1x1x32xf32, #tpu.memory_space<vmem>>, %arg20: memref<1x64x32xbf16, #tpu.memory_space<vmem>>, %arg21: memref<64x32xf32, #tpu.memory_space<vmem>>) attributes {dimension_semantics = [#tpu.dimension_semantics<parallel>, #tpu.dimension_semantics<arbitrary>], iteration_bounds = array<i64: 2, 2>, scalar_prefetch = 0 : i64, scratch_operands = 1 : i64, tpu.core_type = #tpu.core_type<tc>, window_params = [{transform_indices = @transform_0, window_bounds = array<i64: 1, 64, 12>}, {pipeline_mode = #tpu.pipeline_mode<synchronous>, transform_indices = @transform_1, window_bounds = array<i64: 64, 32>}, {pipeline_mode = #tpu.pipeline_mode<synchronous>, transform_indices = @transform_2, window_bounds = array<i64: 12, 32>}, {pipeline_mode = #tpu.pipeline_mode<synchronous>, transform_indices = @transform_3, window_bounds = array<i64: 1, 32>}, {pipeline_mode = #tpu.pipeline_mode<synchronous>, transform_indices = @transform_4, window_bounds = array<i64: 1, 32>}, {pipeline_mode = #tpu.pipeline_mode<synchronous>, transform_indices = @transform_5, window_bounds = array<i64: 1, 32>}, {transform_indices = @transform_6, window_bounds = array<i64: 1, 1, 32>}, {transform_indices = @transform_7, window_bounds = array<i64: 1, 1, 32>}, {transform_indices = @transform_8, window_bounds = array<i64: 1, 32, 96>}, {transform_indices = @transform_9, window_bounds = array<i64: 1, 1, 96>}, {transform_indices = @transform_10, window_bounds = array<i64: 1, 32, 32>}, {transform_indices = @transform_11, window_bounds = array<i64: 1, 1, 32>}, {transform_indices = @transform_12, window_bounds = array<i64: 1, 1, 32>}, {transform_indices = @transform_13, window_bounds = array<i64: 1, 1, 32>}, {transform_indices = @transform_14, window_bounds = array<i64: 1, 32, 128>}, {transform_indices = @transform_15, window_bounds = array<i64: 1, 1, 128>}, {transform_indices = @transform_16, window_bounds = array<i64: 1, 128, 32>}, {transform_indices = @transform_17, window_bounds = array<i64: 1, 1, 32>}, {transform_indices = @transform_18, window_bounds = array<i64: 1, 64, 32>}]} {
    %c0_i32 = arith.constant 0 : i32
    %0 = arith.cmpi eq, %arg1, %c0_i32 : i32
    %1 = arith.extui %0 : i1 to i32
    %c0_i32_0 = arith.constant 0 : i32
    %2 = arith.cmpi ne, %1, %c0_i32_0 : i32
    scf.if %2 {
      %c0_78 = arith.constant 0 : index
      %c0_79 = arith.constant 0 : index
      %c0_80 = arith.constant 0 : index
      %198 = vector.load %arg2[%c0_78, %c0_79, %c0_80] : memref<1x64x12xbf16, #tpu.memory_space<vmem>>, vector<1x64x12xbf16>
      %199 = vector.shape_cast %198 : vector<1x64x12xbf16> to vector<64x12xbf16>
      %c0_81 = arith.constant 0 : index
      %c0_82 = arith.constant 0 : index
      %200 = vector.load %arg4[%c0_81, %c0_82] : memref<12x32xbf16, #tpu.memory_space<vmem>>, vector<12x32xbf16>
      %cst_83 = arith.constant dense<0.000000e+00> : vector<64x32xf32>
      %201 = tpu.matmul %199, %200, %cst_83 {dimension_numbers = #tpu.dot_dimension_numbers<[1], [0], [0], [1], [0, 0, 1, 1], [], []>} : vector<64x12xbf16>, vector<12x32xbf16>, vector<64x32xf32> -> vector<64x32xf32>
      %c0_84 = arith.constant 0 : index
      %c0_85 = arith.constant 0 : index
      %202 = vector.load %arg5[%c0_84, %c0_85] : memref<1x32xf32, #tpu.memory_space<vmem>>, vector<1x32xf32>
      %203 = vector.broadcast %202 : vector<1x32xf32> to vector<64x32xf32>
      %204 = arith.addf %201, %203 : vector<64x32xf32>
      %c0_86 = arith.constant 0 : index
      %c0_87 = arith.constant 0 : index
      %205 = vector.load %arg6[%c0_86, %c0_87] : memref<1x32xf32, #tpu.memory_space<vmem>>, vector<1x32xf32>
      %c0_88 = arith.constant 0 : index
      %c0_89 = arith.constant 0 : index
      %206 = vector.load %arg7[%c0_88, %c0_89] : memref<1x32xf32, #tpu.memory_space<vmem>>, vector<1x32xf32>
      %cst_90 = arith.constant dense<0.000000e+00> : vector<64xf32>
      %207 = vector.multi_reduction <add>, %204, %cst_90 [1] : vector<64x32xf32> to vector<64xf32>
      %208 = vector.shape_cast %207 : vector<64xf32> to vector<64x1xf32>
      %cst_91 = arith.constant 3.200000e+01 : f32
      %209 = vector.broadcast %cst_91 : f32 to vector<64x1xf32>
      %210 = arith.divf %208, %209 : vector<64x1xf32>
      %211 = vector.broadcast %210 : vector<64x1xf32> to vector<64x32xf32>
      %212 = arith.subf %204, %211 : vector<64x32xf32>
      %213 = arith.mulf %212, %212 : vector<64x32xf32>
      %cst_92 = arith.constant dense<0.000000e+00> : vector<64xf32>
      %214 = vector.multi_reduction <add>, %213, %cst_92 [1] : vector<64x32xf32> to vector<64xf32>
      %215 = vector.shape_cast %214 : vector<64xf32> to vector<64x1xf32>
      %cst_93 = arith.constant 3.200000e+01 : f32
      %216 = vector.broadcast %cst_93 : f32 to vector<64x1xf32>
      %217 = arith.divf %215, %216 : vector<64x1xf32>
      %218 = vector.broadcast %210 : vector<64x1xf32> to vector<64x32xf32>
      %219 = arith.subf %204, %218 : vector<64x32xf32>
      %cst_94 = arith.constant 9.99999997E-7 : f32
      %220 = vector.broadcast %cst_94 : f32 to vector<64x1xf32>
      %221 = arith.addf %217, %220 : vector<64x1xf32>
      %222 = math.rsqrt %221 : vector<64x1xf32>
      %223 = vector.broadcast %222 : vector<64x1xf32> to vector<64x32xf32>
      %224 = arith.mulf %219, %223 : vector<64x32xf32>
      %225 = vector.broadcast %205 : vector<1x32xf32> to vector<64x32xf32>
      %226 = arith.mulf %224, %225 : vector<64x32xf32>
      %227 = vector.broadcast %206 : vector<1x32xf32> to vector<64x32xf32>
      %228 = arith.addf %226, %227 : vector<64x32xf32>
      %c0_95 = arith.constant 0 : index
      %c0_96 = arith.constant 0 : index
      %229 = vector.load %arg3[%c0_95, %c0_96] : memref<64x32xf32, #tpu.memory_space<vmem>>, vector<64x32xf32>
      %230 = arith.addf %228, %229 : vector<64x32xf32>
      %c0_97 = arith.constant 0 : index
      %c0_98 = arith.constant 0 : index
      %231 = vector.load %arg21[%c0_97, %c0_98] : memref<64x32xf32, #tpu.memory_space<vmem>>, vector<64x32xf32>
      tpu.vector_store %arg21[%c0_97, %c0_98], %230 {strides = array<i32>} : memref<64x32xf32, #tpu.memory_space<vmem>>, vector<64x32xf32>,
    } else {
    }
    %c0 = arith.constant 0 : index
    %c0_1 = arith.constant 0 : index
    %3 = vector.load %arg21[%c0, %c0_1] : memref<64x32xf32, #tpu.memory_space<vmem>>, vector<64x32xf32>
    %c0_2 = arith.constant 0 : index
    %c0_3 = arith.constant 0 : index
    %c0_4 = arith.constant 0 : index
    %4 = vector.load %arg8[%c0_2, %c0_3, %c0_4] : memref<1x1x32xf32, #tpu.memory_space<vmem>>, vector<1x1x32xf32>
    %5 = vector.shape_cast %4 : vector<1x1x32xf32> to vector<1x32xf32>
    %c0_5 = arith.constant 0 : index
    %c0_6 = arith.constant 0 : index
    %c0_7 = arith.constant 0 : index
    %6 = vector.load %arg9[%c0_5, %c0_6, %c0_7] : memref<1x1x32xf32, #tpu.memory_space<vmem>>, vector<1x1x32xf32>
    %7 = vector.shape_cast %6 : vector<1x1x32xf32> to vector<1x32xf32>
    %cst = arith.constant dense<0.000000e+00> : vector<64xf32>
    %8 = vector.multi_reduction <add>, %3, %cst [1] : vector<64x32xf32> to vector<64xf32>
    %9 = vector.shape_cast %8 : vector<64xf32> to vector<64x1xf32>
    %cst_8 = arith.constant 3.200000e+01 : f32
    %10 = vector.broadcast %cst_8 : f32 to vector<64x1xf32>
    %11 = arith.divf %9, %10 : vector<64x1xf32>
    %12 = vector.broadcast %11 : vector<64x1xf32> to vector<64x32xf32>
    %13 = arith.subf %3, %12 : vector<64x32xf32>
    %14 = arith.mulf %13, %13 : vector<64x32xf32>
    %cst_9 = arith.constant dense<0.000000e+00> : vector<64xf32>
    %15 = vector.multi_reduction <add>, %14, %cst_9 [1] : vector<64x32xf32> to vector<64xf32>
    %16 = vector.shape_cast %15 : vector<64xf32> to vector<64x1xf32>
    %cst_10 = arith.constant 3.200000e+01 : f32
    %17 = vector.broadcast %cst_10 : f32 to vector<64x1xf32>
    %18 = arith.divf %16, %17 : vector<64x1xf32>
    %19 = vector.broadcast %11 : vector<64x1xf32> to vector<64x32xf32>
    %20 = arith.subf %3, %19 : vector<64x32xf32>
    %cst_11 = arith.constant 9.99999997E-7 : f32
    %21 = vector.broadcast %cst_11 : f32 to vector<64x1xf32>
    %22 = arith.addf %18, %21 : vector<64x1xf32>
    %23 = math.rsqrt %22 : vector<64x1xf32>
    %24 = vector.broadcast %23 : vector<64x1xf32> to vector<64x32xf32>
    %25 = arith.mulf %20, %24 : vector<64x32xf32>
    %26 = vector.broadcast %5 : vector<1x32xf32> to vector<64x32xf32>
    %27 = arith.mulf %25, %26 : vector<64x32xf32>
    %28 = vector.broadcast %7 : vector<1x32xf32> to vector<64x32xf32>
    %29 = arith.addf %27, %28 : vector<64x32xf32>
    %30 = arith.truncf %29 : vector<64x32xf32> to vector<64x32xbf16>
    %c0_12 = arith.constant 0 : index
    %c0_13 = arith.constant 0 : index
    %c0_14 = arith.constant 0 : index
    %31 = vector.load %arg10[%c0_12, %c0_13, %c0_14] : memref<1x32x96xbf16, #tpu.memory_space<vmem>>, vector<1x32x96xbf16>
    %32 = vector.shape_cast %31 : vector<1x32x96xbf16> to vector<32x96xbf16>
    %cst_15 = arith.constant dense<0.000000e+00> : vector<64x96xf32>
    %33 = tpu.matmul %30, %32, %cst_15 {dimension_numbers = #tpu.dot_dimension_numbers<[1], [0], [0], [1], [0, 0, 1, 1], [], []>} : vector<64x32xbf16>, vector<32x96xbf16>, vector<64x96xf32> -> vector<64x96xf32>
    %c0_16 = arith.constant 0 : index
    %c0_17 = arith.constant 0 : index
    %c0_18 = arith.constant 0 : index
    %34 = vector.load %arg11[%c0_16, %c0_17, %c0_18] : memref<1x1x96xf32, #tpu.memory_space<vmem>>, vector<1x1x96xf32>
    %35 = vector.shape_cast %34 : vector<1x1x96xf32> to vector<1x96xf32>
    %36 = vector.broadcast %35 : vector<1x96xf32> to vector<64x96xf32>
    %37 = arith.addf %33, %36 : vector<64x96xf32>
    %c0_19 = arith.constant 0 : index
    %c0_20 = arith.constant 0 : index
    %c0_21 = arith.constant 0 : index
    %38 = vector.load %arg12[%c0_19, %c0_20, %c0_21] : memref<1x32x32xbf16, #tpu.memory_space<vmem>>, vector<1x32x32xbf16>
    %39 = vector.shape_cast %38 : vector<1x32x32xbf16> to vector<32x32xbf16>
    %cst_22 = arith.constant 0.000000e+00 : f32
    %40 = vector.broadcast %cst_22 : f32 to vector<64x32xf32>
    %41 = vector.extract_strided_slice %37 {offsets = [0, 0], sizes = [64, 8], strides = [1, 1]} : vector<64x96xf32> to vector<64x8xf32>
    %42 = arith.truncf %41 : vector<64x8xf32> to vector<64x8xbf16>
    %43 = vector.extract_strided_slice %37 {offsets = [0, 32], sizes = [64, 8], strides = [1, 1]} : vector<64x96xf32> to vector<64x8xf32>
    %44 = arith.truncf %43 : vector<64x8xf32> to vector<64x8xbf16>
    %45 = vector.extract_strided_slice %37 {offsets = [0, 64], sizes = [64, 8], strides = [1, 1]} : vector<64x96xf32> to vector<64x8xf32>
    %46 = arith.truncf %45 : vector<64x8xf32> to vector<64x8xbf16>
    %cst_23 = arith.constant dense<0.000000e+00> : vector<64x64xf32>
    %47 = tpu.matmul %42, %44, %cst_23 {dimension_numbers = #tpu.dot_dimension_numbers<[1], [1], [0], [0], [0, 0, 1, 0], [], []>} : vector<64x8xbf16>, vector<64x8xbf16>, vector<64x64xf32> -> vector<64x64xf32>
    %cst_24 = arith.constant dense<0xFF800000> : vector<64xf32>
    %48 = vector.multi_reduction <maximumf>, %47, %cst_24 [1] : vector<64x64xf32> to vector<64xf32>
    %49 = vector.shape_cast %48 : vector<64xf32> to vector<64x1xf32>
    %50 = vector.broadcast %49 : vector<64x1xf32> to vector<64x64xf32>
    %51 = arith.subf %47, %50 : vector<64x64xf32>
    %52 = math.exp %51 : vector<64x64xf32>
    %cst_25 = arith.constant dense<0.000000e+00> : vector<64xf32>
    %53 = vector.multi_reduction <add>, %52, %cst_25 [1] : vector<64x64xf32> to vector<64xf32>
    %54 = vector.shape_cast %53 : vector<64xf32> to vector<64x1xf32>
    %55 = tpu.reciprocal %54 {approx = true} : vector<64x1xf32> -> vector<64x1xf32>
    %56 = vector.broadcast %55 : vector<64x1xf32> to vector<64x64xf32>
    %57 = arith.mulf %52, %56 : vector<64x64xf32>
    %58 = arith.truncf %57 : vector<64x64xf32> to vector<64x64xbf16>
    %cst_26 = arith.constant dense<0.000000e+00> : vector<64x8xf32>
    %59 = tpu.matmul %58, %46, %cst_26 {dimension_numbers = #tpu.dot_dimension_numbers<[1], [0], [0], [1], [0, 0, 1, 1], [], []>} : vector<64x64xbf16>, vector<64x8xbf16>, vector<64x8xf32> -> vector<64x8xf32>
    %60 = arith.truncf %59 : vector<64x8xf32> to vector<64x8xbf16>
    %61 = vector.extract_strided_slice %39 {offsets = [0, 0], sizes = [8, 32], strides = [1, 1]} : vector<32x32xbf16> to vector<8x32xbf16>
    %cst_27 = arith.constant dense<0.000000e+00> : vector<64x32xf32>
    %62 = tpu.matmul %60, %61, %cst_27 {dimension_numbers = #tpu.dot_dimension_numbers<[1], [0], [0], [1], [0, 0, 1, 1], [], []>} : vector<64x8xbf16>, vector<8x32xbf16>, vector<64x32xf32> -> vector<64x32xf32>
    %63 = arith.addf %40, %62 : vector<64x32xf32>
    %64 = vector.extract_strided_slice %37 {offsets = [0, 8], sizes = [64, 8], strides = [1, 1]} : vector<64x96xf32> to vector<64x8xf32>
    %65 = arith.truncf %64 : vector<64x8xf32> to vector<64x8xbf16>
    %66 = vector.extract_strided_slice %37 {offsets = [0, 40], sizes = [64, 8], strides = [1, 1]} : vector<64x96xf32> to vector<64x8xf32>
    %67 = arith.truncf %66 : vector<64x8xf32> to vector<64x8xbf16>
    %68 = vector.extract_strided_slice %37 {offsets = [0, 72], sizes = [64, 8], strides = [1, 1]} : vector<64x96xf32> to vector<64x8xf32>
    %69 = arith.truncf %68 : vector<64x8xf32> to vector<64x8xbf16>
    %cst_28 = arith.constant dense<0.000000e+00> : vector<64x64xf32>
    %70 = tpu.matmul %65, %67, %cst_28 {dimension_numbers = #tpu.dot_dimension_numbers<[1], [1], [0], [0], [0, 0, 1, 0], [], []>} : vector<64x8xbf16>, vector<64x8xbf16>, vector<64x64xf32> -> vector<64x64xf32>
    %cst_29 = arith.constant dense<0xFF800000> : vector<64xf32>
    %71 = vector.multi_reduction <maximumf>, %70, %cst_29 [1] : vector<64x64xf32> to vector<64xf32>
    %72 = vector.shape_cast %71 : vector<64xf32> to vector<64x1xf32>
    %73 = vector.broadcast %72 : vector<64x1xf32> to vector<64x64xf32>
    %74 = arith.subf %70, %73 : vector<64x64xf32>
    %75 = math.exp %74 : vector<64x64xf32>
    %cst_30 = arith.constant dense<0.000000e+00> : vector<64xf32>
    %76 = vector.multi_reduction <add>, %75, %cst_30 [1] : vector<64x64xf32> to vector<64xf32>
    %77 = vector.shape_cast %76 : vector<64xf32> to vector<64x1xf32>
    %78 = tpu.reciprocal %77 {approx = true} : vector<64x1xf32> -> vector<64x1xf32>
    %79 = vector.broadcast %78 : vector<64x1xf32> to vector<64x64xf32>
    %80 = arith.mulf %75, %79 : vector<64x64xf32>
    %81 = arith.truncf %80 : vector<64x64xf32> to vector<64x64xbf16>
    %cst_31 = arith.constant dense<0.000000e+00> : vector<64x8xf32>
    %82 = tpu.matmul %81, %69, %cst_31 {dimension_numbers = #tpu.dot_dimension_numbers<[1], [0], [0], [1], [0, 0, 1, 1], [], []>} : vector<64x64xbf16>, vector<64x8xbf16>, vector<64x8xf32> -> vector<64x8xf32>
    %83 = arith.truncf %82 : vector<64x8xf32> to vector<64x8xbf16>
    %84 = vector.extract_strided_slice %39 {offsets = [8, 0], sizes = [8, 32], strides = [1, 1]} : vector<32x32xbf16> to vector<8x32xbf16>
    %cst_32 = arith.constant dense<0.000000e+00> : vector<64x32xf32>
    %85 = tpu.matmul %83, %84, %cst_32 {dimension_numbers = #tpu.dot_dimension_numbers<[1], [0], [0], [1], [0, 0, 1, 1], [], []>} : vector<64x8xbf16>, vector<8x32xbf16>, vector<64x32xf32> -> vector<64x32xf32>
    %86 = arith.addf %63, %85 : vector<64x32xf32>
    %87 = vector.extract_strided_slice %37 {offsets = [0, 16], sizes = [64, 8], strides = [1, 1]} : vector<64x96xf32> to vector<64x8xf32>
    %88 = arith.truncf %87 : vector<64x8xf32> to vector<64x8xbf16>
    %89 = vector.extract_strided_slice %37 {offsets = [0, 48], sizes = [64, 8], strides = [1, 1]} : vector<64x96xf32> to vector<64x8xf32>
    %90 = arith.truncf %89 : vector<64x8xf32> to vector<64x8xbf16>
    %91 = vector.extract_strided_slice %37 {offsets = [0, 80], sizes = [64, 8], strides = [1, 1]} : vector<64x96xf32> to vector<64x8xf32>
    %92 = arith.truncf %91 : vector<64x8xf32> to vector<64x8xbf16>
    %cst_33 = arith.constant dense<0.000000e+00> : vector<64x64xf32>
    %93 = tpu.matmul %88, %90, %cst_33 {dimension_numbers = #tpu.dot_dimension_numbers<[1], [1], [0], [0], [0, 0, 1, 0], [], []>} : vector<64x8xbf16>, vector<64x8xbf16>, vector<64x64xf32> -> vector<64x64xf32>
    %cst_34 = arith.constant dense<0xFF800000> : vector<64xf32>
    %94 = vector.multi_reduction <maximumf>, %93, %cst_34 [1] : vector<64x64xf32> to vector<64xf32>
    %95 = vector.shape_cast %94 : vector<64xf32> to vector<64x1xf32>
    %96 = vector.broadcast %95 : vector<64x1xf32> to vector<64x64xf32>
    %97 = arith.subf %93, %96 : vector<64x64xf32>
    %98 = math.exp %97 : vector<64x64xf32>
    %cst_35 = arith.constant dense<0.000000e+00> : vector<64xf32>
    %99 = vector.multi_reduction <add>, %98, %cst_35 [1] : vector<64x64xf32> to vector<64xf32>
    %100 = vector.shape_cast %99 : vector<64xf32> to vector<64x1xf32>
    %101 = tpu.reciprocal %100 {approx = true} : vector<64x1xf32> -> vector<64x1xf32>
    %102 = vector.broadcast %101 : vector<64x1xf32> to vector<64x64xf32>
    %103 = arith.mulf %98, %102 : vector<64x64xf32>
    %104 = arith.truncf %103 : vector<64x64xf32> to vector<64x64xbf16>
    %cst_36 = arith.constant dense<0.000000e+00> : vector<64x8xf32>
    %105 = tpu.matmul %104, %92, %cst_36 {dimension_numbers = #tpu.dot_dimension_numbers<[1], [0], [0], [1], [0, 0, 1, 1], [], []>} : vector<64x64xbf16>, vector<64x8xbf16>, vector<64x8xf32> -> vector<64x8xf32>
    %106 = arith.truncf %105 : vector<64x8xf32> to vector<64x8xbf16>
    %107 = vector.extract_strided_slice %39 {offsets = [16, 0], sizes = [8, 32], strides = [1, 1]} : vector<32x32xbf16> to vector<8x32xbf16>
    %cst_37 = arith.constant dense<0.000000e+00> : vector<64x32xf32>
    %108 = tpu.matmul %106, %107, %cst_37 {dimension_numbers = #tpu.dot_dimension_numbers<[1], [0], [0], [1], [0, 0, 1, 1], [], []>} : vector<64x8xbf16>, vector<8x32xbf16>, vector<64x32xf32> -> vector<64x32xf32>
    %109 = arith.addf %86, %108 : vector<64x32xf32>
    %110 = vector.extract_strided_slice %37 {offsets = [0, 24], sizes = [64, 8], strides = [1, 1]} : vector<64x96xf32> to vector<64x8xf32>
    %111 = arith.truncf %110 : vector<64x8xf32> to vector<64x8xbf16>
    %112 = vector.extract_strided_slice %37 {offsets = [0, 56], sizes = [64, 8], strides = [1, 1]} : vector<64x96xf32> to vector<64x8xf32>
    %113 = arith.truncf %112 : vector<64x8xf32> to vector<64x8xbf16>
    %114 = vector.extract_strided_slice %37 {offsets = [0, 88], sizes = [64, 8], strides = [1, 1]} : vector<64x96xf32> to vector<64x8xf32>
    %115 = arith.truncf %114 : vector<64x8xf32> to vector<64x8xbf16>
    %cst_38 = arith.constant dense<0.000000e+00> : vector<64x64xf32>
    %116 = tpu.matmul %111, %113, %cst_38 {dimension_numbers = #tpu.dot_dimension_numbers<[1], [1], [0], [0], [0, 0, 1, 0], [], []>} : vector<64x8xbf16>, vector<64x8xbf16>, vector<64x64xf32> -> vector<64x64xf32>
    %cst_39 = arith.constant dense<0xFF800000> : vector<64xf32>
    %117 = vector.multi_reduction <maximumf>, %116, %cst_39 [1] : vector<64x64xf32> to vector<64xf32>
    %118 = vector.shape_cast %117 : vector<64xf32> to vector<64x1xf32>
    %119 = vector.broadcast %118 : vector<64x1xf32> to vector<64x64xf32>
    %120 = arith.subf %116, %119 : vector<64x64xf32>
    %121 = math.exp %120 : vector<64x64xf32>
    %cst_40 = arith.constant dense<0.000000e+00> : vector<64xf32>
    %122 = vector.multi_reduction <add>, %121, %cst_40 [1] : vector<64x64xf32> to vector<64xf32>
    %123 = vector.shape_cast %122 : vector<64xf32> to vector<64x1xf32>
    %124 = tpu.reciprocal %123 {approx = true} : vector<64x1xf32> -> vector<64x1xf32>
    %125 = vector.broadcast %124 : vector<64x1xf32> to vector<64x64xf32>
    %126 = arith.mulf %121, %125 : vector<64x64xf32>
    %127 = arith.truncf %126 : vector<64x64xf32> to vector<64x64xbf16>
    %cst_41 = arith.constant dense<0.000000e+00> : vector<64x8xf32>
    %128 = tpu.matmul %127, %115, %cst_41 {dimension_numbers = #tpu.dot_dimension_numbers<[1], [0], [0], [1], [0, 0, 1, 1], [], []>} : vector<64x64xbf16>, vector<64x8xbf16>, vector<64x8xf32> -> vector<64x8xf32>
    %129 = arith.truncf %128 : vector<64x8xf32> to vector<64x8xbf16>
    %130 = vector.extract_strided_slice %39 {offsets = [24, 0], sizes = [8, 32], strides = [1, 1]} : vector<32x32xbf16> to vector<8x32xbf16>
    %cst_42 = arith.constant dense<0.000000e+00> : vector<64x32xf32>
    %131 = tpu.matmul %129, %130, %cst_42 {dimension_numbers = #tpu.dot_dimension_numbers<[1], [0], [0], [1], [0, 0, 1, 1], [], []>} : vector<64x8xbf16>, vector<8x32xbf16>, vector<64x32xf32> -> vector<64x32xf32>
    %132 = arith.addf %109, %131 : vector<64x32xf32>
    %133 = arith.addf %3, %132 : vector<64x32xf32>
    %c0_43 = arith.constant 0 : index
    %c0_44 = arith.constant 0 : index
    %c0_45 = arith.constant 0 : index
    %134 = vector.load %arg13[%c0_43, %c0_44, %c0_45] : memref<1x1x32xf32, #tpu.memory_space<vmem>>, vector<1x1x32xf32>
    %135 = vector.shape_cast %134 : vector<1x1x32xf32> to vector<1x32xf32>
    %136 = vector.broadcast %135 : vector<1x32xf32> to vector<64x32xf32>
    %137 = arith.addf %133, %136 : vector<64x32xf32>
    %c0_46 = arith.constant 0 : index
    %c0_47 = arith.constant 0 : index
    %c0_48 = arith.constant 0 : index
    %138 = vector.load %arg14[%c0_46, %c0_47, %c0_48] : memref<1x1x32xf32, #tpu.memory_space<vmem>>, vector<1x1x32xf32>
    %139 = vector.shape_cast %138 : vector<1x1x32xf32> to vector<1x32xf32>
    %c0_49 = arith.constant 0 : index
    %c0_50 = arith.constant 0 : index
    %c0_51 = arith.constant 0 : index
    %140 = vector.load %arg15[%c0_49, %c0_50, %c0_51] : memref<1x1x32xf32, #tpu.memory_space<vmem>>, vector<1x1x32xf32>
    %141 = vector.shape_cast %140 : vector<1x1x32xf32> to vector<1x32xf32>
    %cst_52 = arith.constant dense<0.000000e+00> : vector<64xf32>
    %142 = vector.multi_reduction <add>, %137, %cst_52 [1] : vector<64x32xf32> to vector<64xf32>
    %143 = vector.shape_cast %142 : vector<64xf32> to vector<64x1xf32>
    %cst_53 = arith.constant 3.200000e+01 : f32
    %144 = vector.broadcast %cst_53 : f32 to vector<64x1xf32>
    %145 = arith.divf %143, %144 : vector<64x1xf32>
    %146 = vector.broadcast %145 : vector<64x1xf32> to vector<64x32xf32>
    %147 = arith.subf %137, %146 : vector<64x32xf32>
    %148 = arith.mulf %147, %147 : vector<64x32xf32>
    %cst_54 = arith.constant dense<0.000000e+00> : vector<64xf32>
    %149 = vector.multi_reduction <add>, %148, %cst_54 [1] : vector<64x32xf32> to vector<64xf32>
    %150 = vector.shape_cast %149 : vector<64xf32> to vector<64x1xf32>
    %cst_55 = arith.constant 3.200000e+01 : f32
    %151 = vector.broadcast %cst_55 : f32 to vector<64x1xf32>
    %152 = arith.divf %150, %151 : vector<64x1xf32>
    %153 = vector.broadcast %145 : vector<64x1xf32> to vector<64x32xf32>
    %154 = arith.subf %137, %153 : vector<64x32xf32>
    %cst_56 = arith.constant 9.99999997E-7 : f32
    %155 = vector.broadcast %cst_56 : f32 to vector<64x1xf32>
    %156 = arith.addf %152, %155 : vector<64x1xf32>
    %157 = math.rsqrt %156 : vector<64x1xf32>
    %158 = vector.broadcast %157 : vector<64x1xf32> to vector<64x32xf32>
    %159 = arith.mulf %154, %158 : vector<64x32xf32>
    %160 = vector.broadcast %139 : vector<1x32xf32> to vector<64x32xf32>
    %161 = arith.mulf %159, %160 : vector<64x32xf32>
    %162 = vector.broadcast %141 : vector<1x32xf32> to vector<64x32xf32>
    %163 = arith.addf %161, %162 : vector<64x32xf32>
    %164 = arith.truncf %163 : vector<64x32xf32> to vector<64x32xbf16>
    %c0_57 = arith.constant 0 : index
    %c0_58 = arith.constant 0 : index
    %c0_59 = arith.constant 0 : index
    %165 = vector.load %arg16[%c0_57, %c0_58, %c0_59] : memref<1x32x128xbf16, #tpu.memory_space<vmem>>, vector<1x32x128xbf16>
    %166 = vector.shape_cast %165 : vector<1x32x128xbf16> to vector<32x128xbf16>
    %cst_60 = arith.constant dense<0.000000e+00> : vector<64x128xf32>
    %167 = tpu.matmul %164, %166, %cst_60 {dimension_numbers = #tpu.dot_dimension_numbers<[1], [0], [0], [1], [0, 0, 1, 1], [], []>} : vector<64x32xbf16>, vector<32x128xbf16>, vector<64x128xf32> -> vector<64x128xf32>
    %c0_61 = arith.constant 0 : index
    %c0_62 = arith.constant 0 : index
    %c0_63 = arith.constant 0 : index
    %168 = vector.load %arg17[%c0_61, %c0_62, %c0_63] : memref<1x1x128xf32, #tpu.memory_space<vmem>>, vector<1x1x128xf32>
    %169 = vector.shape_cast %168 : vector<1x1x128xf32> to vector<1x128xf32>
    %170 = vector.broadcast %169 : vector<1x128xf32> to vector<64x128xf32>
    %171 = arith.addf %167, %170 : vector<64x128xf32>
    %cst_64 = arith.constant 5.000000e-01 : f32
    %172 = vector.broadcast %cst_64 : f32 to vector<64x128xf32>
    %173 = arith.mulf %172, %171 : vector<64x128xf32>
    %cst_65 = arith.constant 4.471500e-02 : f32
    %174 = vector.broadcast %cst_65 : f32 to vector<64x128xf32>
    %175 = arith.mulf %174, %171 : vector<64x128xf32>
    %176 = arith.mulf %175, %171 : vector<64x128xf32>
    %177 = arith.mulf %176, %171 : vector<64x128xf32>
    %178 = arith.addf %171, %177 : vector<64x128xf32>
    %cst_66 = arith.constant 0.797884583 : f32
    %179 = vector.broadcast %cst_66 : f32 to vector<64x128xf32>
    %180 = arith.mulf %179, %178 : vector<64x128xf32>
    %181 = math.tanh %180 : vector<64x128xf32>
    %cst_67 = arith.constant 1.000000e+00 : f32
    %182 = vector.broadcast %cst_67 : f32 to vector<64x128xf32>
    %183 = arith.addf %182, %181 : vector<64x128xf32>
    %184 = arith.mulf %173, %183 : vector<64x128xf32>
    %185 = arith.truncf %184 : vector<64x128xf32> to vector<64x128xbf16>
    %c0_68 = arith.constant 0 : index
    %c0_69 = arith.constant 0 : index
    %c0_70 = arith.constant 0 : index
    %186 = vector.load %arg18[%c0_68, %c0_69, %c0_70] : memref<1x128x32xbf16, #tpu.memory_space<vmem>>, vector<1x128x32xbf16>
    %187 = vector.shape_cast %186 : vector<1x128x32xbf16> to vector<128x32xbf16>
    %cst_71 = arith.constant dense<0.000000e+00> : vector<64x32xf32>
    %188 = tpu.matmul %185, %187, %cst_71 {dimension_numbers = #tpu.dot_dimension_numbers<[1], [0], [0], [1], [0, 0, 1, 1], [], []>} : vector<64x128xbf16>, vector<128x32xbf16>, vector<64x32xf32> -> vector<64x32xf32>
    %c0_72 = arith.constant 0 : index
    %c0_73 = arith.constant 0 : index
    %c0_74 = arith.constant 0 : index
    %189 = vector.load %arg19[%c0_72, %c0_73, %c0_74] : memref<1x1x32xf32, #tpu.memory_space<vmem>>, vector<1x1x32xf32>
    %190 = vector.shape_cast %189 : vector<1x1x32xf32> to vector<1x32xf32>
    %191 = vector.broadcast %190 : vector<1x32xf32> to vector<64x32xf32>
    %192 = arith.addf %188, %191 : vector<64x32xf32>
    %193 = arith.addf %137, %192 : vector<64x32xf32>
    %c0_75 = arith.constant 0 : index
    %c0_76 = arith.constant 0 : index
    %194 = vector.load %arg21[%c0_75, %c0_76] : memref<64x32xf32, #tpu.memory_space<vmem>>, vector<64x32xf32>
    tpu.vector_store %arg21[%c0_75, %c0_76], %193 {strides = array<i32>} : memref<64x32xf32, #tpu.memory_space<vmem>>, vector<64x32xf32>,
    %c1_i32 = arith.constant 1 : i32
    %195 = arith.cmpi eq, %arg1, %c1_i32 : i32
    %196 = arith.extui %195 : i1 to i32
    %c0_i32_77 = arith.constant 0 : i32
    %197 = arith.cmpi ne, %196, %c0_i32_77 : i32
    scf.if %197 {
      %198 = arith.truncf %193 : vector<64x32xf32> to vector<64x32xbf16>
      %c0_78 = arith.constant 0 : index
      %c0_79 = arith.constant 0 : index
      %c0_80 = arith.constant 0 : index
      %199 = vector.load %arg20[%c0_78, %c0_79, %c0_80] : memref<1x64x32xbf16, #tpu.memory_space<vmem>>, vector<1x64x32xbf16>
      %200 = vector.shape_cast %199 : vector<1x64x32xbf16> to vector<64x32xbf16>
      %201 = vector.shape_cast %198 : vector<64x32xbf16> to vector<1x64x32xbf16>
      tpu.vector_store %arg20[%c0_78, %c0_79, %c0_80], %201 {strides = array<i32>} : memref<1x64x32xbf16, #tpu.memory_space<vmem>>, vector<1x64x32xbf16>,
    } else {
    }
    return
  }
  func.func @transform_0(%arg0: i32, %arg1: i32) -> (i32, i32, i32) {
    %c0_i32 = arith.constant 0 : i32
    %c0_i32_0 = arith.constant 0 : i32
    %c0_i32_1 = arith.constant 0 : i32
    return %arg0, %c0_i32, %c0_i32_0 : i32, i32, i32
  }
  func.func @transform_1(%arg0: i32, %arg1: i32) -> (i32, i32) {
    %c0_i32 = arith.constant 0 : i32
    %c0_i32_0 = arith.constant 0 : i32
    %c0_i32_1 = arith.constant 0 : i32
    return %c0_i32, %c0_i32_0 : i32, i32
  }
  func.func @transform_2(%arg0: i32, %arg1: i32) -> (i32, i32) {
    %c0_i32 = arith.constant 0 : i32
    %c0_i32_0 = arith.constant 0 : i32
    %c0_i32_1 = arith.constant 0 : i32
    return %c0_i32, %c0_i32_0 : i32, i32
  }
  func.func @transform_3(%arg0: i32, %arg1: i32) -> (i32, i32) {
    %c0_i32 = arith.constant 0 : i32
    %c0_i32_0 = arith.constant 0 : i32
    %c0_i32_1 = arith.constant 0 : i32
    return %c0_i32, %c0_i32_0 : i32, i32
  }
  func.func @transform_4(%arg0: i32, %arg1: i32) -> (i32, i32) {
    %c0_i32 = arith.constant 0 : i32
    %c0_i32_0 = arith.constant 0 : i32
    %c0_i32_1 = arith.constant 0 : i32
    return %c0_i32, %c0_i32_0 : i32, i32
  }
  func.func @transform_5(%arg0: i32, %arg1: i32) -> (i32, i32) {
    %c0_i32 = arith.constant 0 : i32
    %c0_i32_0 = arith.constant 0 : i32
    %c0_i32_1 = arith.constant 0 : i32
    return %c0_i32, %c0_i32_0 : i32, i32
  }
  func.func @transform_6(%arg0: i32, %arg1: i32) -> (i32, i32, i32) {
    %c0_i32 = arith.constant 0 : i32
    %c0_i32_0 = arith.constant 0 : i32
    %c0_i32_1 = arith.constant 0 : i32
    return %arg1, %c0_i32, %c0_i32_0 : i32, i32, i32
  }
  func.func @transform_7(%arg0: i32, %arg1: i32) -> (i32, i32, i32) {
    %c0_i32 = arith.constant 0 : i32
    %c0_i32_0 = arith.constant 0 : i32
    %c0_i32_1 = arith.constant 0 : i32
    return %arg1, %c0_i32, %c0_i32_0 : i32, i32, i32
  }
  func.func @transform_8(%arg0: i32, %arg1: i32) -> (i32, i32, i32) {
    %c0_i32 = arith.constant 0 : i32
    %c0_i32_0 = arith.constant 0 : i32
    %c0_i32_1 = arith.constant 0 : i32
    return %arg1, %c0_i32, %c0_i32_0 : i32, i32, i32
  }
  func.func @transform_9(%arg0: i32, %arg1: i32) -> (i32, i32, i32) {
    %c0_i32 = arith.constant 0 : i32
    %c0_i32_0 = arith.constant 0 : i32
    %c0_i32_1 = arith.constant 0 : i32
    return %arg1, %c0_i32, %c0_i32_0 : i32, i32, i32
  }
  func.func @transform_10(%arg0: i32, %arg1: i32) -> (i32, i32, i32) {
    %c0_i32 = arith.constant 0 : i32
    %c0_i32_0 = arith.constant 0 : i32
    %c0_i32_1 = arith.constant 0 : i32
    return %arg1, %c0_i32, %c0_i32_0 : i32, i32, i32
  }
  func.func @transform_11(%arg0: i32, %arg1: i32) -> (i32, i32, i32) {
    %c0_i32 = arith.constant 0 : i32
    %c0_i32_0 = arith.constant 0 : i32
    %c0_i32_1 = arith.constant 0 : i32
    return %arg1, %c0_i32, %c0_i32_0 : i32, i32, i32
  }
  func.func @transform_12(%arg0: i32, %arg1: i32) -> (i32, i32, i32) {
    %c0_i32 = arith.constant 0 : i32
    %c0_i32_0 = arith.constant 0 : i32
    %c0_i32_1 = arith.constant 0 : i32
    return %arg1, %c0_i32, %c0_i32_0 : i32, i32, i32
  }
  func.func @transform_13(%arg0: i32, %arg1: i32) -> (i32, i32, i32) {
    %c0_i32 = arith.constant 0 : i32
    %c0_i32_0 = arith.constant 0 : i32
    %c0_i32_1 = arith.constant 0 : i32
    return %arg1, %c0_i32, %c0_i32_0 : i32, i32, i32
  }
  func.func @transform_14(%arg0: i32, %arg1: i32) -> (i32, i32, i32) {
    %c0_i32 = arith.constant 0 : i32
    %c0_i32_0 = arith.constant 0 : i32
    %c0_i32_1 = arith.constant 0 : i32
    return %arg1, %c0_i32, %c0_i32_0 : i32, i32, i32
  }
  func.func @transform_15(%arg0: i32, %arg1: i32) -> (i32, i32, i32) {
    %c0_i32 = arith.constant 0 : i32
    %c0_i32_0 = arith.constant 0 : i32
    %c0_i32_1 = arith.constant 0 : i32
    return %arg1, %c0_i32, %c0_i32_0 : i32, i32, i32
  }
  func.func @transform_16(%arg0: i32, %arg1: i32) -> (i32, i32, i32) {
    %c0_i32 = arith.constant 0 : i32
    %c0_i32_0 = arith.constant 0 : i32
    %c0_i32_1 = arith.constant 0 : i32
    return %arg1, %c0_i32, %c0_i32_0 : i32, i32, i32
  }
  func.func @transform_17(%arg0: i32, %arg1: i32) -> (i32, i32, i32) {
    %c0_i32 = arith.constant 0 : i32
    %c0_i32_0 = arith.constant 0 : i32
    %c0_i32_1 = arith.constant 0 : i32
    return %arg1, %c0_i32, %c0_i32_0 : i32, i32, i32
  }
  func.func @transform_18(%arg0: i32, %arg1: i32) -> (i32, i32, i32) {
    %c0_i32 = arith.constant 0 : i32
    %c0_i32_0 = arith.constant 0 : i32
    %c0_i32_1 = arith.constant 0 : i32
    return %arg0, %c0_i32, %c0_i32_0 : i32, i32, i32
  }
}

module attributes {stable_mosaic.version = 11 : i64} {
  func.func @_level_kernel(%arg0: i32, %arg1: i32, %arg2: memref<1x16x128xbf16, #tpu.memory_space<vmem>>, %arg3: memref<16x64xf32, #tpu.memory_space<vmem>>, %arg4: memref<128x64xbf16, #tpu.memory_space<vmem>>, %arg5: memref<1x64xf32, #tpu.memory_space<vmem>>, %arg6: memref<1x64xf32, #tpu.memory_space<vmem>>, %arg7: memref<1x64xf32, #tpu.memory_space<vmem>>, %arg8: memref<1x1x64xf32, #tpu.memory_space<vmem>>, %arg9: memref<1x1x64xf32, #tpu.memory_space<vmem>>, %arg10: memref<1x64x192xbf16, #tpu.memory_space<vmem>>, %arg11: memref<1x1x192xf32, #tpu.memory_space<vmem>>, %arg12: memref<1x64x64xbf16, #tpu.memory_space<vmem>>, %arg13: memref<1x1x64xf32, #tpu.memory_space<vmem>>, %arg14: memref<1x1x64xf32, #tpu.memory_space<vmem>>, %arg15: memref<1x1x64xf32, #tpu.memory_space<vmem>>, %arg16: memref<1x64x256xbf16, #tpu.memory_space<vmem>>, %arg17: memref<1x1x256xf32, #tpu.memory_space<vmem>>, %arg18: memref<1x256x64xbf16, #tpu.memory_space<vmem>>, %arg19: memref<1x1x64xf32, #tpu.memory_space<vmem>>, %arg20: memref<1x64xf32, #tpu.memory_space<vmem>>, %arg21: memref<1x64xf32, #tpu.memory_space<vmem>>, %arg22: memref<64x128xbf16, #tpu.memory_space<vmem>>, %arg23: memref<1x128xf32, #tpu.memory_space<vmem>>, %arg24: memref<1x1x128xf32, #tpu.memory_space<vmem>>, %arg25: memref<16x64xf32, #tpu.memory_space<vmem>>) attributes {dimension_semantics = [#tpu.dimension_semantics<parallel>, #tpu.dimension_semantics<arbitrary>], iteration_bounds = array<i64: 2, 2>, scalar_prefetch = 0 : i64, scratch_operands = 1 : i64, tpu.core_type = #tpu.core_type<tc>, window_params = [{transform_indices = @transform_0, window_bounds = array<i64: 1, 16, 128>}, {pipeline_mode = #tpu.pipeline_mode<synchronous>, transform_indices = @transform_1, window_bounds = array<i64: 16, 64>}, {pipeline_mode = #tpu.pipeline_mode<synchronous>, transform_indices = @transform_2, window_bounds = array<i64: 128, 64>}, {pipeline_mode = #tpu.pipeline_mode<synchronous>, transform_indices = @transform_3, window_bounds = array<i64: 1, 64>}, {pipeline_mode = #tpu.pipeline_mode<synchronous>, transform_indices = @transform_4, window_bounds = array<i64: 1, 64>}, {pipeline_mode = #tpu.pipeline_mode<synchronous>, transform_indices = @transform_5, window_bounds = array<i64: 1, 64>}, {transform_indices = @transform_6, window_bounds = array<i64: 1, 1, 64>}, {transform_indices = @transform_7, window_bounds = array<i64: 1, 1, 64>}, {transform_indices = @transform_8, window_bounds = array<i64: 1, 64, 192>}, {transform_indices = @transform_9, window_bounds = array<i64: 1, 1, 192>}, {transform_indices = @transform_10, window_bounds = array<i64: 1, 64, 64>}, {transform_indices = @transform_11, window_bounds = array<i64: 1, 1, 64>}, {transform_indices = @transform_12, window_bounds = array<i64: 1, 1, 64>}, {transform_indices = @transform_13, window_bounds = array<i64: 1, 1, 64>}, {transform_indices = @transform_14, window_bounds = array<i64: 1, 64, 256>}, {transform_indices = @transform_15, window_bounds = array<i64: 1, 1, 256>}, {transform_indices = @transform_16, window_bounds = array<i64: 1, 256, 64>}, {transform_indices = @transform_17, window_bounds = array<i64: 1, 1, 64>}, {pipeline_mode = #tpu.pipeline_mode<synchronous>, transform_indices = @transform_18, window_bounds = array<i64: 1, 64>}, {pipeline_mode = #tpu.pipeline_mode<synchronous>, transform_indices = @transform_19, window_bounds = array<i64: 1, 64>}, {pipeline_mode = #tpu.pipeline_mode<synchronous>, transform_indices = @transform_20, window_bounds = array<i64: 64, 128>}, {pipeline_mode = #tpu.pipeline_mode<synchronous>, transform_indices = @transform_21, window_bounds = array<i64: 1, 128>}, {transform_indices = @transform_22, window_bounds = array<i64: 1, 1, 128>}]} {
    %c0_i32 = arith.constant 0 : i32
    %0 = arith.cmpi eq, %arg1, %c0_i32 : i32
    %1 = arith.extui %0 : i1 to i32
    %c0_i32_0 = arith.constant 0 : i32
    %2 = arith.cmpi ne, %1, %c0_i32_0 : i32
    scf.if %2 {
      %c0_98 = arith.constant 0 : index
      %c0_99 = arith.constant 0 : index
      %c0_100 = arith.constant 0 : index
      %290 = vector.load %arg2[%c0_98, %c0_99, %c0_100] : memref<1x16x128xbf16, #tpu.memory_space<vmem>>, vector<1x16x128xbf16>
      %291 = vector.shape_cast %290 : vector<1x16x128xbf16> to vector<16x128xbf16>
      %c0_101 = arith.constant 0 : index
      %c0_102 = arith.constant 0 : index
      %292 = vector.load %arg4[%c0_101, %c0_102] : memref<128x64xbf16, #tpu.memory_space<vmem>>, vector<128x64xbf16>
      %cst_103 = arith.constant dense<0.000000e+00> : vector<16x64xf32>
      %293 = tpu.matmul %291, %292, %cst_103 {dimension_numbers = #tpu.dot_dimension_numbers<[1], [0], [0], [1], [0, 0, 1, 1], [], []>} : vector<16x128xbf16>, vector<128x64xbf16>, vector<16x64xf32> -> vector<16x64xf32>
      %c0_104 = arith.constant 0 : index
      %c0_105 = arith.constant 0 : index
      %294 = vector.load %arg5[%c0_104, %c0_105] : memref<1x64xf32, #tpu.memory_space<vmem>>, vector<1x64xf32>
      %295 = vector.broadcast %294 : vector<1x64xf32> to vector<16x64xf32>
      %296 = arith.addf %293, %295 : vector<16x64xf32>
      %c0_106 = arith.constant 0 : index
      %c0_107 = arith.constant 0 : index
      %297 = vector.load %arg6[%c0_106, %c0_107] : memref<1x64xf32, #tpu.memory_space<vmem>>, vector<1x64xf32>
      %c0_108 = arith.constant 0 : index
      %c0_109 = arith.constant 0 : index
      %298 = vector.load %arg7[%c0_108, %c0_109] : memref<1x64xf32, #tpu.memory_space<vmem>>, vector<1x64xf32>
      %cst_110 = arith.constant dense<0.000000e+00> : vector<16xf32>
      %299 = vector.multi_reduction <add>, %296, %cst_110 [1] : vector<16x64xf32> to vector<16xf32>
      %300 = vector.shape_cast %299 : vector<16xf32> to vector<16x1xf32>
      %cst_111 = arith.constant 6.400000e+01 : f32
      %301 = vector.broadcast %cst_111 : f32 to vector<16x1xf32>
      %302 = arith.divf %300, %301 : vector<16x1xf32>
      %303 = vector.broadcast %302 : vector<16x1xf32> to vector<16x64xf32>
      %304 = arith.subf %296, %303 : vector<16x64xf32>
      %305 = arith.mulf %304, %304 : vector<16x64xf32>
      %cst_112 = arith.constant dense<0.000000e+00> : vector<16xf32>
      %306 = vector.multi_reduction <add>, %305, %cst_112 [1] : vector<16x64xf32> to vector<16xf32>
      %307 = vector.shape_cast %306 : vector<16xf32> to vector<16x1xf32>
      %cst_113 = arith.constant 6.400000e+01 : f32
      %308 = vector.broadcast %cst_113 : f32 to vector<16x1xf32>
      %309 = arith.divf %307, %308 : vector<16x1xf32>
      %310 = vector.broadcast %302 : vector<16x1xf32> to vector<16x64xf32>
      %311 = arith.subf %296, %310 : vector<16x64xf32>
      %cst_114 = arith.constant 9.99999997E-7 : f32
      %312 = vector.broadcast %cst_114 : f32 to vector<16x1xf32>
      %313 = arith.addf %309, %312 : vector<16x1xf32>
      %314 = math.rsqrt %313 : vector<16x1xf32>
      %315 = vector.broadcast %314 : vector<16x1xf32> to vector<16x64xf32>
      %316 = arith.mulf %311, %315 : vector<16x64xf32>
      %317 = vector.broadcast %297 : vector<1x64xf32> to vector<16x64xf32>
      %318 = arith.mulf %316, %317 : vector<16x64xf32>
      %319 = vector.broadcast %298 : vector<1x64xf32> to vector<16x64xf32>
      %320 = arith.addf %318, %319 : vector<16x64xf32>
      %c0_115 = arith.constant 0 : index
      %c0_116 = arith.constant 0 : index
      %321 = vector.load %arg3[%c0_115, %c0_116] : memref<16x64xf32, #tpu.memory_space<vmem>>, vector<16x64xf32>
      %322 = arith.addf %320, %321 : vector<16x64xf32>
      %c0_117 = arith.constant 0 : index
      %c0_118 = arith.constant 0 : index
      %323 = vector.load %arg25[%c0_117, %c0_118] : memref<16x64xf32, #tpu.memory_space<vmem>>, vector<16x64xf32>
      tpu.vector_store %arg25[%c0_117, %c0_118], %322 {strides = array<i32>} : memref<16x64xf32, #tpu.memory_space<vmem>>, vector<16x64xf32>,
    } else {
    }
    %c0 = arith.constant 0 : index
    %c0_1 = arith.constant 0 : index
    %3 = vector.load %arg25[%c0, %c0_1] : memref<16x64xf32, #tpu.memory_space<vmem>>, vector<16x64xf32>
    %c0_2 = arith.constant 0 : index
    %c0_3 = arith.constant 0 : index
    %c0_4 = arith.constant 0 : index
    %4 = vector.load %arg8[%c0_2, %c0_3, %c0_4] : memref<1x1x64xf32, #tpu.memory_space<vmem>>, vector<1x1x64xf32>
    %5 = vector.shape_cast %4 : vector<1x1x64xf32> to vector<1x64xf32>
    %c0_5 = arith.constant 0 : index
    %c0_6 = arith.constant 0 : index
    %c0_7 = arith.constant 0 : index
    %6 = vector.load %arg9[%c0_5, %c0_6, %c0_7] : memref<1x1x64xf32, #tpu.memory_space<vmem>>, vector<1x1x64xf32>
    %7 = vector.shape_cast %6 : vector<1x1x64xf32> to vector<1x64xf32>
    %cst = arith.constant dense<0.000000e+00> : vector<16xf32>
    %8 = vector.multi_reduction <add>, %3, %cst [1] : vector<16x64xf32> to vector<16xf32>
    %9 = vector.shape_cast %8 : vector<16xf32> to vector<16x1xf32>
    %cst_8 = arith.constant 6.400000e+01 : f32
    %10 = vector.broadcast %cst_8 : f32 to vector<16x1xf32>
    %11 = arith.divf %9, %10 : vector<16x1xf32>
    %12 = vector.broadcast %11 : vector<16x1xf32> to vector<16x64xf32>
    %13 = arith.subf %3, %12 : vector<16x64xf32>
    %14 = arith.mulf %13, %13 : vector<16x64xf32>
    %cst_9 = arith.constant dense<0.000000e+00> : vector<16xf32>
    %15 = vector.multi_reduction <add>, %14, %cst_9 [1] : vector<16x64xf32> to vector<16xf32>
    %16 = vector.shape_cast %15 : vector<16xf32> to vector<16x1xf32>
    %cst_10 = arith.constant 6.400000e+01 : f32
    %17 = vector.broadcast %cst_10 : f32 to vector<16x1xf32>
    %18 = arith.divf %16, %17 : vector<16x1xf32>
    %19 = vector.broadcast %11 : vector<16x1xf32> to vector<16x64xf32>
    %20 = arith.subf %3, %19 : vector<16x64xf32>
    %cst_11 = arith.constant 9.99999997E-7 : f32
    %21 = vector.broadcast %cst_11 : f32 to vector<16x1xf32>
    %22 = arith.addf %18, %21 : vector<16x1xf32>
    %23 = math.rsqrt %22 : vector<16x1xf32>
    %24 = vector.broadcast %23 : vector<16x1xf32> to vector<16x64xf32>
    %25 = arith.mulf %20, %24 : vector<16x64xf32>
    %26 = vector.broadcast %5 : vector<1x64xf32> to vector<16x64xf32>
    %27 = arith.mulf %25, %26 : vector<16x64xf32>
    %28 = vector.broadcast %7 : vector<1x64xf32> to vector<16x64xf32>
    %29 = arith.addf %27, %28 : vector<16x64xf32>
    %30 = arith.truncf %29 : vector<16x64xf32> to vector<16x64xbf16>
    %c0_12 = arith.constant 0 : index
    %c0_13 = arith.constant 0 : index
    %c0_14 = arith.constant 0 : index
    %31 = vector.load %arg10[%c0_12, %c0_13, %c0_14] : memref<1x64x192xbf16, #tpu.memory_space<vmem>>, vector<1x64x192xbf16>
    %32 = vector.shape_cast %31 : vector<1x64x192xbf16> to vector<64x192xbf16>
    %cst_15 = arith.constant dense<0.000000e+00> : vector<16x192xf32>
    %33 = tpu.matmul %30, %32, %cst_15 {dimension_numbers = #tpu.dot_dimension_numbers<[1], [0], [0], [1], [0, 0, 1, 1], [], []>} : vector<16x64xbf16>, vector<64x192xbf16>, vector<16x192xf32> -> vector<16x192xf32>
    %c0_16 = arith.constant 0 : index
    %c0_17 = arith.constant 0 : index
    %c0_18 = arith.constant 0 : index
    %34 = vector.load %arg11[%c0_16, %c0_17, %c0_18] : memref<1x1x192xf32, #tpu.memory_space<vmem>>, vector<1x1x192xf32>
    %35 = vector.shape_cast %34 : vector<1x1x192xf32> to vector<1x192xf32>
    %36 = vector.broadcast %35 : vector<1x192xf32> to vector<16x192xf32>
    %37 = arith.addf %33, %36 : vector<16x192xf32>
    %c0_19 = arith.constant 0 : index
    %c0_20 = arith.constant 0 : index
    %c0_21 = arith.constant 0 : index
    %38 = vector.load %arg12[%c0_19, %c0_20, %c0_21] : memref<1x64x64xbf16, #tpu.memory_space<vmem>>, vector<1x64x64xbf16>
    %39 = vector.shape_cast %38 : vector<1x64x64xbf16> to vector<64x64xbf16>
    %cst_22 = arith.constant 0.000000e+00 : f32
    %40 = vector.broadcast %cst_22 : f32 to vector<16x64xf32>
    %41 = vector.extract_strided_slice %37 {offsets = [0, 0], sizes = [16, 8], strides = [1, 1]} : vector<16x192xf32> to vector<16x8xf32>
    %42 = arith.truncf %41 : vector<16x8xf32> to vector<16x8xbf16>
    %43 = vector.extract_strided_slice %37 {offsets = [0, 64], sizes = [16, 8], strides = [1, 1]} : vector<16x192xf32> to vector<16x8xf32>
    %44 = arith.truncf %43 : vector<16x8xf32> to vector<16x8xbf16>
    %45 = vector.extract_strided_slice %37 {offsets = [0, 128], sizes = [16, 8], strides = [1, 1]} : vector<16x192xf32> to vector<16x8xf32>
    %46 = arith.truncf %45 : vector<16x8xf32> to vector<16x8xbf16>
    %cst_23 = arith.constant dense<0.000000e+00> : vector<16x16xf32>
    %47 = tpu.matmul %42, %44, %cst_23 {dimension_numbers = #tpu.dot_dimension_numbers<[1], [1], [0], [0], [0, 0, 1, 0], [], []>} : vector<16x8xbf16>, vector<16x8xbf16>, vector<16x16xf32> -> vector<16x16xf32>
    %cst_24 = arith.constant dense<0xFF800000> : vector<16xf32>
    %48 = vector.multi_reduction <maximumf>, %47, %cst_24 [1] : vector<16x16xf32> to vector<16xf32>
    %49 = vector.shape_cast %48 : vector<16xf32> to vector<16x1xf32>
    %50 = vector.broadcast %49 : vector<16x1xf32> to vector<16x16xf32>
    %51 = arith.subf %47, %50 : vector<16x16xf32>
    %52 = math.exp %51 : vector<16x16xf32>
    %cst_25 = arith.constant dense<0.000000e+00> : vector<16xf32>
    %53 = vector.multi_reduction <add>, %52, %cst_25 [1] : vector<16x16xf32> to vector<16xf32>
    %54 = vector.shape_cast %53 : vector<16xf32> to vector<16x1xf32>
    %55 = tpu.reciprocal %54 {approx = true} : vector<16x1xf32> -> vector<16x1xf32>
    %56 = vector.broadcast %55 : vector<16x1xf32> to vector<16x16xf32>
    %57 = arith.mulf %52, %56 : vector<16x16xf32>
    %58 = arith.truncf %57 : vector<16x16xf32> to vector<16x16xbf16>
    %cst_26 = arith.constant dense<0.000000e+00> : vector<16x8xf32>
    %59 = tpu.matmul %58, %46, %cst_26 {dimension_numbers = #tpu.dot_dimension_numbers<[1], [0], [0], [1], [0, 0, 1, 1], [], []>} : vector<16x16xbf16>, vector<16x8xbf16>, vector<16x8xf32> -> vector<16x8xf32>
    %60 = arith.truncf %59 : vector<16x8xf32> to vector<16x8xbf16>
    %61 = vector.extract_strided_slice %39 {offsets = [0, 0], sizes = [8, 64], strides = [1, 1]} : vector<64x64xbf16> to vector<8x64xbf16>
    %cst_27 = arith.constant dense<0.000000e+00> : vector<16x64xf32>
    %62 = tpu.matmul %60, %61, %cst_27 {dimension_numbers = #tpu.dot_dimension_numbers<[1], [0], [0], [1], [0, 0, 1, 1], [], []>} : vector<16x8xbf16>, vector<8x64xbf16>, vector<16x64xf32> -> vector<16x64xf32>
    %63 = arith.addf %40, %62 : vector<16x64xf32>
    %64 = vector.extract_strided_slice %37 {offsets = [0, 8], sizes = [16, 8], strides = [1, 1]} : vector<16x192xf32> to vector<16x8xf32>
    %65 = arith.truncf %64 : vector<16x8xf32> to vector<16x8xbf16>
    %66 = vector.extract_strided_slice %37 {offsets = [0, 72], sizes = [16, 8], strides = [1, 1]} : vector<16x192xf32> to vector<16x8xf32>
    %67 = arith.truncf %66 : vector<16x8xf32> to vector<16x8xbf16>
    %68 = vector.extract_strided_slice %37 {offsets = [0, 136], sizes = [16, 8], strides = [1, 1]} : vector<16x192xf32> to vector<16x8xf32>
    %69 = arith.truncf %68 : vector<16x8xf32> to vector<16x8xbf16>
    %cst_28 = arith.constant dense<0.000000e+00> : vector<16x16xf32>
    %70 = tpu.matmul %65, %67, %cst_28 {dimension_numbers = #tpu.dot_dimension_numbers<[1], [1], [0], [0], [0, 0, 1, 0], [], []>} : vector<16x8xbf16>, vector<16x8xbf16>, vector<16x16xf32> -> vector<16x16xf32>
    %cst_29 = arith.constant dense<0xFF800000> : vector<16xf32>
    %71 = vector.multi_reduction <maximumf>, %70, %cst_29 [1] : vector<16x16xf32> to vector<16xf32>
    %72 = vector.shape_cast %71 : vector<16xf32> to vector<16x1xf32>
    %73 = vector.broadcast %72 : vector<16x1xf32> to vector<16x16xf32>
    %74 = arith.subf %70, %73 : vector<16x16xf32>
    %75 = math.exp %74 : vector<16x16xf32>
    %cst_30 = arith.constant dense<0.000000e+00> : vector<16xf32>
    %76 = vector.multi_reduction <add>, %75, %cst_30 [1] : vector<16x16xf32> to vector<16xf32>
    %77 = vector.shape_cast %76 : vector<16xf32> to vector<16x1xf32>
    %78 = tpu.reciprocal %77 {approx = true} : vector<16x1xf32> -> vector<16x1xf32>
    %79 = vector.broadcast %78 : vector<16x1xf32> to vector<16x16xf32>
    %80 = arith.mulf %75, %79 : vector<16x16xf32>
    %81 = arith.truncf %80 : vector<16x16xf32> to vector<16x16xbf16>
    %cst_31 = arith.constant dense<0.000000e+00> : vector<16x8xf32>
    %82 = tpu.matmul %81, %69, %cst_31 {dimension_numbers = #tpu.dot_dimension_numbers<[1], [0], [0], [1], [0, 0, 1, 1], [], []>} : vector<16x16xbf16>, vector<16x8xbf16>, vector<16x8xf32> -> vector<16x8xf32>
    %83 = arith.truncf %82 : vector<16x8xf32> to vector<16x8xbf16>
    %84 = vector.extract_strided_slice %39 {offsets = [8, 0], sizes = [8, 64], strides = [1, 1]} : vector<64x64xbf16> to vector<8x64xbf16>
    %cst_32 = arith.constant dense<0.000000e+00> : vector<16x64xf32>
    %85 = tpu.matmul %83, %84, %cst_32 {dimension_numbers = #tpu.dot_dimension_numbers<[1], [0], [0], [1], [0, 0, 1, 1], [], []>} : vector<16x8xbf16>, vector<8x64xbf16>, vector<16x64xf32> -> vector<16x64xf32>
    %86 = arith.addf %63, %85 : vector<16x64xf32>
    %87 = vector.extract_strided_slice %37 {offsets = [0, 16], sizes = [16, 8], strides = [1, 1]} : vector<16x192xf32> to vector<16x8xf32>
    %88 = arith.truncf %87 : vector<16x8xf32> to vector<16x8xbf16>
    %89 = vector.extract_strided_slice %37 {offsets = [0, 80], sizes = [16, 8], strides = [1, 1]} : vector<16x192xf32> to vector<16x8xf32>
    %90 = arith.truncf %89 : vector<16x8xf32> to vector<16x8xbf16>
    %91 = vector.extract_strided_slice %37 {offsets = [0, 144], sizes = [16, 8], strides = [1, 1]} : vector<16x192xf32> to vector<16x8xf32>
    %92 = arith.truncf %91 : vector<16x8xf32> to vector<16x8xbf16>
    %cst_33 = arith.constant dense<0.000000e+00> : vector<16x16xf32>
    %93 = tpu.matmul %88, %90, %cst_33 {dimension_numbers = #tpu.dot_dimension_numbers<[1], [1], [0], [0], [0, 0, 1, 0], [], []>} : vector<16x8xbf16>, vector<16x8xbf16>, vector<16x16xf32> -> vector<16x16xf32>
    %cst_34 = arith.constant dense<0xFF800000> : vector<16xf32>
    %94 = vector.multi_reduction <maximumf>, %93, %cst_34 [1] : vector<16x16xf32> to vector<16xf32>
    %95 = vector.shape_cast %94 : vector<16xf32> to vector<16x1xf32>
    %96 = vector.broadcast %95 : vector<16x1xf32> to vector<16x16xf32>
    %97 = arith.subf %93, %96 : vector<16x16xf32>
    %98 = math.exp %97 : vector<16x16xf32>
    %cst_35 = arith.constant dense<0.000000e+00> : vector<16xf32>
    %99 = vector.multi_reduction <add>, %98, %cst_35 [1] : vector<16x16xf32> to vector<16xf32>
    %100 = vector.shape_cast %99 : vector<16xf32> to vector<16x1xf32>
    %101 = tpu.reciprocal %100 {approx = true} : vector<16x1xf32> -> vector<16x1xf32>
    %102 = vector.broadcast %101 : vector<16x1xf32> to vector<16x16xf32>
    %103 = arith.mulf %98, %102 : vector<16x16xf32>
    %104 = arith.truncf %103 : vector<16x16xf32> to vector<16x16xbf16>
    %cst_36 = arith.constant dense<0.000000e+00> : vector<16x8xf32>
    %105 = tpu.matmul %104, %92, %cst_36 {dimension_numbers = #tpu.dot_dimension_numbers<[1], [0], [0], [1], [0, 0, 1, 1], [], []>} : vector<16x16xbf16>, vector<16x8xbf16>, vector<16x8xf32> -> vector<16x8xf32>
    %106 = arith.truncf %105 : vector<16x8xf32> to vector<16x8xbf16>
    %107 = vector.extract_strided_slice %39 {offsets = [16, 0], sizes = [8, 64], strides = [1, 1]} : vector<64x64xbf16> to vector<8x64xbf16>
    %cst_37 = arith.constant dense<0.000000e+00> : vector<16x64xf32>
    %108 = tpu.matmul %106, %107, %cst_37 {dimension_numbers = #tpu.dot_dimension_numbers<[1], [0], [0], [1], [0, 0, 1, 1], [], []>} : vector<16x8xbf16>, vector<8x64xbf16>, vector<16x64xf32> -> vector<16x64xf32>
    %109 = arith.addf %86, %108 : vector<16x64xf32>
    %110 = vector.extract_strided_slice %37 {offsets = [0, 24], sizes = [16, 8], strides = [1, 1]} : vector<16x192xf32> to vector<16x8xf32>
    %111 = arith.truncf %110 : vector<16x8xf32> to vector<16x8xbf16>
    %112 = vector.extract_strided_slice %37 {offsets = [0, 88], sizes = [16, 8], strides = [1, 1]} : vector<16x192xf32> to vector<16x8xf32>
    %113 = arith.truncf %112 : vector<16x8xf32> to vector<16x8xbf16>
    %114 = vector.extract_strided_slice %37 {offsets = [0, 152], sizes = [16, 8], strides = [1, 1]} : vector<16x192xf32> to vector<16x8xf32>
    %115 = arith.truncf %114 : vector<16x8xf32> to vector<16x8xbf16>
    %cst_38 = arith.constant dense<0.000000e+00> : vector<16x16xf32>
    %116 = tpu.matmul %111, %113, %cst_38 {dimension_numbers = #tpu.dot_dimension_numbers<[1], [1], [0], [0], [0, 0, 1, 0], [], []>} : vector<16x8xbf16>, vector<16x8xbf16>, vector<16x16xf32> -> vector<16x16xf32>
    %cst_39 = arith.constant dense<0xFF800000> : vector<16xf32>
    %117 = vector.multi_reduction <maximumf>, %116, %cst_39 [1] : vector<16x16xf32> to vector<16xf32>
    %118 = vector.shape_cast %117 : vector<16xf32> to vector<16x1xf32>
    %119 = vector.broadcast %118 : vector<16x1xf32> to vector<16x16xf32>
    %120 = arith.subf %116, %119 : vector<16x16xf32>
    %121 = math.exp %120 : vector<16x16xf32>
    %cst_40 = arith.constant dense<0.000000e+00> : vector<16xf32>
    %122 = vector.multi_reduction <add>, %121, %cst_40 [1] : vector<16x16xf32> to vector<16xf32>
    %123 = vector.shape_cast %122 : vector<16xf32> to vector<16x1xf32>
    %124 = tpu.reciprocal %123 {approx = true} : vector<16x1xf32> -> vector<16x1xf32>
    %125 = vector.broadcast %124 : vector<16x1xf32> to vector<16x16xf32>
    %126 = arith.mulf %121, %125 : vector<16x16xf32>
    %127 = arith.truncf %126 : vector<16x16xf32> to vector<16x16xbf16>
    %cst_41 = arith.constant dense<0.000000e+00> : vector<16x8xf32>
    %128 = tpu.matmul %127, %115, %cst_41 {dimension_numbers = #tpu.dot_dimension_numbers<[1], [0], [0], [1], [0, 0, 1, 1], [], []>} : vector<16x16xbf16>, vector<16x8xbf16>, vector<16x8xf32> -> vector<16x8xf32>
    %129 = arith.truncf %128 : vector<16x8xf32> to vector<16x8xbf16>
    %130 = vector.extract_strided_slice %39 {offsets = [24, 0], sizes = [8, 64], strides = [1, 1]} : vector<64x64xbf16> to vector<8x64xbf16>
    %cst_42 = arith.constant dense<0.000000e+00> : vector<16x64xf32>
    %131 = tpu.matmul %129, %130, %cst_42 {dimension_numbers = #tpu.dot_dimension_numbers<[1], [0], [0], [1], [0, 0, 1, 1], [], []>} : vector<16x8xbf16>, vector<8x64xbf16>, vector<16x64xf32> -> vector<16x64xf32>
    %132 = arith.addf %109, %131 : vector<16x64xf32>
    %133 = vector.extract_strided_slice %37 {offsets = [0, 32], sizes = [16, 8], strides = [1, 1]} : vector<16x192xf32> to vector<16x8xf32>
    %134 = arith.truncf %133 : vector<16x8xf32> to vector<16x8xbf16>
    %135 = vector.extract_strided_slice %37 {offsets = [0, 96], sizes = [16, 8], strides = [1, 1]} : vector<16x192xf32> to vector<16x8xf32>
    %136 = arith.truncf %135 : vector<16x8xf32> to vector<16x8xbf16>
    %137 = vector.extract_strided_slice %37 {offsets = [0, 160], sizes = [16, 8], strides = [1, 1]} : vector<16x192xf32> to vector<16x8xf32>
    %138 = arith.truncf %137 : vector<16x8xf32> to vector<16x8xbf16>
    %cst_43 = arith.constant dense<0.000000e+00> : vector<16x16xf32>
    %139 = tpu.matmul %134, %136, %cst_43 {dimension_numbers = #tpu.dot_dimension_numbers<[1], [1], [0], [0], [0, 0, 1, 0], [], []>} : vector<16x8xbf16>, vector<16x8xbf16>, vector<16x16xf32> -> vector<16x16xf32>
    %cst_44 = arith.constant dense<0xFF800000> : vector<16xf32>
    %140 = vector.multi_reduction <maximumf>, %139, %cst_44 [1] : vector<16x16xf32> to vector<16xf32>
    %141 = vector.shape_cast %140 : vector<16xf32> to vector<16x1xf32>
    %142 = vector.broadcast %141 : vector<16x1xf32> to vector<16x16xf32>
    %143 = arith.subf %139, %142 : vector<16x16xf32>
    %144 = math.exp %143 : vector<16x16xf32>
    %cst_45 = arith.constant dense<0.000000e+00> : vector<16xf32>
    %145 = vector.multi_reduction <add>, %144, %cst_45 [1] : vector<16x16xf32> to vector<16xf32>
    %146 = vector.shape_cast %145 : vector<16xf32> to vector<16x1xf32>
    %147 = tpu.reciprocal %146 {approx = true} : vector<16x1xf32> -> vector<16x1xf32>
    %148 = vector.broadcast %147 : vector<16x1xf32> to vector<16x16xf32>
    %149 = arith.mulf %144, %148 : vector<16x16xf32>
    %150 = arith.truncf %149 : vector<16x16xf32> to vector<16x16xbf16>
    %cst_46 = arith.constant dense<0.000000e+00> : vector<16x8xf32>
    %151 = tpu.matmul %150, %138, %cst_46 {dimension_numbers = #tpu.dot_dimension_numbers<[1], [0], [0], [1], [0, 0, 1, 1], [], []>} : vector<16x16xbf16>, vector<16x8xbf16>, vector<16x8xf32> -> vector<16x8xf32>
    %152 = arith.truncf %151 : vector<16x8xf32> to vector<16x8xbf16>
    %153 = vector.extract_strided_slice %39 {offsets = [32, 0], sizes = [8, 64], strides = [1, 1]} : vector<64x64xbf16> to vector<8x64xbf16>
    %cst_47 = arith.constant dense<0.000000e+00> : vector<16x64xf32>
    %154 = tpu.matmul %152, %153, %cst_47 {dimension_numbers = #tpu.dot_dimension_numbers<[1], [0], [0], [1], [0, 0, 1, 1], [], []>} : vector<16x8xbf16>, vector<8x64xbf16>, vector<16x64xf32> -> vector<16x64xf32>
    %155 = arith.addf %132, %154 : vector<16x64xf32>
    %156 = vector.extract_strided_slice %37 {offsets = [0, 40], sizes = [16, 8], strides = [1, 1]} : vector<16x192xf32> to vector<16x8xf32>
    %157 = arith.truncf %156 : vector<16x8xf32> to vector<16x8xbf16>
    %158 = vector.extract_strided_slice %37 {offsets = [0, 104], sizes = [16, 8], strides = [1, 1]} : vector<16x192xf32> to vector<16x8xf32>
    %159 = arith.truncf %158 : vector<16x8xf32> to vector<16x8xbf16>
    %160 = vector.extract_strided_slice %37 {offsets = [0, 168], sizes = [16, 8], strides = [1, 1]} : vector<16x192xf32> to vector<16x8xf32>
    %161 = arith.truncf %160 : vector<16x8xf32> to vector<16x8xbf16>
    %cst_48 = arith.constant dense<0.000000e+00> : vector<16x16xf32>
    %162 = tpu.matmul %157, %159, %cst_48 {dimension_numbers = #tpu.dot_dimension_numbers<[1], [1], [0], [0], [0, 0, 1, 0], [], []>} : vector<16x8xbf16>, vector<16x8xbf16>, vector<16x16xf32> -> vector<16x16xf32>
    %cst_49 = arith.constant dense<0xFF800000> : vector<16xf32>
    %163 = vector.multi_reduction <maximumf>, %162, %cst_49 [1] : vector<16x16xf32> to vector<16xf32>
    %164 = vector.shape_cast %163 : vector<16xf32> to vector<16x1xf32>
    %165 = vector.broadcast %164 : vector<16x1xf32> to vector<16x16xf32>
    %166 = arith.subf %162, %165 : vector<16x16xf32>
    %167 = math.exp %166 : vector<16x16xf32>
    %cst_50 = arith.constant dense<0.000000e+00> : vector<16xf32>
    %168 = vector.multi_reduction <add>, %167, %cst_50 [1] : vector<16x16xf32> to vector<16xf32>
    %169 = vector.shape_cast %168 : vector<16xf32> to vector<16x1xf32>
    %170 = tpu.reciprocal %169 {approx = true} : vector<16x1xf32> -> vector<16x1xf32>
    %171 = vector.broadcast %170 : vector<16x1xf32> to vector<16x16xf32>
    %172 = arith.mulf %167, %171 : vector<16x16xf32>
    %173 = arith.truncf %172 : vector<16x16xf32> to vector<16x16xbf16>
    %cst_51 = arith.constant dense<0.000000e+00> : vector<16x8xf32>
    %174 = tpu.matmul %173, %161, %cst_51 {dimension_numbers = #tpu.dot_dimension_numbers<[1], [0], [0], [1], [0, 0, 1, 1], [], []>} : vector<16x16xbf16>, vector<16x8xbf16>, vector<16x8xf32> -> vector<16x8xf32>
    %175 = arith.truncf %174 : vector<16x8xf32> to vector<16x8xbf16>
    %176 = vector.extract_strided_slice %39 {offsets = [40, 0], sizes = [8, 64], strides = [1, 1]} : vector<64x64xbf16> to vector<8x64xbf16>
    %cst_52 = arith.constant dense<0.000000e+00> : vector<16x64xf32>
    %177 = tpu.matmul %175, %176, %cst_52 {dimension_numbers = #tpu.dot_dimension_numbers<[1], [0], [0], [1], [0, 0, 1, 1], [], []>} : vector<16x8xbf16>, vector<8x64xbf16>, vector<16x64xf32> -> vector<16x64xf32>
    %178 = arith.addf %155, %177 : vector<16x64xf32>
    %179 = vector.extract_strided_slice %37 {offsets = [0, 48], sizes = [16, 8], strides = [1, 1]} : vector<16x192xf32> to vector<16x8xf32>
    %180 = arith.truncf %179 : vector<16x8xf32> to vector<16x8xbf16>
    %181 = vector.extract_strided_slice %37 {offsets = [0, 112], sizes = [16, 8], strides = [1, 1]} : vector<16x192xf32> to vector<16x8xf32>
    %182 = arith.truncf %181 : vector<16x8xf32> to vector<16x8xbf16>
    %183 = vector.extract_strided_slice %37 {offsets = [0, 176], sizes = [16, 8], strides = [1, 1]} : vector<16x192xf32> to vector<16x8xf32>
    %184 = arith.truncf %183 : vector<16x8xf32> to vector<16x8xbf16>
    %cst_53 = arith.constant dense<0.000000e+00> : vector<16x16xf32>
    %185 = tpu.matmul %180, %182, %cst_53 {dimension_numbers = #tpu.dot_dimension_numbers<[1], [1], [0], [0], [0, 0, 1, 0], [], []>} : vector<16x8xbf16>, vector<16x8xbf16>, vector<16x16xf32> -> vector<16x16xf32>
    %cst_54 = arith.constant dense<0xFF800000> : vector<16xf32>
    %186 = vector.multi_reduction <maximumf>, %185, %cst_54 [1] : vector<16x16xf32> to vector<16xf32>
    %187 = vector.shape_cast %186 : vector<16xf32> to vector<16x1xf32>
    %188 = vector.broadcast %187 : vector<16x1xf32> to vector<16x16xf32>
    %189 = arith.subf %185, %188 : vector<16x16xf32>
    %190 = math.exp %189 : vector<16x16xf32>
    %cst_55 = arith.constant dense<0.000000e+00> : vector<16xf32>
    %191 = vector.multi_reduction <add>, %190, %cst_55 [1] : vector<16x16xf32> to vector<16xf32>
    %192 = vector.shape_cast %191 : vector<16xf32> to vector<16x1xf32>
    %193 = tpu.reciprocal %192 {approx = true} : vector<16x1xf32> -> vector<16x1xf32>
    %194 = vector.broadcast %193 : vector<16x1xf32> to vector<16x16xf32>
    %195 = arith.mulf %190, %194 : vector<16x16xf32>
    %196 = arith.truncf %195 : vector<16x16xf32> to vector<16x16xbf16>
    %cst_56 = arith.constant dense<0.000000e+00> : vector<16x8xf32>
    %197 = tpu.matmul %196, %184, %cst_56 {dimension_numbers = #tpu.dot_dimension_numbers<[1], [0], [0], [1], [0, 0, 1, 1], [], []>} : vector<16x16xbf16>, vector<16x8xbf16>, vector<16x8xf32> -> vector<16x8xf32>
    %198 = arith.truncf %197 : vector<16x8xf32> to vector<16x8xbf16>
    %199 = vector.extract_strided_slice %39 {offsets = [48, 0], sizes = [8, 64], strides = [1, 1]} : vector<64x64xbf16> to vector<8x64xbf16>
    %cst_57 = arith.constant dense<0.000000e+00> : vector<16x64xf32>
    %200 = tpu.matmul %198, %199, %cst_57 {dimension_numbers = #tpu.dot_dimension_numbers<[1], [0], [0], [1], [0, 0, 1, 1], [], []>} : vector<16x8xbf16>, vector<8x64xbf16>, vector<16x64xf32> -> vector<16x64xf32>
    %201 = arith.addf %178, %200 : vector<16x64xf32>
    %202 = vector.extract_strided_slice %37 {offsets = [0, 56], sizes = [16, 8], strides = [1, 1]} : vector<16x192xf32> to vector<16x8xf32>
    %203 = arith.truncf %202 : vector<16x8xf32> to vector<16x8xbf16>
    %204 = vector.extract_strided_slice %37 {offsets = [0, 120], sizes = [16, 8], strides = [1, 1]} : vector<16x192xf32> to vector<16x8xf32>
    %205 = arith.truncf %204 : vector<16x8xf32> to vector<16x8xbf16>
    %206 = vector.extract_strided_slice %37 {offsets = [0, 184], sizes = [16, 8], strides = [1, 1]} : vector<16x192xf32> to vector<16x8xf32>
    %207 = arith.truncf %206 : vector<16x8xf32> to vector<16x8xbf16>
    %cst_58 = arith.constant dense<0.000000e+00> : vector<16x16xf32>
    %208 = tpu.matmul %203, %205, %cst_58 {dimension_numbers = #tpu.dot_dimension_numbers<[1], [1], [0], [0], [0, 0, 1, 0], [], []>} : vector<16x8xbf16>, vector<16x8xbf16>, vector<16x16xf32> -> vector<16x16xf32>
    %cst_59 = arith.constant dense<0xFF800000> : vector<16xf32>
    %209 = vector.multi_reduction <maximumf>, %208, %cst_59 [1] : vector<16x16xf32> to vector<16xf32>
    %210 = vector.shape_cast %209 : vector<16xf32> to vector<16x1xf32>
    %211 = vector.broadcast %210 : vector<16x1xf32> to vector<16x16xf32>
    %212 = arith.subf %208, %211 : vector<16x16xf32>
    %213 = math.exp %212 : vector<16x16xf32>
    %cst_60 = arith.constant dense<0.000000e+00> : vector<16xf32>
    %214 = vector.multi_reduction <add>, %213, %cst_60 [1] : vector<16x16xf32> to vector<16xf32>
    %215 = vector.shape_cast %214 : vector<16xf32> to vector<16x1xf32>
    %216 = tpu.reciprocal %215 {approx = true} : vector<16x1xf32> -> vector<16x1xf32>
    %217 = vector.broadcast %216 : vector<16x1xf32> to vector<16x16xf32>
    %218 = arith.mulf %213, %217 : vector<16x16xf32>
    %219 = arith.truncf %218 : vector<16x16xf32> to vector<16x16xbf16>
    %cst_61 = arith.constant dense<0.000000e+00> : vector<16x8xf32>
    %220 = tpu.matmul %219, %207, %cst_61 {dimension_numbers = #tpu.dot_dimension_numbers<[1], [0], [0], [1], [0, 0, 1, 1], [], []>} : vector<16x16xbf16>, vector<16x8xbf16>, vector<16x8xf32> -> vector<16x8xf32>
    %221 = arith.truncf %220 : vector<16x8xf32> to vector<16x8xbf16>
    %222 = vector.extract_strided_slice %39 {offsets = [56, 0], sizes = [8, 64], strides = [1, 1]} : vector<64x64xbf16> to vector<8x64xbf16>
    %cst_62 = arith.constant dense<0.000000e+00> : vector<16x64xf32>
    %223 = tpu.matmul %221, %222, %cst_62 {dimension_numbers = #tpu.dot_dimension_numbers<[1], [0], [0], [1], [0, 0, 1, 1], [], []>} : vector<16x8xbf16>, vector<8x64xbf16>, vector<16x64xf32> -> vector<16x64xf32>
    %224 = arith.addf %201, %223 : vector<16x64xf32>
    %225 = arith.addf %3, %224 : vector<16x64xf32>
    %c0_63 = arith.constant 0 : index
    %c0_64 = arith.constant 0 : index
    %c0_65 = arith.constant 0 : index
    %226 = vector.load %arg13[%c0_63, %c0_64, %c0_65] : memref<1x1x64xf32, #tpu.memory_space<vmem>>, vector<1x1x64xf32>
    %227 = vector.shape_cast %226 : vector<1x1x64xf32> to vector<1x64xf32>
    %228 = vector.broadcast %227 : vector<1x64xf32> to vector<16x64xf32>
    %229 = arith.addf %225, %228 : vector<16x64xf32>
    %c0_66 = arith.constant 0 : index
    %c0_67 = arith.constant 0 : index
    %c0_68 = arith.constant 0 : index
    %230 = vector.load %arg14[%c0_66, %c0_67, %c0_68] : memref<1x1x64xf32, #tpu.memory_space<vmem>>, vector<1x1x64xf32>
    %231 = vector.shape_cast %230 : vector<1x1x64xf32> to vector<1x64xf32>
    %c0_69 = arith.constant 0 : index
    %c0_70 = arith.constant 0 : index
    %c0_71 = arith.constant 0 : index
    %232 = vector.load %arg15[%c0_69, %c0_70, %c0_71] : memref<1x1x64xf32, #tpu.memory_space<vmem>>, vector<1x1x64xf32>
    %233 = vector.shape_cast %232 : vector<1x1x64xf32> to vector<1x64xf32>
    %cst_72 = arith.constant dense<0.000000e+00> : vector<16xf32>
    %234 = vector.multi_reduction <add>, %229, %cst_72 [1] : vector<16x64xf32> to vector<16xf32>
    %235 = vector.shape_cast %234 : vector<16xf32> to vector<16x1xf32>
    %cst_73 = arith.constant 6.400000e+01 : f32
    %236 = vector.broadcast %cst_73 : f32 to vector<16x1xf32>
    %237 = arith.divf %235, %236 : vector<16x1xf32>
    %238 = vector.broadcast %237 : vector<16x1xf32> to vector<16x64xf32>
    %239 = arith.subf %229, %238 : vector<16x64xf32>
    %240 = arith.mulf %239, %239 : vector<16x64xf32>
    %cst_74 = arith.constant dense<0.000000e+00> : vector<16xf32>
    %241 = vector.multi_reduction <add>, %240, %cst_74 [1] : vector<16x64xf32> to vector<16xf32>
    %242 = vector.shape_cast %241 : vector<16xf32> to vector<16x1xf32>
    %cst_75 = arith.constant 6.400000e+01 : f32
    %243 = vector.broadcast %cst_75 : f32 to vector<16x1xf32>
    %244 = arith.divf %242, %243 : vector<16x1xf32>
    %245 = vector.broadcast %237 : vector<16x1xf32> to vector<16x64xf32>
    %246 = arith.subf %229, %245 : vector<16x64xf32>
    %cst_76 = arith.constant 9.99999997E-7 : f32
    %247 = vector.broadcast %cst_76 : f32 to vector<16x1xf32>
    %248 = arith.addf %244, %247 : vector<16x1xf32>
    %249 = math.rsqrt %248 : vector<16x1xf32>
    %250 = vector.broadcast %249 : vector<16x1xf32> to vector<16x64xf32>
    %251 = arith.mulf %246, %250 : vector<16x64xf32>
    %252 = vector.broadcast %231 : vector<1x64xf32> to vector<16x64xf32>
    %253 = arith.mulf %251, %252 : vector<16x64xf32>
    %254 = vector.broadcast %233 : vector<1x64xf32> to vector<16x64xf32>
    %255 = arith.addf %253, %254 : vector<16x64xf32>
    %256 = arith.truncf %255 : vector<16x64xf32> to vector<16x64xbf16>
    %c0_77 = arith.constant 0 : index
    %c0_78 = arith.constant 0 : index
    %c0_79 = arith.constant 0 : index
    %257 = vector.load %arg16[%c0_77, %c0_78, %c0_79] : memref<1x64x256xbf16, #tpu.memory_space<vmem>>, vector<1x64x256xbf16>
    %258 = vector.shape_cast %257 : vector<1x64x256xbf16> to vector<64x256xbf16>
    %cst_80 = arith.constant dense<0.000000e+00> : vector<16x256xf32>
    %259 = tpu.matmul %256, %258, %cst_80 {dimension_numbers = #tpu.dot_dimension_numbers<[1], [0], [0], [1], [0, 0, 1, 1], [], []>} : vector<16x64xbf16>, vector<64x256xbf16>, vector<16x256xf32> -> vector<16x256xf32>
    %c0_81 = arith.constant 0 : index
    %c0_82 = arith.constant 0 : index
    %c0_83 = arith.constant 0 : index
    %260 = vector.load %arg17[%c0_81, %c0_82, %c0_83] : memref<1x1x256xf32, #tpu.memory_space<vmem>>, vector<1x1x256xf32>
    %261 = vector.shape_cast %260 : vector<1x1x256xf32> to vector<1x256xf32>
    %262 = vector.broadcast %261 : vector<1x256xf32> to vector<16x256xf32>
    %263 = arith.addf %259, %262 : vector<16x256xf32>
    %cst_84 = arith.constant 5.000000e-01 : f32
    %264 = vector.broadcast %cst_84 : f32 to vector<16x256xf32>
    %265 = arith.mulf %264, %263 : vector<16x256xf32>
    %cst_85 = arith.constant 4.471500e-02 : f32
    %266 = vector.broadcast %cst_85 : f32 to vector<16x256xf32>
    %267 = arith.mulf %266, %263 : vector<16x256xf32>
    %268 = arith.mulf %267, %263 : vector<16x256xf32>
    %269 = arith.mulf %268, %263 : vector<16x256xf32>
    %270 = arith.addf %263, %269 : vector<16x256xf32>
    %cst_86 = arith.constant 0.797884583 : f32
    %271 = vector.broadcast %cst_86 : f32 to vector<16x256xf32>
    %272 = arith.mulf %271, %270 : vector<16x256xf32>
    %273 = math.tanh %272 : vector<16x256xf32>
    %cst_87 = arith.constant 1.000000e+00 : f32
    %274 = vector.broadcast %cst_87 : f32 to vector<16x256xf32>
    %275 = arith.addf %274, %273 : vector<16x256xf32>
    %276 = arith.mulf %265, %275 : vector<16x256xf32>
    %277 = arith.truncf %276 : vector<16x256xf32> to vector<16x256xbf16>
    %c0_88 = arith.constant 0 : index
    %c0_89 = arith.constant 0 : index
    %c0_90 = arith.constant 0 : index
    %278 = vector.load %arg18[%c0_88, %c0_89, %c0_90] : memref<1x256x64xbf16, #tpu.memory_space<vmem>>, vector<1x256x64xbf16>
    %279 = vector.shape_cast %278 : vector<1x256x64xbf16> to vector<256x64xbf16>
    %cst_91 = arith.constant dense<0.000000e+00> : vector<16x64xf32>
    %280 = tpu.matmul %277, %279, %cst_91 {dimension_numbers = #tpu.dot_dimension_numbers<[1], [0], [0], [1], [0, 0, 1, 1], [], []>} : vector<16x256xbf16>, vector<256x64xbf16>, vector<16x64xf32> -> vector<16x64xf32>
    %c0_92 = arith.constant 0 : index
    %c0_93 = arith.constant 0 : index
    %c0_94 = arith.constant 0 : index
    %281 = vector.load %arg19[%c0_92, %c0_93, %c0_94] : memref<1x1x64xf32, #tpu.memory_space<vmem>>, vector<1x1x64xf32>
    %282 = vector.shape_cast %281 : vector<1x1x64xf32> to vector<1x64xf32>
    %283 = vector.broadcast %282 : vector<1x64xf32> to vector<16x64xf32>
    %284 = arith.addf %280, %283 : vector<16x64xf32>
    %285 = arith.addf %229, %284 : vector<16x64xf32>
    %c0_95 = arith.constant 0 : index
    %c0_96 = arith.constant 0 : index
    %286 = vector.load %arg25[%c0_95, %c0_96] : memref<16x64xf32, #tpu.memory_space<vmem>>, vector<16x64xf32>
    tpu.vector_store %arg25[%c0_95, %c0_96], %285 {strides = array<i32>} : memref<16x64xf32, #tpu.memory_space<vmem>>, vector<16x64xf32>,
    %c1_i32 = arith.constant 1 : i32
    %287 = arith.cmpi eq, %arg1, %c1_i32 : i32
    %288 = arith.extui %287 : i1 to i32
    %c0_i32_97 = arith.constant 0 : i32
    %289 = arith.cmpi ne, %288, %c0_i32_97 : i32
    scf.if %289 {
      %c0_98 = arith.constant 0 : index
      %c0_99 = arith.constant 0 : index
      %290 = vector.load %arg20[%c0_98, %c0_99] : memref<1x64xf32, #tpu.memory_space<vmem>>, vector<1x64xf32>
      %c0_100 = arith.constant 0 : index
      %c0_101 = arith.constant 0 : index
      %291 = vector.load %arg21[%c0_100, %c0_101] : memref<1x64xf32, #tpu.memory_space<vmem>>, vector<1x64xf32>
      %cst_102 = arith.constant dense<0.000000e+00> : vector<16xf32>
      %292 = vector.multi_reduction <add>, %285, %cst_102 [1] : vector<16x64xf32> to vector<16xf32>
      %293 = vector.shape_cast %292 : vector<16xf32> to vector<16x1xf32>
      %cst_103 = arith.constant 6.400000e+01 : f32
      %294 = vector.broadcast %cst_103 : f32 to vector<16x1xf32>
      %295 = arith.divf %293, %294 : vector<16x1xf32>
      %296 = vector.broadcast %295 : vector<16x1xf32> to vector<16x64xf32>
      %297 = arith.subf %285, %296 : vector<16x64xf32>
      %298 = arith.mulf %297, %297 : vector<16x64xf32>
      %cst_104 = arith.constant dense<0.000000e+00> : vector<16xf32>
      %299 = vector.multi_reduction <add>, %298, %cst_104 [1] : vector<16x64xf32> to vector<16xf32>
      %300 = vector.shape_cast %299 : vector<16xf32> to vector<16x1xf32>
      %cst_105 = arith.constant 6.400000e+01 : f32
      %301 = vector.broadcast %cst_105 : f32 to vector<16x1xf32>
      %302 = arith.divf %300, %301 : vector<16x1xf32>
      %303 = vector.broadcast %295 : vector<16x1xf32> to vector<16x64xf32>
      %304 = arith.subf %285, %303 : vector<16x64xf32>
      %cst_106 = arith.constant 9.99999997E-7 : f32
      %305 = vector.broadcast %cst_106 : f32 to vector<16x1xf32>
      %306 = arith.addf %302, %305 : vector<16x1xf32>
      %307 = math.rsqrt %306 : vector<16x1xf32>
      %308 = vector.broadcast %307 : vector<16x1xf32> to vector<16x64xf32>
      %309 = arith.mulf %304, %308 : vector<16x64xf32>
      %310 = vector.broadcast %290 : vector<1x64xf32> to vector<16x64xf32>
      %311 = arith.mulf %309, %310 : vector<16x64xf32>
      %312 = vector.broadcast %291 : vector<1x64xf32> to vector<16x64xf32>
      %313 = arith.addf %311, %312 : vector<16x64xf32>
      %cst_107 = arith.constant dense<0.000000e+00> : vector<64xf32>
      %314 = vector.multi_reduction <add>, %313, %cst_107 [0] : vector<16x64xf32> to vector<64xf32>
      %315 = vector.shape_cast %314 : vector<64xf32> to vector<1x64xf32>
      %cst_108 = arith.constant 1.600000e+01 : f32
      %316 = vector.broadcast %cst_108 : f32 to vector<1x64xf32>
      %317 = arith.divf %315, %316 : vector<1x64xf32>
      %318 = arith.truncf %317 : vector<1x64xf32> to vector<1x64xbf16>
      %c0_109 = arith.constant 0 : index
      %c0_110 = arith.constant 0 : index
      %319 = vector.load %arg22[%c0_109, %c0_110] : memref<64x128xbf16, #tpu.memory_space<vmem>>, vector<64x128xbf16>
      %cst_111 = arith.constant dense<0.000000e+00> : vector<1x128xf32>
      %320 = tpu.matmul %318, %319, %cst_111 {dimension_numbers = #tpu.dot_dimension_numbers<[1], [0], [0], [1], [0, 0, 1, 1], [], []>} : vector<1x64xbf16>, vector<64x128xbf16>, vector<1x128xf32> -> vector<1x128xf32>
      %c0_112 = arith.constant 0 : index
      %c0_113 = arith.constant 0 : index
      %321 = vector.load %arg23[%c0_112, %c0_113] : memref<1x128xf32, #tpu.memory_space<vmem>>, vector<1x128xf32>
      %322 = arith.addf %320, %321 : vector<1x128xf32>
      %c0_114 = arith.constant 0 : index
      %c0_115 = arith.constant 0 : index
      %c0_116 = arith.constant 0 : index
      %323 = vector.load %arg24[%c0_114, %c0_115, %c0_116] : memref<1x1x128xf32, #tpu.memory_space<vmem>>, vector<1x1x128xf32>
      %324 = vector.shape_cast %323 : vector<1x1x128xf32> to vector<1x128xf32>
      %325 = vector.shape_cast %322 : vector<1x128xf32> to vector<1x1x128xf32>
      tpu.vector_store %arg24[%c0_114, %c0_115, %c0_116], %325 {strides = array<i32>} : memref<1x1x128xf32, #tpu.memory_space<vmem>>, vector<1x1x128xf32>,
    } else {
    }
    return
  }
  func.func @transform_0(%arg0: i32, %arg1: i32) -> (i32, i32, i32) {
    %c0_i32 = arith.constant 0 : i32
    %c0_i32_0 = arith.constant 0 : i32
    %c0_i32_1 = arith.constant 0 : i32
    return %arg0, %c0_i32, %c0_i32_0 : i32, i32, i32
  }
  func.func @transform_1(%arg0: i32, %arg1: i32) -> (i32, i32) {
    %c0_i32 = arith.constant 0 : i32
    %c0_i32_0 = arith.constant 0 : i32
    %c0_i32_1 = arith.constant 0 : i32
    return %c0_i32, %c0_i32_0 : i32, i32
  }
  func.func @transform_2(%arg0: i32, %arg1: i32) -> (i32, i32) {
    %c0_i32 = arith.constant 0 : i32
    %c0_i32_0 = arith.constant 0 : i32
    %c0_i32_1 = arith.constant 0 : i32
    return %c0_i32, %c0_i32_0 : i32, i32
  }
  func.func @transform_3(%arg0: i32, %arg1: i32) -> (i32, i32) {
    %c0_i32 = arith.constant 0 : i32
    %c0_i32_0 = arith.constant 0 : i32
    %c0_i32_1 = arith.constant 0 : i32
    return %c0_i32, %c0_i32_0 : i32, i32
  }
  func.func @transform_4(%arg0: i32, %arg1: i32) -> (i32, i32) {
    %c0_i32 = arith.constant 0 : i32
    %c0_i32_0 = arith.constant 0 : i32
    %c0_i32_1 = arith.constant 0 : i32
    return %c0_i32, %c0_i32_0 : i32, i32
  }
  func.func @transform_5(%arg0: i32, %arg1: i32) -> (i32, i32) {
    %c0_i32 = arith.constant 0 : i32
    %c0_i32_0 = arith.constant 0 : i32
    %c0_i32_1 = arith.constant 0 : i32
    return %c0_i32, %c0_i32_0 : i32, i32
  }
  func.func @transform_6(%arg0: i32, %arg1: i32) -> (i32, i32, i32) {
    %c0_i32 = arith.constant 0 : i32
    %c0_i32_0 = arith.constant 0 : i32
    %c0_i32_1 = arith.constant 0 : i32
    return %arg1, %c0_i32, %c0_i32_0 : i32, i32, i32
  }
  func.func @transform_7(%arg0: i32, %arg1: i32) -> (i32, i32, i32) {
    %c0_i32 = arith.constant 0 : i32
    %c0_i32_0 = arith.constant 0 : i32
    %c0_i32_1 = arith.constant 0 : i32
    return %arg1, %c0_i32, %c0_i32_0 : i32, i32, i32
  }
  func.func @transform_8(%arg0: i32, %arg1: i32) -> (i32, i32, i32) {
    %c0_i32 = arith.constant 0 : i32
    %c0_i32_0 = arith.constant 0 : i32
    %c0_i32_1 = arith.constant 0 : i32
    return %arg1, %c0_i32, %c0_i32_0 : i32, i32, i32
  }
  func.func @transform_9(%arg0: i32, %arg1: i32) -> (i32, i32, i32) {
    %c0_i32 = arith.constant 0 : i32
    %c0_i32_0 = arith.constant 0 : i32
    %c0_i32_1 = arith.constant 0 : i32
    return %arg1, %c0_i32, %c0_i32_0 : i32, i32, i32
  }
  func.func @transform_10(%arg0: i32, %arg1: i32) -> (i32, i32, i32) {
    %c0_i32 = arith.constant 0 : i32
    %c0_i32_0 = arith.constant 0 : i32
    %c0_i32_1 = arith.constant 0 : i32
    return %arg1, %c0_i32, %c0_i32_0 : i32, i32, i32
  }
  func.func @transform_11(%arg0: i32, %arg1: i32) -> (i32, i32, i32) {
    %c0_i32 = arith.constant 0 : i32
    %c0_i32_0 = arith.constant 0 : i32
    %c0_i32_1 = arith.constant 0 : i32
    return %arg1, %c0_i32, %c0_i32_0 : i32, i32, i32
  }
  func.func @transform_12(%arg0: i32, %arg1: i32) -> (i32, i32, i32) {
    %c0_i32 = arith.constant 0 : i32
    %c0_i32_0 = arith.constant 0 : i32
    %c0_i32_1 = arith.constant 0 : i32
    return %arg1, %c0_i32, %c0_i32_0 : i32, i32, i32
  }
  func.func @transform_13(%arg0: i32, %arg1: i32) -> (i32, i32, i32) {
    %c0_i32 = arith.constant 0 : i32
    %c0_i32_0 = arith.constant 0 : i32
    %c0_i32_1 = arith.constant 0 : i32
    return %arg1, %c0_i32, %c0_i32_0 : i32, i32, i32
  }
  func.func @transform_14(%arg0: i32, %arg1: i32) -> (i32, i32, i32) {
    %c0_i32 = arith.constant 0 : i32
    %c0_i32_0 = arith.constant 0 : i32
    %c0_i32_1 = arith.constant 0 : i32
    return %arg1, %c0_i32, %c0_i32_0 : i32, i32, i32
  }
  func.func @transform_15(%arg0: i32, %arg1: i32) -> (i32, i32, i32) {
    %c0_i32 = arith.constant 0 : i32
    %c0_i32_0 = arith.constant 0 : i32
    %c0_i32_1 = arith.constant 0 : i32
    return %arg1, %c0_i32, %c0_i32_0 : i32, i32, i32
  }
  func.func @transform_16(%arg0: i32, %arg1: i32) -> (i32, i32, i32) {
    %c0_i32 = arith.constant 0 : i32
    %c0_i32_0 = arith.constant 0 : i32
    %c0_i32_1 = arith.constant 0 : i32
    return %arg1, %c0_i32, %c0_i32_0 : i32, i32, i32
  }
  func.func @transform_17(%arg0: i32, %arg1: i32) -> (i32, i32, i32) {
    %c0_i32 = arith.constant 0 : i32
    %c0_i32_0 = arith.constant 0 : i32
    %c0_i32_1 = arith.constant 0 : i32
    return %arg1, %c0_i32, %c0_i32_0 : i32, i32, i32
  }
  func.func @transform_18(%arg0: i32, %arg1: i32) -> (i32, i32) {
    %c0_i32 = arith.constant 0 : i32
    %c0_i32_0 = arith.constant 0 : i32
    %c0_i32_1 = arith.constant 0 : i32
    return %c0_i32, %c0_i32_0 : i32, i32
  }
  func.func @transform_19(%arg0: i32, %arg1: i32) -> (i32, i32) {
    %c0_i32 = arith.constant 0 : i32
    %c0_i32_0 = arith.constant 0 : i32
    %c0_i32_1 = arith.constant 0 : i32
    return %c0_i32, %c0_i32_0 : i32, i32
  }
  func.func @transform_20(%arg0: i32, %arg1: i32) -> (i32, i32) {
    %c0_i32 = arith.constant 0 : i32
    %c0_i32_0 = arith.constant 0 : i32
    %c0_i32_1 = arith.constant 0 : i32
    return %c0_i32, %c0_i32_0 : i32, i32
  }
  func.func @transform_21(%arg0: i32, %arg1: i32) -> (i32, i32) {
    %c0_i32 = arith.constant 0 : i32
    %c0_i32_0 = arith.constant 0 : i32
    %c0_i32_1 = arith.constant 0 : i32
    return %c0_i32, %c0_i32_0 : i32, i32
  }
  func.func @transform_22(%arg0: i32, %arg1: i32) -> (i32, i32, i32) {
    %c0_i32 = arith.constant 0 : i32
    %c0_i32_0 = arith.constant 0 : i32
    %c0_i32_1 = arith.constant 0 : i32
    return %arg0, %c0_i32, %c0_i32_0 : i32, i32, i32
  }
}

</mosaic_0001>

<llo_original>
// kernel: wavet_forward.3
$region0: #{wavet_forward.3}
  #allocation0 [shape = 'u32[]', space=smem, size = 0x4, offset = 0x4, fixed_abs, tag = 'smem constant byte address 0x4 - core index']
  #allocation1 [shape = 'u32[144,128]{1,0:T(1,128)}', space=vmem, size = 0x12000, scoped, tag = 'internal scratch']
  #allocation2 [shape = 'f32[16,64]{1,0:T(8,128)}', space=vmem, size = 0x2000, scoped, tag = 'scratch operand']
  %s0 = inlined_call_operand.vmem [shape: bf16[2,16,128], index: 0, kind: input, shape index: {}]
  %s1 = inlined_call_operand.vmem [shape: f32[16,64], index: 1, kind: input, shape index: {}]
  %s2 = inlined_call_operand.vmem [shape: bf16[128,64], index: 2, kind: input, shape index: {}]
  %s3 = inlined_call_operand.vmem [shape: f32[1,64], index: 3, kind: input, shape index: {}]
  %s4 = inlined_call_operand.vmem [shape: f32[1,64], index: 4, kind: input, shape index: {}]
  %s5 = inlined_call_operand.vmem [shape: f32[1,64], index: 5, kind: input, shape index: {}]
  %s6 = inlined_call_operand.vmem [shape: f32[2,1,64], index: 6, kind: input, shape index: {}]
  %s7 = inlined_call_operand.vmem [shape: f32[2,1,64], index: 7, kind: input, shape index: {}]
  %s8 = inlined_call_operand.vmem [shape: bf16[2,64,192], index: 8, kind: input, shape index: {}]
  %s9 = inlined_call_operand.vmem [shape: f32[2,1,192], index: 9, kind: input, shape index: {}]
  %s10 = inlined_call_operand.vmem [shape: bf16[2,64,64], index: 10, kind: input, shape index: {}]
  %s11 = inlined_call_operand.vmem [shape: f32[2,1,64], index: 11, kind: input, shape index: {}]
  %s12 = inlined_call_operand.vmem [shape: f32[2,1,64], index: 12, kind: input, shape index: {}]
  %s13 = inlined_call_operand.vmem [shape: f32[2,1,64], index: 13, kind: input, shape index: {}]
  %s14 = inlined_call_operand.vmem [shape: bf16[2,64,256], index: 14, kind: input, shape index: {}]
  %s15 = inlined_call_operand.vmem [shape: f32[2,1,256], index: 15, kind: input, shape index: {}]
  %s16 = inlined_call_operand.vmem [shape: bf16[2,256,64], index: 16, kind: input, shape index: {}]
  %s17 = inlined_call_operand.vmem [shape: f32[2,1,64], index: 17, kind: input, shape index: {}]
  %s18 = inlined_call_operand.vmem [shape: f32[1,64], index: 18, kind: input, shape index: {}]
  %s19 = inlined_call_operand.vmem [shape: f32[1,64], index: 19, kind: input, shape index: {}]
  %s20 = inlined_call_operand.vmem [shape: bf16[64,128], index: 20, kind: input, shape index: {}]
  %s21 = inlined_call_operand.vmem [shape: f32[1,128], index: 21, kind: input, shape index: {}]
  %s22 = inlined_call_operand.hbm [shape: f32[2,1,128], index: 22, kind: output, shape index: {}]
  %s23 = sld [smem:[#allocation0]]
  $region129: #{wavet_forward.3} parent=0
    _
  %s25 = ssub.s32 1, %s23
  %s26 = scalar_select 0, %s25, %s23
  $region1: #{wavet_forward.3} parent=0
    #allocation3 [shape = 'u8[1024]{0}', space=vmem, size = 0x400, scoped, tag = 'output window, operand 0']
    #allocation4 [shape = 's32[2]{0}', space=sflag, size = 0x8, scoped, tag = 'scoped memory for wavet_forward.3']
    %27 = vsyncpa [#allocation4], 0
    %s28 = scalar_lea.sflag [#allocation4], 1
    %29 = vsyncpa %s28, 0
    loop: start=0, step=1, limit=6
    $region2: #{wavet_forward.3} parent=1 // loop_pre_header
      _
    $region3: #{wavet_forward.3} parent=1 // loop_header
      %s31 = sphi 0, %s35
      %p32 = scmp.ge.s32.totalorder %s31, 6
      %s38 = sphi 0, %s50
      %s39 = sphi 0, %s46
      %s40 = sphi 0, %s38
      %s41 = sphi 0, %s39
      %s42 = sphi 0, %s40
      %s43 = sphi 0, %s41
      %s53 = sphi 0, %s55
      %s56 = sphi 0, %s53
      %s57 = sphi 0, %s56
      %s73 = sphi 0, %s57
      %s77 = sphi 0, %s77
      %s79 = sphi 0, %s77
      %s80 = sphi 0, %s79
      %s94 = sphi 0, %s80
      %s98 = sphi 0, %s98
      %s100 = sphi 0, %s98
      %s101 = sphi 0, %s100
      %s115 = sphi 0, %s101
      %s119 = sphi 0, %s119
      %s121 = sphi 0, %s119
      %s122 = sphi 0, %s121
      %s136 = sphi 0, %s122
      %s140 = sphi 0, %s140
      %s142 = sphi 0, %s140
      %s143 = sphi 0, %s142
      %s157 = sphi 0, %s143
      %s161 = sphi 0, %s161
      %s163 = sphi 0, %s161
      %s164 = sphi 0, %s163
      %s178 = sphi 0, %s164
      %s184 = sphi 0, %s186
      %s187 = sphi 0, %s184
      %s188 = sphi 0, %s187
      %s204 = sphi 0, %s188
      %s210 = sphi 0, %s212
      %s213 = sphi 0, %s210
      %s214 = sphi 0, %s213
      %s230 = sphi 0, %s214
      %s236 = sphi 0, %s238
      %s239 = sphi 0, %s236
      %s240 = sphi 0, %s239
      %s256 = sphi 0, %s240
      %s262 = sphi 0, %s264
      %s265 = sphi 0, %s262
      %s266 = sphi 0, %s265
      %s282 = sphi 0, %s266
      %s288 = sphi 0, %s290
      %s291 = sphi 0, %s288
      %s292 = sphi 0, %s291
      %s308 = sphi 0, %s292
      %s314 = sphi 0, %s316
      %s317 = sphi 0, %s314
      %s318 = sphi 0, %s317
      %s334 = sphi 0, %s318
      %s340 = sphi 0, %s342
      %s343 = sphi 0, %s340
      %s344 = sphi 0, %s343
      %s360 = sphi 0, %s344
      %s366 = sphi 0, %s368
      %s369 = sphi 0, %s366
      %s370 = sphi 0, %s369
      %s386 = sphi 0, %s370
      %s392 = sphi 0, %s394
      %s395 = sphi 0, %s392
      %s396 = sphi 0, %s395
      %s412 = sphi 0, %s396
      %s418 = sphi 0, %s420
      %s421 = sphi 0, %s418
      %s422 = sphi 0, %s421
      %s438 = sphi 0, %s422
      %s444 = sphi 0, %s446
      %s447 = sphi 0, %s444
      %s448 = sphi 0, %s447
      %s464 = sphi 0, %s448
      %s470 = sphi 0, %s472
      %s473 = sphi 0, %s470
      %s474 = sphi 0, %s473
      %s490 = sphi 0, %s474
      %s494 = sphi 0, %s494
      %s496 = sphi 0, %s494
      %s497 = sphi 0, %s496
      %s511 = sphi 0, %s497
      %s515 = sphi 0, %s515
      %s517 = sphi 0, %s515
      %s518 = sphi 0, %s517
      %s532 = sphi 0, %s518
      %s536 = sphi 0, %s536
      %s538 = sphi 0, %s536
      %s539 = sphi 0, %s538
      %s553 = sphi 0, %s539
      %s557 = sphi 0, %s557
      %s559 = sphi 0, %s557
      %s560 = sphi 0, %s559
      %s574 = sphi 0, %s560
      %s580 = sphi 0, %s582
      %s583 = sphi 0, %s580
      %s584 = sphi 0, %s583
      %s600 = sphi 0, %s584
    $region4: #{wavet_forward.3} parent=1 // loop_header_branch
      %34 = sbr.rel (%p32) target = $region8
    $region5: #{wavet_forward.3} parent=1 // loop_body
      %s36 = ssub.s32 %s31, 1
      %s37 = ssub.s32 %s31, 2
      %s44 = sadd.s32 1, %s39
      %p45 = scmp.ge.s32.totalorder %s44, 2
      %s46 = scalar_select %p45, 0, %s44
      %s47 = sadd.s32 1, %s38
      %s48 = scalar_select %p45, %s47, %s38
      %p49 = scmp.ge.s32.totalorder %s48, 2
      %s50 = scalar_select %p49, 0, %s48
      %s51 = ssub.s32 %s38, %s50
      %p52 = scmp.eq.s32.totalorder %s51, 0
      %s54 = sadd.s32 %s53, 1
      %s55 = scalar_select %p52, %s53, %s54
      %p58 = pneg %p52
      %p59 = scmp.eq.s32.totalorder %s31, 3
      %p60 = por %p58, %p59
      %p61 = scmp.ne.s32.totalorder %s53, %s56
      %p62 = scmp.eq.s32.totalorder %s31, 0
      %p63 = por %p61, %p62
      %p64 = scmp.ne.s32.totalorder %s53, %s56
      %p65 = scmp.eq.s32.totalorder %s36, 3
      %p66 = por %p64, %p65
      %p67 = scmp.ne.s32.totalorder %s56, %s57
      %p68 = scmp.eq.s32.totalorder %s36, 0
      %p69 = por %p67, %p68
      %p70 = scmp.ne.s32.totalorder %s56, %s57
      %p71 = scmp.eq.s32.totalorder %s37, 3
      %p72 = por %p70, %p71
      %p74 = scmp.ne.s32.totalorder %s57, %s73
      %p75 = scmp.eq.s32.totalorder %s37, 0
      %p76 = por %p74, %p75
      %s78 = sadd.s32 %s77, 1
      %p81 = scmp.eq.s32.totalorder %s31, 3
      %p82 = scmp.ne.s32.totalorder %s77, %s79
      %p83 = scmp.eq.s32.totalorder %s31, 0
      %p84 = por %p82, %p83
      %p85 = scmp.ne.s32.totalorder %s77, %s79
      %p86 = scmp.eq.s32.totalorder %s36, 3
      %p87 = por %p85, %p86
      %p88 = scmp.ne.s32.totalorder %s79, %s80
      %p89 = scmp.eq.s32.totalorder %s36, 0
      %p90 = por %p88, %p89
      %p91 = scmp.ne.s32.totalorder %s79, %s80
      %p92 = scmp.eq.s32.totalorder %s37, 3
      %p93 = por %p91, %p92
      %p95 = scmp.ne.s32.totalorder %s80, %s94
      %p96 = scmp.eq.s32.totalorder %s37, 0
      %p97 = por %p95, %p96
      %s99 = sadd.s32 %s98, 1
      %p102 = scmp.eq.s32.totalorder %s31, 3
      %p103 = scmp.ne.s32.totalorder %s98, %s100
      %p104 = scmp.eq.s32.totalorder %s31, 0
      %p105 = por %p103, %p104
      %p106 = scmp.ne.s32.totalorder %s98, %s100
      %p107 = scmp.eq.s32.totalorder %s36, 3
      %p108 = por %p106, %p107
      %p109 = scmp.ne.s32.totalorder %s100, %s101
      %p110 = scmp.eq.s32.totalorder %s36, 0
      %p111 = por %p109, %p110
      %p112 = scmp.ne.s32.totalorder %s100, %s101
      %p113 = scmp.eq.s32.totalorder %s37, 3
      %p114 = por %p112, %p113
      %p116 = scmp.ne.s32.totalorder %s101, %s115
      %p117 = scmp.eq.s32.totalorder %s37, 0
      %p118 = por %p116, %p117
      %s120 = sadd.s32 %s119, 1
      %p123 = scmp.eq.s32.totalorder %s31, 3
      %p124 = scmp.ne.s32.totalorder %s119, %s121
      %p125 = scmp.eq.s32.totalorder %s31, 0
      %p126 = por %p124, %p125
      %p127 = scmp.ne.s32.totalorder %s119, %s121
      %p128 = scmp.eq.s32.totalorder %s36, 3
      %p129 = por %p127, %p128
      %p130 = scmp.ne.s32.totalorder %s121, %s122
      %p131 = scmp.eq.s32.totalorder %s36, 0
      %p132 = por %p130, %p131
      %p133 = scmp.ne.s32.totalorder %s121, %s122
      %p134 = scmp.eq.s32.totalorder %s37, 3
      %p135 = por %p133, %p134
      %p137 = scmp.ne.s32.totalorder %s122, %s136
      %p138 = scmp.eq.s32.totalorder %s37, 0
      %p139 = por %p137, %p138
      %s141 = sadd.s32 %s140, 1
      %p144 = scmp.eq.s32.totalorder %s31, 3
      %p145 = scmp.ne.s32.totalorder %s140, %s142
      %p146 = scmp.eq.s32.totalorder %s31, 0
      %p147 = por %p145, %p146
      %p148 = scmp.ne.s32.totalorder %s140, %s142
      %p149 = scmp.eq.s32.totalorder %s36, 3
      %p150 = por %p148, %p149
      %p151 = scmp.ne.s32.totalorder %s142, %s143
      %p152 = scmp.eq.s32.totalorder %s36, 0
      %p153 = por %p151, %p152
      %p154 = scmp.ne.s32.totalorder %s142, %s143
      %p155 = scmp.eq.s32.totalorder %s37, 3
      %p156 = por %p154, %p155
      %p158 = scmp.ne.s32.totalorder %s143, %s157
      %p159 = scmp.eq.s32.totalorder %s37, 0
      %p160 = por %p158, %p159
      %s162 = sadd.s32 %s161, 1
      %p165 = scmp.eq.s32.totalorder %s31, 3
      %p166 = scmp.ne.s32.totalorder %s161, %s163
      %p167 = scmp.eq.s32.totalorder %s31, 0
      %p168 = por %p166, %p167
      %p169 = scmp.ne.s32.totalorder %s161, %s163
      %p170 = scmp.eq.s32.totalorder %s36, 3
      %p171 = por %p169, %p170
      %p172 = scmp.ne.s32.totalorder %s163, %s164
      %p173 = scmp.eq.s32.totalorder %s36, 0
      %p174 = por %p172, %p173
      %p175 = scmp.ne.s32.totalorder %s163, %s164
      %p176 = scmp.eq.s32.totalorder %s37, 3
      %p177 = por %p175, %p176
      %p179 = scmp.ne.s32.totalorder %s164, %s178
      %p180 = scmp.eq.s32.totalorder %s37, 0
      %p181 = por %p179, %p180
      %s182 = ssub.s32 %s39, %s46
      %p183 = scmp.eq.s32.totalorder %s182, 0
      %s185 = sadd.s32 %s184, 1
      %s186 = scalar_select %p183, %s184, %s185
      %p189 = pneg %p183
      %p190 = scmp.eq.s32.totalorder %s31, 3
      %p191 = por %p189, %p190
      %p192 = scmp.ne.s32.totalorder %s184, %s187
      %p193 = scmp.eq.s32.totalorder %s31, 0
      %p194 = por %p192, %p193
      %p195 = scmp.ne.s32.totalorder %s184, %s187
      %p196 = scmp.eq.s32.totalorder %s36, 3
      %p197 = por %p195, %p196
      %p198 = scmp.ne.s32.totalorder %s187, %s188
      %p199 = scmp.eq.s32.totalorder %s36, 0
      %p200 = por %p198, %p199
      %p201 = scmp.ne.s32.totalorder %s187, %s188
      %p202 = scmp.eq.s32.totalorder %s37, 3
      %p203 = por %p201, %p202
      %p205 = scmp.ne.s32.totalorder %s188, %s204
      %p206 = scmp.eq.s32.totalorder %s37, 0
      %p207 = por %p205, %p206
      %s208 = ssub.s32 %s39, %s46
      %p209 = scmp.eq.s32.totalorder %s208, 0
      %s211 = sadd.s32 %s210, 1
      %s212 = scalar_select %p209, %s210, %s211
      %p215 = pneg %p209
      %p216 = scmp.eq.s32.totalorder %s31, 3
      %p217 = por %p215, %p216
      %p218 = scmp.ne.s32.totalorder %s210, %s213
      %p219 = scmp.eq.s32.totalorder %s31, 0
      %p220 = por %p218, %p219
      %p221 = scmp.ne.s32.totalorder %s210, %s213
      %p222 = scmp.eq.s32.totalorder %s36, 3
      %p223 = por %p221, %p222
      %p224 = scmp.ne.s32.totalorder %s213, %s214
      %p225 = scmp.eq.s32.totalorder %s36, 0
      %p226 = por %p224, %p225
      %p227 = scmp.ne.s32.totalorder %s213, %s214
      %p228 = scmp.eq.s32.totalorder %s37, 3
      %p229 = por %p227, %p228
      %p231 = scmp.ne.s32.totalorder %s214, %s230
      %p232 = scmp.eq.s32.totalorder %s37, 0
      %p233 = por %p231, %p232
      %s234 = ssub.s32 %s39, %s46
      %p235 = scmp.eq.s32.totalorder %s234, 0
      %s237 = sadd.s32 %s236, 1
      %s238 = scalar_select %p235, %s236, %s237
      %p241 = pneg %p235
      %p242 = scmp.eq.s32.totalorder %s31, 3
      %p243 = por %p241, %p242
      %p244 = scmp.ne.s32.totalorder %s236, %s239
      %p245 = scmp.eq.s32.totalorder %s31, 0
      %p246 = por %p244, %p245
      %p247 = scmp.ne.s32.totalorder %s236, %s239
      %p248 = scmp.eq.s32.totalorder %s36, 3
      %p249 = por %p247, %p248
      %p250 = scmp.ne.s32.totalorder %s239, %s240
      %p251 = scmp.eq.s32.totalorder %s36, 0
      %p252 = por %p250, %p251
      %p253 = scmp.ne.s32.totalorder %s239, %s240
      %p254 = scmp.eq.s32.totalorder %s37, 3
      %p255 = por %p253, %p254
      %p257 = scmp.ne.s32.totalorder %s240, %s256
      %p258 = scmp.eq.s32.totalorder %s37, 0
      %p259 = por %p257, %p258
      %s260 = ssub.s32 %s39, %s46
      %p261 = scmp.eq.s32.totalorder %s260, 0
      %s263 = sadd.s32 %s262, 1
      %s264 = scalar_select %p261, %s262, %s263
      %p267 = pneg %p261
      %p268 = scmp.eq.s32.totalorder %s31, 3
      %p269 = por %p267, %p268
      %p270 = scmp.ne.s32.totalorder %s262, %s265
      %p271 = scmp.eq.s32.totalorder %s31, 0
      %p272 = por %p270, %p271
      %p273 = scmp.ne.s32.totalorder %s262, %s265
      %p274 = scmp.eq.s32.totalorder %s36, 3
      %p275 = por %p273, %p274
      %p276 = scmp.ne.s32.totalorder %s265, %s266
      %p277 = scmp.eq.s32.totalorder %s36, 0
      %p278 = por %p276, %p277
      %p279 = scmp.ne.s32.totalorder %s265, %s266
      %p280 = scmp.eq.s32.totalorder %s37, 3
      %p281 = por %p279, %p280
      %p283 = scmp.ne.s32.totalorder %s266, %s282
      %p284 = scmp.eq.s32.totalorder %s37, 0
      %p285 = por %p283, %p284
      %s286 = ssub.s32 %s39, %s46
      %p287 = scmp.eq.s32.totalorder %s286, 0
      %s289 = sadd.s32 %s288, 1
      %s290 = scalar_select %p287, %s288, %s289
      %p293 = pneg %p287
      %p294 = scmp.eq.s32.totalorder %s31, 3
      %p295 = por %p293, %p294
      %p296 = scmp.ne.s32.totalorder %s288, %s291
      %p297 = scmp.eq.s32.totalorder %s31, 0
      %p298 = por %p296, %p297
      %p299 = scmp.ne.s32.totalorder %s288, %s291
      %p300 = scmp.eq.s32.totalorder %s36, 3
      %p301 = por %p299, %p300
      %p302 = scmp.ne.s32.totalorder %s291, %s292
      %p303 = scmp.eq.s32.totalorder %s36, 0
      %p304 = por %p302, %p303
      %p305 = scmp.ne.s32.totalorder %s291, %s292
      %p306 = scmp.eq.s32.totalorder %s37, 3
      %p307 = por %p305, %p306
      %p309 = scmp.ne.s32.totalorder %s292, %s308
      %p310 = scmp.eq.s32.totalorder %s37, 0
      %p311 = por %p309, %p310
      %s312 = ssub.s32 %s39, %s46
      %p313 = scmp.eq.s32.totalorder %s312, 0
      %s315 = sadd.s32 %s314, 1
      %s316 = scalar_select %p313, %s314, %s315
      %p319 = pneg %p313
      %p320 = scmp.eq.s32.totalorder %s31, 3
      %p321 = por %p319, %p320
      %p322 = scmp.ne.s32.totalorder %s314, %s317
      %p323 = scmp.eq.s32.totalorder %s31, 0
      %p324 = por %p322, %p323
      %p325 = scmp.ne.s32.totalorder %s314, %s317
      %p326 = scmp.eq.s32.totalorder %s36, 3
      %p327 = por %p325, %p326
      %p328 = scmp.ne.s32.totalorder %s317, %s318
      %p329 = scmp.eq.s32.totalorder %s36, 0
      %p330 = por %p328, %p329
      %p331 = scmp.ne.s32.totalorder %s317, %s318
      %p332 = scmp.eq.s32.totalorder %s37, 3
      %p333 = por %p331, %p332
      %p335 = scmp.ne.s32.totalorder %s318, %s334
      %p336 = scmp.eq.s32.totalorder %s37, 0
      %p337 = por %p335, %p336
      %s338 = ssub.s32 %s39, %s46
      %p339 = scmp.eq.s32.totalorder %s338, 0
      %s341 = sadd.s32 %s340, 1
      %s342 = scalar_select %p339, %s340, %s341
      %p345 = pneg %p339
      %p346 = scmp.eq.s32.totalorder %s31, 3
      %p347 = por %p345, %p346
      %p348 = scmp.ne.s32.totalorder %s340, %s343
      %p349 = scmp.eq.s32.totalorder %s31, 0
      %p350 = por %p348, %p349
      %p351 = scmp.ne.s32.totalorder %s340, %s343
      %p352 = scmp.eq.s32.totalorder %s36, 3
      %p353 = por %p351, %p352
      %p354 = scmp.ne.s32.totalorder %s343, %s344
      %p355 = scmp.eq.s32.totalorder %s36, 0
      %p356 = por %p354, %p355
      %p357 = scmp.ne.s32.totalorder %s343, %s344
      %p358 = scmp.eq.s32.totalorder %s37, 3
      %p359 = por %p357, %p358
      %p361 = scmp.ne.s32.totalorder %s344, %s360
      %p362 = scmp.eq.s32.totalorder %s37, 0
      %p363 = por %p361, %p362
      %s364 = ssub.s32 %s39, %s46
      %p365 = scmp.eq.s32.totalorder %s364, 0
      %s367 = sadd.s32 %s366, 1
      %s368 = scalar_select %p365, %s366, %s367
      %p371 = pneg %p365
      %p372 = scmp.eq.s32.totalorder %s31, 3
      %p373 = por %p371, %p372
      %p374 = scmp.ne.s32.totalorder %s366, %s369
      %p375 = scmp.eq.s32.totalorder %s31, 0
      %p376 = por %p374, %p375
      %p377 = scmp.ne.s32.totalorder %s366, %s369
      %p378 = scmp.eq.s32.totalorder %s36, 3
      %p379 = por %p377, %p378
      %p380 = scmp.ne.s32.totalorder %s369, %s370
      %p381 = scmp.eq.s32.totalorder %s36, 0
      %p382 = por %p380, %p381
      %p383 = scmp.ne.s32.totalorder %s369, %s370
      %p384 = scmp.eq.s32.totalorder %s37, 3
      %p385 = por %p383, %p384
      %p387 = scmp.ne.s32.totalorder %s370, %s386
      %p388 = scmp.eq.s32.totalorder %s37, 0
      %p389 = por %p387, %p388
      %s390 = ssub.s32 %s39, %s46
      %p391 = scmp.eq.s32.totalorder %s390, 0
      %s393 = sadd.s32 %s392, 1
      %s394 = scalar_select %p391, %s392, %s393
      %p397 = pneg %p391
      %p398 = scmp.eq.s32.totalorder %s31, 3
      %p399 = por %p397, %p398
      %p400 = scmp.ne.s32.totalorder %s392, %s395
      %p401 = scmp.eq.s32.totalorder %s31, 0
      %p402 = por %p400, %p401
      %p403 = scmp.ne.s32.totalorder %s392, %s395
      %p404 = scmp.eq.s32.totalorder %s36, 3
      %p405 = por %p403, %p404
      %p406 = scmp.ne.s32.totalorder %s395, %s396
      %p407 = scmp.eq.s32.totalorder %s36, 0
      %p408 = por %p406, %p407
      %p409 = scmp.ne.s32.totalorder %s395, %s396
      %p410 = scmp.eq.s32.totalorder %s37, 3
      %p411 = por %p409, %p410
      %p413 = scmp.ne.s32.totalorder %s396, %s412
      %p414 = scmp.eq.s32.totalorder %s37, 0
      %p415 = por %p413, %p414
      %s416 = ssub.s32 %s39, %s46
      %p417 = scmp.eq.s32.totalorder %s416, 0
      %s419 = sadd.s32 %s418, 1
      %s420 = scalar_select %p417, %s418, %s419
      %p423 = pneg %p417
      %p424 = scmp.eq.s32.totalorder %s31, 3
      %p425 = por %p423, %p424
      %p426 = scmp.ne.s32.totalorder %s418, %s421
      %p427 = scmp.eq.s32.totalorder %s31, 0
      %p428 = por %p426, %p427
      %p429 = scmp.ne.s32.totalorder %s418, %s421
      %p430 = scmp.eq.s32.totalorder %s36, 3
      %p431 = por %p429, %p430
      %p432 = scmp.ne.s32.totalorder %s421, %s422
      %p433 = scmp.eq.s32.totalorder %s36, 0
      %p434 = por %p432, %p433
      %p435 = scmp.ne.s32.totalorder %s421, %s422
      %p436 = scmp.eq.s32.totalorder %s37, 3
      %p437 = por %p435, %p436
      %p439 = scmp.ne.s32.totalorder %s422, %s438
      %p440 = scmp.eq.s32.totalorder %s37, 0
      %p441 = por %p439, %p440
      %s442 = ssub.s32 %s39, %s46
      %p443 = scmp.eq.s32.totalorder %s442, 0
      %s445 = sadd.s32 %s444, 1
      %s446 = scalar_select %p443, %s444, %s445
      %p449 = pneg %p443
      %p450 = scmp.eq.s32.totalorder %s31, 3
      %p451 = por %p449, %p450
      %p452 = scmp.ne.s32.totalorder %s444, %s447
      %p453 = scmp.eq.s32.totalorder %s31, 0
      %p454 = por %p452, %p453
      %p455 = scmp.ne.s32.totalorder %s444, %s447
      %p456 = scmp.eq.s32.totalorder %s36, 3
      %p457 = por %p455, %p456
      %p458 = scmp.ne.s32.totalorder %s447, %s448
      %p459 = scmp.eq.s32.totalorder %s36, 0
      %p460 = por %p458, %p459
      %p461 = scmp.ne.s32.totalorder %s447, %s448
      %p462 = scmp.eq.s32.totalorder %s37, 3
      %p463 = por %p461, %p462
      %p465 = scmp.ne.s32.totalorder %s448, %s464
      %p466 = scmp.eq.s32.totalorder %s37, 0
      %p467 = por %p465, %p466
      %s468 = ssub.s32 %s39, %s46
      %p469 = scmp.eq.s32.totalorder %s468, 0
      %s471 = sadd.s32 %s470, 1
      %s472 = scalar_select %p469, %s470, %s471
      %p475 = pneg %p469
      %p476 = scmp.eq.s32.totalorder %s31, 3
      %p477 = por %p475, %p476
      %p478 = scmp.ne.s32.totalorder %s470, %s473
      %p479 = scmp.eq.s32.totalorder %s31, 0
      %p480 = por %p478, %p479
      %p481 = scmp.ne.s32.totalorder %s470, %s473
      %p482 = scmp.eq.s32.totalorder %s36, 3
      %p483 = por %p481, %p482
      %p484 = scmp.ne.s32.totalorder %s473, %s474
      %p485 = scmp.eq.s32.totalorder %s36, 0
      %p486 = por %p484, %p485
      %p487 = scmp.ne.s32.totalorder %s473, %s474
      %p488 = scmp.eq.s32.totalorder %s37, 3
      %p489 = por %p487, %p488
      %p491 = scmp.ne.s32.totalorder %s474, %s490
      %p492 = scmp.eq.s32.totalorder %s37, 0
      %p493 = por %p491, %p492
      %s495 = sadd.s32 %s494, 1
      %p498 = scmp.eq.s32.totalorder %s31, 3
      %p499 = scmp.ne.s32.totalorder %s494, %s496
      %p500 = scmp.eq.s32.totalorder %s31, 0
      %p501 = por %p499, %p500
      %p502 = scmp.ne.s32.totalorder %s494, %s496
      %p503 = scmp.eq.s32.totalorder %s36, 3
      %p504 = por %p502, %p503
      %p505 = scmp.ne.s32.totalorder %s496, %s497
      %p506 = scmp.eq.s32.totalorder %s36, 0
      %p507 = por %p505, %p506
      %p508 = scmp.ne.s32.totalorder %s496, %s497
      %p509 = scmp.eq.s32.totalorder %s37, 3
      %p510 = por %p508, %p509
      %p512 = scmp.ne.s32.totalorder %s497, %s511
      %p513 = scmp.eq.s32.totalorder %s37, 0
      %p514 = por %p512, %p513
      %s516 = sadd.s32 %s515, 1
      %p519 = scmp.eq.s32.totalorder %s31, 3
      %p520 = scmp.ne.s32.totalorder %s515, %s517
      %p521 = scmp.eq.s32.totalorder %s31, 0
      %p522 = por %p520, %p521
      %p523 = scmp.ne.s32.totalorder %s515, %s517
      %p524 = scmp.eq.s32.totalorder %s36, 3
      %p525 = por %p523, %p524
      %p526 = scmp.ne.s32.totalorder %s517, %s518
      %p527 = scmp.eq.s32.totalorder %s36, 0
      %p528 = por %p526, %p527
      %p529 = scmp.ne.s32.totalorder %s517, %s518
      %p530 = scmp.eq.s32.totalorder %s37, 3
      %p531 = por %p529, %p530
      %p533 = scmp.ne.s32.totalorder %s518, %s532
      %p534 = scmp.eq.s32.totalorder %s37, 0
      %p535 = por %p533, %p534
      %s537 = sadd.s32 %s536, 1
      %p540 = scmp.eq.s32.totalorder %s31, 3
      %p541 = scmp.ne.s32.totalorder %s536, %s538
      %p542 = scmp.eq.s32.totalorder %s31, 0
      %p543 = por %p541, %p542
      %p544 = scmp.ne.s32.totalorder %s536, %s538
      %p545 = scmp.eq.s32.totalorder %s36, 3
      %p546 = por %p544, %p545
      %p547 = scmp.ne.s32.totalorder %s538, %s539
      %p548 = scmp.eq.s32.totalorder %s36, 0
      %p549 = por %p547, %p548
      %p550 = scmp.ne.s32.totalorder %s538, %s539
      %p551 = scmp.eq.s32.totalorder %s37, 3
      %p552 = por %p550, %p551
      %p554 = scmp.ne.s32.totalorder %s539, %s553
      %p555 = scmp.eq.s32.totalorder %s37, 0
      %p556 = por %p554, %p555
      %s558 = sadd.s32 %s557, 1
      %p561 = scmp.eq.s32.totalorder %s31, 3
      %p562 = scmp.ne.s32.totalorder %s557, %s559
      %p563 = scmp.eq.s32.totalorder %s31, 0
      %p564 = por %p562, %p563
      %p565 = scmp.ne.s32.totalorder %s557, %s559
      %p566 = scmp.eq.s32.totalorder %s36, 3
      %p567 = por %p565, %p566
      %p568 = scmp.ne.s32.totalorder %s559, %s560
      %p569 = scmp.eq.s32.totalorder %s36, 0
      %p570 = por %p568, %p569
      %p571 = scmp.ne.s32.totalorder %s559, %s560
      %p572 = scmp.eq.s32.totalorder %s37, 3
      %p573 = por %p571, %p572
      %p575 = scmp.ne.s32.totalorder %s560, %s574
      %p576 = scmp.eq.s32.totalorder %s37, 0
      %p577 = por %p575, %p576
      %s578 = ssub.s32 %s38, %s50
      %p579 = scmp.eq.s32.totalorder %s578, 0
      %s581 = sadd.s32 %s580, 1
      %s582 = scalar_select %p579, %s580, %s581
      %p585 = pneg %p579
      %p586 = scmp.eq.s32.totalorder %s31, 3
      %p587 = por %p585, %p586
      %p588 = scmp.ne.s32.totalorder %s580, %s583
      %p589 = scmp.eq.s32.totalorder %s31, 0
      %p590 = por %p588, %p589
      %p591 = scmp.ne.s32.totalorder %s580, %s583
      %p592 = scmp.eq.s32.totalorder %s36, 3
      %p593 = por %p591, %p592
      %p594 = scmp.ne.s32.totalorder %s583, %s584
      %p595 = scmp.eq.s32.totalorder %s36, 0
      %p596 = por %p594, %p595
      %p597 = scmp.ne.s32.totalorder %s583, %s584
      %p598 = scmp.eq.s32.totalorder %s37, 3
      %p599 = por %p597, %p598
      %p601 = scmp.ne.s32.totalorder %s584, %s600
      %p602 = scmp.eq.s32.totalorder %s37, 0
      %p603 = por %p601, %p602
      %p604 = scmp.le.s32.totalorder 1, %s31
      %p605 = scmp.lt.s32.totalorder %s31, 5
      %p606 = pnand %p604, %p605
      %p607 = pneg %p606
      // Predicated region
      $region9: #{wavet_forward.3} parent=5 // pred_check
        _
      $region10: #{wavet_forward.3} parent=5 // pred_check_branch
        %609 = sbr.rel (%p606) target = $region12
      $region11: #{wavet_forward.3} parent=5 // pred_region
        %s610 = ssub.s32 %s31, 1
        // Predicated region
        $region13: #{wavet_forward.3} parent=11 // pred_check
          %p611 = pneg %p90
        $region14: #{wavet_forward.3} parent=11 // pred_check_branch
          %613 = sbr.rel (%p611) target = $region16
        $region15: #{wavet_forward.3} parent=11 // pred_region
          _
        $region16: #{wavet_forward.3} parent=11 // pred_fallthru
          _
        // Predicated region
        $region17: #{wavet_forward.3} parent=11 // pred_check
          %p614 = pneg %p111
        $region18: #{wavet_forward.3} parent=11 // pred_check_branch
          %616 = sbr.rel (%p614) target = $region20
        $region19: #{wavet_forward.3} parent=11 // pred_region
          _
        $region20: #{wavet_forward.3} parent=11 // pred_fallthru
          _
        // Predicated region
        $region21: #{wavet_forward.3} parent=11 // pred_check
          %p617 = pneg %p132
        $region22: #{wavet_forward.3} parent=11 // pred_check_branch
          %619 = sbr.rel (%p617) target = $region24
        $region23: #{wavet_forward.3} parent=11 // pred_region
          _
        $region24: #{wavet_forward.3} parent=11 // pred_fallthru
          _
        // Predicated region
        $region25: #{wavet_forward.3} parent=11 // pred_check
          %p620 = pneg %p153
        $region26: #{wavet_forward.3} parent=11 // pred_check_branch
          %622 = sbr.rel (%p620) target = $region28
        $region27: #{wavet_forward.3} parent=11 // pred_region
          _
        $region28: #{wavet_forward.3} parent=11 // pred_fallthru
          _
        // Predicated region
        $region29: #{wavet_forward.3} parent=11 // pred_check
          %p623 = pneg %p174
        $region30: #{wavet_forward.3} parent=11 // pred_check_branch
          %625 = sbr.rel (%p623) target = $region32
        $region31: #{wavet_forward.3} parent=11 // pred_region
          _
        $region32: #{wavet_forward.3} parent=11 // pred_fallthru
          _
        // Predicated region
        $region33: #{wavet_forward.3} parent=11 // pred_check
          %p626 = pneg %p507
        $region34: #{wavet_forward.3} parent=11 // pred_check_branch
          %628 = sbr.rel (%p626) target = $region36
        $region35: #{wavet_forward.3} parent=11 // pred_region
          _
        $region36: #{wavet_forward.3} parent=11 // pred_fallthru
          _
        // Predicated region
        $region37: #{wavet_forward.3} parent=11 // pred_check
          %p629 = pneg %p528
        $region38: #{wavet_forward.3} parent=11 // pred_check_branch
          %631 = sbr.rel (%p629) target = $region40
        $region39: #{wavet_forward.3} parent=11 // pred_region
          _
        $region40: #{wavet_forward.3} parent=11 // pred_fallthru
          _
        // Predicated region
        $region41: #{wavet_forward.3} parent=11 // pred_check
          %p632 = pneg %p549
        $region42: #{wavet_forward.3} parent=11 // pred_check_branch
          %634 = sbr.rel (%p632) target = $region44
        $region43: #{wavet_forward.3} parent=11 // pred_region
          _
        $region44: #{wavet_forward.3} parent=11 // pred_fallthru
          _
        // Predicated region
        $region45: #{wavet_forward.3} parent=11 // pred_check
          %p635 = pneg %p570
        $region46: #{wavet_forward.3} parent=11 // pred_check_branch
          %637 = sbr.rel (%p635) target = $region48
        $region47: #{wavet_forward.3} parent=11 // pred_region
          _
        $region48: #{wavet_forward.3} parent=11 // pred_fallthru
          _
      $region12: #{wavet_forward.3} parent=5 // pred_fallthru
        _
      %p638 = scmp.lt.s32.totalorder %s31, 4
      // Predicated region
      $region49: #{wavet_forward.3} parent=5 // pred_check
        %p639 = pneg %p638
      $region50: #{wavet_forward.3} parent=5 // pred_check_branch
        %641 = sbr.rel (%p639) target = $region52
      $region51: #{wavet_forward.3} parent=5 // pred_region
        // Predicated region
        $region53: #{wavet_forward.3} parent=51 // pred_check
          %p642 = pneg %p63
        $region54: #{wavet_forward.3} parent=51 // pred_check_branch
          %644 = sbr.rel (%p642) target = $region56
        $region55: #{wavet_forward.3} parent=51 // pred_region
          %p645 = scmp.lt.s32.totalorder %s38, 1
          %s646 = scalar_select %p645, %s38, 1
          %s647 = smul.addr %s646, 2
          %s648 = smul.addr %s647, 4
          %s649 = scalar_lea.vmem %s0, %s648
        $region56: #{wavet_forward.3} parent=51 // pred_fallthru
          _
        // Predicated region
        $region57: #{wavet_forward.3} parent=51 // pred_check
          %p650 = pneg %p194
        $region58: #{wavet_forward.3} parent=51 // pred_check_branch
          %652 = sbr.rel (%p650) target = $region60
        $region59: #{wavet_forward.3} parent=51 // pred_region
          %p653 = scmp.lt.s32.totalorder %s39, 1
          %s654 = scalar_select %p653, %s39, 1
          %s655 = scalar_lea.vmem %s6, %s654
        $region60: #{wavet_forward.3} parent=51 // pred_fallthru
          _
        // Predicated region
        $region61: #{wavet_forward.3} parent=51 // pred_check
          %p656 = pneg %p220
        $region62: #{wavet_forward.3} parent=51 // pred_check_branch
          %658 = sbr.rel (%p656) target = $region64
        $region63: #{wavet_forward.3} parent=51 // pred_region
          %p659 = scmp.lt.s32.totalorder %s39, 1
          %s660 = scalar_select %p659, %s39, 1
          %s661 = scalar_lea.vmem %s7, %s660
        $region64: #{wavet_forward.3} parent=51 // pred_fallthru
          _
        // Predicated region
        $region65: #{wavet_forward.3} parent=51 // pred_check
          %p662 = pneg %p246
        $region66: #{wavet_forward.3} parent=51 // pred_check_branch
          %664 = sbr.rel (%p662) target = $region68
        $region67: #{wavet_forward.3} parent=51 // pred_region
          %p665 = scmp.lt.s32.totalorder %s39, 1
          %s666 = scalar_select %p665, %s39, 1
          %s667 = smul.addr %s666, 16
          %s668 = smul.addr %s667, 4
          %s669 = scalar_lea.vmem %s8, %s668
        $region68: #{wavet_forward.3} parent=51 // pred_fallthru
          _
        // Predicated region
        $region69: #{wavet_forward.3} parent=51 // pred_check
          %p670 = pneg %p272
        $region70: #{wavet_forward.3} parent=51 // pred_check_branch
          %672 = sbr.rel (%p670) target = $region72
        $region71: #{wavet_forward.3} parent=51 // pred_region
          %p673 = scmp.lt.s32.totalorder %s39, 1
          %s674 = scalar_select %p673, %s39, 1
          %s675 = smul.addr %s674, 2
          %s676 = scalar_lea.vmem %s9, %s675
        $region72: #{wavet_forward.3} parent=51 // pred_fallthru
          _
        // Predicated region
        $region73: #{wavet_forward.3} parent=51 // pred_check
          %p677 = pneg %p298
        $region74: #{wavet_forward.3} parent=51 // pred_check_branch
          %679 = sbr.rel (%p677) target = $region76
        $region75: #{wavet_forward.3} parent=51 // pred_region
          %p680 = scmp.lt.s32.totalorder %s39, 1
          %s681 = scalar_select %p680, %s39, 1
          %s682 = smul.addr %s681, 8
          %s683 = smul.addr %s682, 4
          %s684 = scalar_lea.vmem %s10, %s683
        $region76: #{wavet_forward.3} parent=51 // pred_fallthru
          _
        // Predicated region
        $region77: #{wavet_forward.3} parent=51 // pred_check
          %p685 = pneg %p324
        $region78: #{wavet_forward.3} parent=51 // pred_check_branch
          %687 = sbr.rel (%p685) target = $region80
        $region79: #{wavet_forward.3} parent=51 // pred_region
          %p688 = scmp.lt.s32.totalorder %s39, 1
          %s689 = scalar_select %p688, %s39, 1
          %s690 = scalar_lea.vmem %s11, %s689
        $region80: #{wavet_forward.3} parent=51 // pred_fallthru
          _
        // Predicated region
        $region81: #{wavet_forward.3} parent=51 // pred_check
          %p691 = pneg %p350
        $region82: #{wavet_forward.3} parent=51 // pred_check_branch
          %693 = sbr.rel (%p691) target = $region84
        $region83: #{wavet_forward.3} parent=51 // pred_region
          %p694 = scmp.lt.s32.totalorder %s39, 1
          %s695 = scalar_select %p694, %s39, 1
          %s696 = scalar_lea.vmem %s12, %s695
        $region84: #{wavet_forward.3} parent=51 // pred_fallthru
          _
        // Predicated region
        $region85: #{wavet_forward.3} parent=51 // pred_check
          %p697 = pneg %p376
        $region86: #{wavet_forward.3} parent=51 // pred_check_branch
          %699 = sbr.rel (%p697) target = $region88
        $region87: #{wavet_forward.3} parent=51 // pred_region
          %p700 = scmp.lt.s32.totalorder %s39, 1
          %s701 = scalar_select %p700, %s39, 1
          %s702 = scalar_lea.vmem %s13, %s701
        $region88: #{wavet_forward.3} parent=51 // pred_fallthru
          _
        // Predicated region
        $region89: #{wavet_forward.3} parent=51 // pred_check
          %p703 = pneg %p402
        $region90: #{wavet_forward.3} parent=51 // pred_check_branch
          %705 = sbr.rel (%p703) target = $region92
        $region91: #{wavet_forward.3} parent=51 // pred_region
          %p706 = scmp.lt.s32.totalorder %s39, 1
          %s707 = scalar_select %p706, %s39, 1
          %s708 = smul.addr %s707, 16
          %s709 = smul.addr %s708, 4
          %s710 = scalar_lea.vmem %s14, %s709
        $region92: #{wavet_forward.3} parent=51 // pred_fallthru
          _
        // Predicated region
        $region93: #{wavet_forward.3} parent=51 // pred_check
          %p711 = pneg %p428
        $region94: #{wavet_forward.3} parent=51 // pred_check_branch
          %713 = sbr.rel (%p711) target = $region96
        $region95: #{wavet_forward.3} parent=51 // pred_region
          %p714 = scmp.lt.s32.totalorder %s39, 1
          %s715 = scalar_select %p714, %s39, 1
          %s716 = smul.addr %s715, 2
          %s717 = scalar_lea.vmem %s15, %s716
        $region96: #{wavet_forward.3} parent=51 // pred_fallthru
          _
        // Predicated region
        $region97: #{wavet_forward.3} parent=51 // pred_check
          %p718 = pneg %p454
        $region98: #{wavet_forward.3} parent=51 // pred_check_branch
          %720 = sbr.rel (%p718) target = $region100
        $region99: #{wavet_forward.3} parent=51 // pred_region
          %p721 = scmp.lt.s32.totalorder %s39, 1
          %s722 = scalar_select %p721, %s39, 1
          %s723 = smul.addr %s722, 32
          %s724 = smul.addr %s723, 4
          %s725 = scalar_lea.vmem %s16, %s724
        $region100: #{wavet_forward.3} parent=51 // pred_fallthru
          _
        // Predicated region
        $region101: #{wavet_forward.3} parent=51 // pred_check
          %p726 = pneg %p480
        $region102: #{wavet_forward.3} parent=51 // pred_check_branch
          %728 = sbr.rel (%p726) target = $region104
        $region103: #{wavet_forward.3} parent=51 // pred_region
          %p729 = scmp.lt.s32.totalorder %s39, 1
          %s730 = scalar_select %p729, %s39, 1
          %s731 = scalar_lea.vmem %s17, %s730
        $region104: #{wavet_forward.3} parent=51 // pred_fallthru
          _
      $region52: #{wavet_forward.3} parent=5 // pred_fallthru
        _
      %p732 = scmp.le.s32.totalorder 1, %s31
      %p733 = scmp.lt.s32.totalorder %s31, 5
      %p734 = pnand %p732, %p733
      %p735 = pneg %p734
      // Predicated region
      $region105: #{wavet_forward.3} parent=5 // pred_check
        _
      $region106: #{wavet_forward.3} parent=5 // pred_check_branch
        %737 = sbr.rel (%p734) target = $region108
      $region107: #{wavet_forward.3} parent=5 // pred_region
        %s738 = ssub.s32 %s31, 1
        %p739 = scmp.lt.s32.totalorder %s40, 1
        %s740 = scalar_select %p739, %s40, 1
        %s741 = smul.addr %s740, 2
        %s742 = smul.addr %s741, 4
        %s743 = scalar_lea.vmem %s0, %s742
        %p744 = pneg %p69
        %p745 = pneg %p66
        %p746 = pneg %p90
        %p747 = pneg %p87
        %p748 = pneg %p111
        %p749 = pneg %p108
        %p750 = pneg %p132
        %p751 = pneg %p129
        %p752 = pneg %p153
        %p753 = pneg %p150
        %p754 = pneg %p174
        %p755 = pneg %p171
        %p756 = scmp.lt.s32.totalorder %s41, 1
        %s757 = scalar_select %p756, %s41, 1
        %s758 = scalar_lea.vmem %s6, %s757
        %p759 = pneg %p200
        %p760 = pneg %p197
        %p761 = scmp.lt.s32.totalorder %s41, 1
        %s762 = scalar_select %p761, %s41, 1
        %s763 = scalar_lea.vmem %s7, %s762
        %p764 = pneg %p226
        %p765 = pneg %p223
        %p766 = scmp.lt.s32.totalorder %s41, 1
        %s767 = scalar_select %p766, %s41, 1
        %s768 = smul.addr %s767, 16
        %s769 = smul.addr %s768, 4
        %s770 = scalar_lea.vmem %s8, %s769
        %p771 = pneg %p252
        %p772 = pneg %p249
        %p773 = scmp.lt.s32.totalorder %s41, 1
        %s774 = scalar_select %p773, %s41, 1
        %s775 = smul.addr %s774, 2
        %s776 = scalar_lea.vmem %s9, %s775
        %p777 = pneg %p278
        %p778 = pneg %p275
        %p779 = scmp.lt.s32.totalorder %s41, 1
        %s780 = scalar_select %p779, %s41, 1
        %s781 = smul.addr %s780, 8
        %s782 = smul.addr %s781, 4
        %s783 = scalar_lea.vmem %s10, %s782
        %p784 = pneg %p304
        %p785 = pneg %p301
        %p786 = scmp.lt.s32.totalorder %s41, 1
        %s787 = scalar_select %p786, %s41, 1
        %s788 = scalar_lea.vmem %s11, %s787
        %p789 = pneg %p330
        %p790 = pneg %p327
        %p791 = scmp.lt.s32.totalorder %s41, 1
        %s792 = scalar_select %p791, %s41, 1
        %s793 = scalar_lea.vmem %s12, %s792
        %p794 = pneg %p356
        %p795 = pneg %p353
        %p796 = scmp.lt.s32.totalorder %s41, 1
        %s797 = scalar_select %p796, %s41, 1
        %s798 = scalar_lea.vmem %s13, %s797
        %p799 = pneg %p382
        %p800 = pneg %p379
        %p801 = scmp.lt.s32.totalorder %s41, 1
        %s802 = scalar_select %p801, %s41, 1
        %s803 = smul.addr %s802, 16
        %s804 = smul.addr %s803, 4
        %s805 = scalar_lea.vmem %s14, %s804
        %p806 = pneg %p408
        %p807 = pneg %p405
        %p808 = scmp.lt.s32.totalorder %s41, 1
        %s809 = scalar_select %p808, %s41, 1
        %s810 = smul.addr %s809, 2
        %s811 = scalar_lea.vmem %s15, %s810
        %p812 = pneg %p434
        %p813 = pneg %p431
        %p814 = scmp.lt.s32.totalorder %s41, 1
        %s815 = scalar_select %p814, %s41, 1
        %s816 = smul.addr %s815, 32
        %s817 = smul.addr %s816, 4
        %s818 = scalar_lea.vmem %s16, %s817
        %p819 = pneg %p460
        %p820 = pneg %p457
        %p821 = scmp.lt.s32.totalorder %s41, 1
        %s822 = scalar_select %p821, %s41, 1
        %s823 = scalar_lea.vmem %s17, %s822
        %p824 = pneg %p486
        %p825 = pneg %p483
        %p826 = pneg %p507
        %p827 = pneg %p504
        %p828 = pneg %p528
        %p829 = pneg %p525
        %p830 = pneg %p549
        %p831 = pneg %p546
        %p832 = pneg %p570
        %p833 = pneg %p567
        %p834 = pneg %p596
        %p835 = pneg %p593
        %s836 = sand.u32 %s583, 1
        %s837 = scalar_lea.sflag [#allocation4], %s836
        %s838 = sand.u32 %s583, 1
        %s839 = scalar_lea.vmem [#allocation3], %s838
        %p840 = scmp.lt.s32.totalorder %s40, 1
        %s841 = scalar_select %p840, %s40, 1
        %s842 = smul.addr %s841, 2
        %s843 = smul.addr %s842, 4
        %s844 = scalar_lea.vmem %s0, %s843
        %p845 = scmp.lt.s32.totalorder %s41, 1
        %s846 = scalar_select %p845, %s41, 1
        %s847 = scalar_lea.vmem %s6, %s846
        %p848 = scmp.lt.s32.totalorder %s41, 1
        %s849 = scalar_select %p848, %s41, 1
        %s850 = scalar_lea.vmem %s7, %s849
        %p851 = scmp.lt.s32.totalorder %s41, 1
        %s852 = scalar_select %p851, %s41, 1
        %s853 = smul.addr %s852, 16
        %s854 = smul.addr %s853, 4
        %s855 = scalar_lea.vmem %s8, %s854
        %p856 = scmp.lt.s32.totalorder %s41, 1
        %s857 = scalar_select %p856, %s41, 1
        %s858 = smul.addr %s857, 2
        %s859 = scalar_lea.vmem %s9, %s858
        %p860 = scmp.lt.s32.totalorder %s41, 1
        %s861 = scalar_select %p860, %s41, 1
        %s862 = smul.addr %s861, 8
        %s863 = smul.addr %s862, 4
        %s864 = scalar_lea.vmem %s10, %s863
        %p865 = scmp.lt.s32.totalorder %s41, 1
        %s866 = scalar_select %p865, %s41, 1
        %s867 = scalar_lea.vmem %s11, %s866
        %p868 = scmp.lt.s32.totalorder %s41, 1
        %s869 = scalar_select %p868, %s41, 1
        %s870 = scalar_lea.vmem %s12, %s869
        %p871 = scmp.lt.s32.totalorder %s41, 1
        %s872 = scalar_select %p871, %s41, 1
        %s873 = scalar_lea.vmem %s13, %s872
        %p874 = scmp.lt.s32.totalorder %s41, 1
        %s875 = scalar_select %p874, %s41, 1
        %s876 = smul.addr %s875, 16
        %s877 = smul.addr %s876, 4
        %s878 = scalar_lea.vmem %s14, %s877
        %p879 = scmp.lt.s32.totalorder %s41, 1
        %s880 = scalar_select %p879, %s41, 1
        %s881 = smul.addr %s880, 2
        %s882 = scalar_lea.vmem %s15, %s881
        %p883 = scmp.lt.s32.totalorder %s41, 1
        %s884 = scalar_select %p883, %s41, 1
        %s885 = smul.addr %s884, 32
        %s886 = smul.addr %s885, 4
        %s887 = scalar_lea.vmem %s16, %s886
        %p888 = scmp.lt.s32.totalorder %s41, 1
        %s889 = scalar_select %p888, %s41, 1
        %s890 = scalar_lea.vmem %s17, %s889
        %p892 = scmp.eq.s32.totalorder %s41, 0
        // Predicated region
        $region109: #{wavet_forward.3} parent=107 // pred_check
          %p893 = pneg %p892
        $region110: #{wavet_forward.3} parent=107 // pred_check_branch
          %895 = sbr.rel (%p893) target = $region112
        $region111: #{wavet_forward.3} parent=107 // pred_region
          %v896 = vld [vmem:[%s844] sm:$0xf]
          %v897 = vld [vmem:[%s844 + $0x4] sm:$0xf]
          %v898 = vld [vmem:[%s2] sm:$0xf]
          %v899 = vld [vmem:[%s2 + $0x4] sm:$0xf]
          %v900 = vld [vmem:[%s2 + $0x8] sm:$0xf]
          %v901 = vld [vmem:[%s2 + $0xc] sm:$0xf]
          %v902 = vld [vmem:[%s2 + $0x10] sm:$0xf]
          %v903 = vld [vmem:[%s2 + $0x14] sm:$0xf]
          %v904 = vld [vmem:[%s2 + $0x18] sm:$0xf]
          %v905 = vld [vmem:[%s2 + $0x1c] sm:$0xf]
          %v906 = vld [vmem:[%s2 + $0x20] sm:$0xf]
          %v907 = vld [vmem:[%s2 + $0x24] sm:$0xf]
          %v908 = vld [vmem:[%s2 + $0x28] sm:$0xf]
          %v909 = vld [vmem:[%s2 + $0x2c] sm:$0xf]
          %v910 = vld [vmem:[%s2 + $0x30] sm:$0xf]
          %v911 = vld [vmem:[%s2 + $0x34] sm:$0xf]
          %v912 = vld [vmem:[%s2 + $0x38] sm:$0xf]
          %v913 = vld [vmem:[%s2 + $0x3c] sm:$0xf]
          %v914 = vld [vmem:[%s3] sm:$0x1]
          %v916 = vlaneseq
          %v917 = vshrl.u32 %v916, 7
          %v918 = vsub.s32 0, %v917
          %v919 = vrot.slane %v914, %v918
          %v923 = vunpack.c.l.b16 %v896
          %v924 = vunpack.c.l.b16 %v897
          %v925 = vpack.c.b16 %v924, %v923
          %v943 = vunpack.c.l.b16 %v898
          %v944 = vunpack.c.l.b16 %v899
          %v945 = vunpack.c.l.b16 %v900
          %v946 = vunpack.c.l.b16 %v901
          %v947 = vunpack.c.l.b16 %v902
          %v948 = vunpack.c.l.b16 %v903
          %v949 = vunpack.c.l.b16 %v904
          %v950 = vunpack.c.l.b16 %v905
          %v951 = vunpack.c.l.b16 %v906
          %v952 = vunpack.c.l.b16 %v907
          %v953 = vunpack.c.l.b16 %v908
          %v954 = vunpack.c.l.b16 %v909
          %v955 = vunpack.c.l.b16 %v910
          %v956 = vunpack.c.l.b16 %v911
          %v957 = vunpack.c.l.b16 %v912
          %v958 = vunpack.c.l.b16 %v913
          %v959 = vpack.c.b16 %v944, %v943
          %v960 = vpack.c.b16 %v946, %v945
          %v961 = vpack.c.b16 %v948, %v947
          %v962 = vpack.c.b16 %v950, %v949
          %v963 = vpack.c.b16 %v952, %v951
          %v964 = vpack.c.b16 %v954, %v953
          %v965 = vpack.c.b16 %v956, %v955
          %v966 = vpack.c.b16 %v958, %v957
          %975 = vmatprep.subr.bf16.mxu0 0
          %976 = vmatpush1.bf16.msra.mxu0 %v959
          %977 = vmatprep.subr.bf16.mxu0 0
          %978 = vmatpush1.bf16.msra.mxu0 %v960
          %979 = vmatprep.subr.bf16.mxu0 0
          %980 = vmatpush1.bf16.msra.mxu0 %v961
          %981 = vmatprep.subr.bf16.mxu0 0
          %982 = vmatpush1.bf16.msra.mxu0 %v962
          %983 = vmatprep.subr.bf16.mxu0 0
          %984 = vmatpush1.bf16.msra.mxu0 %v963
          %985 = vmatprep.subr.bf16.mxu0 0
          %986 = vmatpush1.bf16.msra.mxu0 %v964
          %987 = vmatprep.subr.bf16.mxu0 0
          %988 = vmatpush1.bf16.msra.mxu0 %v965
          %989 = vmatprep.subr.bf16.mxu0 0
          %990 = vmatpush1.bf16.msra.mxu0 %v966
          %991 = vmatprep.subr.bf16.mxu0 0
          %992 = vmatpush1.bf16.msra.mxu0 0
          %993 = vmatprep.subr.bf16.mxu0 0
          %994 = vmatpush1.bf16.msra.mxu0 0
          %995 = vmatprep.subr.bf16.mxu0 0
          %996 = vmatpush1.bf16.msra.mxu0 0
          %997 = vmatprep.subr.bf16.mxu0 0
          %998 = vmatpush1.bf16.msra.mxu0 0
          %999 = vmatprep.subr.bf16.mxu0 0
          %1000 = vmatpush1.bf16.msra.mxu0 0
          %1001 = vmatprep.subr.bf16.mxu0 0
          %1002 = vmatpush1.bf16.msra.mxu0 0
          %1003 = vmatprep.subr.bf16.mxu0 0
          %1004 = vmatpush1.bf16.msra.mxu0 0
          %1005 = vmatprep.subr.bf16.mxu0 0
          %1006 = vmatpush1.bf16.msra.mxu0 0
          %1007 = vmatprep.mubr.bf16.mxu0 0
          %1008 = vmatmul.mubr.bf16.gmra.mrb[0].mxu0 %v925
          %v1009 = vpop.f32.mrb[0].mxu0
          %v1010 = vadd.f32 %v919, %v1009
          %v1011 = vpop.f32.mrb[0].mxu0
          %v1012 = vpop.f32.mrb[0].mxu0
          %v1013 = vadd.f32 %v919, %v1012
          %v1014 = vpop.f32.mrb[0].mxu0
          %1015 = vdwg.mxu0
          %v1016 = vld [vmem:[%s4] sm:$0x1]
          %v1017 = vld [vmem:[%s5] sm:$0x1]
          %vm1018 = vcmask 523264
          %v1019 = vsel %vm1018, %v1010, 0.0
          %1020 = vadd.xlane.f32.xlu0 %v1019
          %v1021 = vpop.xlane.xlu0 %1020
          %v1022 = vsel %vm1018, %v1013, 0.0
          %1023 = vadd.xlane.f32.xlu0 %v1022
          %v1024 = vpop.xlane.xlu0 %1023
          %v1025 = vrcp.pop 64.0
          %v1026 = vmul.f32 %v1021, %v1025
          %v1027 = vmul.f32 %v1024, %v1025
          %v1028 = vsub.f32 %v1010, %v1026
          %v1029 = vsub.f32 %v1013, %v1027
          %v1030 = vmul.f32 %v1028, %v1028
          %v1031 = vmul.f32 %v1029, %v1029
          %v1032 = vsel %vm1018, %v1030, 0.0
          %1033 = vadd.xlane.f32.xlu0 %v1032
          %v1034 = vpop.xlane.xlu0 %1033
          %v1035 = vsel %vm1018, %v1031, 0.0
          %1036 = vadd.xlane.f32.xlu0 %v1035
          %v1037 = vpop.xlane.xlu0 %1036
          %v1038 = vmul.f32 %v1034, %v1025
          %v1039 = vmul.f32 %v1037, %v1025
          %v1040 = vadd.f32 %v1038, 1e-06
          %v1041 = vadd.f32 %v1039, 1e-06
          %v1042 = vrsqrt.pop %v1040
          %v1043 = vrsqrt.pop %v1041
          %v1044 = vmul.f32 %v1028, %v1042
          %v1045 = vmul.f32 %v1029, %v1043
          %v1047 = vlaneseq
          %v1048 = vshrl.u32 %v1047, 7
          %v1049 = vsub.s32 0, %v1048
          %v1050 = vrot.slane %v1016, %v1049
          %v1052 = vmul.f32 %v1044, %v1050
          %v1053 = vmul.f32 %v1045, %v1050
          %v1055 = vlaneseq
          %v1056 = vshrl.u32 %v1055, 7
          %v1057 = vsub.s32 0, %v1056
          %v1058 = vrot.slane %v1017, %v1057
          %v1060 = vadd.f32 %v1052, %v1058
          %v1061 = vadd.f32 %v1053, %v1058
          %v1062 = vld [vmem:[%s1] sm:$0xff]
          %v1063 = vld [vmem:[%s1 + $0x8] sm:$0xff]
          %v1064 = vadd.f32 %v1060, %v1062
          %v1065 = vadd.f32 %v1061, %v1063
          %1066 = vst.msk [vmem:[#allocation2] sm:$0xff] %vm1018, %v1064
          %1067 = vst.msk [vmem:[#allocation2 + $0x8] sm:$0xff] %vm1018, %v1065
        $region112: #{wavet_forward.3} parent=107 // pred_fallthru
          _
        %v1068 = vld [vmem:[#allocation2] sm:$0xff]
        %v1069 = vld [vmem:[#allocation2 + $0x8] sm:$0xff]
        %v1070 = vld [vmem:[%s847] sm:$0x1]
        %v1071 = vld [vmem:[%s850] sm:$0x1]
        %vm1072 = vcmask 523264
        %v1073 = vsel %vm1072, %v1068, 0.0
        %1074 = vadd.xlane.f32.xlu0 %v1073
        %v1075 = vpop.xlane.xlu0 %1074
        %v1076 = vsel %vm1072, %v1069, 0.0
        %1077 = vadd.xlane.f32.xlu0 %v1076
        %v1078 = vpop.xlane.xlu0 %1077
        %v1079 = vrcp.pop 64.0
        %v1080 = vmul.f32 %v1075, %v1079
        %v1081 = vmul.f32 %v1078, %v1079
        %v1082 = vsub.f32 %v1068, %v1080
        %v1083 = vsub.f32 %v1069, %v1081
        %v1084 = vmul.f32 %v1082, %v1082
        %v1085 = vmul.f32 %v1083, %v1083
        %v1086 = vsel %vm1072, %v1084, 0.0
        %1087 = vadd.xlane.f32.xlu0 %v1086
        %v1088 = vpop.xlane.xlu0 %1087
        %v1089 = vsel %vm1072, %v1085, 0.0
        %1090 = vadd.xlane.f32.xlu0 %v1089
        %v1091 = vpop.xlane.xlu0 %1090
        %v1092 = vmul.f32 %v1088, %v1079
        %v1093 = vmul.f32 %v1091, %v1079
        %v1094 = vadd.f32 %v1092, 1e-06
        %v1095 = vadd.f32 %v1093, 1e-06
        %v1096 = vrsqrt.pop %v1094
        %v1097 = vrsqrt.pop %v1095
        %v1098 = vmul.f32 %v1082, %v1096
        %v1099 = vmul.f32 %v1083, %v1097
        %v1101 = vlaneseq
        %v1102 = vshrl.u32 %v1101, 7
        %v1103 = vsub.s32 0, %v1102
        %v1104 = vrot.slane %v1070, %v1103
        %v1106 = vmul.f32 %v1098, %v1104
        %v1107 = vmul.f32 %v1099, %v1104
        %v1109 = vlaneseq
        %v1110 = vshrl.u32 %v1109, 7
        %v1111 = vsub.s32 0, %v1110
        %v1112 = vrot.slane %v1071, %v1111
        %v1114 = vadd.f32 %v1106, %v1112
        %v1115 = vadd.f32 %v1107, %v1112
        %v1116 = vpack.c.bf16 %v1115, %v1114
        %v1117 = vld [vmem:[%s855] sm:$0xff]
        %v1118 = vld [vmem:[%s855 + $0x8] sm:$0xff]
        %v1119 = vld [vmem:[%s855 + $0x10] sm:$0xff]
        %v1120 = vld [vmem:[%s855 + $0x18] sm:$0xff]
        %v1121 = vld [vmem:[%s855 + $0x20] sm:$0xff]
        %v1122 = vld [vmem:[%s855 + $0x28] sm:$0xff]
        %v1123 = vld [vmem:[%s855 + $0x30] sm:$0xff]
        %v1124 = vld [vmem:[%s855 + $0x38] sm:$0xff]
        %v1125 = vld [vmem:[%s859] sm:$0x3]
        %v1127 = vlaneseq
        %v1128 = vshrl.u32 %v1127, 7
        %v1129 = vsub.s32 0, %v1128
        %v1130 = vrot.slane %v1125, %v1129
        %v1131 = vlaneseq
        %v1132 = vshrl.u32 %v1131, 7
        %v1133 = vsub.s32 1, %v1132
        %v1134 = vrot.slane %v1125, %v1133
        %v1145 = vunpack.c.l.b16 %v1117
        %v1146 = vunpack.c.h.b16 %v1117
        %v1147 = vunpack.c.l.b16 %v1118
        %v1148 = vunpack.c.h.b16 %v1118
        %v1149 = vunpack.c.l.b16 %v1119
        %v1150 = vunpack.c.h.b16 %v1119
        %v1151 = vunpack.c.l.b16 %v1120
        %v1152 = vunpack.c.h.b16 %v1120
        %v1153 = vunpack.c.l.b16 %v1121
        %v1154 = vunpack.c.h.b16 %v1121
        %v1155 = vunpack.c.l.b16 %v1122
        %v1156 = vunpack.c.h.b16 %v1122
        %v1157 = vunpack.c.l.b16 %v1123
        %v1158 = vunpack.c.h.b16 %v1123
        %v1159 = vunpack.c.l.b16 %v1124
        %v1160 = vunpack.c.h.b16 %v1124
        %v1161 = vpack.c.b16 %v1147, %v1145
        %v1162 = vpack.c.b16 %v1148, %v1146
        %v1163 = vpack.c.b16 %v1151, %v1149
        %v1164 = vpack.c.b16 %v1152, %v1150
        %v1165 = vpack.c.b16 %v1155, %v1153
        %v1166 = vpack.c.b16 %v1156, %v1154
        %v1167 = vpack.c.b16 %v1159, %v1157
        %v1168 = vpack.c.b16 %v1160, %v1158
        %v1178 = vsel %vm1072, %v1116, 0
        %1180 = vmatprep.subr.bf16.mxu0 %v1162
        %1181 = vmatpush1.bf16.msra.mxu0 %v1161
        %1182 = vmatprep.subr.bf16.mxu0 %v1164
        %1183 = vmatpush1.bf16.msra.mxu0 %v1163
        %1184 = vmatprep.subr.bf16.mxu0 %v1166
        %1185 = vmatpush1.bf16.msra.mxu0 %v1165
        %1186 = vmatprep.subr.bf16.mxu0 %v1168
        %1187 = vmatpush1.bf16.msra.mxu0 %v1167
        %1188 = vmatprep.subr.bf16.mxu0 0
        %1189 = vmatpush1.bf16.msra.mxu0 0
        %1190 = vmatprep.subr.bf16.mxu0 0
        %1191 = vmatpush1.bf16.msra.mxu0 0
        %1192 = vmatprep.subr.bf16.mxu0 0
        %1193 = vmatpush1.bf16.msra.mxu0 0
        %1194 = vmatprep.subr.bf16.mxu0 0
        %1195 = vmatpush1.bf16.msra.mxu0 0
        %1196 = vmatprep.subr.bf16.mxu0 0
        %1197 = vmatpush1.bf16.msra.mxu0 0
        %1198 = vmatprep.subr.bf16.mxu0 0
        %1199 = vmatpush1.bf16.msra.mxu0 0
        %1200 = vmatprep.subr.bf16.mxu0 0
        %1201 = vmatpush1.bf16.msra.mxu0 0
        %1202 = vmatprep.subr.bf16.mxu0 0
        %1203 = vmatpush1.bf16.msra.mxu0 0
        %1204 = vmatprep.subr.bf16.mxu0 0
        %1205 = vmatpush1.bf16.msra.mxu0 0
        %1206 = vmatprep.subr.bf16.mxu0 0
        %1207 = vmatpush1.bf16.msra.mxu0 0
        %1208 = vmatprep.subr.bf16.mxu0 0
        %1209 = vmatpush1.bf16.msra.mxu0 0
        %1210 = vmatprep.subr.bf16.mxu0 0
        %1211 = vmatpush1.bf16.msra.mxu0 0
        %1212 = vmatprep.mubr.bf16.mxu0 0
        %1213 = vmatmul.mubr.bf16.gmra.mrb[0].mxu0 %v1178
        %v1214 = vpop.f32.mrb[0].mxu0
        %v1215 = vadd.f32 %v1130, %v1214
        %v1216 = vpop.f32.mrb[0].mxu0
        %v1217 = vadd.f32 %v1134, %v1216
        %v1218 = vpop.f32.mrb[0].mxu0
        %v1219 = vadd.f32 %v1130, %v1218
        %v1220 = vpop.f32.mrb[0].mxu0
        %v1221 = vadd.f32 %v1134, %v1220
        %1222 = vdwg.mxu0
        %v1223 = vld [vmem:[%s864] sm:$0xf]
        %v1224 = vld [vmem:[%s864 + $0x4] sm:$0xf]
        %v1225 = vld [vmem:[%s864 + $0x8] sm:$0xf]
        %v1226 = vld [vmem:[%s864 + $0xc] sm:$0xf]
        %v1227 = vld [vmem:[%s864 + $0x10] sm:$0xf]
        %v1228 = vld [vmem:[%s864 + $0x14] sm:$0xf]
        %v1229 = vld [vmem:[%s864 + $0x18] sm:$0xf]
        %v1230 = vld [vmem:[%s864 + $0x1c] sm:$0xf]
        %v1231 = vpack.c.bf16 %v1219, %v1215
        %v1232 = vpack.c.bf16 %v1221, %v1217
        %1234 = vrot.lane.b32.xlu0 %v1231, 64
        %v1235 = vpop.permute.xlu0 %1234
        %vm1236 = vcmask 64512
        %v1238 = vsel %vm1236, %v1231, 0
        %v1241 = vsel %vm1236, %v1235, 0
        %1243 = vmatprep.subr.bf16.mxu0 0
        %1244 = vmatpush1.bf16.xpose.msra.mxu0 %v1241
        %1245 = vmatprep.subr.bf16.mxu0 0
        %1246 = vmatpush1.bf16.xpose.msra.mxu0 0
        %1247 = vmatprep.subr.bf16.mxu0 0
        %1248 = vmatpush1.bf16.xpose.msra.mxu0 0
        %1249 = vmatprep.subr.bf16.mxu0 0
        %1250 = vmatpush1.bf16.xpose.msra.mxu0 0
        %1251 = vmatprep.subr.bf16.mxu0 0
        %1252 = vmatpush1.bf16.xpose.msra.mxu0 0
        %1253 = vmatprep.subr.bf16.mxu0 0
        %1254 = vmatpush1.bf16.xpose.msra.mxu0 0
        %1255 = vmatprep.subr.bf16.mxu0 0
        %1256 = vmatpush1.bf16.xpose.msra.mxu0 0
        %1257 = vmatprep.subr.bf16.mxu0 0
        %1258 = vmatpush1.bf16.xpose.msra.mxu0 0
        %1259 = vmatprep.subr.bf16.mxu0 0
        %1260 = vmatpush1.bf16.xpose.msra.mxu0 0
        %1261 = vmatprep.subr.bf16.mxu0 0
        %1262 = vmatpush1.bf16.xpose.msra.mxu0 0
        %1263 = vmatprep.subr.bf16.mxu0 0
        %1264 = vmatpush1.bf16.xpose.msra.mxu0 0
        %1265 = vmatprep.subr.bf16.mxu0 0
        %1266 = vmatpush1.bf16.xpose.msra.mxu0 0
        %1267 = vmatprep.subr.bf16.mxu0 0
        %1268 = vmatpush1.bf16.xpose.msra.mxu0 0
        %1269 = vmatprep.subr.bf16.mxu0 0
        %1270 = vmatpush1.bf16.xpose.msra.mxu0 0
        %1271 = vmatprep.subr.bf16.mxu0 0
        %1272 = vmatpush1.bf16.xpose.msra.mxu0 0
        %1273 = vmatprep.subr.bf16.mxu0 0
        %1274 = vmatpush1.bf16.xpose.msra.mxu0 0
        %1275 = vmatprep.mubr.bf16.mxu0 0
        %1276 = vmatmul.mubr.bf16.gmra.mrb[0].mxu0 %v1238
        %v1277 = vpop.f32.mrb[0].mxu0
        %v1278 = vadd.f32 0.0, %v1277
        %v1279 = vpop.f32.mrb[0].mxu0
        %v1280 = vpop.f32.mrb[0].mxu0
        %v1281 = vadd.f32 0.0, %v1280
        %v1282 = vpop.f32.mrb[0].mxu0
        %1283 = vdwg.mxu0
        %vm1284 = vcmask 130048
        %v1285 = vsel %vm1284, %v1278, -inf
        %1286 = vmax.xlane.f32.xlu0 %v1285
        %v1287 = vpop.xlane.xlu0 %1286
        %v1288 = vsel %vm1284, %v1281, -inf
        %1289 = vmax.xlane.f32.xlu0 %v1288
        %v1290 = vpop.xlane.xlu0 %1289
        %v1291 = vsub.f32 %v1278, %v1287
        %v1292 = vsub.f32 %v1281, %v1290
        %v1293 = vmul.f32 %v1291, 1.442695
        %v1294 = vpow.pop %v1293
        %v1295 = vmul.f32 %v1292, 1.442695
        %v1296 = vpow.pop %v1295
        %v1297 = vsel %vm1284, %v1294, 0.0
        %1298 = vadd.xlane.f32.xlu0 %v1297
        %v1299 = vpop.xlane.xlu0 %1298
        %v1300 = vsel %vm1284, %v1296, 0.0
        %1301 = vadd.xlane.f32.xlu0 %v1300
        %v1302 = vpop.xlane.xlu0 %1301
        %v1303 = vrcp.pop %v1299
        %v1304 = vrcp.pop %v1302
        %v1305 = vmul.f32 %v1294, %v1303
        %v1306 = vmul.f32 %v1296, %v1304
        %v1307 = vpack.c.bf16 %v1306, %v1305
        %v1309 = vsel %vm1284, %v1307, 0
        %1311 = vmatprep.subr.bf16.mxu0 0
        %1312 = vmatpush1.bf16.msra.mxu0 %v1232
        %1313 = vmatprep.subr.bf16.mxu0 0
        %1314 = vmatpush1.bf16.msra.mxu0 0
        %1315 = vmatprep.subr.bf16.mxu0 0
        %1316 = vmatpush1.bf16.msra.mxu0 0
        %1317 = vmatprep.subr.bf16.mxu0 0
        %1318 = vmatpush1.bf16.msra.mxu0 0
        %1319 = vmatprep.subr.bf16.mxu0 0
        %1320 = vmatpush1.bf16.msra.mxu0 0
        %1321 = vmatprep.subr.bf16.mxu0 0
        %1322 = vmatpush1.bf16.msra.mxu0 0
        %1323 = vmatprep.subr.bf16.mxu0 0
        %1324 = vmatpush1.bf16.msra.mxu0 0
        %1325 = vmatprep.subr.bf16.mxu0 0
        %1326 = vmatpush1.bf16.msra.mxu0 0
        %1327 = vmatprep.subr.bf16.mxu0 0
        %1328 = vmatpush1.bf16.msra.mxu0 0
        %1329 = vmatprep.subr.bf16.mxu0 0
        %1330 = vmatpush1.bf16.msra.mxu0 0
        %1331 = vmatprep.subr.bf16.mxu0 0
        %1332 = vmatpush1.bf16.msra.mxu0 0
        %1333 = vmatprep.subr.bf16.mxu0 0
        %1334 = vmatpush1.bf16.msra.mxu0 0
        %1335 = vmatprep.subr.bf16.mxu0 0
        %1336 = vmatpush1.bf16.msra.mxu0 0
        %1337 = vmatprep.subr.bf16.mxu0 0
        %1338 = vmatpush1.bf16.msra.mxu0 0
        %1339 = vmatprep.subr.bf16.mxu0 0
        %1340 = vmatpush1.bf16.msra.mxu0 0
        %1341 = vmatprep.subr.bf16.mxu0 0
        %1342 = vmatpush1.bf16.msra.mxu0 0
        %1343 = vmatprep.mubr.bf16.mxu0 0
        %1344 = vmatmul.mubr.bf16.gmra.mrb[0].mxu0 %v1309
        %v1345 = vpop.f32.mrb[0].mxu0
        %v1346 = vadd.f32 0.0, %v1345
        %v1347 = vpop.f32.mrb[0].mxu0
        %v1348 = vpop.f32.mrb[0].mxu0
        %v1349 = vadd.f32 0.0, %v1348
        %v1350 = vpop.f32.mrb[0].mxu0
        %1351 = vdwg.mxu0
        %v1352 = vpack.c.bf16 %v1349, %v1346
        %1353 = vrot.lane.b32.xlu0 %v1231, 120
        %v1354 = vpop.permute.xlu0 %1353
        %1355 = vrot.lane.b32.xlu0 %v1231, 56
        %v1356 = vpop.permute.xlu0 %1355
        %v1358 = vsel %vm1236, %v1354, 0
        %v1361 = vsel %vm1236, %v1356, 0
        %1363 = vmatprep.subr.bf16.mxu0 0
        %1364 = vmatpush1.bf16.xpose.msra.mxu0 %v1361
        %1365 = vmatprep.subr.bf16.mxu0 0
        %1366 = vmatpush1.bf16.xpose.msra.mxu0 0
        %1367 = vmatprep.subr.bf16.mxu0 0
        %1368 = vmatpush1.bf16.xpose.msra.mxu0 0
        %1369 = vmatprep.subr.bf16.mxu0 0
        %1370 = vmatpush1.bf16.xpose.msra.mxu0 0
        %1371 = vmatprep.subr.bf16.mxu0 0
        %1372 = vmatpush1.bf16.xpose.msra.mxu0 0
        %1373 = vmatprep.subr.bf16.mxu0 0
        %1374 = vmatpush1.bf16.xpose.msra.mxu0 0
        %1375 = vmatprep.subr.bf16.mxu0 0
        %1376 = vmatpush1.bf16.xpose.msra.mxu0 0
        %1377 = vmatprep.subr.bf16.mxu0 0
        %1378 = vmatpush1.bf16.xpose.msra.mxu0 0
        %1379 = vmatprep.subr.bf16.mxu0 0
        %1380 = vmatpush1.bf16.xpose.msra.mxu0 0
        %1381 = vmatprep.subr.bf16.mxu0 0
        %1382 = vmatpush1.bf16.xpose.msra.mxu0 0
        %1383 = vmatprep.subr.bf16.mxu0 0
        %1384 = vmatpush1.bf16.xpose.msra.mxu0 0
        %1385 = vmatprep.subr.bf16.mxu0 0
        %1386 = vmatpush1.bf16.xpose.msra.mxu0 0
        %1387 = vmatprep.subr.bf16.mxu0 0
        %1388 = vmatpush1.bf16.xpose.msra.mxu0 0
        %1389 = vmatprep.subr.bf16.mxu0 0
        %1390 = vmatpush1.bf16.xpose.msra.mxu0 0
        %1391 = vmatprep.subr.bf16.mxu0 0
        %1392 = vmatpush1.bf16.xpose.msra.mxu0 0
        %1393 = vmatprep.subr.bf16.mxu0 0
        %1394 = vmatpush1.bf16.xpose.msra.mxu0 0
        %1395 = vmatprep.mubr.bf16.mxu0 0
        %1396 = vmatmul.mubr.bf16.gmra.mrb[0].mxu0 %v1358
        %v1397 = vpop.f32.mrb[0].mxu0
        %v1398 = vadd.f32 0.0, %v1397
        %v1399 = vpop.f32.mrb[0].mxu0
        %v1400 = vpop.f32.mrb[0].mxu0
        %v1401 = vadd.f32 0.0, %v1400
        %v1402 = vpop.f32.mrb[0].mxu0
        %1403 = vdwg.mxu0
        %v1404 = vsel %vm1284, %v1398, -inf
        %1405 = vmax.xlane.f32.xlu0 %v1404
        %v1406 = vpop.xlane.xlu0 %1405
        %v1407 = vsel %vm1284, %v1401, -inf
        %1408 = vmax.xlane.f32.xlu0 %v1407
        %v1409 = vpop.xlane.xlu0 %1408
        %v1410 = vsub.f32 %v1398, %v1406
        %v1411 = vsub.f32 %v1401, %v1409
        %v1412 = vmul.f32 %v1410, 1.442695
        %v1413 = vpow.pop %v1412
        %v1414 = vmul.f32 %v1411, 1.442695
        %v1415 = vpow.pop %v1414
        %v1416 = vsel %vm1284, %v1413, 0.0
        %1417 = vadd.xlane.f32.xlu0 %v1416
        %v1418 = vpop.xlane.xlu0 %1417
        %v1419 = vsel %vm1284, %v1415, 0.0
        %1420 = vadd.xlane.f32.xlu0 %v1419
        %v1421 = vpop.xlane.xlu0 %1420
        %v1422 = vrcp.pop %v1418
        %v1423 = vrcp.pop %v1421
        %v1424 = vmul.f32 %v1413, %v1422
        %v1425 = vmul.f32 %v1415, %v1423
        %v1426 = vpack.c.bf16 %v1425, %v1424
        %1428 = vrot.lane.b32.xlu0 %v1232, 120
        %v1429 = vpop.permute.xlu0 %1428
        %v1432 = vsel %vm1284, %v1426, 0
        %1434 = vmatprep.subr.bf16.mxu0 0
        %1435 = vmatpush1.bf16.msra.mxu0 %v1429
        %1436 = vmatprep.subr.bf16.mxu0 0
        %1437 = vmatpush1.bf16.msra.mxu0 0
        %1438 = vmatprep.subr.bf16.mxu0 0
        %1439 = vmatpush1.bf16.msra.mxu0 0
        %1440 = vmatprep.subr.bf16.mxu0 0
        %1441 = vmatpush1.bf16.msra.mxu0 0
        %1442 = vmatprep.subr.bf16.mxu0 0
        %1443 = vmatpush1.bf16.msra.mxu0 0
        %1444 = vmatprep.subr.bf16.mxu0 0
        %1445 = vmatpush1.bf16.msra.mxu0 0
        %1446 = vmatprep.subr.bf16.mxu0 0
        %1447 = vmatpush1.bf16.msra.mxu0 0
        %1448 = vmatprep.subr.bf16.mxu0 0
        %1449 = vmatpush1.bf16.msra.mxu0 0
        %1450 = vmatprep.subr.bf16.mxu0 0
        %1451 = vmatpush1.bf16.msra.mxu0 0
        %1452 = vmatprep.subr.bf16.mxu0 0
        %1453 = vmatpush1.bf16.msra.mxu0 0
        %1454 = vmatprep.subr.bf16.mxu0 0
        %1455 = vmatpush1.bf16.msra.mxu0 0
        %1456 = vmatprep.subr.bf16.mxu0 0
        %1457 = vmatpush1.bf16.msra.mxu0 0
        %1458 = vmatprep.subr.bf16.mxu0 0
        %1459 = vmatpush1.bf16.msra.mxu0 0
        %1460 = vmatprep.subr.bf16.mxu0 0
        %1461 = vmatpush1.bf16.msra.mxu0 0
        %1462 = vmatprep.subr.bf16.mxu0 0
        %1463 = vmatpush1.bf16.msra.mxu0 0
        %1464 = vmatprep.subr.bf16.mxu0 0
        %1465 = vmatpush1.bf16.msra.mxu0 0
        %1466 = vmatprep.mubr.bf16.mxu0 0
        %1467 = vmatmul.mubr.bf16.gmra.mrb[0].mxu0 %v1432
        %v1468 = vpop.f32.mrb[0].mxu0
        %v1469 = vadd.f32 0.0, %v1468
        %v1470 = vpop.f32.mrb[0].mxu0
        %v1471 = vpop.f32.mrb[0].mxu0
        %v1472 = vadd.f32 0.0, %v1471
        %v1473 = vpop.f32.mrb[0].mxu0
        %1474 = vdwg.mxu0
        %v1475 = vpack.c.bf16 %v1472, %v1469
        %v1477 = vsel %vm1236, %v1475, 0
        %vm1479 = vcmask 1043456
        %v1481 = vsel %vm1479, %v1224, 0
        %1483 = vmatprep.subr.bf16.mxu0 0
        %1484 = vmatpush1.bf16.msra.mxu0 %v1481
        %1485 = vmatprep.subr.bf16.mxu0 0
        %1486 = vmatpush1.bf16.msra.mxu0 0
        %1487 = vmatprep.subr.bf16.mxu0 0
        %1488 = vmatpush1.bf16.msra.mxu0 0
        %1489 = vmatprep.subr.bf16.mxu0 0
        %1490 = vmatpush1.bf16.msra.mxu0 0
        %1491 = vmatprep.subr.bf16.mxu0 0
        %1492 = vmatpush1.bf16.msra.mxu0 0
        %1493 = vmatprep.subr.bf16.mxu0 0
        %1494 = vmatpush1.bf16.msra.mxu0 0
        %1495 = vmatprep.subr.bf16.mxu0 0
        %1496 = vmatpush1.bf16.msra.mxu0 0
        %1497 = vmatprep.subr.bf16.mxu0 0
        %1498 = vmatpush1.bf16.msra.mxu0 0
        %1499 = vmatprep.subr.bf16.mxu0 0
        %1500 = vmatpush1.bf16.msra.mxu0 0
        %1501 = vmatprep.subr.bf16.mxu0 0
        %1502 = vmatpush1.bf16.msra.mxu0 0
        %1503 = vmatprep.subr.bf16.mxu0 0
        %1504 = vmatpush1.bf16.msra.mxu0 0
        %1505 = vmatprep.subr.bf16.mxu0 0
        %1506 = vmatpush1.bf16.msra.mxu0 0
        %1507 = vmatprep.subr.bf16.mxu0 0
        %1508 = vmatpush1.bf16.msra.mxu0 0
        %1509 = vmatprep.subr.bf16.mxu0 0
        %1510 = vmatpush1.bf16.msra.mxu0 0
        %1511 = vmatprep.subr.bf16.mxu0 0
        %1512 = vmatpush1.bf16.msra.mxu0 0
        %1513 = vmatprep.subr.bf16.mxu0 0
        %1514 = vmatpush1.bf16.msra.mxu0 0
        %1515 = vmatprep.mubr.bf16.mxu0 0
        %1516 = vmatmul.mubr.bf16.gmra.mrb[0].mxu0 %v1477
        %v1517 = vpop.f32.mrb[0].mxu0
        %v1518 = vadd.f32 0.0, %v1517
        %v1519 = vpop.f32.mrb[0].mxu0
        %v1520 = vpop.f32.mrb[0].mxu0
        %v1521 = vadd.f32 0.0, %v1520
        %v1522 = vpop.f32.mrb[0].mxu0
        %1523 = vdwg.mxu0
        %v1525 = vsel %vm1236, %v1352, 0
        %v1528 = vsel %vm1479, %v1223, 0
        %1530 = vmatprep.subr.bf16.mxu0 0
        %1531 = vmatpush1.bf16.msra.mxu0 %v1528
        %1532 = vmatprep.subr.bf16.mxu0 0
        %1533 = vmatpush1.bf16.msra.mxu0 0
        %1534 = vmatprep.subr.bf16.mxu0 0
        %1535 = vmatpush1.bf16.msra.mxu0 0
        %1536 = vmatprep.subr.bf16.mxu0 0
        %1537 = vmatpush1.bf16.msra.mxu0 0
        %1538 = vmatprep.subr.bf16.mxu0 0
        %1539 = vmatpush1.bf16.msra.mxu0 0
        %1540 = vmatprep.subr.bf16.mxu0 0
        %1541 = vmatpush1.bf16.msra.mxu0 0
        %1542 = vmatprep.subr.bf16.mxu0 0
        %1543 = vmatpush1.bf16.msra.mxu0 0
        %1544 = vmatprep.subr.bf16.mxu0 0
        %1545 = vmatpush1.bf16.msra.mxu0 0
        %1546 = vmatprep.subr.bf16.mxu0 0
        %1547 = vmatpush1.bf16.msra.mxu0 0
        %1548 = vmatprep.subr.bf16.mxu0 0
        %1549 = vmatpush1.bf16.msra.mxu0 0
        %1550 = vmatprep.subr.bf16.mxu0 0
        %1551 = vmatpush1.bf16.msra.mxu0 0
        %1552 = vmatprep.subr.bf16.mxu0 0
        %1553 = vmatpush1.bf16.msra.mxu0 0
        %1554 = vmatprep.subr.bf16.mxu0 0
        %1555 = vmatpush1.bf16.msra.mxu0 0
        %1556 = vmatprep.subr.bf16.mxu0 0
        %1557 = vmatpush1.bf16.msra.mxu0 0
        %1558 = vmatprep.subr.bf16.mxu0 0
        %1559 = vmatpush1.bf16.msra.mxu0 0
        %1560 = vmatprep.subr.bf16.mxu0 0
        %1561 = vmatpush1.bf16.msra.mxu0 0
        %1562 = vmatprep.mubr.bf16.mxu0 0
        %1563 = vmatmul.mubr.bf16.gmra.mrb[0].mxu0 %v1525
        %v1564 = vpop.f32.mrb[0].mxu0
        %v1565 = vadd.f32 %v1518, %v1564
        %v1566 = vpop.f32.mrb[0].mxu0
        %v1567 = vpop.f32.mrb[0].mxu0
        %v1568 = vadd.f32 %v1521, %v1567
        %v1569 = vpop.f32.mrb[0].mxu0
        %1570 = vdwg.mxu0
        %1571 = vrot.lane.b32.xlu0 %v1231, 112
        %v1572 = vpop.permute.xlu0 %1571
        %1573 = vrot.lane.b32.xlu0 %v1231, 48
        %v1574 = vpop.permute.xlu0 %1573
        %v1576 = vsel %vm1236, %v1572, 0
        %v1579 = vsel %vm1236, %v1574, 0
        %1581 = vmatprep.subr.bf16.mxu0 0
        %1582 = vmatpush1.bf16.xpose.msra.mxu0 %v1579
        %1583 = vmatprep.subr.bf16.mxu0 0
        %1584 = vmatpush1.bf16.xpose.msra.mxu0 0
        %1585 = vmatprep.subr.bf16.mxu0 0
        %1586 = vmatpush1.bf16.xpose.msra.mxu0 0
        %1587 = vmatprep.subr.bf16.mxu0 0
        %1588 = vmatpush1.bf16.xpose.msra.mxu0 0
        %1589 = vmatprep.subr.bf16.mxu0 0
        %1590 = vmatpush1.bf16.xpose.msra.mxu0 0
        %1591 = vmatprep.subr.bf16.mxu0 0
        %1592 = vmatpush1.bf16.xpose.msra.mxu0 0
        %1593 = vmatprep.subr.bf16.mxu0 0
        %1594 = vmatpush1.bf16.xpose.msra.mxu0 0
        %1595 = vmatprep.subr.bf16.mxu0 0
        %1596 = vmatpush1.bf16.xpose.msra.mxu0 0
        %1597 = vmatprep.subr.bf16.mxu0 0
        %1598 = vmatpush1.bf16.xpose.msra.mxu0 0
        %1599 = vmatprep.subr.bf16.mxu0 0
        %1600 = vmatpush1.bf16.xpose.msra.mxu0 0
        %1601 = vmatprep.subr.bf16.mxu0 0
        %1602 = vmatpush1.bf16.xpose.msra.mxu0 0
        %1603 = vmatprep.subr.bf16.mxu0 0
        %1604 = vmatpush1.bf16.xpose.msra.mxu0 0
        %1605 = vmatprep.subr.bf16.mxu0 0
        %1606 = vmatpush1.bf16.xpose.msra.mxu0 0
        %1607 = vmatprep.subr.bf16.mxu0 0
        %1608 = vmatpush1.bf16.xpose.msra.mxu0 0
        %1609 = vmatprep.subr.bf16.mxu0 0
        %1610 = vmatpush1.bf16.xpose.msra.mxu0 0
        %1611 = vmatprep.subr.bf16.mxu0 0
        %1612 = vmatpush1.bf16.xpose.msra.mxu0 0
        %1613 = vmatprep.mubr.bf16.mxu0 0
        %1614 = vmatmul.mubr.bf16.gmra.mrb[0].mxu0 %v1576
        %v1615 = vpop.f32.mrb[0].mxu0
        %v1616 = vadd.f32 0.0, %v1615
        %v1617 = vpop.f32.mrb[0].mxu0
        %v1618 = vpop.f32.mrb[0].mxu0
        %v1619 = vadd.f32 0.0, %v1618
        %v1620 = vpop.f32.mrb[0].mxu0
        %1621 = vdwg.mxu0
        %v1622 = vsel %vm1284, %v1616, -inf
        %1623 = vmax.xlane.f32.xlu0 %v1622
        %v1624 = vpop.xlane.xlu0 %1623
        %v1625 = vsel %vm1284, %v1619, -inf
        %1626 = vmax.xlane.f32.xlu0 %v1625
        %v1627 = vpop.xlane.xlu0 %1626
        %v1628 = vsub.f32 %v1616, %v1624
        %v1629 = vsub.f32 %v1619, %v1627
        %v1630 = vmul.f32 %v1628, 1.442695
        %v1631 = vpow.pop %v1630
        %v1632 = vmul.f32 %v1629, 1.442695
        %v1633 = vpow.pop %v1632
        %v1634 = vsel %vm1284, %v1631, 0.0
        %1635 = vadd.xlane.f32.xlu0 %v1634
        %v1636 = vpop.xlane.xlu0 %1635
        %v1637 = vsel %vm1284, %v1633, 0.0
        %1638 = vadd.xlane.f32.xlu0 %v1637
        %v1639 = vpop.xlane.xlu0 %1638
        %v1640 = vrcp.pop %v1636
        %v1641 = vrcp.pop %v1639
        %v1642 = vmul.f32 %v1631, %v1640
        %v1643 = vmul.f32 %v1633, %v1641
        %v1644 = vpack.c.bf16 %v1643, %v1642
        %1645 = vrot.lane.b32.xlu0 %v1232, 112
        %v1646 = vpop.permute.xlu0 %1645
        %v1649 = vsel %vm1284, %v1644, 0
        %1651 = vmatprep.subr.bf16.mxu0 0
        %1652 = vmatpush1.bf16.msra.mxu0 %v1646
        %1653 = vmatprep.subr.bf16.mxu0 0
        %1654 = vmatpush1.bf16.msra.mxu0 0
        %1655 = vmatprep.subr.bf16.mxu0 0
        %1656 = vmatpush1.bf16.msra.mxu0 0
        %1657 = vmatprep.subr.bf16.mxu0 0
        %1658 = vmatpush1.bf16.msra.mxu0 0
        %1659 = vmatprep.subr.bf16.mxu0 0
        %1660 = vmatpush1.bf16.msra.mxu0 0
        %1661 = vmatprep.subr.bf16.mxu0 0
        %1662 = vmatpush1.bf16.msra.mxu0 0
        %1663 = vmatprep.subr.bf16.mxu0 0
        %1664 = vmatpush1.bf16.msra.mxu0 0
        %1665 = vmatprep.subr.bf16.mxu0 0
        %1666 = vmatpush1.bf16.msra.mxu0 0
        %1667 = vmatprep.subr.bf16.mxu0 0
        %1668 = vmatpush1.bf16.msra.mxu0 0
        %1669 = vmatprep.subr.bf16.mxu0 0
        %1670 = vmatpush1.bf16.msra.mxu0 0
        %1671 = vmatprep.subr.bf16.mxu0 0
        %1672 = vmatpush1.bf16.msra.mxu0 0
        %1673 = vmatprep.subr.bf16.mxu0 0
        %1674 = vmatpush1.bf16.msra.mxu0 0
        %1675 = vmatprep.subr.bf16.mxu0 0
        %1676 = vmatpush1.bf16.msra.mxu0 0
        %1677 = vmatprep.subr.bf16.mxu0 0
        %1678 = vmatpush1.bf16.msra.mxu0 0
        %1679 = vmatprep.subr.bf16.mxu0 0
        %1680 = vmatpush1.bf16.msra.mxu0 0
        %1681 = vmatprep.subr.bf16.mxu0 0
        %1682 = vmatpush1.bf16.msra.mxu0 0
        %1683 = vmatprep.mubr.bf16.mxu0 0
        %1684 = vmatmul.mubr.bf16.gmra.mrb[0].mxu0 %v1649
        %v1685 = vpop.f32.mrb[0].mxu0
        %v1686 = vadd.f32 0.0, %v1685
        %v1687 = vpop.f32.mrb[0].mxu0
        %v1688 = vpop.f32.mrb[0].mxu0
        %v1689 = vadd.f32 0.0, %v1688
        %v1690 = vpop.f32.mrb[0].mxu0
        %1691 = vdwg.mxu0
        %v1692 = vpack.c.bf16 %v1689, %v1686
        %v1694 = vsel %vm1236, %v1692, 0
        %v1697 = vsel %vm1479, %v1225, 0
        %1699 = vmatprep.subr.bf16.mxu0 0
        %1700 = vmatpush1.bf16.msra.mxu0 %v1697
        %1701 = vmatprep.subr.bf16.mxu0 0
        %1702 = vmatpush1.bf16.msra.mxu0 0
        %1703 = vmatprep.subr.bf16.mxu0 0
        %1704 = vmatpush1.bf16.msra.mxu0 0
        %1705 = vmatprep.subr.bf16.mxu0 0
        %1706 = vmatpush1.bf16.msra.mxu0 0
        %1707 = vmatprep.subr.bf16.mxu0 0
        %1708 = vmatpush1.bf16.msra.mxu0 0
        %1709 = vmatprep.subr.bf16.mxu0 0
        %1710 = vmatpush1.bf16.msra.mxu0 0
        %1711 = vmatprep.subr.bf16.mxu0 0
        %1712 = vmatpush1.bf16.msra.mxu0 0
        %1713 = vmatprep.subr.bf16.mxu0 0
        %1714 = vmatpush1.bf16.msra.mxu0 0
        %1715 = vmatprep.subr.bf16.mxu0 0
        %1716 = vmatpush1.bf16.msra.mxu0 0
        %1717 = vmatprep.subr.bf16.mxu0 0
        %1718 = vmatpush1.bf16.msra.mxu0 0
        %1719 = vmatprep.subr.bf16.mxu0 0
        %1720 = vmatpush1.bf16.msra.mxu0 0
        %1721 = vmatprep.subr.bf16.mxu0 0
        %1722 = vmatpush1.bf16.msra.mxu0 0
        %1723 = vmatprep.subr.bf16.mxu0 0
        %1724 = vmatpush1.bf16.msra.mxu0 0
        %1725 = vmatprep.subr.bf16.mxu0 0
        %1726 = vmatpush1.bf16.msra.mxu0 0
        %1727 = vmatprep.subr.bf16.mxu0 0
        %1728 = vmatpush1.bf16.msra.mxu0 0
        %1729 = vmatprep.subr.bf16.mxu0 0
        %1730 = vmatpush1.bf16.msra.mxu0 0
        %1731 = vmatprep.mubr.bf16.mxu0 0
        %1732 = vmatmul.mubr.bf16.gmra.mrb[0].mxu0 %v1694
        %v1733 = vpop.f32.mrb[0].mxu0
        %v1734 = vadd.f32 0.0, %v1733
        %v1735 = vpop.f32.mrb[0].mxu0
        %v1736 = vpop.f32.mrb[0].mxu0
        %v1737 = vadd.f32 0.0, %v1736
        %v1738 = vpop.f32.mrb[0].mxu0
        %1739 = vdwg.mxu0
        %v1740 = vadd.f32 %v1565, %v1734
        %v1741 = vadd.f32 %v1568, %v1737
        %1742 = vrot.lane.b32.xlu0 %v1231, 104
        %v1743 = vpop.permute.xlu0 %1742
        %1744 = vrot.lane.b32.xlu0 %v1231, 40
        %v1745 = vpop.permute.xlu0 %1744
        %v1747 = vsel %vm1236, %v1743, 0
        %v1750 = vsel %vm1236, %v1745, 0
        %1752 = vmatprep.subr.bf16.mxu0 0
        %1753 = vmatpush1.bf16.xpose.msra.mxu0 %v1750
        %1754 = vmatprep.subr.bf16.mxu0 0
        %1755 = vmatpush1.bf16.xpose.msra.mxu0 0
        %1756 = vmatprep.subr.bf16.mxu0 0
        %1757 = vmatpush1.bf16.xpose.msra.mxu0 0
        %1758 = vmatprep.subr.bf16.mxu0 0
        %1759 = vmatpush1.bf16.xpose.msra.mxu0 0
        %1760 = vmatprep.subr.bf16.mxu0 0
        %1761 = vmatpush1.bf16.xpose.msra.mxu0 0
        %1762 = vmatprep.subr.bf16.mxu0 0
        %1763 = vmatpush1.bf16.xpose.msra.mxu0 0
        %1764 = vmatprep.subr.bf16.mxu0 0
        %1765 = vmatpush1.bf16.xpose.msra.mxu0 0
        %1766 = vmatprep.subr.bf16.mxu0 0
        %1767 = vmatpush1.bf16.xpose.msra.mxu0 0
        %1768 = vmatprep.subr.bf16.mxu0 0
        %1769 = vmatpush1.bf16.xpose.msra.mxu0 0
        %1770 = vmatprep.subr.bf16.mxu0 0
        %1771 = vmatpush1.bf16.xpose.msra.mxu0 0
        %1772 = vmatprep.subr.bf16.mxu0 0
        %1773 = vmatpush1.bf16.xpose.msra.mxu0 0
        %1774 = vmatprep.subr.bf16.mxu0 0
        %1775 = vmatpush1.bf16.xpose.msra.mxu0 0
        %1776 = vmatprep.subr.bf16.mxu0 0
        %1777 = vmatpush1.bf16.xpose.msra.mxu0 0
        %1778 = vmatprep.subr.bf16.mxu0 0
        %1779 = vmatpush1.bf16.xpose.msra.mxu0 0
        %1780 = vmatprep.subr.bf16.mxu0 0
        %1781 = vmatpush1.bf16.xpose.msra.mxu0 0
        %1782 = vmatprep.subr.bf16.mxu0 0
        %1783 = vmatpush1.bf16.xpose.msra.mxu0 0
        %1784 = vmatprep.mubr.bf16.mxu0 0
        %1785 = vmatmul.mubr.bf16.gmra.mrb[0].mxu0 %v1747
        %v1786 = vpop.f32.mrb[0].mxu0
        %v1787 = vadd.f32 0.0, %v1786
        %v1788 = vpop.f32.mrb[0].mxu0
        %v1789 = vpop.f32.mrb[0].mxu0
        %v1790 = vadd.f32 0.0, %v1789
        %v1791 = vpop.f32.mrb[0].mxu0
        %1792 = vdwg.mxu0
        %v1793 = vsel %vm1284, %v1787, -inf
        %1794 = vmax.xlane.f32.xlu0 %v1793
        %v1795 = vpop.xlane.xlu0 %1794
        %v1796 = vsel %vm1284, %v1790, -inf
        %1797 = vmax.xlane.f32.xlu0 %v1796
        %v1798 = vpop.xlane.xlu0 %1797
        %v1799 = vsub.f32 %v1787, %v1795
        %v1800 = vsub.f32 %v1790, %v1798
        %v1801 = vmul.f32 %v1799, 1.442695
        %v1802 = vpow.pop %v1801
        %v1803 = vmul.f32 %v1800, 1.442695
        %v1804 = vpow.pop %v1803
        %v1805 = vsel %vm1284, %v1802, 0.0
        %1806 = vadd.xlane.f32.xlu0 %v1805
        %v1807 = vpop.xlane.xlu0 %1806
        %v1808 = vsel %vm1284, %v1804, 0.0
        %1809 = vadd.xlane.f32.xlu0 %v1808
        %v1810 = vpop.xlane.xlu0 %1809
        %v1811 = vrcp.pop %v1807
        %v1812 = vrcp.pop %v1810
        %v1813 = vmul.f32 %v1802, %v1811
        %v1814 = vmul.f32 %v1804, %v1812
        %v1815 = vpack.c.bf16 %v1814, %v1813
        %1816 = vrot.lane.b32.xlu0 %v1232, 104
        %v1817 = vpop.permute.xlu0 %1816
        %v1820 = vsel %vm1284, %v1815, 0
        %1822 = vmatprep.subr.bf16.mxu0 0
        %1823 = vmatpush1.bf16.msra.mxu0 %v1817
        %1824 = vmatprep.subr.bf16.mxu0 0
        %1825 = vmatpush1.bf16.msra.mxu0 0
        %1826 = vmatprep.subr.bf16.mxu0 0
        %1827 = vmatpush1.bf16.msra.mxu0 0
        %1828 = vmatprep.subr.bf16.mxu0 0
        %1829 = vmatpush1.bf16.msra.mxu0 0
        %1830 = vmatprep.subr.bf16.mxu0 0
        %1831 = vmatpush1.bf16.msra.mxu0 0
        %1832 = vmatprep.subr.bf16.mxu0 0
        %1833 = vmatpush1.bf16.msra.mxu0 0
        %1834 = vmatprep.subr.bf16.mxu0 0
        %1835 = vmatpush1.bf16.msra.mxu0 0
        %1836 = vmatprep.subr.bf16.mxu0 0
        %1837 = vmatpush1.bf16.msra.mxu0 0
        %1838 = vmatprep.subr.bf16.mxu0 0
        %1839 = vmatpush1.bf16.msra.mxu0 0
        %1840 = vmatprep.subr.bf16.mxu0 0
        %1841 = vmatpush1.bf16.msra.mxu0 0
        %1842 = vmatprep.subr.bf16.mxu0 0
        %1843 = vmatpush1.bf16.msra.mxu0 0
        %1844 = vmatprep.subr.bf16.mxu0 0
        %1845 = vmatpush1.bf16.msra.mxu0 0
        %1846 = vmatprep.subr.bf16.mxu0 0
        %1847 = vmatpush1.bf16.msra.mxu0 0
        %1848 = vmatprep.subr.bf16.mxu0 0
        %1849 = vmatpush1.bf16.msra.mxu0 0
        %1850 = vmatprep.subr.bf16.mxu0 0
        %1851 = vmatpush1.bf16.msra.mxu0 0
        %1852 = vmatprep.subr.bf16.mxu0 0
        %1853 = vmatpush1.bf16.msra.mxu0 0
        %1854 = vmatprep.mubr.bf16.mxu0 0
        %1855 = vmatmul.mubr.bf16.gmra.mrb[0].mxu0 %v1820
        %v1856 = vpop.f32.mrb[0].mxu0
        %v1857 = vadd.f32 0.0, %v1856
        %v1858 = vpop.f32.mrb[0].mxu0
        %v1859 = vpop.f32.mrb[0].mxu0
        %v1860 = vadd.f32 0.0, %v1859
        %v1861 = vpop.f32.mrb[0].mxu0
        %1862 = vdwg.mxu0
        %v1863 = vpack.c.bf16 %v1860, %v1857
        %v1865 = vsel %vm1236, %v1863, 0
        %v1868 = vsel %vm1479, %v1226, 0
        %1870 = vmatprep.subr.bf16.mxu0 0
        %1871 = vmatpush1.bf16.msra.mxu0 %v1868
        %1872 = vmatprep.subr.bf16.mxu0 0
        %1873 = vmatpush1.bf16.msra.mxu0 0
        %1874 = vmatprep.subr.bf16.mxu0 0
        %1875 = vmatpush1.bf16.msra.mxu0 0
        %1876 = vmatprep.subr.bf16.mxu0 0
        %1877 = vmatpush1.bf16.msra.mxu0 0
        %1878 = vmatprep.subr.bf16.mxu0 0
        %1879 = vmatpush1.bf16.msra.mxu0 0
        %1880 = vmatprep.subr.bf16.mxu0 0
        %1881 = vmatpush1.bf16.msra.mxu0 0
        %1882 = vmatprep.subr.bf16.mxu0 0
        %1883 = vmatpush1.bf16.msra.mxu0 0
        %1884 = vmatprep.subr.bf16.mxu0 0
        %1885 = vmatpush1.bf16.msra.mxu0 0
        %1886 = vmatprep.subr.bf16.mxu0 0
        %1887 = vmatpush1.bf16.msra.mxu0 0
        %1888 = vmatprep.subr.bf16.mxu0 0
        %1889 = vmatpush1.bf16.msra.mxu0 0
        %1890 = vmatprep.subr.bf16.mxu0 0
        %1891 = vmatpush1.bf16.msra.mxu0 0
        %1892 = vmatprep.subr.bf16.mxu0 0
        %1893 = vmatpush1.bf16.msra.mxu0 0
        %1894 = vmatprep.subr.bf16.mxu0 0
        %1895 = vmatpush1.bf16.msra.mxu0 0
        %1896 = vmatprep.subr.bf16.mxu0 0
        %1897 = vmatpush1.bf16.msra.mxu0 0
        %1898 = vmatprep.subr.bf16.mxu0 0
        %1899 = vmatpush1.bf16.msra.mxu0 0
        %1900 = vmatprep.subr.bf16.mxu0 0
        %1901 = vmatpush1.bf16.msra.mxu0 0
        %1902 = vmatprep.mubr.bf16.mxu0 0
        %1903 = vmatmul.mubr.bf16.gmra.mrb[0].mxu0 %v1865
        %v1904 = vpop.f32.mrb[0].mxu0
        %v1905 = vadd.f32 0.0, %v1904
        %v1906 = vpop.f32.mrb[0].mxu0
        %v1907 = vpop.f32.mrb[0].mxu0
        %v1908 = vadd.f32 0.0, %v1907
        %v1909 = vpop.f32.mrb[0].mxu0
        %1910 = vdwg.mxu0
        %v1911 = vadd.f32 %v1740, %v1905
        %v1912 = vadd.f32 %v1741, %v1908
        %1913 = vrot.lane.b32.xlu0 %v1231, 96
        %v1914 = vpop.permute.xlu0 %1913
        %1915 = vrot.lane.b32.xlu0 %v1231, 32
        %v1916 = vpop.permute.xlu0 %1915
        %v1918 = vsel %vm1236, %v1914, 0
        %v1921 = vsel %vm1236, %v1916, 0
        %1923 = vmatprep.subr.bf16.mxu0 0
        %1924 = vmatpush1.bf16.xpose.msra.mxu0 %v1921
        %1925 = vmatprep.subr.bf16.mxu0 0
        %1926 = vmatpush1.bf16.xpose.msra.mxu0 0
        %1927 = vmatprep.subr.bf16.mxu0 0
        %1928 = vmatpush1.bf16.xpose.msra.mxu0 0
        %1929 = vmatprep.subr.bf16.mxu0 0
        %1930 = vmatpush1.bf16.xpose.msra.mxu0 0
        %1931 = vmatprep.subr.bf16.mxu0 0
        %1932 = vmatpush1.bf16.xpose.msra.mxu0 0
        %1933 = vmatprep.subr.bf16.mxu0 0
        %1934 = vmatpush1.bf16.xpose.msra.mxu0 0
        %1935 = vmatprep.subr.bf16.mxu0 0
        %1936 = vmatpush1.bf16.xpose.msra.mxu0 0
        %1937 = vmatprep.subr.bf16.mxu0 0
        %1938 = vmatpush1.bf16.xpose.msra.mxu0 0
        %1939 = vmatprep.subr.bf16.mxu0 0
        %1940 = vmatpush1.bf16.xpose.msra.mxu0 0
        %1941 = vmatprep.subr.bf16.mxu0 0
        %1942 = vmatpush1.bf16.xpose.msra.mxu0 0
        %1943 = vmatprep.subr.bf16.mxu0 0
        %1944 = vmatpush1.bf16.xpose.msra.mxu0 0
        %1945 = vmatprep.subr.bf16.mxu0 0
        %1946 = vmatpush1.bf16.xpose.msra.mxu0 0
        %1947 = vmatprep.subr.bf16.mxu0 0
        %1948 = vmatpush1.bf16.xpose.msra.mxu0 0
        %1949 = vmatprep.subr.bf16.mxu0 0
        %1950 = vmatpush1.bf16.xpose.msra.mxu0 0
        %1951 = vmatprep.subr.bf16.mxu0 0
        %1952 = vmatpush1.bf16.xpose.msra.mxu0 0
        %1953 = vmatprep.subr.bf16.mxu0 0
        %1954 = vmatpush1.bf16.xpose.msra.mxu0 0
        %1955 = vmatprep.mubr.bf16.mxu0 0
        %1956 = vmatmul.mubr.bf16.gmra.mrb[0].mxu0 %v1918
        %v1957 = vpop.f32.mrb[0].mxu0
        %v1958 = vadd.f32 0.0, %v1957
        %v1959 = vpop.f32.mrb[0].mxu0
        %v1960 = vpop.f32.mrb[0].mxu0
        %v1961 = vadd.f32 0.0, %v1960
        %v1962 = vpop.f32.mrb[0].mxu0
        %1963 = vdwg.mxu0
        %v1964 = vsel %vm1284, %v1958, -inf
        %1965 = vmax.xlane.f32.xlu0 %v1964
        %v1966 = vpop.xlane.xlu0 %1965
        %v1967 = vsel %vm1284, %v1961, -inf
        %1968 = vmax.xlane.f32.xlu0 %v1967
        %v1969 = vpop.xlane.xlu0 %1968
        %v1970 = vsub.f32 %v1958, %v1966
        %v1971 = vsub.f32 %v1961, %v1969
        %v1972 = vmul.f32 %v1970, 1.442695
        %v1973 = vpow.pop %v1972
        %v1974 = vmul.f32 %v1971, 1.442695
        %v1975 = vpow.pop %v1974
        %v1976 = vsel %vm1284, %v1973, 0.0
        %1977 = vadd.xlane.f32.xlu0 %v1976
        %v1978 = vpop.xlane.xlu0 %1977
        %v1979 = vsel %vm1284, %v1975, 0.0
        %1980 = vadd.xlane.f32.xlu0 %v1979
        %v1981 = vpop.xlane.xlu0 %1980
        %v1982 = vrcp.pop %v1978
        %v1983 = vrcp.pop %v1981
        %v1984 = vmul.f32 %v1973, %v1982
        %v1985 = vmul.f32 %v1975, %v1983
        %v1986 = vpack.c.bf16 %v1985, %v1984
        %1987 = vrot.lane.b32.xlu0 %v1232, 96
        %v1988 = vpop.permute.xlu0 %1987
        %v1991 = vsel %vm1284, %v1986, 0
        %1993 = vmatprep.subr.bf16.mxu0 0
        %1994 = vmatpush1.bf16.msra.mxu0 %v1988
        %1995 = vmatprep.subr.bf16.mxu0 0
        %1996 = vmatpush1.bf16.msra.mxu0 0
        %1997 = vmatprep.subr.bf16.mxu0 0
        %1998 = vmatpush1.bf16.msra.mxu0 0
        %1999 = vmatprep.subr.bf16.mxu0 0
        %2000 = vmatpush1.bf16.msra.mxu0 0
        %2001 = vmatprep.subr.bf16.mxu0 0
        %2002 = vmatpush1.bf16.msra.mxu0 0
        %2003 = vmatprep.subr.bf16.mxu0 0
        %2004 = vmatpush1.bf16.msra.mxu0 0
        %2005 = vmatprep.subr.bf16.mxu0 0
        %2006 = vmatpush1.bf16.msra.mxu0 0
        %2007 = vmatprep.subr.bf16.mxu0 0
        %2008 = vmatpush1.bf16.msra.mxu0 0
        %2009 = vmatprep.subr.bf16.mxu0 0
        %2010 = vmatpush1.bf16.msra.mxu0 0
        %2011 = vmatprep.subr.bf16.mxu0 0
        %2012 = vmatpush1.bf16.msra.mxu0 0
        %2013 = vmatprep.subr.bf16.mxu0 0
        %2014 = vmatpush1.bf16.msra.mxu0 0
        %2015 = vmatprep.subr.bf16.mxu0 0
        %2016 = vmatpush1.bf16.msra.mxu0 0
        %2017 = vmatprep.subr.bf16.mxu0 0
        %2018 = vmatpush1.bf16.msra.mxu0 0
        %2019 = vmatprep.subr.bf16.mxu0 0
        %2020 = vmatpush1.bf16.msra.mxu0 0
        %2021 = vmatprep.subr.bf16.mxu0 0
        %2022 = vmatpush1.bf16.msra.mxu0 0
        %2023 = vmatprep.subr.bf16.mxu0 0
        %2024 = vmatpush1.bf16.msra.mxu0 0
        %2025 = vmatprep.mubr.bf16.mxu0 0
        %2026 = vmatmul.mubr.bf16.gmra.mrb[0].mxu0 %v1991
        %v2027 = vpop.f32.mrb[0].mxu0
        %v2028 = vadd.f32 0.0, %v2027
        %v2029 = vpop.f32.mrb[0].mxu0
        %v2030 = vpop.f32.mrb[0].mxu0
        %v2031 = vadd.f32 0.0, %v2030
        %v2032 = vpop.f32.mrb[0].mxu0
        %2033 = vdwg.mxu0
        %v2034 = vpack.c.bf16 %v2031, %v2028
        %v2036 = vsel %vm1236, %v2034, 0
        %v2039 = vsel %vm1479, %v1227, 0
        %2041 = vmatprep.subr.bf16.mxu0 0
        %2042 = vmatpush1.bf16.msra.mxu0 %v2039
        %2043 = vmatprep.subr.bf16.mxu0 0
        %2044 = vmatpush1.bf16.msra.mxu0 0
        %2045 = vmatprep.subr.bf16.mxu0 0
        %2046 = vmatpush1.bf16.msra.mxu0 0
        %2047 = vmatprep.subr.bf16.mxu0 0
        %2048 = vmatpush1.bf16.msra.mxu0 0
        %2049 = vmatprep.subr.bf16.mxu0 0
        %2050 = vmatpush1.bf16.msra.mxu0 0
        %2051 = vmatprep.subr.bf16.mxu0 0
        %2052 = vmatpush1.bf16.msra.mxu0 0
        %2053 = vmatprep.subr.bf16.mxu0 0
        %2054 = vmatpush1.bf16.msra.mxu0 0
        %2055 = vmatprep.subr.bf16.mxu0 0
        %2056 = vmatpush1.bf16.msra.mxu0 0
        %2057 = vmatprep.subr.bf16.mxu0 0
        %2058 = vmatpush1.bf16.msra.mxu0 0
        %2059 = vmatprep.subr.bf16.mxu0 0
        %2060 = vmatpush1.bf16.msra.mxu0 0
        %2061 = vmatprep.subr.bf16.mxu0 0
        %2062 = vmatpush1.bf16.msra.mxu0 0
        %2063 = vmatprep.subr.bf16.mxu0 0
        %2064 = vmatpush1.bf16.msra.mxu0 0
        %2065 = vmatprep.subr.bf16.mxu0 0
        %2066 = vmatpush1.bf16.msra.mxu0 0
        %2067 = vmatprep.subr.bf16.mxu0 0
        %2068 = vmatpush1.bf16.msra.mxu0 0
        %2069 = vmatprep.subr.bf16.mxu0 0
        %2070 = vmatpush1.bf16.msra.mxu0 0
        %2071 = vmatprep.subr.bf16.mxu0 0
        %2072 = vmatpush1.bf16.msra.mxu0 0
        %2073 = vmatprep.mubr.bf16.mxu0 0
        %2074 = vmatmul.mubr.bf16.gmra.mrb[0].mxu0 %v2036
        %v2075 = vpop.f32.mrb[0].mxu0
        %v2076 = vadd.f32 0.0, %v2075
        %v2077 = vpop.f32.mrb[0].mxu0
        %v2078 = vpop.f32.mrb[0].mxu0
        %v2079 = vadd.f32 0.0, %v2078
        %v2080 = vpop.f32.mrb[0].mxu0
        %2081 = vdwg.mxu0
        %v2082 = vadd.f32 %v1911, %v2076
        %v2083 = vadd.f32 %v1912, %v2079
        %2084 = vrot.lane.b32.xlu0 %v1231, 88
        %v2085 = vpop.permute.xlu0 %2084
        %2086 = vrot.lane.b32.xlu0 %v1231, 24
        %v2087 = vpop.permute.xlu0 %2086
        %v2089 = vsel %vm1236, %v2085, 0
        %v2092 = vsel %vm1236, %v2087, 0
        %2094 = vmatprep.subr.bf16.mxu0 0
        %2095 = vmatpush1.bf16.xpose.msra.mxu0 %v2092
        %2096 = vmatprep.subr.bf16.mxu0 0
        %2097 = vmatpush1.bf16.xpose.msra.mxu0 0
        %2098 = vmatprep.subr.bf16.mxu0 0
        %2099 = vmatpush1.bf16.xpose.msra.mxu0 0
        %2100 = vmatprep.subr.bf16.mxu0 0
        %2101 = vmatpush1.bf16.xpose.msra.mxu0 0
        %2102 = vmatprep.subr.bf16.mxu0 0
        %2103 = vmatpush1.bf16.xpose.msra.mxu0 0
        %2104 = vmatprep.subr.bf16.mxu0 0
        %2105 = vmatpush1.bf16.xpose.msra.mxu0 0
        %2106 = vmatprep.subr.bf16.mxu0 0
        %2107 = vmatpush1.bf16.xpose.msra.mxu0 0
        %2108 = vmatprep.subr.bf16.mxu0 0
        %2109 = vmatpush1.bf16.xpose.msra.mxu0 0
        %2110 = vmatprep.subr.bf16.mxu0 0
        %2111 = vmatpush1.bf16.xpose.msra.mxu0 0
        %2112 = vmatprep.subr.bf16.mxu0 0
        %2113 = vmatpush1.bf16.xpose.msra.mxu0 0
        %2114 = vmatprep.subr.bf16.mxu0 0
        %2115 = vmatpush1.bf16.xpose.msra.mxu0 0
        %2116 = vmatprep.subr.bf16.mxu0 0
        %2117 = vmatpush1.bf16.xpose.msra.mxu0 0
        %2118 = vmatprep.subr.bf16.mxu0 0
        %2119 = vmatpush1.bf16.xpose.msra.mxu0 0
        %2120 = vmatprep.subr.bf16.mxu0 0
        %2121 = vmatpush1.bf16.xpose.msra.mxu0 0
        %2122 = vmatprep.subr.bf16.mxu0 0
        %2123 = vmatpush1.bf16.xpose.msra.mxu0 0
        %2124 = vmatprep.subr.bf16.mxu0 0
        %2125 = vmatpush1.bf16.xpose.msra.mxu0 0
        %2126 = vmatprep.mubr.bf16.mxu0 0
        %2127 = vmatmul.mubr.bf16.gmra.mrb[0].mxu0 %v2089
        %v2128 = vpop.f32.mrb[0].mxu0
        %v2129 = vadd.f32 0.0, %v2128
        %v2130 = vpop.f32.mrb[0].mxu0
        %v2131 = vpop.f32.mrb[0].mxu0
        %v2132 = vadd.f32 0.0, %v2131
        %v2133 = vpop.f32.mrb[0].mxu0
        %2134 = vdwg.mxu0
        %v2135 = vsel %vm1284, %v2129, -inf
        %2136 = vmax.xlane.f32.xlu0 %v2135
        %v2137 = vpop.xlane.xlu0 %2136
        %v2138 = vsel %vm1284, %v2132, -inf
        %2139 = vmax.xlane.f32.xlu0 %v2138
        %v2140 = vpop.xlane.xlu0 %2139
        %v2141 = vsub.f32 %v2129, %v2137
        %v2142 = vsub.f32 %v2132, %v2140
        %v2143 = vmul.f32 %v2141, 1.442695
        %v2144 = vpow.pop %v2143
        %v2145 = vmul.f32 %v2142, 1.442695
        %v2146 = vpow.pop %v2145
        %v2147 = vsel %vm1284, %v2144, 0.0
        %2148 = vadd.xlane.f32.xlu0 %v2147
        %v2149 = vpop.xlane.xlu0 %2148
        %v2150 = vsel %vm1284, %v2146, 0.0
        %2151 = vadd.xlane.f32.xlu0 %v2150
        %v2152 = vpop.xlane.xlu0 %2151
        %v2153 = vrcp.pop %v2149
        %v2154 = vrcp.pop %v2152
        %v2155 = vmul.f32 %v2144, %v2153
        %v2156 = vmul.f32 %v2146, %v2154
        %v2157 = vpack.c.bf16 %v2156, %v2155
        %2158 = vrot.lane.b32.xlu0 %v1232, 88
        %v2159 = vpop.permute.xlu0 %2158
        %v2162 = vsel %vm1284, %v2157, 0
        %2164 = vmatprep.subr.bf16.mxu0 0
        %2165 = vmatpush1.bf16.msra.mxu0 %v2159
        %2166 = vmatprep.subr.bf16.mxu0 0
        %2167 = vmatpush1.bf16.msra.mxu0 0
        %2168 = vmatprep.subr.bf16.mxu0 0
        %2169 = vmatpush1.bf16.msra.mxu0 0
        %2170 = vmatprep.subr.bf16.mxu0 0
        %2171 = vmatpush1.bf16.msra.mxu0 0
        %2172 = vmatprep.subr.bf16.mxu0 0
        %2173 = vmatpush1.bf16.msra.mxu0 0
        %2174 = vmatprep.subr.bf16.mxu0 0
        %2175 = vmatpush1.bf16.msra.mxu0 0
        %2176 = vmatprep.subr.bf16.mxu0 0
        %2177 = vmatpush1.bf16.msra.mxu0 0
        %2178 = vmatprep.subr.bf16.mxu0 0
        %2179 = vmatpush1.bf16.msra.mxu0 0
        %2180 = vmatprep.subr.bf16.mxu0 0
        %2181 = vmatpush1.bf16.msra.mxu0 0
        %2182 = vmatprep.subr.bf16.mxu0 0
        %2183 = vmatpush1.bf16.msra.mxu0 0
        %2184 = vmatprep.subr.bf16.mxu0 0
        %2185 = vmatpush1.bf16.msra.mxu0 0
        %2186 = vmatprep.subr.bf16.mxu0 0
        %2187 = vmatpush1.bf16.msra.mxu0 0
        %2188 = vmatprep.subr.bf16.mxu0 0
        %2189 = vmatpush1.bf16.msra.mxu0 0
        %2190 = vmatprep.subr.bf16.mxu0 0
        %2191 = vmatpush1.bf16.msra.mxu0 0
        %2192 = vmatprep.subr.bf16.mxu0 0
        %2193 = vmatpush1.bf16.msra.mxu0 0
        %2194 = vmatprep.subr.bf16.mxu0 0
        %2195 = vmatpush1.bf16.msra.mxu0 0
        %2196 = vmatprep.mubr.bf16.mxu0 0
        %2197 = vmatmul.mubr.bf16.gmra.mrb[0].mxu0 %v2162
        %v2198 = vpop.f32.mrb[0].mxu0
        %v2199 = vadd.f32 0.0, %v2198
        %v2200 = vpop.f32.mrb[0].mxu0
        %v2201 = vpop.f32.mrb[0].mxu0
        %v2202 = vadd.f32 0.0, %v2201
        %v2203 = vpop.f32.mrb[0].mxu0
        %2204 = vdwg.mxu0
        %v2205 = vpack.c.bf16 %v2202, %v2199
        %v2207 = vsel %vm1236, %v2205, 0
        %v2210 = vsel %vm1479, %v1228, 0
        %2212 = vmatprep.subr.bf16.mxu0 0
        %2213 = vmatpush1.bf16.msra.mxu0 %v2210
        %2214 = vmatprep.subr.bf16.mxu0 0
        %2215 = vmatpush1.bf16.msra.mxu0 0
        %2216 = vmatprep.subr.bf16.mxu0 0
        %2217 = vmatpush1.bf16.msra.mxu0 0
        %2218 = vmatprep.subr.bf16.mxu0 0
        %2219 = vmatpush1.bf16.msra.mxu0 0
        %2220 = vmatprep.subr.bf16.mxu0 0
        %2221 = vmatpush1.bf16.msra.mxu0 0
        %2222 = vmatprep.subr.bf16.mxu0 0
        %2223 = vmatpush1.bf16.msra.mxu0 0
        %2224 = vmatprep.subr.bf16.mxu0 0
        %2225 = vmatpush1.bf16.msra.mxu0 0
        %2226 = vmatprep.subr.bf16.mxu0 0
        %2227 = vmatpush1.bf16.msra.mxu0 0
        %2228 = vmatprep.subr.bf16.mxu0 0
        %2229 = vmatpush1.bf16.msra.mxu0 0
        %2230 = vmatprep.subr.bf16.mxu0 0
        %2231 = vmatpush1.bf16.msra.mxu0 0
        %2232 = vmatprep.subr.bf16.mxu0 0
        %2233 = vmatpush1.bf16.msra.mxu0 0
        %2234 = vmatprep.subr.bf16.mxu0 0
        %2235 = vmatpush1.bf16.msra.mxu0 0
        %2236 = vmatprep.subr.bf16.mxu0 0
        %2237 = vmatpush1.bf16.msra.mxu0 0
        %2238 = vmatprep.subr.bf16.mxu0 0
        %2239 = vmatpush1.bf16.msra.mxu0 0
        %2240 = vmatprep.subr.bf16.mxu0 0
        %2241 = vmatpush1.bf16.msra.mxu0 0
        %2242 = vmatprep.subr.bf16.mxu0 0
        %2243 = vmatpush1.bf16.msra.mxu0 0
        %2244 = vmatprep.mubr.bf16.mxu0 0
        %2245 = vmatmul.mubr.bf16.gmra.mrb[0].mxu0 %v2207
        %v2246 = vpop.f32.mrb[0].mxu0
        %v2247 = vadd.f32 0.0, %v2246
        %v2248 = vpop.f32.mrb[0].mxu0
        %v2249 = vpop.f32.mrb[0].mxu0
        %v2250 = vadd.f32 0.0, %v2249
        %v2251 = vpop.f32.mrb[0].mxu0
        %2252 = vdwg.mxu0
        %v2253 = vadd.f32 %v2082, %v2247
        %v2254 = vadd.f32 %v2083, %v2250
        %2255 = vrot.lane.b32.xlu0 %v1231, 80
        %v2256 = vpop.permute.xlu0 %2255
        %2257 = vrot.lane.b32.xlu0 %v1231, 16
        %v2258 = vpop.permute.xlu0 %2257
        %v2260 = vsel %vm1236, %v2256, 0
        %v2263 = vsel %vm1236, %v2258, 0
        %2265 = vmatprep.subr.bf16.mxu0 0
        %2266 = vmatpush1.bf16.xpose.msra.mxu0 %v2263
        %2267 = vmatprep.subr.bf16.mxu0 0
        %2268 = vmatpush1.bf16.xpose.msra.mxu0 0
        %2269 = vmatprep.subr.bf16.mxu0 0
        %2270 = vmatpush1.bf16.xpose.msra.mxu0 0
        %2271 = vmatprep.subr.bf16.mxu0 0
        %2272 = vmatpush1.bf16.xpose.msra.mxu0 0
        %2273 = vmatprep.subr.bf16.mxu0 0
        %2274 = vmatpush1.bf16.xpose.msra.mxu0 0
        %2275 = vmatprep.subr.bf16.mxu0 0
        %2276 = vmatpush1.bf16.xpose.msra.mxu0 0
        %2277 = vmatprep.subr.bf16.mxu0 0
        %2278 = vmatpush1.bf16.xpose.msra.mxu0 0
        %2279 = vmatprep.subr.bf16.mxu0 0
        %2280 = vmatpush1.bf16.xpose.msra.mxu0 0
        %2281 = vmatprep.subr.bf16.mxu0 0
        %2282 = vmatpush1.bf16.xpose.msra.mxu0 0
        %2283 = vmatprep.subr.bf16.mxu0 0
        %2284 = vmatpush1.bf16.xpose.msra.mxu0 0
        %2285 = vmatprep.subr.bf16.mxu0 0
        %2286 = vmatpush1.bf16.xpose.msra.mxu0 0
        %2287 = vmatprep.subr.bf16.mxu0 0
        %2288 = vmatpush1.bf16.xpose.msra.mxu0 0
        %2289 = vmatprep.subr.bf16.mxu0 0
        %2290 = vmatpush1.bf16.xpose.msra.mxu0 0
        %2291 = vmatprep.subr.bf16.mxu0 0
        %2292 = vmatpush1.bf16.xpose.msra.mxu0 0
        %2293 = vmatprep.subr.bf16.mxu0 0
        %2294 = vmatpush1.bf16.xpose.msra.mxu0 0
        %2295 = vmatprep.subr.bf16.mxu0 0
        %2296 = vmatpush1.bf16.xpose.msra.mxu0 0
        %2297 = vmatprep.mubr.bf16.mxu0 0
        %2298 = vmatmul.mubr.bf16.gmra.mrb[0].mxu0 %v2260
        %v2299 = vpop.f32.mrb[0].mxu0
        %v2300 = vadd.f32 0.0, %v2299
        %v2301 = vpop.f32.mrb[0].mxu0
        %v2302 = vpop.f32.mrb[0].mxu0
        %v2303 = vadd.f32 0.0, %v2302
        %v2304 = vpop.f32.mrb[0].mxu0
        %2305 = vdwg.mxu0
        %v2306 = vsel %vm1284, %v2300, -inf
        %2307 = vmax.xlane.f32.xlu0 %v2306
        %v2308 = vpop.xlane.xlu0 %2307
        %v2309 = vsel %vm1284, %v2303, -inf
        %2310 = vmax.xlane.f32.xlu0 %v2309
        %v2311 = vpop.xlane.xlu0 %2310
        %v2312 = vsub.f32 %v2300, %v2308
        %v2313 = vsub.f32 %v2303, %v2311
        %v2314 = vmul.f32 %v2312, 1.442695
        %v2315 = vpow.pop %v2314
        %v2316 = vmul.f32 %v2313, 1.442695
        %v2317 = vpow.pop %v2316
        %v2318 = vsel %vm1284, %v2315, 0.0
        %2319 = vadd.xlane.f32.xlu0 %v2318
        %v2320 = vpop.xlane.xlu0 %2319
        %v2321 = vsel %vm1284, %v2317, 0.0
        %2322 = vadd.xlane.f32.xlu0 %v2321
        %v2323 = vpop.xlane.xlu0 %2322
        %v2324 = vrcp.pop %v2320
        %v2325 = vrcp.pop %v2323
        %v2326 = vmul.f32 %v2315, %v2324
        %v2327 = vmul.f32 %v2317, %v2325
        %v2328 = vpack.c.bf16 %v2327, %v2326
        %2329 = vrot.lane.b32.xlu0 %v1232, 80
        %v2330 = vpop.permute.xlu0 %2329
        %v2333 = vsel %vm1284, %v2328, 0
        %2335 = vmatprep.subr.bf16.mxu0 0
        %2336 = vmatpush1.bf16.msra.mxu0 %v2330
        %2337 = vmatprep.subr.bf16.mxu0 0
        %2338 = vmatpush1.bf16.msra.mxu0 0
        %2339 = vmatprep.subr.bf16.mxu0 0
        %2340 = vmatpush1.bf16.msra.mxu0 0
        %2341 = vmatprep.subr.bf16.mxu0 0
        %2342 = vmatpush1.bf16.msra.mxu0 0
        %2343 = vmatprep.subr.bf16.mxu0 0
        %2344 = vmatpush1.bf16.msra.mxu0 0
        %2345 = vmatprep.subr.bf16.mxu0 0
        %2346 = vmatpush1.bf16.msra.mxu0 0
        %2347 = vmatprep.subr.bf16.mxu0 0
        %2348 = vmatpush1.bf16.msra.mxu0 0
        %2349 = vmatprep.subr.bf16.mxu0 0
        %2350 = vmatpush1.bf16.msra.mxu0 0
        %2351 = vmatprep.subr.bf16.mxu0 0
        %2352 = vmatpush1.bf16.msra.mxu0 0
        %2353 = vmatprep.subr.bf16.mxu0 0
        %2354 = vmatpush1.bf16.msra.mxu0 0
        %2355 = vmatprep.subr.bf16.mxu0 0
        %2356 = vmatpush1.bf16.msra.mxu0 0
        %2357 = vmatprep.subr.bf16.mxu0 0
        %2358 = vmatpush1.bf16.msra.mxu0 0
        %2359 = vmatprep.subr.bf16.mxu0 0
        %2360 = vmatpush1.bf16.msra.mxu0 0
        %2361 = vmatprep.subr.bf16.mxu0 0
        %2362 = vmatpush1.bf16.msra.mxu0 0
        %2363 = vmatprep.subr.bf16.mxu0 0
        %2364 = vmatpush1.bf16.msra.mxu0 0
        %2365 = vmatprep.subr.bf16.mxu0 0
        %2366 = vmatpush1.bf16.msra.mxu0 0
        %2367 = vmatprep.mubr.bf16.mxu0 0
        %2368 = vmatmul.mubr.bf16.gmra.mrb[0].mxu0 %v2333
        %v2369 = vpop.f32.mrb[0].mxu0
        %v2370 = vadd.f32 0.0, %v2369
        %v2371 = vpop.f32.mrb[0].mxu0
        %v2372 = vpop.f32.mrb[0].mxu0
        %v2373 = vadd.f32 0.0, %v2372
        %v2374 = vpop.f32.mrb[0].mxu0
        %2375 = vdwg.mxu0
        %v2376 = vpack.c.bf16 %v2373, %v2370
        %v2378 = vsel %vm1236, %v2376, 0
        %v2381 = vsel %vm1479, %v1229, 0
        %2383 = vmatprep.subr.bf16.mxu0 0
        %2384 = vmatpush1.bf16.msra.mxu0 %v2381
        %2385 = vmatprep.subr.bf16.mxu0 0
        %2386 = vmatpush1.bf16.msra.mxu0 0
        %2387 = vmatprep.subr.bf16.mxu0 0
        %2388 = vmatpush1.bf16.msra.mxu0 0
        %2389 = vmatprep.subr.bf16.mxu0 0
        %2390 = vmatpush1.bf16.msra.mxu0 0
        %2391 = vmatprep.subr.bf16.mxu0 0
        %2392 = vmatpush1.bf16.msra.mxu0 0
        %2393 = vmatprep.subr.bf16.mxu0 0
        %2394 = vmatpush1.bf16.msra.mxu0 0
        %2395 = vmatprep.subr.bf16.mxu0 0
        %2396 = vmatpush1.bf16.msra.mxu0 0
        %2397 = vmatprep.subr.bf16.mxu0 0
        %2398 = vmatpush1.bf16.msra.mxu0 0
        %2399 = vmatprep.subr.bf16.mxu0 0
        %2400 = vmatpush1.bf16.msra.mxu0 0
        %2401 = vmatprep.subr.bf16.mxu0 0
        %2402 = vmatpush1.bf16.msra.mxu0 0
        %2403 = vmatprep.subr.bf16.mxu0 0
        %2404 = vmatpush1.bf16.msra.mxu0 0
        %2405 = vmatprep.subr.bf16.mxu0 0
        %2406 = vmatpush1.bf16.msra.mxu0 0
        %2407 = vmatprep.subr.bf16.mxu0 0
        %2408 = vmatpush1.bf16.msra.mxu0 0
        %2409 = vmatprep.subr.bf16.mxu0 0
        %2410 = vmatpush1.bf16.msra.mxu0 0
        %2411 = vmatprep.subr.bf16.mxu0 0
        %2412 = vmatpush1.bf16.msra.mxu0 0
        %2413 = vmatprep.subr.bf16.mxu0 0
        %2414 = vmatpush1.bf16.msra.mxu0 0
        %2415 = vmatprep.mubr.bf16.mxu0 0
        %2416 = vmatmul.mubr.bf16.gmra.mrb[0].mxu0 %v2378
        %v2417 = vpop.f32.mrb[0].mxu0
        %v2418 = vadd.f32 0.0, %v2417
        %v2419 = vpop.f32.mrb[0].mxu0
        %v2420 = vpop.f32.mrb[0].mxu0
        %v2421 = vadd.f32 0.0, %v2420
        %v2422 = vpop.f32.mrb[0].mxu0
        %2423 = vdwg.mxu0
        %v2424 = vadd.f32 %v2253, %v2418
        %v2425 = vadd.f32 %v2254, %v2421
        %2426 = vrot.lane.b32.xlu0 %v1231, 72
        %v2427 = vpop.permute.xlu0 %2426
        %2428 = vrot.lane.b32.xlu0 %v1231, 8
        %v2429 = vpop.permute.xlu0 %2428
        %v2431 = vsel %vm1236, %v2427, 0
        %v2434 = vsel %vm1236, %v2429, 0
        %2436 = vmatprep.subr.bf16.mxu0 0
        %2437 = vmatpush1.bf16.xpose.msra.mxu0 %v2434
        %2438 = vmatprep.subr.bf16.mxu0 0
        %2439 = vmatpush1.bf16.xpose.msra.mxu0 0
        %2440 = vmatprep.subr.bf16.mxu0 0
        %2441 = vmatpush1.bf16.xpose.msra.mxu0 0
        %2442 = vmatprep.subr.bf16.mxu0 0
        %2443 = vmatpush1.bf16.xpose.msra.mxu0 0
        %2444 = vmatprep.subr.bf16.mxu0 0
        %2445 = vmatpush1.bf16.xpose.msra.mxu0 0
        %2446 = vmatprep.subr.bf16.mxu0 0
        %2447 = vmatpush1.bf16.xpose.msra.mxu0 0
        %2448 = vmatprep.subr.bf16.mxu0 0
        %2449 = vmatpush1.bf16.xpose.msra.mxu0 0
        %2450 = vmatprep.subr.bf16.mxu0 0
        %2451 = vmatpush1.bf16.xpose.msra.mxu0 0
        %2452 = vmatprep.subr.bf16.mxu0 0
        %2453 = vmatpush1.bf16.xpose.msra.mxu0 0
        %2454 = vmatprep.subr.bf16.mxu0 0
        %2455 = vmatpush1.bf16.xpose.msra.mxu0 0
        %2456 = vmatprep.subr.bf16.mxu0 0
        %2457 = vmatpush1.bf16.xpose.msra.mxu0 0
        %2458 = vmatprep.subr.bf16.mxu0 0
        %2459 = vmatpush1.bf16.xpose.msra.mxu0 0
        %2460 = vmatprep.subr.bf16.mxu0 0
        %2461 = vmatpush1.bf16.xpose.msra.mxu0 0
        %2462 = vmatprep.subr.bf16.mxu0 0
        %2463 = vmatpush1.bf16.xpose.msra.mxu0 0
        %2464 = vmatprep.subr.bf16.mxu0 0
        %2465 = vmatpush1.bf16.xpose.msra.mxu0 0
        %2466 = vmatprep.subr.bf16.mxu0 0
        %2467 = vmatpush1.bf16.xpose.msra.mxu0 0
        %2468 = vmatprep.mubr.bf16.mxu0 0
        %2469 = vmatmul.mubr.bf16.gmra.mrb[0].mxu0 %v2431
        %v2470 = vpop.f32.mrb[0].mxu0
        %v2471 = vadd.f32 0.0, %v2470
        %v2472 = vpop.f32.mrb[0].mxu0
        %v2473 = vpop.f32.mrb[0].mxu0
        %v2474 = vadd.f32 0.0, %v2473
        %v2475 = vpop.f32.mrb[0].mxu0
        %2476 = vdwg.mxu0
        %v2477 = vsel %vm1284, %v2471, -inf
        %2478 = vmax.xlane.f32.xlu0 %v2477
        %v2479 = vpop.xlane.xlu0 %2478
        %v2480 = vsel %vm1284, %v2474, -inf
        %2481 = vmax.xlane.f32.xlu0 %v2480
        %v2482 = vpop.xlane.xlu0 %2481
        %v2483 = vsub.f32 %v2471, %v2479
        %v2484 = vsub.f32 %v2474, %v2482
        %v2485 = vmul.f32 %v2483, 1.442695
        %v2486 = vpow.pop %v2485
        %v2487 = vmul.f32 %v2484, 1.442695
        %v2488 = vpow.pop %v2487
        %v2489 = vsel %vm1284, %v2486, 0.0
        %2490 = vadd.xlane.f32.xlu0 %v2489
        %v2491 = vpop.xlane.xlu0 %2490
        %v2492 = vsel %vm1284, %v2488, 0.0
        %2493 = vadd.xlane.f32.xlu0 %v2492
        %v2494 = vpop.xlane.xlu0 %2493
        %v2495 = vrcp.pop %v2491
        %v2496 = vrcp.pop %v2494
        %v2497 = vmul.f32 %v2486, %v2495
        %v2498 = vmul.f32 %v2488, %v2496
        %v2499 = vpack.c.bf16 %v2498, %v2497
        %2500 = vrot.lane.b32.xlu0 %v1232, 72
        %v2501 = vpop.permute.xlu0 %2500
        %v2504 = vsel %vm1284, %v2499, 0
        %2506 = vmatprep.subr.bf16.mxu0 0
        %2507 = vmatpush1.bf16.msra.mxu0 %v2501
        %2508 = vmatprep.subr.bf16.mxu0 0
        %2509 = vmatpush1.bf16.msra.mxu0 0
        %2510 = vmatprep.subr.bf16.mxu0 0
        %2511 = vmatpush1.bf16.msra.mxu0 0
        %2512 = vmatprep.subr.bf16.mxu0 0
        %2513 = vmatpush1.bf16.msra.mxu0 0
        %2514 = vmatprep.subr.bf16.mxu0 0
        %2515 = vmatpush1.bf16.msra.mxu0 0
        %2516 = vmatprep.subr.bf16.mxu0 0
        %2517 = vmatpush1.bf16.msra.mxu0 0
        %2518 = vmatprep.subr.bf16.mxu0 0
        %2519 = vmatpush1.bf16.msra.mxu0 0
        %2520 = vmatprep.subr.bf16.mxu0 0
        %2521 = vmatpush1.bf16.msra.mxu0 0
        %2522 = vmatprep.subr.bf16.mxu0 0
        %2523 = vmatpush1.bf16.msra.mxu0 0
        %2524 = vmatprep.subr.bf16.mxu0 0
        %2525 = vmatpush1.bf16.msra.mxu0 0
        %2526 = vmatprep.subr.bf16.mxu0 0
        %2527 = vmatpush1.bf16.msra.mxu0 0
        %2528 = vmatprep.subr.bf16.mxu0 0
        %2529 = vmatpush1.bf16.msra.mxu0 0
        %2530 = vmatprep.subr.bf16.mxu0 0
        %2531 = vmatpush1.bf16.msra.mxu0 0
        %2532 = vmatprep.subr.bf16.mxu0 0
        %2533 = vmatpush1.bf16.msra.mxu0 0
        %2534 = vmatprep.subr.bf16.mxu0 0
        %2535 = vmatpush1.bf16.msra.mxu0 0
        %2536 = vmatprep.subr.bf16.mxu0 0
        %2537 = vmatpush1.bf16.msra.mxu0 0
        %2538 = vmatprep.mubr.bf16.mxu0 0
        %2539 = vmatmul.mubr.bf16.gmra.mrb[0].mxu0 %v2504
        %v2540 = vpop.f32.mrb[0].mxu0
        %v2541 = vadd.f32 0.0, %v2540
        %v2542 = vpop.f32.mrb[0].mxu0
        %v2543 = vpop.f32.mrb[0].mxu0
        %v2544 = vadd.f32 0.0, %v2543
        %v2545 = vpop.f32.mrb[0].mxu0
        %2546 = vdwg.mxu0
        %v2547 = vpack.c.bf16 %v2544, %v2541
        %v2549 = vsel %vm1236, %v2547, 0
        %v2552 = vsel %vm1479, %v1230, 0
        %2554 = vmatprep.subr.bf16.mxu0 0
        %2555 = vmatpush1.bf16.msra.mxu0 %v2552
        %2556 = vmatprep.subr.bf16.mxu0 0
        %2557 = vmatpush1.bf16.msra.mxu0 0
        %2558 = vmatprep.subr.bf16.mxu0 0
        %2559 = vmatpush1.bf16.msra.mxu0 0
        %2560 = vmatprep.subr.bf16.mxu0 0
        %2561 = vmatpush1.bf16.msra.mxu0 0
        %2562 = vmatprep.subr.bf16.mxu0 0
        %2563 = vmatpush1.bf16.msra.mxu0 0
        %2564 = vmatprep.subr.bf16.mxu0 0
        %2565 = vmatpush1.bf16.msra.mxu0 0
        %2566 = vmatprep.subr.bf16.mxu0 0
        %2567 = vmatpush1.bf16.msra.mxu0 0
        %2568 = vmatprep.subr.bf16.mxu0 0
        %2569 = vmatpush1.bf16.msra.mxu0 0
        %2570 = vmatprep.subr.bf16.mxu0 0
        %2571 = vmatpush1.bf16.msra.mxu0 0
        %2572 = vmatprep.subr.bf16.mxu0 0
        %2573 = vmatpush1.bf16.msra.mxu0 0
        %2574 = vmatprep.subr.bf16.mxu0 0
        %2575 = vmatpush1.bf16.msra.mxu0 0
        %2576 = vmatprep.subr.bf16.mxu0 0
        %2577 = vmatpush1.bf16.msra.mxu0 0
        %2578 = vmatprep.subr.bf16.mxu0 0
        %2579 = vmatpush1.bf16.msra.mxu0 0
        %2580 = vmatprep.subr.bf16.mxu0 0
        %2581 = vmatpush1.bf16.msra.mxu0 0
        %2582 = vmatprep.subr.bf16.mxu0 0
        %2583 = vmatpush1.bf16.msra.mxu0 0
        %2584 = vmatprep.subr.bf16.mxu0 0
        %2585 = vmatpush1.bf16.msra.mxu0 0
        %2586 = vmatprep.mubr.bf16.mxu0 0
        %2587 = vmatmul.mubr.bf16.gmra.mrb[0].mxu0 %v2549
        %v2588 = vpop.f32.mrb[0].mxu0
        %v2589 = vadd.f32 0.0, %v2588
        %v2590 = vpop.f32.mrb[0].mxu0
        %v2591 = vpop.f32.mrb[0].mxu0
        %v2592 = vadd.f32 0.0, %v2591
        %v2593 = vpop.f32.mrb[0].mxu0
        %2594 = vdwg.mxu0
        %v2595 = vadd.f32 %v2424, %v2589
        %v2596 = vadd.f32 %v2425, %v2592
        %v2597 = vadd.f32 %v1068, %v2595
        %v2598 = vadd.f32 %v1069, %v2596
        %v2599 = vld [vmem:[%s867] sm:$0x1]
        %v2601 = vlaneseq
        %v2602 = vshrl.u32 %v2601, 7
        %v2603 = vsub.s32 0, %v2602
        %v2604 = vrot.slane %v2599, %v2603
        %v2606 = vadd.f32 %v2597, %v2604
        %v2607 = vadd.f32 %v2598, %v2604
        %v2608 = vld [vmem:[%s870] sm:$0x1]
        %v2609 = vld [vmem:[%s873] sm:$0x1]
        %v2610 = vsel %vm1072, %v2606, 0.0
        %2611 = vadd.xlane.f32.xlu0 %v2610
        %v2612 = vpop.xlane.xlu0 %2611
        %v2613 = vsel %vm1072, %v2607, 0.0
        %2614 = vadd.xlane.f32.xlu0 %v2613
        %v2615 = vpop.xlane.xlu0 %2614
        %v2616 = vmul.f32 %v2612, %v1079
        %v2617 = vmul.f32 %v2615, %v1079
        %v2618 = vsub.f32 %v2606, %v2616
        %v2619 = vsub.f32 %v2607, %v2617
        %v2620 = vmul.f32 %v2618, %v2618
        %v2621 = vmul.f32 %v2619, %v2619
        %v2622 = vsel %vm1072, %v2620, 0.0
        %2623 = vadd.xlane.f32.xlu0 %v2622
        %v2624 = vpop.xlane.xlu0 %2623
        %v2625 = vsel %vm1072, %v2621, 0.0
        %2626 = vadd.xlane.f32.xlu0 %v2625
        %v2627 = vpop.xlane.xlu0 %2626
        %v2628 = vmul.f32 %v2624, %v1079
        %v2629 = vmul.f32 %v2627, %v1079
        %v2630 = vadd.f32 %v2628, 1e-06
        %v2631 = vadd.f32 %v2629, 1e-06
        %v2632 = vrsqrt.pop %v2630
        %v2633 = vrsqrt.pop %v2631
        %v2634 = vmul.f32 %v2618, %v2632
        %v2635 = vmul.f32 %v2619, %v2633
        %v2637 = vlaneseq
        %v2638 = vshrl.u32 %v2637, 7
        %v2639 = vsub.s32 0, %v2638
        %v2640 = vrot.slane %v2608, %v2639
        %v2642 = vmul.f32 %v2634, %v2640
        %v2643 = vmul.f32 %v2635, %v2640
        %v2645 = vlaneseq
        %v2646 = vshrl.u32 %v2645, 7
        %v2647 = vsub.s32 0, %v2646
        %v2648 = vrot.slane %v2609, %v2647
        %v2650 = vadd.f32 %v2642, %v2648
        %v2651 = vadd.f32 %v2643, %v2648
        %v2652 = vpack.c.bf16 %v2651, %v2650
        %v2653 = vld [vmem:[%s878] sm:$0xff]
        %v2654 = vld [vmem:[%s878 + $0x8] sm:$0xff]
        %v2655 = vld [vmem:[%s878 + $0x10] sm:$0xff]
        %v2656 = vld [vmem:[%s878 + $0x18] sm:$0xff]
        %v2657 = vld [vmem:[%s878 + $0x20] sm:$0xff]
        %v2658 = vld [vmem:[%s878 + $0x28] sm:$0xff]
        %v2659 = vld [vmem:[%s878 + $0x30] sm:$0xff]
        %v2660 = vld [vmem:[%s878 + $0x38] sm:$0xff]
        %v2661 = vld [vmem:[%s882] sm:$0x3]
        %v2663 = vlaneseq
        %v2664 = vshrl.u32 %v2663, 7
        %v2665 = vsub.s32 0, %v2664
        %v2666 = vrot.slane %v2661, %v2665
        %v2667 = vlaneseq
        %v2668 = vshrl.u32 %v2667, 7
        %v2669 = vsub.s32 1, %v2668
        %v2670 = vrot.slane %v2661, %v2669
        %v2681 = vunpack.c.l.b16 %v2653
        %v2682 = vunpack.c.h.b16 %v2653
        %v2683 = vunpack.c.l.b16 %v2654
        %v2684 = vunpack.c.h.b16 %v2654
        %v2685 = vunpack.c.l.b16 %v2655
        %v2686 = vunpack.c.h.b16 %v2655
        %v2687 = vunpack.c.l.b16 %v2656
        %v2688 = vunpack.c.h.b16 %v2656
        %v2689 = vunpack.c.l.b16 %v2657
        %v2690 = vunpack.c.h.b16 %v2657
        %v2691 = vunpack.c.l.b16 %v2658
        %v2692 = vunpack.c.h.b16 %v2658
        %v2693 = vunpack.c.l.b16 %v2659
        %v2694 = vunpack.c.h.b16 %v2659
        %v2695 = vunpack.c.l.b16 %v2660
        %v2696 = vunpack.c.h.b16 %v2660
        %v2697 = vpack.c.b16 %v2683, %v2681
        %v2698 = vpack.c.b16 %v2684, %v2682
        %v2699 = vpack.c.b16 %v2687, %v2685
        %v2700 = vpack.c.b16 %v2688, %v2686
        %v2701 = vpack.c.b16 %v2691, %v2689
        %v2702 = vpack.c.b16 %v2692, %v2690
        %v2703 = vpack.c.b16 %v2695, %v2693
        %v2704 = vpack.c.b16 %v2696, %v2694
        %v2714 = vsel %vm1072, %v2652, 0
        %2716 = vmatprep.subr.bf16.mxu0 %v2698
        %2717 = vmatpush1.bf16.msra.mxu0 %v2697
        %2718 = vmatprep.subr.bf16.mxu0 %v2700
        %2719 = vmatpush1.bf16.msra.mxu0 %v2699
        %2720 = vmatprep.subr.bf16.mxu0 %v2702
        %2721 = vmatpush1.bf16.msra.mxu0 %v2701
        %2722 = vmatprep.subr.bf16.mxu0 %v2704
        %2723 = vmatpush1.bf16.msra.mxu0 %v2703
        %2724 = vmatprep.subr.bf16.mxu0 0
        %2725 = vmatpush1.bf16.msra.mxu0 0
        %2726 = vmatprep.subr.bf16.mxu0 0
        %2727 = vmatpush1.bf16.msra.mxu0 0
        %2728 = vmatprep.subr.bf16.mxu0 0
        %2729 = vmatpush1.bf16.msra.mxu0 0
        %2730 = vmatprep.subr.bf16.mxu0 0
        %2731 = vmatpush1.bf16.msra.mxu0 0
        %2732 = vmatprep.subr.bf16.mxu0 0
        %2733 = vmatpush1.bf16.msra.mxu0 0
        %2734 = vmatprep.subr.bf16.mxu0 0
        %2735 = vmatpush1.bf16.msra.mxu0 0
        %2736 = vmatprep.subr.bf16.mxu0 0
        %2737 = vmatpush1.bf16.msra.mxu0 0
        %2738 = vmatprep.subr.bf16.mxu0 0
        %2739 = vmatpush1.bf16.msra.mxu0 0
        %2740 = vmatprep.subr.bf16.mxu0 0
        %2741 = vmatpush1.bf16.msra.mxu0 0
        %2742 = vmatprep.subr.bf16.mxu0 0
        %2743 = vmatpush1.bf16.msra.mxu0 0
        %2744 = vmatprep.subr.bf16.mxu0 0
        %2745 = vmatpush1.bf16.msra.mxu0 0
        %2746 = vmatprep.subr.bf16.mxu0 0
        %2747 = vmatpush1.bf16.msra.mxu0 0
        %2748 = vmatprep.mubr.bf16.mxu0 0
        %2749 = vmatmul.mubr.bf16.gmra.mrb[0].mxu0 %v2714
        %v2750 = vpop.f32.mrb[0].mxu0
        %v2751 = vadd.f32 %v2666, %v2750
        %v2752 = vpop.f32.mrb[0].mxu0
        %v2753 = vadd.f32 %v2670, %v2752
        %v2754 = vpop.f32.mrb[0].mxu0
        %v2755 = vadd.f32 %v2666, %v2754
        %v2756 = vpop.f32.mrb[0].mxu0
        %v2757 = vadd.f32 %v2670, %v2756
        %2758 = vdwg.mxu0
        %v2759 = vmul.f32 %v2751, 0.5
        %v2760 = vmul.f32 %v2753, 0.5
        %v2761 = vmul.f32 %v2755, 0.5
        %v2762 = vmul.f32 %v2757, 0.5
        %v2763 = vmul.f32 %v2751, 0.044715
        %v2764 = vmul.f32 %v2753, 0.044715
        %v2765 = vmul.f32 %v2755, 0.044715
        %v2766 = vmul.f32 %v2757, 0.044715
        %v2767 = vmul.f32 %v2763, %v2751
        %v2768 = vmul.f32 %v2764, %v2753
        %v2769 = vmul.f32 %v2765, %v2755
        %v2770 = vmul.f32 %v2766, %v2757
        %v2771 = vmul.f32 %v2767, %v2751
        %v2772 = vmul.f32 %v2768, %v2753
        %v2773 = vmul.f32 %v2769, %v2755
        %v2774 = vmul.f32 %v2770, %v2757
        %v2775 = vadd.f32 %v2751, %v2771
        %v2776 = vadd.f32 %v2753, %v2772
        %v2777 = vadd.f32 %v2755, %v2773
        %v2778 = vadd.f32 %v2757, %v2774
        %v2779 = vmul.f32 %v2775, 0.7978846
        %v2780 = vmul.f32 %v2776, 0.7978846
        %v2781 = vmul.f32 %v2777, 0.7978846
        %v2782 = vmul.f32 %v2778, 0.7978846
        %v2783 = vtanh.pop %v2779
        %v2784 = vtanh.pop %v2780
        %v2785 = vtanh.pop %v2781
        %v2786 = vtanh.pop %v2782
        %v2787 = vadd.f32 %v2783, 1.0
        %v2788 = vadd.f32 %v2784, 1.0
        %v2789 = vadd.f32 %v2785, 1.0
        %v2790 = vadd.f32 %v2786, 1.0
        %v2791 = vmul.f32 %v2759, %v2787
        %v2792 = vmul.f32 %v2760, %v2788
        %v2793 = vmul.f32 %v2761, %v2789
        %v2794 = vmul.f32 %v2762, %v2790
        %v2795 = vpack.c.bf16 %v2793, %v2791
        %v2796 = vpack.c.bf16 %v2794, %v2792
        %v2797 = vld [vmem:[%s887] sm:$0xf]
        %v2798 = vld [vmem:[%s887 + $0x4] sm:$0xf]
        %v2799 = vld [vmem:[%s887 + $0x8] sm:$0xf]
        %v2800 = vld [vmem:[%s887 + $0xc] sm:$0xf]
        %v2801 = vld [vmem:[%s887 + $0x10] sm:$0xf]
        %v2802 = vld [vmem:[%s887 + $0x14] sm:$0xf]
        %v2803 = vld [vmem:[%s887 + $0x18] sm:$0xf]
        %v2804 = vld [vmem:[%s887 + $0x1c] sm:$0xf]
        %v2805 = vld [vmem:[%s887 + $0x20] sm:$0xf]
        %v2806 = vld [vmem:[%s887 + $0x24] sm:$0xf]
        %v2807 = vld [vmem:[%s887 + $0x28] sm:$0xf]
        %v2808 = vld [vmem:[%s887 + $0x2c] sm:$0xf]
        %v2809 = vld [vmem:[%s887 + $0x30] sm:$0xf]
        %v2810 = vld [vmem:[%s887 + $0x34] sm:$0xf]
        %v2811 = vld [vmem:[%s887 + $0x38] sm:$0xf]
        %v2812 = vld [vmem:[%s887 + $0x3c] sm:$0xf]
        %v2813 = vld [vmem:[%s887 + $0x40] sm:$0xf]
        %v2814 = vld [vmem:[%s887 + $0x44] sm:$0xf]
        %v2815 = vld [vmem:[%s887 + $0x48] sm:$0xf]
        %v2816 = vld [vmem:[%s887 + $0x4c] sm:$0xf]
        %v2817 = vld [vmem:[%s887 + $0x50] sm:$0xf]
        %v2818 = vld [vmem:[%s887 + $0x54] sm:$0xf]
        %v2819 = vld [vmem:[%s887 + $0x58] sm:$0xf]
        %v2820 = vld [vmem:[%s887 + $0x5c] sm:$0xf]
        %v2821 = vld [vmem:[%s887 + $0x60] sm:$0xf]
        %v2822 = vld [vmem:[%s887 + $0x64] sm:$0xf]
        %v2823 = vld [vmem:[%s887 + $0x68] sm:$0xf]
        %v2824 = vld [vmem:[%s887 + $0x6c] sm:$0xf]
        %v2825 = vld [vmem:[%s887 + $0x70] sm:$0xf]
        %v2826 = vld [vmem:[%s887 + $0x74] sm:$0xf]
        %v2827 = vld [vmem:[%s887 + $0x78] sm:$0xf]
        %v2828 = vld [vmem:[%s887 + $0x7c] sm:$0xf]
        %v2829 = vld [vmem:[%s890] sm:$0x1]
        %v2831 = vlaneseq
        %v2832 = vshrl.u32 %v2831, 7
        %v2833 = vsub.s32 0, %v2832
        %v2834 = vrot.slane %v2829, %v2833
        %v2868 = vunpack.c.l.b16 %v2797
        %v2869 = vunpack.c.l.b16 %v2798
        %v2870 = vunpack.c.l.b16 %v2799
        %v2871 = vunpack.c.l.b16 %v2800
        %v2872 = vunpack.c.l.b16 %v2801
        %v2873 = vunpack.c.l.b16 %v2802
        %v2874 = vunpack.c.l.b16 %v2803
        %v2875 = vunpack.c.l.b16 %v2804
        %v2876 = vunpack.c.l.b16 %v2805
        %v2877 = vunpack.c.l.b16 %v2806
        %v2878 = vunpack.c.l.b16 %v2807
        %v2879 = vunpack.c.l.b16 %v2808
        %v2880 = vunpack.c.l.b16 %v2809
        %v2881 = vunpack.c.l.b16 %v2810
        %v2882 = vunpack.c.l.b16 %v2811
        %v2883 = vunpack.c.l.b16 %v2812
        %v2884 = vunpack.c.l.b16 %v2813
        %v2885 = vunpack.c.l.b16 %v2814
        %v2886 = vunpack.c.l.b16 %v2815
        %v2887 = vunpack.c.l.b16 %v2816
        %v2888 = vunpack.c.l.b16 %v2817
        %v2889 = vunpack.c.l.b16 %v2818
        %v2890 = vunpack.c.l.b16 %v2819
        %v2891 = vunpack.c.l.b16 %v2820
        %v2892 = vunpack.c.l.b16 %v2821
        %v2893 = vunpack.c.l.b16 %v2822
        %v2894 = vunpack.c.l.b16 %v2823
        %v2895 = vunpack.c.l.b16 %v2824
        %v2896 = vunpack.c.l.b16 %v2825
        %v2897 = vunpack.c.l.b16 %v2826
        %v2898 = vunpack.c.l.b16 %v2827
        %v2899 = vunpack.c.l.b16 %v2828
        %v2900 = vpack.c.b16 %v2869, %v2868
        %v2901 = vpack.c.b16 %v2871, %v2870
        %v2902 = vpack.c.b16 %v2873, %v2872
        %v2903 = vpack.c.b16 %v2875, %v2874
        %v2904 = vpack.c.b16 %v2877, %v2876
        %v2905 = vpack.c.b16 %v2879, %v2878
        %v2906 = vpack.c.b16 %v2881, %v2880
        %v2907 = vpack.c.b16 %v2883, %v2882
        %v2908 = vpack.c.b16 %v2885, %v2884
        %v2909 = vpack.c.b16 %v2887, %v2886
        %v2910 = vpack.c.b16 %v2889, %v2888
        %v2911 = vpack.c.b16 %v2891, %v2890
        %v2912 = vpack.c.b16 %v2893, %v2892
        %v2913 = vpack.c.b16 %v2895, %v2894
        %v2914 = vpack.c.b16 %v2897, %v2896
        %v2915 = vpack.c.b16 %v2899, %v2898
        %2932 = vmatprep.subr.bf16.mxu0 0
        %2933 = vmatpush1.bf16.msra.mxu0 %v2900
        %2934 = vmatprep.subr.bf16.mxu0 0
        %2935 = vmatpush1.bf16.msra.mxu0 %v2901
        %2936 = vmatprep.subr.bf16.mxu0 0
        %2937 = vmatpush1.bf16.msra.mxu0 %v2902
        %2938 = vmatprep.subr.bf16.mxu0 0
        %2939 = vmatpush1.bf16.msra.mxu0 %v2903
        %2940 = vmatprep.subr.bf16.mxu0 0
        %2941 = vmatpush1.bf16.msra.mxu0 %v2904
        %2942 = vmatprep.subr.bf16.mxu0 0
        %2943 = vmatpush1.bf16.msra.mxu0 %v2905
        %2944 = vmatprep.subr.bf16.mxu0 0
        %2945 = vmatpush1.bf16.msra.mxu0 %v2906
        %2946 = vmatprep.subr.bf16.mxu0 0
        %2947 = vmatpush1.bf16.msra.mxu0 %v2907
        %2948 = vmatprep.subr.bf16.mxu0 0
        %2949 = vmatpush1.bf16.msra.mxu0 %v2908
        %2950 = vmatprep.subr.bf16.mxu0 0
        %2951 = vmatpush1.bf16.msra.mxu0 %v2909
        %2952 = vmatprep.subr.bf16.mxu0 0
        %2953 = vmatpush1.bf16.msra.mxu0 %v2910
        %2954 = vmatprep.subr.bf16.mxu0 0
        %2955 = vmatpush1.bf16.msra.mxu0 %v2911
        %2956 = vmatprep.subr.bf16.mxu0 0
        %2957 = vmatpush1.bf16.msra.mxu0 %v2912
        %2958 = vmatprep.subr.bf16.mxu0 0
        %2959 = vmatpush1.bf16.msra.mxu0 %v2913
        %2960 = vmatprep.subr.bf16.mxu0 0
        %2961 = vmatpush1.bf16.msra.mxu0 %v2914
        %2962 = vmatprep.subr.bf16.mxu0 0
        %2963 = vmatpush1.bf16.msra.mxu0 %v2915
        %2964 = vmatprep.mubr.bf16.mxu0 %v2796
        %2965 = vmatmul.mubr.bf16.gmra.mrb[0].mxu0 %v2795
        %v2966 = vpop.f32.mrb[0].mxu0
        %v2967 = vadd.f32 %v2834, %v2966
        %v2968 = vpop.f32.mrb[0].mxu0
        %v2969 = vpop.f32.mrb[0].mxu0
        %v2970 = vadd.f32 %v2834, %v2969
        %v2971 = vpop.f32.mrb[0].mxu0
        %2972 = vdwg.mxu0
        %v2973 = vadd.f32 %v2606, %v2967
        %v2974 = vadd.f32 %v2607, %v2970
        %2975 = vst.msk [vmem:[#allocation2] sm:$0xff] %vm1072, %v2973
        %2976 = vst.msk [vmem:[#allocation2 + $0x8] sm:$0xff] %vm1072, %v2974
        %p2977 = scmp.eq.s32.totalorder %s41, 1
        // Predicated region
        $region113: #{wavet_forward.3} parent=107 // pred_check
          %p2978 = pneg %p2977
        $region114: #{wavet_forward.3} parent=107 // pred_check_branch
          %2980 = sbr.rel (%p2978) target = $region116
        $region115: #{wavet_forward.3} parent=107 // pred_region
          %v2981 = vld [vmem:[%s18] sm:$0x1]
          %v2982 = vld [vmem:[%s19] sm:$0x1]
          %v2983 = vsel %vm1072, %v2973, 0.0
          %2984 = vadd.xlane.f32.xlu0 %v2983
          %v2985 = vpop.xlane.xlu0 %2984
          %v2986 = vsel %vm1072, %v2974, 0.0
          %2987 = vadd.xlane.f32.xlu0 %v2986
          %v2988 = vpop.xlane.xlu0 %2987
          %v2989 = vmul.f32 %v2985, %v1079
          %v2990 = vmul.f32 %v2988, %v1079
          %v2991 = vsub.f32 %v2973, %v2989
          %v2992 = vsub.f32 %v2974, %v2990
          %v2993 = vmul.f32 %v2991, %v2991
          %v2994 = vmul.f32 %v2992, %v2992
          %v2995 = vsel %vm1072, %v2993, 0.0
          %2996 = vadd.xlane.f32.xlu0 %v2995
          %v2997 = vpop.xlane.xlu0 %2996
          %v2998 = vsel %vm1072, %v2994, 0.0
          %2999 = vadd.xlane.f32.xlu0 %v2998
          %v3000 = vpop.xlane.xlu0 %2999
          %v3001 = vmul.f32 %v2997, %v1079
          %v3002 = vmul.f32 %v3000, %v1079
          %v3003 = vadd.f32 %v3001, 1e-06
          %v3004 = vadd.f32 %v3002, 1e-06
          %v3005 = vrsqrt.pop %v3003
          %v3006 = vrsqrt.pop %v3004
          %v3007 = vmul.f32 %v2991, %v3005
          %v3008 = vmul.f32 %v2992, %v3006
          %v3010 = vlaneseq
          %v3011 = vshrl.u32 %v3010, 7
          %v3012 = vsub.s32 0, %v3011
          %v3013 = vrot.slane %v2981, %v3012
          %v3015 = vmul.f32 %v3007, %v3013
          %v3016 = vmul.f32 %v3008, %v3013
          %v3018 = vlaneseq
          %v3019 = vshrl.u32 %v3018, 7
          %v3020 = vsub.s32 0, %v3019
          %v3021 = vrot.slane %v2982, %v3020
          %v3023 = vadd.f32 %v3015, %v3021
          %v3024 = vadd.f32 %v3016, %v3021
          %v3025 = vsel %vm1072, %v3023, 0.0
          %v3026 = vsel %vm1072, %v3024, 0.0
          %v3027 = vadd.f32 %v3025, %v3026
          %v3028 = vrot.slane %v3027, 4
          %v3029 = vadd.f32 %v3027, %v3028
          %v3030 = vrot.slane %v3029, 2
          %v3031 = vadd.f32 %v3029, %v3030
          %v3032 = vrot.slane %v3031, 1
          %v3033 = vadd.f32 %v3031, %v3032
          %v3034 = vrcp.pop 16.0
          %v3035 = vmul.f32 %v3033, %v3034
          %v3036 = vpack.c.bf16 %v3035, %v3035
          %v3037 = vld [vmem:[%s20] sm:$0xf]
          %v3038 = vld [vmem:[%s20 + $0x4] sm:$0xf]
          %v3039 = vld [vmem:[%s20 + $0x8] sm:$0xf]
          %v3040 = vld [vmem:[%s20 + $0xc] sm:$0xf]
          %v3041 = vld [vmem:[%s20 + $0x10] sm:$0xf]
          %v3042 = vld [vmem:[%s20 + $0x14] sm:$0xf]
          %v3043 = vld [vmem:[%s20 + $0x18] sm:$0xf]
          %v3044 = vld [vmem:[%s20 + $0x1c] sm:$0xf]
          %v3045 = vld [vmem:[%s21] sm:$0x1]
          %v3054 = vunpack.c.l.b16 %v3037
          %v3055 = vunpack.c.l.b16 %v3038
          %v3056 = vunpack.c.l.b16 %v3039
          %v3057 = vunpack.c.l.b16 %v3040
          %v3058 = vunpack.c.l.b16 %v3041
          %v3059 = vunpack.c.l.b16 %v3042
          %v3060 = vunpack.c.l.b16 %v3043
          %v3061 = vunpack.c.l.b16 %v3044
          %v3062 = vpack.c.b16 %v3055, %v3054
          %v3063 = vpack.c.b16 %v3057, %v3056
          %v3064 = vpack.c.b16 %v3059, %v3058
          %v3065 = vpack.c.b16 %v3061, %v3060
          %v3071 = vsel %vm1072, %v3036, 0
          %3073 = vmatprep.subr.bf16.mxu0 0
          %3074 = vmatpush1.bf16.msra.mxu0 %v3062
          %3075 = vmatprep.subr.bf16.mxu0 0
          %3076 = vmatpush1.bf16.msra.mxu0 %v3063
          %3077 = vmatprep.subr.bf16.mxu0 0
          %3078 = vmatpush1.bf16.msra.mxu0 %v3064
          %3079 = vmatprep.subr.bf16.mxu0 0
          %3080 = vmatpush1.bf16.msra.mxu0 %v3065
          %3081 = vmatprep.subr.bf16.mxu0 0
          %3082 = vmatpush1.bf16.msra.mxu0 0
          %3083 = vmatprep.subr.bf16.mxu0 0
          %3084 = vmatpush1.bf16.msra.mxu0 0
          %3085 = vmatprep.subr.bf16.mxu0 0
          %3086 = vmatpush1.bf16.msra.mxu0 0
          %3087 = vmatprep.subr.bf16.mxu0 0
          %3088 = vmatpush1.bf16.msra.mxu0 0
          %3089 = vmatprep.subr.bf16.mxu0 0
          %3090 = vmatpush1.bf16.msra.mxu0 0
          %3091 = vmatprep.subr.bf16.mxu0 0
          %3092 = vmatpush1.bf16.msra.mxu0 0
          %3093 = vmatprep.subr.bf16.mxu0 0
          %3094 = vmatpush1.bf16.msra.mxu0 0
          %3095 = vmatprep.subr.bf16.mxu0 0
          %3096 = vmatpush1.bf16.msra.mxu0 0
          %3097 = vmatprep.subr.bf16.mxu0 0
          %3098 = vmatpush1.bf16.msra.mxu0 0
          %3099 = vmatprep.subr.bf16.mxu0 0
          %3100 = vmatpush1.bf16.msra.mxu0 0
          %3101 = vmatprep.subr.bf16.mxu0 0
          %3102 = vmatpush1.bf16.msra.mxu0 0
          %3103 = vmatprep.subr.bf16.mxu0 0
          %3104 = vmatpush1.bf16.msra.mxu0 0
          %3105 = vmatprep.mubr.bf16.mxu0 0
          %3106 = vmatmul.mubr.bf16.gmra.mrb[0].mxu0 %v3071
          %v3107 = vpop.f32.mrb[0].mxu0
          %v3108 = vadd.f32 %v3045, %v3107
          %v3109 = vpop.f32.mrb[0].mxu0
          %v3110 = vpop.f32.mrb[0].mxu0
          %v3111 = vpop.f32.mrb[0].mxu0
          %3112 = vdwg.mxu0
          %3113 = vst [vmem:[%s839] sm:$0x1] %v3108
        $region116: #{wavet_forward.3} parent=107 // pred_fallthru
          _
        %s3114 = sand.u32 %s583, 1
        %s3115 = scalar_lea.sflag [#allocation4], %s3114
        %s3116 = sand.u32 %s583, 1
        %s3117 = scalar_lea.vmem [#allocation3], %s3116
        // Predicated region
        $region117: #{wavet_forward.3} parent=107 // pred_check
          %p3118 = pneg %p593
        $region118: #{wavet_forward.3} parent=107 // pred_check_branch
          %3120 = sbr.rel (%p3118) target = $region120
        $region119: #{wavet_forward.3} parent=107 // pred_region
          %s3122 = ssub.s32 16, 16
          %3123 = vsyncadd %s3115, %s3122
          %s3124 = smul.addr %s40, 16
          %s3125 = scalar_lea.hbm %s22, %s3124
          %s3127 = sshll.u32 %s3117, 4
          %s3128 = int_to_ptr.vmem [resolvable:$true] %s3127
          %3130 = dma.vmem_to_hbm [thread:$0]  %s3128, 16, %s3125, %s3115
        $region120: #{wavet_forward.3} parent=107 // pred_fallthru
          _
      $region108: #{wavet_forward.3} parent=5 // pred_fallthru
        _
      %p3131 = scmp.le.s32.totalorder 2, %s31
      // Predicated region
      $region121: #{wavet_forward.3} parent=5 // pred_check
        %p3132 = pneg %p3131
      $region122: #{wavet_forward.3} parent=5 // pred_check_branch
        %3134 = sbr.rel (%p3132) target = $region124
      $region123: #{wavet_forward.3} parent=5 // pred_region
        %s3135 = ssub.s32 %s31, 2
        // Predicated region
        $region125: #{wavet_forward.3} parent=123 // pred_check
          %p3136 = pneg %p599
        $region126: #{wavet_forward.3} parent=123 // pred_check_branch
          %3138 = sbr.rel (%p3136) target = $region128
        $region127: #{wavet_forward.3} parent=123 // pred_region
          %s3139 = sand.u32 %s584, 1
          %s3140 = scalar_lea.sflag [#allocation4], %s3139
          %s3141 = sand.u32 %s584, 1
          %s3142 = scalar_lea.vmem [#allocation3], %s3141
          %3143 = dma.done %s3140, 16
        $region128: #{wavet_forward.3} parent=123 // pred_fallthru
          _
      $region124: #{wavet_forward.3} parent=5 // pred_fallthru
        _
    $region6: #{wavet_forward.3} parent=1 // loop_footer
      %s35 = sadd.s32 1, %s31
    $region7: #{wavet_forward.3} parent=1 // loop_footer_branch
      %30 = sbr.rel target = $region3
    $region8: #{wavet_forward.3} parent=1 // loop_exit
      _
    %3144 = vsyncpa [#allocation4], 1
    %s3145 = scalar_lea.sflag [#allocation4], 1
    %3146 = vsyncpa %s3145, 1

// kernel: wavet_forward.2
$region0: #{wavet_forward.2}
  #allocation0 [shape = 'u32[]', space=smem, size = 0x4, offset = 0x4, fixed_abs, tag = 'smem constant byte address 0x4 - core index']
  #allocation1 [shape = 'u32[144,128]{1,0:T(1,128)}', space=vmem, size = 0x12000, scoped, tag = 'internal scratch']
  #allocation2 [shape = 'f32[64,32]{1,0:T(8,128)}', space=vmem, size = 0x8000, scoped, tag = 'scratch operand']
  %s0 = inlined_call_operand.vmem [shape: bf16[2,64,12], index: 0, kind: input, shape index: {}]
  %s1 = inlined_call_operand.vmem [shape: f32[64,32], index: 1, kind: input, shape index: {}]
  %s2 = inlined_call_operand.vmem [shape: bf16[12,32], index: 2, kind: input, shape index: {}]
  %s3 = inlined_call_operand.vmem [shape: f32[1,32], index: 3, kind: input, shape index: {}]
  %s4 = inlined_call_operand.vmem [shape: f32[1,32], index: 4, kind: input, shape index: {}]
  %s5 = inlined_call_operand.vmem [shape: f32[1,32], index: 5, kind: input, shape index: {}]
  %s6 = inlined_call_operand.vmem [shape: f32[2,1,32], index: 6, kind: input, shape index: {}]
  %s7 = inlined_call_operand.vmem [shape: f32[2,1,32], index: 7, kind: input, shape index: {}]
  %s8 = inlined_call_operand.vmem [shape: bf16[2,32,96], index: 8, kind: input, shape index: {}]
  %s9 = inlined_call_operand.vmem [shape: f32[2,1,96], index: 9, kind: input, shape index: {}]
  %s10 = inlined_call_operand.vmem [shape: bf16[2,32,32], index: 10, kind: input, shape index: {}]
  %s11 = inlined_call_operand.vmem [shape: f32[2,1,32], index: 11, kind: input, shape index: {}]
  %s12 = inlined_call_operand.vmem [shape: f32[2,1,32], index: 12, kind: input, shape index: {}]
  %s13 = inlined_call_operand.vmem [shape: f32[2,1,32], index: 13, kind: input, shape index: {}]
  %s14 = inlined_call_operand.vmem [shape: bf16[2,32,128], index: 14, kind: input, shape index: {}]
  %s15 = inlined_call_operand.vmem [shape: f32[2,1,128], index: 15, kind: input, shape index: {}]
  %s16 = inlined_call_operand.vmem [shape: bf16[2,128,32], index: 16, kind: input, shape index: {}]
  %s17 = inlined_call_operand.vmem [shape: f32[2,1,32], index: 17, kind: input, shape index: {}]
  %s18 = inlined_call_operand.vmem [shape: bf16[2,64,32], index: 18, kind: output, shape index: {}]
  %s19 = sld [smem:[#allocation0]]
  $region113: #{wavet_forward.2} parent=0
    _
  %s21 = ssub.s32 1, %s19
  %s22 = scalar_select 0, %s21, %s19
  loop: start=0, step=1, limit=6
  $region2: #{wavet_forward.2} parent=0 // loop_pre_header
    _
  $region3: #{wavet_forward.2} parent=0 // loop_header
    %s24 = sphi 0, %s28
    %p25 = scmp.ge.s32.totalorder %s24, 6
    %s31 = sphi 0, %s43
    %s32 = sphi 0, %s39
    %s33 = sphi 0, %s31
    %s34 = sphi 0, %s32
    %s35 = sphi 0, %s33
    %s36 = sphi 0, %s34
    %s46 = sphi 0, %s48
    %s49 = sphi 0, %s46
    %s50 = sphi 0, %s49
    %s66 = sphi 0, %s50
    %s70 = sphi 0, %s70
    %s72 = sphi 0, %s70
    %s73 = sphi 0, %s72
    %s87 = sphi 0, %s73
    %s91 = sphi 0, %s91
    %s93 = sphi 0, %s91
    %s94 = sphi 0, %s93
    %s108 = sphi 0, %s94
    %s112 = sphi 0, %s112
    %s114 = sphi 0, %s112
    %s115 = sphi 0, %s114
    %s129 = sphi 0, %s115
    %s133 = sphi 0, %s133
    %s135 = sphi 0, %s133
    %s136 = sphi 0, %s135
    %s150 = sphi 0, %s136
    %s154 = sphi 0, %s154
    %s156 = sphi 0, %s154
    %s157 = sphi 0, %s156
    %s171 = sphi 0, %s157
    %s177 = sphi 0, %s179
    %s180 = sphi 0, %s177
    %s181 = sphi 0, %s180
    %s197 = sphi 0, %s181
    %s203 = sphi 0, %s205
    %s206 = sphi 0, %s203
    %s207 = sphi 0, %s206
    %s223 = sphi 0, %s207
    %s229 = sphi 0, %s231
    %s232 = sphi 0, %s229
    %s233 = sphi 0, %s232
    %s249 = sphi 0, %s233
    %s255 = sphi 0, %s257
    %s258 = sphi 0, %s255
    %s259 = sphi 0, %s258
    %s275 = sphi 0, %s259
    %s281 = sphi 0, %s283
    %s284 = sphi 0, %s281
    %s285 = sphi 0, %s284
    %s301 = sphi 0, %s285
    %s307 = sphi 0, %s309
    %s310 = sphi 0, %s307
    %s311 = sphi 0, %s310
    %s327 = sphi 0, %s311
    %s333 = sphi 0, %s335
    %s336 = sphi 0, %s333
    %s337 = sphi 0, %s336
    %s353 = sphi 0, %s337
    %s359 = sphi 0, %s361
    %s362 = sphi 0, %s359
    %s363 = sphi 0, %s362
    %s379 = sphi 0, %s363
    %s385 = sphi 0, %s387
    %s388 = sphi 0, %s385
    %s389 = sphi 0, %s388
    %s405 = sphi 0, %s389
    %s411 = sphi 0, %s413
    %s414 = sphi 0, %s411
    %s415 = sphi 0, %s414
    %s431 = sphi 0, %s415
    %s437 = sphi 0, %s439
    %s440 = sphi 0, %s437
    %s441 = sphi 0, %s440
    %s457 = sphi 0, %s441
    %s463 = sphi 0, %s465
    %s466 = sphi 0, %s463
    %s467 = sphi 0, %s466
    %s483 = sphi 0, %s467
    %s489 = sphi 0, %s491
    %s492 = sphi 0, %s489
    %s493 = sphi 0, %s492
    %s509 = sphi 0, %s493
  $region4: #{wavet_forward.2} parent=0 // loop_header_branch
    %27 = sbr.rel (%p25) target = $region8
  $region5: #{wavet_forward.2} parent=0 // loop_body
    %s29 = ssub.s32 %s24, 1
    %s30 = ssub.s32 %s24, 2
    %s37 = sadd.s32 1, %s32
    %p38 = scmp.ge.s32.totalorder %s37, 2
    %s39 = scalar_select %p38, 0, %s37
    %s40 = sadd.s32 1, %s31
    %s41 = scalar_select %p38, %s40, %s31
    %p42 = scmp.ge.s32.totalorder %s41, 2
    %s43 = scalar_select %p42, 0, %s41
    %s44 = ssub.s32 %s31, %s43
    %p45 = scmp.eq.s32.totalorder %s44, 0
    %s47 = sadd.s32 %s46, 1
    %s48 = scalar_select %p45, %s46, %s47
    %p51 = pneg %p45
    %p52 = scmp.eq.s32.totalorder %s24, 3
    %p53 = por %p51, %p52
    %p54 = scmp.ne.s32.totalorder %s46, %s49
    %p55 = scmp.eq.s32.totalorder %s24, 0
    %p56 = por %p54, %p55
    %p57 = scmp.ne.s32.totalorder %s46, %s49
    %p58 = scmp.eq.s32.totalorder %s29, 3
    %p59 = por %p57, %p58
    %p60 = scmp.ne.s32.totalorder %s49, %s50
    %p61 = scmp.eq.s32.totalorder %s29, 0
    %p62 = por %p60, %p61
    %p63 = scmp.ne.s32.totalorder %s49, %s50
    %p64 = scmp.eq.s32.totalorder %s30, 3
    %p65 = por %p63, %p64
    %p67 = scmp.ne.s32.totalorder %s50, %s66
    %p68 = scmp.eq.s32.totalorder %s30, 0
    %p69 = por %p67, %p68
    %s71 = sadd.s32 %s70, 1
    %p74 = scmp.eq.s32.totalorder %s24, 3
    %p75 = scmp.ne.s32.totalorder %s70, %s72
    %p76 = scmp.eq.s32.totalorder %s24, 0
    %p77 = por %p75, %p76
    %p78 = scmp.ne.s32.totalorder %s70, %s72
    %p79 = scmp.eq.s32.totalorder %s29, 3
    %p80 = por %p78, %p79
    %p81 = scmp.ne.s32.totalorder %s72, %s73
    %p82 = scmp.eq.s32.totalorder %s29, 0
    %p83 = por %p81, %p82
    %p84 = scmp.ne.s32.totalorder %s72, %s73
    %p85 = scmp.eq.s32.totalorder %s30, 3
    %p86 = por %p84, %p85
    %p88 = scmp.ne.s32.totalorder %s73, %s87
    %p89 = scmp.eq.s32.totalorder %s30, 0
    %p90 = por %p88, %p89
    %s92 = sadd.s32 %s91, 1
    %p95 = scmp.eq.s32.totalorder %s24, 3
    %p96 = scmp.ne.s32.totalorder %s91, %s93
    %p97 = scmp.eq.s32.totalorder %s24, 0
    %p98 = por %p96, %p97
    %p99 = scmp.ne.s32.totalorder %s91, %s93
    %p100 = scmp.eq.s32.totalorder %s29, 3
    %p101 = por %p99, %p100
    %p102 = scmp.ne.s32.totalorder %s93, %s94
    %p103 = scmp.eq.s32.totalorder %s29, 0
    %p104 = por %p102, %p103
    %p105 = scmp.ne.s32.totalorder %s93, %s94
    %p106 = scmp.eq.s32.totalorder %s30, 3
    %p107 = por %p105, %p106
    %p109 = scmp.ne.s32.totalorder %s94, %s108
    %p110 = scmp.eq.s32.totalorder %s30, 0
    %p111 = por %p109, %p110
    %s113 = sadd.s32 %s112, 1
    %p116 = scmp.eq.s32.totalorder %s24, 3
    %p117 = scmp.ne.s32.totalorder %s112, %s114
    %p118 = scmp.eq.s32.totalorder %s24, 0
    %p119 = por %p117, %p118
    %p120 = scmp.ne.s32.totalorder %s112, %s114
    %p121 = scmp.eq.s32.totalorder %s29, 3
    %p122 = por %p120, %p121
    %p123 = scmp.ne.s32.totalorder %s114, %s115
    %p124 = scmp.eq.s32.totalorder %s29, 0
    %p125 = por %p123, %p124
    %p126 = scmp.ne.s32.totalorder %s114, %s115
    %p127 = scmp.eq.s32.totalorder %s30, 3
    %p128 = por %p126, %p127
    %p130 = scmp.ne.s32.totalorder %s115, %s129
    %p131 = scmp.eq.s32.totalorder %s30, 0
    %p132 = por %p130, %p131
    %s134 = sadd.s32 %s133, 1
    %p137 = scmp.eq.s32.totalorder %s24, 3
    %p138 = scmp.ne.s32.totalorder %s133, %s135
    %p139 = scmp.eq.s32.totalorder %s24, 0
    %p140 = por %p138, %p139
    %p141 = scmp.ne.s32.totalorder %s133, %s135
    %p142 = scmp.eq.s32.totalorder %s29, 3
    %p143 = por %p141, %p142
    %p144 = scmp.ne.s32.totalorder %s135, %s136
    %p145 = scmp.eq.s32.totalorder %s29, 0
    %p146 = por %p144, %p145
    %p147 = scmp.ne.s32.totalorder %s135, %s136
    %p148 = scmp.eq.s32.totalorder %s30, 3
    %p149 = por %p147, %p148
    %p151 = scmp.ne.s32.totalorder %s136, %s150
    %p152 = scmp.eq.s32.totalorder %s30, 0
    %p153 = por %p151, %p152
    %s155 = sadd.s32 %s154, 1
    %p158 = scmp.eq.s32.totalorder %s24, 3
    %p159 = scmp.ne.s32.totalorder %s154, %s156
    %p160 = scmp.eq.s32.totalorder %s24, 0
    %p161 = por %p159, %p160
    %p162 = scmp.ne.s32.totalorder %s154, %s156
    %p163 = scmp.eq.s32.totalorder %s29, 3
    %p164 = por %p162, %p163
    %p165 = scmp.ne.s32.totalorder %s156, %s157
    %p166 = scmp.eq.s32.totalorder %s29, 0
    %p167 = por %p165, %p166
    %p168 = scmp.ne.s32.totalorder %s156, %s157
    %p169 = scmp.eq.s32.totalorder %s30, 3
    %p170 = por %p168, %p169
    %p172 = scmp.ne.s32.totalorder %s157, %s171
    %p173 = scmp.eq.s32.totalorder %s30, 0
    %p174 = por %p172, %p173
    %s175 = ssub.s32 %s32, %s39
    %p176 = scmp.eq.s32.totalorder %s175, 0
    %s178 = sadd.s32 %s177, 1
    %s179 = scalar_select %p176, %s177, %s178
    %p182 = pneg %p176
    %p183 = scmp.eq.s32.totalorder %s24, 3
    %p184 = por %p182, %p183
    %p185 = scmp.ne.s32.totalorder %s177, %s180
    %p186 = scmp.eq.s32.totalorder %s24, 0
    %p187 = por %p185, %p186
    %p188 = scmp.ne.s32.totalorder %s177, %s180
    %p189 = scmp.eq.s32.totalorder %s29, 3
    %p190 = por %p188, %p189
    %p191 = scmp.ne.s32.totalorder %s180, %s181
    %p192 = scmp.eq.s32.totalorder %s29, 0
    %p193 = por %p191, %p192
    %p194 = scmp.ne.s32.totalorder %s180, %s181
    %p195 = scmp.eq.s32.totalorder %s30, 3
    %p196 = por %p194, %p195
    %p198 = scmp.ne.s32.totalorder %s181, %s197
    %p199 = scmp.eq.s32.totalorder %s30, 0
    %p200 = por %p198, %p199
    %s201 = ssub.s32 %s32, %s39
    %p202 = scmp.eq.s32.totalorder %s201, 0
    %s204 = sadd.s32 %s203, 1
    %s205 = scalar_select %p202, %s203, %s204
    %p208 = pneg %p202
    %p209 = scmp.eq.s32.totalorder %s24, 3
    %p210 = por %p208, %p209
    %p211 = scmp.ne.s32.totalorder %s203, %s206
    %p212 = scmp.eq.s32.totalorder %s24, 0
    %p213 = por %p211, %p212
    %p214 = scmp.ne.s32.totalorder %s203, %s206
    %p215 = scmp.eq.s32.totalorder %s29, 3
    %p216 = por %p214, %p215
    %p217 = scmp.ne.s32.totalorder %s206, %s207
    %p218 = scmp.eq.s32.totalorder %s29, 0
    %p219 = por %p217, %p218
    %p220 = scmp.ne.s32.totalorder %s206, %s207
    %p221 = scmp.eq.s32.totalorder %s30, 3
    %p222 = por %p220, %p221
    %p224 = scmp.ne.s32.totalorder %s207, %s223
    %p225 = scmp.eq.s32.totalorder %s30, 0
    %p226 = por %p224, %p225
    %s227 = ssub.s32 %s32, %s39
    %p228 = scmp.eq.s32.totalorder %s227, 0
    %s230 = sadd.s32 %s229, 1
    %s231 = scalar_select %p228, %s229, %s230
    %p234 = pneg %p228
    %p235 = scmp.eq.s32.totalorder %s24, 3
    %p236 = por %p234, %p235
    %p237 = scmp.ne.s32.totalorder %s229, %s232
    %p238 = scmp.eq.s32.totalorder %s24, 0
    %p239 = por %p237, %p238
    %p240 = scmp.ne.s32.totalorder %s229, %s232
    %p241 = scmp.eq.s32.totalorder %s29, 3
    %p242 = por %p240, %p241
    %p243 = scmp.ne.s32.totalorder %s232, %s233
    %p244 = scmp.eq.s32.totalorder %s29, 0
    %p245 = por %p243, %p244
    %p246 = scmp.ne.s32.totalorder %s232, %s233
    %p247 = scmp.eq.s32.totalorder %s30, 3
    %p248 = por %p246, %p247
    %p250 = scmp.ne.s32.totalorder %s233, %s249
    %p251 = scmp.eq.s32.totalorder %s30, 0
    %p252 = por %p250, %p251
    %s253 = ssub.s32 %s32, %s39
    %p254 = scmp.eq.s32.totalorder %s253, 0
    %s256 = sadd.s32 %s255, 1
    %s257 = scalar_select %p254, %s255, %s256
    %p260 = pneg %p254
    %p261 = scmp.eq.s32.totalorder %s24, 3
    %p262 = por %p260, %p261
    %p263 = scmp.ne.s32.totalorder %s255, %s258
    %p264 = scmp.eq.s32.totalorder %s24, 0
    %p265 = por %p263, %p264
    %p266 = scmp.ne.s32.totalorder %s255, %s258
    %p267 = scmp.eq.s32.totalorder %s29, 3
    %p268 = por %p266, %p267
    %p269 = scmp.ne.s32.totalorder %s258, %s259
    %p270 = scmp.eq.s32.totalorder %s29, 0
    %p271 = por %p269, %p270
    %p272 = scmp.ne.s32.totalorder %s258, %s259
    %p273 = scmp.eq.s32.totalorder %s30, 3
    %p274 = por %p272, %p273
    %p276 = scmp.ne.s32.totalorder %s259, %s275
    %p277 = scmp.eq.s32.totalorder %s30, 0
    %p278 = por %p276, %p277
    %s279 = ssub.s32 %s32, %s39
    %p280 = scmp.eq.s32.totalorder %s279, 0
    %s282 = sadd.s32 %s281, 1
    %s283 = scalar_select %p280, %s281, %s282
    %p286 = pneg %p280
    %p287 = scmp.eq.s32.totalorder %s24, 3
    %p288 = por %p286, %p287
    %p289 = scmp.ne.s32.totalorder %s281, %s284
    %p290 = scmp.eq.s32.totalorder %s24, 0
    %p291 = por %p289, %p290
    %p292 = scmp.ne.s32.totalorder %s281, %s284
    %p293 = scmp.eq.s32.totalorder %s29, 3
    %p294 = por %p292, %p293
    %p295 = scmp.ne.s32.totalorder %s284, %s285
    %p296 = scmp.eq.s32.totalorder %s29, 0
    %p297 = por %p295, %p296
    %p298 = scmp.ne.s32.totalorder %s284, %s285
    %p299 = scmp.eq.s32.totalorder %s30, 3
    %p300 = por %p298, %p299
    %p302 = scmp.ne.s32.totalorder %s285, %s301
    %p303 = scmp.eq.s32.totalorder %s30, 0
    %p304 = por %p302, %p303
    %s305 = ssub.s32 %s32, %s39
    %p306 = scmp.eq.s32.totalorder %s305, 0
    %s308 = sadd.s32 %s307, 1
    %s309 = scalar_select %p306, %s307, %s308
    %p312 = pneg %p306
    %p313 = scmp.eq.s32.totalorder %s24, 3
    %p314 = por %p312, %p313
    %p315 = scmp.ne.s32.totalorder %s307, %s310
    %p316 = scmp.eq.s32.totalorder %s24, 0
    %p317 = por %p315, %p316
    %p318 = scmp.ne.s32.totalorder %s307, %s310
    %p319 = scmp.eq.s32.totalorder %s29, 3
    %p320 = por %p318, %p319
    %p321 = scmp.ne.s32.totalorder %s310, %s311
    %p322 = scmp.eq.s32.totalorder %s29, 0
    %p323 = por %p321, %p322
    %p324 = scmp.ne.s32.totalorder %s310, %s311
    %p325 = scmp.eq.s32.totalorder %s30, 3
    %p326 = por %p324, %p325
    %p328 = scmp.ne.s32.totalorder %s311, %s327
    %p329 = scmp.eq.s32.totalorder %s30, 0
    %p330 = por %p328, %p329
    %s331 = ssub.s32 %s32, %s39
    %p332 = scmp.eq.s32.totalorder %s331, 0
    %s334 = sadd.s32 %s333, 1
    %s335 = scalar_select %p332, %s333, %s334
    %p338 = pneg %p332
    %p339 = scmp.eq.s32.totalorder %s24, 3
    %p340 = por %p338, %p339
    %p341 = scmp.ne.s32.totalorder %s333, %s336
    %p342 = scmp.eq.s32.totalorder %s24, 0
    %p343 = por %p341, %p342
    %p344 = scmp.ne.s32.totalorder %s333, %s336
    %p345 = scmp.eq.s32.totalorder %s29, 3
    %p346 = por %p344, %p345
    %p347 = scmp.ne.s32.totalorder %s336, %s337
    %p348 = scmp.eq.s32.totalorder %s29, 0
    %p349 = por %p347, %p348
    %p350 = scmp.ne.s32.totalorder %s336, %s337
    %p351 = scmp.eq.s32.totalorder %s30, 3
    %p352 = por %p350, %p351
    %p354 = scmp.ne.s32.totalorder %s337, %s353
    %p355 = scmp.eq.s32.totalorder %s30, 0
    %p356 = por %p354, %p355
    %s357 = ssub.s32 %s32, %s39
    %p358 = scmp.eq.s32.totalorder %s357, 0
    %s360 = sadd.s32 %s359, 1
    %s361 = scalar_select %p358, %s359, %s360
    %p364 = pneg %p358
    %p365 = scmp.eq.s32.totalorder %s24, 3
    %p366 = por %p364, %p365
    %p367 = scmp.ne.s32.totalorder %s359, %s362
    %p368 = scmp.eq.s32.totalorder %s24, 0
    %p369 = por %p367, %p368
    %p370 = scmp.ne.s32.totalorder %s359, %s362
    %p371 = scmp.eq.s32.totalorder %s29, 3
    %p372 = por %p370, %p371
    %p373 = scmp.ne.s32.totalorder %s362, %s363
    %p374 = scmp.eq.s32.totalorder %s29, 0
    %p375 = por %p373, %p374
    %p376 = scmp.ne.s32.totalorder %s362, %s363
    %p377 = scmp.eq.s32.totalorder %s30, 3
    %p378 = por %p376, %p377
    %p380 = scmp.ne.s32.totalorder %s363, %s379
    %p381 = scmp.eq.s32.totalorder %s30, 0
    %p382 = por %p380, %p381
    %s383 = ssub.s32 %s32, %s39
    %p384 = scmp.eq.s32.totalorder %s383, 0
    %s386 = sadd.s32 %s385, 1
    %s387 = scalar_select %p384, %s385, %s386
    %p390 = pneg %p384
    %p391 = scmp.eq.s32.totalorder %s24, 3
    %p392 = por %p390, %p391
    %p393 = scmp.ne.s32.totalorder %s385, %s388
    %p394 = scmp.eq.s32.totalorder %s24, 0
    %p395 = por %p393, %p394
    %p396 = scmp.ne.s32.totalorder %s385, %s388
    %p397 = scmp.eq.s32.totalorder %s29, 3
    %p398 = por %p396, %p397
    %p399 = scmp.ne.s32.totalorder %s388, %s389
    %p400 = scmp.eq.s32.totalorder %s29, 0
    %p401 = por %p399, %p400
    %p402 = scmp.ne.s32.totalorder %s388, %s389
    %p403 = scmp.eq.s32.totalorder %s30, 3
    %p404 = por %p402, %p403
    %p406 = scmp.ne.s32.totalorder %s389, %s405
    %p407 = scmp.eq.s32.totalorder %s30, 0
    %p408 = por %p406, %p407
    %s409 = ssub.s32 %s32, %s39
    %p410 = scmp.eq.s32.totalorder %s409, 0
    %s412 = sadd.s32 %s411, 1
    %s413 = scalar_select %p410, %s411, %s412
    %p416 = pneg %p410
    %p417 = scmp.eq.s32.totalorder %s24, 3
    %p418 = por %p416, %p417
    %p419 = scmp.ne.s32.totalorder %s411, %s414
    %p420 = scmp.eq.s32.totalorder %s24, 0
    %p421 = por %p419, %p420
    %p422 = scmp.ne.s32.totalorder %s411, %s414
    %p423 = scmp.eq.s32.totalorder %s29, 3
    %p424 = por %p422, %p423
    %p425 = scmp.ne.s32.totalorder %s414, %s415
    %p426 = scmp.eq.s32.totalorder %s29, 0
    %p427 = por %p425, %p426
    %p428 = scmp.ne.s32.totalorder %s414, %s415
    %p429 = scmp.eq.s32.totalorder %s30, 3
    %p430 = por %p428, %p429
    %p432 = scmp.ne.s32.totalorder %s415, %s431
    %p433 = scmp.eq.s32.totalorder %s30, 0
    %p434 = por %p432, %p433
    %s435 = ssub.s32 %s32, %s39
    %p436 = scmp.eq.s32.totalorder %s435, 0
    %s438 = sadd.s32 %s437, 1
    %s439 = scalar_select %p436, %s437, %s438
    %p442 = pneg %p436
    %p443 = scmp.eq.s32.totalorder %s24, 3
    %p444 = por %p442, %p443
    %p445 = scmp.ne.s32.totalorder %s437, %s440
    %p446 = scmp.eq.s32.totalorder %s24, 0
    %p447 = por %p445, %p446
    %p448 = scmp.ne.s32.totalorder %s437, %s440
    %p449 = scmp.eq.s32.totalorder %s29, 3
    %p450 = por %p448, %p449
    %p451 = scmp.ne.s32.totalorder %s440, %s441
    %p452 = scmp.eq.s32.totalorder %s29, 0
    %p453 = por %p451, %p452
    %p454 = scmp.ne.s32.totalorder %s440, %s441
    %p455 = scmp.eq.s32.totalorder %s30, 3
    %p456 = por %p454, %p455
    %p458 = scmp.ne.s32.totalorder %s441, %s457
    %p459 = scmp.eq.s32.totalorder %s30, 0
    %p460 = por %p458, %p459
    %s461 = ssub.s32 %s32, %s39
    %p462 = scmp.eq.s32.totalorder %s461, 0
    %s464 = sadd.s32 %s463, 1
    %s465 = scalar_select %p462, %s463, %s464
    %p468 = pneg %p462
    %p469 = scmp.eq.s32.totalorder %s24, 3
    %p470 = por %p468, %p469
    %p471 = scmp.ne.s32.totalorder %s463, %s466
    %p472 = scmp.eq.s32.totalorder %s24, 0
    %p473 = por %p471, %p472
    %p474 = scmp.ne.s32.totalorder %s463, %s466
    %p475 = scmp.eq.s32.totalorder %s29, 3
    %p476 = por %p474, %p475
    %p477 = scmp.ne.s32.totalorder %s466, %s467
    %p478 = scmp.eq.s32.totalorder %s29, 0
    %p479 = por %p477, %p478
    %p480 = scmp.ne.s32.totalorder %s466, %s467
    %p481 = scmp.eq.s32.totalorder %s30, 3
    %p482 = por %p480, %p481
    %p484 = scmp.ne.s32.totalorder %s467, %s483
    %p485 = scmp.eq.s32.totalorder %s30, 0
    %p486 = por %p484, %p485
    %s487 = ssub.s32 %s31, %s43
    %p488 = scmp.eq.s32.totalorder %s487, 0
    %s490 = sadd.s32 %s489, 1
    %s491 = scalar_select %p488, %s489, %s490
    %p494 = pneg %p488
    %p495 = scmp.eq.s32.totalorder %s24, 3
    %p496 = por %p494, %p495
    %p497 = scmp.ne.s32.totalorder %s489, %s492
    %p498 = scmp.eq.s32.totalorder %s24, 0
    %p499 = por %p497, %p498
    %p500 = scmp.ne.s32.totalorder %s489, %s492
    %p501 = scmp.eq.s32.totalorder %s29, 3
    %p502 = por %p500, %p501
    %p503 = scmp.ne.s32.totalorder %s492, %s493
    %p504 = scmp.eq.s32.totalorder %s29, 0
    %p505 = por %p503, %p504
    %p506 = scmp.ne.s32.totalorder %s492, %s493
    %p507 = scmp.eq.s32.totalorder %s30, 3
    %p508 = por %p506, %p507
    %p510 = scmp.ne.s32.totalorder %s493, %s509
    %p511 = scmp.eq.s32.totalorder %s30, 0
    %p512 = por %p510, %p511
    %p513 = scmp.le.s32.totalorder 1, %s24
    %p514 = scmp.lt.s32.totalorder %s24, 5
    %p515 = pnand %p513, %p514
    %p516 = pneg %p515
    // Predicated region
    $region9: #{wavet_forward.2} parent=5 // pred_check
      _
    $region10: #{wavet_forward.2} parent=5 // pred_check_branch
      %518 = sbr.rel (%p515) target = $region12
    $region11: #{wavet_forward.2} parent=5 // pred_region
      %s519 = ssub.s32 %s24, 1
      // Predicated region
      $region13: #{wavet_forward.2} parent=11 // pred_check
        %p520 = pneg %p83
      $region14: #{wavet_forward.2} parent=11 // pred_check_branch
        %522 = sbr.rel (%p520) target = $region16
      $region15: #{wavet_forward.2} parent=11 // pred_region
        _
      $region16: #{wavet_forward.2} parent=11 // pred_fallthru
        _
      // Predicated region
      $region17: #{wavet_forward.2} parent=11 // pred_check
        %p523 = pneg %p104
      $region18: #{wavet_forward.2} parent=11 // pred_check_branch
        %525 = sbr.rel (%p523) target = $region20
      $region19: #{wavet_forward.2} parent=11 // pred_region
        _
      $region20: #{wavet_forward.2} parent=11 // pred_fallthru
        _
      // Predicated region
      $region21: #{wavet_forward.2} parent=11 // pred_check
        %p526 = pneg %p125
      $region22: #{wavet_forward.2} parent=11 // pred_check_branch
        %528 = sbr.rel (%p526) target = $region24
      $region23: #{wavet_forward.2} parent=11 // pred_region
        _
      $region24: #{wavet_forward.2} parent=11 // pred_fallthru
        _
      // Predicated region
      $region25: #{wavet_forward.2} parent=11 // pred_check
        %p529 = pneg %p146
      $region26: #{wavet_forward.2} parent=11 // pred_check_branch
        %531 = sbr.rel (%p529) target = $region28
      $region27: #{wavet_forward.2} parent=11 // pred_region
        _
      $region28: #{wavet_forward.2} parent=11 // pred_fallthru
        _
      // Predicated region
      $region29: #{wavet_forward.2} parent=11 // pred_check
        %p532 = pneg %p167
      $region30: #{wavet_forward.2} parent=11 // pred_check_branch
        %534 = sbr.rel (%p532) target = $region32
      $region31: #{wavet_forward.2} parent=11 // pred_region
        _
      $region32: #{wavet_forward.2} parent=11 // pred_fallthru
        _
    $region12: #{wavet_forward.2} parent=5 // pred_fallthru
      _
    %p535 = scmp.lt.s32.totalorder %s24, 4
    // Predicated region
    $region33: #{wavet_forward.2} parent=5 // pred_check
      %p536 = pneg %p535
    $region34: #{wavet_forward.2} parent=5 // pred_check_branch
      %538 = sbr.rel (%p536) target = $region36
    $region35: #{wavet_forward.2} parent=5 // pred_region
      // Predicated region
      $region37: #{wavet_forward.2} parent=35 // pred_check
        %p539 = pneg %p56
      $region38: #{wavet_forward.2} parent=35 // pred_check_branch
        %541 = sbr.rel (%p539) target = $region40
      $region39: #{wavet_forward.2} parent=35 // pred_region
        %p542 = scmp.lt.s32.totalorder %s31, 1
        %s543 = scalar_select %p542, %s31, 1
        %s544 = smul.addr %s543, 8
        %s545 = smul.addr %s544, 4
        %s546 = scalar_lea.vmem %s0, %s545
      $region40: #{wavet_forward.2} parent=35 // pred_fallthru
        _
      // Predicated region
      $region41: #{wavet_forward.2} parent=35 // pred_check
        %p547 = pneg %p187
      $region42: #{wavet_forward.2} parent=35 // pred_check_branch
        %549 = sbr.rel (%p547) target = $region44
      $region43: #{wavet_forward.2} parent=35 // pred_region
        %p550 = scmp.lt.s32.totalorder %s32, 1
        %s551 = scalar_select %p550, %s32, 1
        %s552 = scalar_lea.vmem %s6, %s551
      $region44: #{wavet_forward.2} parent=35 // pred_fallthru
        _
      // Predicated region
      $region45: #{wavet_forward.2} parent=35 // pred_check
        %p553 = pneg %p213
      $region46: #{wavet_forward.2} parent=35 // pred_check_branch
        %555 = sbr.rel (%p553) target = $region48
      $region47: #{wavet_forward.2} parent=35 // pred_region
        %p556 = scmp.lt.s32.totalorder %s32, 1
        %s557 = scalar_select %p556, %s32, 1
        %s558 = scalar_lea.vmem %s7, %s557
      $region48: #{wavet_forward.2} parent=35 // pred_fallthru
        _
      // Predicated region
      $region49: #{wavet_forward.2} parent=35 // pred_check
        %p559 = pneg %p239
      $region50: #{wavet_forward.2} parent=35 // pred_check_branch
        %561 = sbr.rel (%p559) target = $region52
      $region51: #{wavet_forward.2} parent=35 // pred_region
        %p562 = scmp.lt.s32.totalorder %s32, 1
        %s563 = scalar_select %p562, %s32, 1
        %s564 = smul.addr %s563, 4
        %s565 = smul.addr %s564, 4
        %s566 = scalar_lea.vmem %s8, %s565
      $region52: #{wavet_forward.2} parent=35 // pred_fallthru
        _
      // Predicated region
      $region53: #{wavet_forward.2} parent=35 // pred_check
        %p567 = pneg %p265
      $region54: #{wavet_forward.2} parent=35 // pred_check_branch
        %569 = sbr.rel (%p567) target = $region56
      $region55: #{wavet_forward.2} parent=35 // pred_region
        %p570 = scmp.lt.s32.totalorder %s32, 1
        %s571 = scalar_select %p570, %s32, 1
        %s572 = scalar_lea.vmem %s9, %s571
      $region56: #{wavet_forward.2} parent=35 // pred_fallthru
        _
      // Predicated region
      $region57: #{wavet_forward.2} parent=35 // pred_check
        %p573 = pneg %p291
      $region58: #{wavet_forward.2} parent=35 // pred_check_branch
        %575 = sbr.rel (%p573) target = $region60
      $region59: #{wavet_forward.2} parent=35 // pred_region
        %p576 = scmp.lt.s32.totalorder %s32, 1
        %s577 = scalar_select %p576, %s32, 1
        %s578 = smul.addr %s577, 4
        %s579 = smul.addr %s578, 4
        %s580 = scalar_lea.vmem %s10, %s579
      $region60: #{wavet_forward.2} parent=35 // pred_fallthru
        _
      // Predicated region
      $region61: #{wavet_forward.2} parent=35 // pred_check
        %p581 = pneg %p317
      $region62: #{wavet_forward.2} parent=35 // pred_check_branch
        %583 = sbr.rel (%p581) target = $region64
      $region63: #{wavet_forward.2} parent=35 // pred_region
        %p584 = scmp.lt.s32.totalorder %s32, 1
        %s585 = scalar_select %p584, %s32, 1
        %s586 = scalar_lea.vmem %s11, %s585
      $region64: #{wavet_forward.2} parent=35 // pred_fallthru
        _
      // Predicated region
      $region65: #{wavet_forward.2} parent=35 // pred_check
        %p587 = pneg %p343
      $region66: #{wavet_forward.2} parent=35 // pred_check_branch
        %589 = sbr.rel (%p587) target = $region68
      $region67: #{wavet_forward.2} parent=35 // pred_region
        %p590 = scmp.lt.s32.totalorder %s32, 1
        %s591 = scalar_select %p590, %s32, 1
        %s592 = scalar_lea.vmem %s12, %s591
      $region68: #{wavet_forward.2} parent=35 // pred_fallthru
        _
      // Predicated region
      $region69: #{wavet_forward.2} parent=35 // pred_check
        %p593 = pneg %p369
      $region70: #{wavet_forward.2} parent=35 // pred_check_branch
        %595 = sbr.rel (%p593) target = $region72
      $region71: #{wavet_forward.2} parent=35 // pred_region
        %p596 = scmp.lt.s32.totalorder %s32, 1
        %s597 = scalar_select %p596, %s32, 1
        %s598 = scalar_lea.vmem %s13, %s597
      $region72: #{wavet_forward.2} parent=35 // pred_fallthru
        _
      // Predicated region
      $region73: #{wavet_forward.2} parent=35 // pred_check
        %p599 = pneg %p395
      $region74: #{wavet_forward.2} parent=35 // pred_check_branch
        %601 = sbr.rel (%p599) target = $region76
      $region75: #{wavet_forward.2} parent=35 // pred_region
        %p602 = scmp.lt.s32.totalorder %s32, 1
        %s603 = scalar_select %p602, %s32, 1
        %s604 = smul.addr %s603, 4
        %s605 = smul.addr %s604, 4
        %s606 = scalar_lea.vmem %s14, %s605
      $region76: #{wavet_forward.2} parent=35 // pred_fallthru
        _
      // Predicated region
      $region77: #{wavet_forward.2} parent=35 // pred_check
        %p607 = pneg %p421
      $region78: #{wavet_forward.2} parent=35 // pred_check_branch
        %609 = sbr.rel (%p607) target = $region80
      $region79: #{wavet_forward.2} parent=35 // pred_region
        %p610 = scmp.lt.s32.totalorder %s32, 1
        %s611 = scalar_select %p610, %s32, 1
        %s612 = scalar_lea.vmem %s15, %s611
      $region80: #{wavet_forward.2} parent=35 // pred_fallthru
        _
      // Predicated region
      $region81: #{wavet_forward.2} parent=35 // pred_check
        %p613 = pneg %p447
      $region82: #{wavet_forward.2} parent=35 // pred_check_branch
        %615 = sbr.rel (%p613) target = $region84
      $region83: #{wavet_forward.2} parent=35 // pred_region
        %p616 = scmp.lt.s32.totalorder %s32, 1
        %s617 = scalar_select %p616, %s32, 1
        %s618 = smul.addr %s617, 16
        %s619 = smul.addr %s618, 4
        %s620 = scalar_lea.vmem %s16, %s619
      $region84: #{wavet_forward.2} parent=35 // pred_fallthru
        _
      // Predicated region
      $region85: #{wavet_forward.2} parent=35 // pred_check
        %p621 = pneg %p473
      $region86: #{wavet_forward.2} parent=35 // pred_check_branch
        %623 = sbr.rel (%p621) target = $region88
      $region87: #{wavet_forward.2} parent=35 // pred_region
        %p624 = scmp.lt.s32.totalorder %s32, 1
        %s625 = scalar_select %p624, %s32, 1
        %s626 = scalar_lea.vmem %s17, %s625
      $region88: #{wavet_forward.2} parent=35 // pred_fallthru
        _
    $region36: #{wavet_forward.2} parent=5 // pred_fallthru
      _
    %p627 = scmp.le.s32.totalorder 1, %s24
    %p628 = scmp.lt.s32.totalorder %s24, 5
    %p629 = pnand %p627, %p628
    %p630 = pneg %p629
    // Predicated region
    $region89: #{wavet_forward.2} parent=5 // pred_check
      _
    $region90: #{wavet_forward.2} parent=5 // pred_check_branch
      %632 = sbr.rel (%p629) target = $region92
    $region91: #{wavet_forward.2} parent=5 // pred_region
      %s633 = ssub.s32 %s24, 1
      %p634 = scmp.lt.s32.totalorder %s33, 1
      %s635 = scalar_select %p634, %s33, 1
      %s636 = smul.addr %s635, 8
      %s637 = smul.addr %s636, 4
      %s638 = scalar_lea.vmem %s0, %s637
      %p639 = pneg %p62
      %p640 = pneg %p59
      %p641 = pneg %p83
      %p642 = pneg %p80
      %p643 = pneg %p104
      %p644 = pneg %p101
      %p645 = pneg %p125
      %p646 = pneg %p122
      %p647 = pneg %p146
      %p648 = pneg %p143
      %p649 = pneg %p167
      %p650 = pneg %p164
      %p651 = scmp.lt.s32.totalorder %s34, 1
      %s652 = scalar_select %p651, %s34, 1
      %s653 = scalar_lea.vmem %s6, %s652
      %p654 = pneg %p193
      %p655 = pneg %p190
      %p656 = scmp.lt.s32.totalorder %s34, 1
      %s657 = scalar_select %p656, %s34, 1
      %s658 = scalar_lea.vmem %s7, %s657
      %p659 = pneg %p219
      %p660 = pneg %p216
      %p661 = scmp.lt.s32.totalorder %s34, 1
      %s662 = scalar_select %p661, %s34, 1
      %s663 = smul.addr %s662, 4
      %s664 = smul.addr %s663, 4
      %s665 = scalar_lea.vmem %s8, %s664
      %p666 = pneg %p245
      %p667 = pneg %p242
      %p668 = scmp.lt.s32.totalorder %s34, 1
      %s669 = scalar_select %p668, %s34, 1
      %s670 = scalar_lea.vmem %s9, %s669
      %p671 = pneg %p271
      %p672 = pneg %p268
      %p673 = scmp.lt.s32.totalorder %s34, 1
      %s674 = scalar_select %p673, %s34, 1
      %s675 = smul.addr %s674, 4
      %s676 = smul.addr %s675, 4
      %s677 = scalar_lea.vmem %s10, %s676
      %p678 = pneg %p297
      %p679 = pneg %p294
      %p680 = scmp.lt.s32.totalorder %s34, 1
      %s681 = scalar_select %p680, %s34, 1
      %s682 = scalar_lea.vmem %s11, %s681
      %p683 = pneg %p323
      %p684 = pneg %p320
      %p685 = scmp.lt.s32.totalorder %s34, 1
      %s686 = scalar_select %p685, %s34, 1
      %s687 = scalar_lea.vmem %s12, %s686
      %p688 = pneg %p349
      %p689 = pneg %p346
      %p690 = scmp.lt.s32.totalorder %s34, 1
      %s691 = scalar_select %p690, %s34, 1
      %s692 = scalar_lea.vmem %s13, %s691
      %p693 = pneg %p375
      %p694 = pneg %p372
      %p695 = scmp.lt.s32.totalorder %s34, 1
      %s696 = scalar_select %p695, %s34, 1
      %s697 = smul.addr %s696, 4
      %s698 = smul.addr %s697, 4
      %s699 = scalar_lea.vmem %s14, %s698
      %p700 = pneg %p401
      %p701 = pneg %p398
      %p702 = scmp.lt.s32.totalorder %s34, 1
      %s703 = scalar_select %p702, %s34, 1
      %s704 = scalar_lea.vmem %s15, %s703
      %p705 = pneg %p427
      %p706 = pneg %p424
      %p707 = scmp.lt.s32.totalorder %s34, 1
      %s708 = scalar_select %p707, %s34, 1
      %s709 = smul.addr %s708, 16
      %s710 = smul.addr %s709, 4
      %s711 = scalar_lea.vmem %s16, %s710
      %p712 = pneg %p453
      %p713 = pneg %p450
      %p714 = scmp.lt.s32.totalorder %s34, 1
      %s715 = scalar_select %p714, %s34, 1
      %s716 = scalar_lea.vmem %s17, %s715
      %p717 = pneg %p479
      %p718 = pneg %p476
      %p719 = pneg %p505
      %p720 = pneg %p502
      %p721 = scmp.lt.s32.totalorder %s33, 1
      %s722 = scalar_select %p721, %s33, 1
      %s723 = smul.addr %s722, 8
      %s724 = smul.addr %s723, 4
      %s725 = scalar_lea.vmem %s18, %s724
      %p726 = scmp.lt.s32.totalorder %s33, 1
      %s727 = scalar_select %p726, %s33, 1
      %s728 = smul.addr %s727, 8
      %s729 = smul.addr %s728, 4
      %s730 = scalar_lea.vmem %s0, %s729
      %p731 = scmp.lt.s32.totalorder %s34, 1
      %s732 = scalar_select %p731, %s34, 1
      %s733 = scalar_lea.vmem %s6, %s732
      %p734 = scmp.lt.s32.totalorder %s34, 1
      %s735 = scalar_select %p734, %s34, 1
      %s736 = scalar_lea.vmem %s7, %s735
      %p737 = scmp.lt.s32.totalorder %s34, 1
      %s738 = scalar_select %p737, %s34, 1
      %s739 = smul.addr %s738, 4
      %s740 = smul.addr %s739, 4
      %s741 = scalar_lea.vmem %s8, %s740
      %p742 = scmp.lt.s32.totalorder %s34, 1
      %s743 = scalar_select %p742, %s34, 1
      %s744 = scalar_lea.vmem %s9, %s743
      %p745 = scmp.lt.s32.totalorder %s34, 1
      %s746 = scalar_select %p745, %s34, 1
      %s747 = smul.addr %s746, 4
      %s748 = smul.addr %s747, 4
      %s749 = scalar_lea.vmem %s10, %s748
      %p750 = scmp.lt.s32.totalorder %s34, 1
      %s751 = scalar_select %p750, %s34, 1
      %s752 = scalar_lea.vmem %s11, %s751
      %p753 = scmp.lt.s32.totalorder %s34, 1
      %s754 = scalar_select %p753, %s34, 1
      %s755 = scalar_lea.vmem %s12, %s754
      %p756 = scmp.lt.s32.totalorder %s34, 1
      %s757 = scalar_select %p756, %s34, 1
      %s758 = scalar_lea.vmem %s13, %s757
      %p759 = scmp.lt.s32.totalorder %s34, 1
      %s760 = scalar_select %p759, %s34, 1
      %s761 = smul.addr %s760, 4
      %s762 = smul.addr %s761, 4
      %s763 = scalar_lea.vmem %s14, %s762
      %p764 = scmp.lt.s32.totalorder %s34, 1
      %s765 = scalar_select %p764, %s34, 1
      %s766 = scalar_lea.vmem %s15, %s765
      %p767 = scmp.lt.s32.totalorder %s34, 1
      %s768 = scalar_select %p767, %s34, 1
      %s769 = smul.addr %s768, 16
      %s770 = smul.addr %s769, 4
      %s771 = scalar_lea.vmem %s16, %s770
      %p772 = scmp.lt.s32.totalorder %s34, 1
      %s773 = scalar_select %p772, %s34, 1
      %s774 = scalar_lea.vmem %s17, %s773
      %p775 = scmp.lt.s32.totalorder %s33, 1
      %s776 = scalar_select %p775, %s33, 1
      %s777 = smul.addr %s776, 8
      %s778 = smul.addr %s777, 4
      %s779 = scalar_lea.vmem %s18, %s778
      %p781 = scmp.eq.s32.totalorder %s34, 0
      // Predicated region
      $region93: #{wavet_forward.2} parent=91 // pred_check
        %p782 = pneg %p781
      $region94: #{wavet_forward.2} parent=91 // pred_check_branch
        %784 = sbr.rel (%p782) target = $region96
      $region95: #{wavet_forward.2} parent=91 // pred_region
        %v785 = vld [vmem:[%s730] sm:$0xf]
        %v786 = vld [vmem:[%s730 + $0x4] sm:$0xf]
        %v787 = vld [vmem:[%s730 + $0x8] sm:$0xf]
        %v788 = vld [vmem:[%s730 + $0xc] sm:$0xf]
        %v789 = vld [vmem:[%s730 + $0x10] sm:$0xf]
        %v790 = vld [vmem:[%s730 + $0x14] sm:$0xf]
        %v791 = vld [vmem:[%s730 + $0x18] sm:$0xf]
        %v792 = vld [vmem:[%s730 + $0x1c] sm:$0xf]
        %v793 = vld [vmem:[%s2] sm:$0xf]
        %v794 = vld [vmem:[%s2 + $0x4] sm:$0x3]
        %v795 = vld [vmem:[%s3] sm:$0x1]
        %v797 = vlaneseq
        %v798 = vshrl.u32 %v797, 7
        %v799 = vsub.s32 0, %v798
        %v800 = vrot.slane %v795, %v799
        %v810 = vunpack.c.l.b16 %v785
        %v811 = vunpack.c.l.b16 %v786
        %v812 = vunpack.c.l.b16 %v787
        %v813 = vunpack.c.l.b16 %v788
        %v814 = vunpack.c.l.b16 %v789
        %v815 = vunpack.c.l.b16 %v790
        %v816 = vunpack.c.l.b16 %v791
        %v817 = vunpack.c.l.b16 %v792
        %v818 = vpack.c.b16 %v811, %v810
        %v819 = vpack.c.b16 %v813, %v812
        %v820 = vpack.c.b16 %v815, %v814
        %v821 = vpack.c.b16 %v817, %v816
        %v824 = vunpack.c.l.b16 %v793
        %v825 = vunpack.c.l.b16 %v794
        %v826 = vpack.c.b16 %v825, %v824
        %vm827 = vcmask 97280
        %v829 = vsel %vm827, %v818, 0
        %v832 = vsel %vm827, %v819, 0
        %v835 = vsel %vm827, %v820, 0
        %v838 = vsel %vm827, %v821, 0
        %vm840 = vcmask 1045504
        %v842 = vsel %vm840, %v826, 0
        %844 = vmatprep.subr.bf16.mxu0 0
        %845 = vmatpush1.bf16.msra.mxu0 %v842
        %846 = vmatprep.subr.bf16.mxu0 0
        %847 = vmatpush1.bf16.msra.mxu0 0
        %848 = vmatprep.subr.bf16.mxu0 0
        %849 = vmatpush1.bf16.msra.mxu0 0
        %850 = vmatprep.subr.bf16.mxu0 0
        %851 = vmatpush1.bf16.msra.mxu0 0
        %852 = vmatprep.subr.bf16.mxu0 0
        %853 = vmatpush1.bf16.msra.mxu0 0
        %854 = vmatprep.subr.bf16.mxu0 0
        %855 = vmatpush1.bf16.msra.mxu0 0
        %856 = vmatprep.subr.bf16.mxu0 0
        %857 = vmatpush1.bf16.msra.mxu0 0
        %858 = vmatprep.subr.bf16.mxu0 0
        %859 = vmatpush1.bf16.msra.mxu0 0
        %860 = vmatprep.subr.bf16.mxu0 0
        %861 = vmatpush1.bf16.msra.mxu0 0
        %862 = vmatprep.subr.bf16.mxu0 0
        %863 = vmatpush1.bf16.msra.mxu0 0
        %864 = vmatprep.subr.bf16.mxu0 0
        %865 = vmatpush1.bf16.msra.mxu0 0
        %866 = vmatprep.subr.bf16.mxu0 0
        %867 = vmatpush1.bf16.msra.mxu0 0
        %868 = vmatprep.subr.bf16.mxu0 0
        %869 = vmatpush1.bf16.msra.mxu0 0
        %870 = vmatprep.subr.bf16.mxu0 0
        %871 = vmatpush1.bf16.msra.mxu0 0
        %872 = vmatprep.subr.bf16.mxu0 0
        %873 = vmatpush1.bf16.msra.mxu0 0
        %874 = vmatprep.subr.bf16.mxu0 0
        %875 = vmatpush1.bf16.msra.mxu0 0
        %876 = vmatprep.mubr.bf16.mxu0 0
        %877 = vmatmul.mubr.bf16.gmra.mrb[0].mxu0 %v829
        %v878 = vpop.f32.mrb[0].mxu0
        %v879 = vadd.f32 %v800, %v878
        %v880 = vpop.f32.mrb[0].mxu0
        %v881 = vpop.f32.mrb[0].mxu0
        %v882 = vadd.f32 %v800, %v881
        %v883 = vpop.f32.mrb[0].mxu0
        %884 = vmatprep.mubr.bf16.mxu0 0
        %885 = vmatmul.mubr.bf16.gmra.mrb[0].mxu0 %v832
        %v886 = vpop.f32.mrb[0].mxu0
        %v887 = vadd.f32 %v800, %v886
        %v888 = vpop.f32.mrb[0].mxu0
        %v889 = vpop.f32.mrb[0].mxu0
        %v890 = vadd.f32 %v800, %v889
        %v891 = vpop.f32.mrb[0].mxu0
        %892 = vmatprep.mubr.bf16.mxu0 0
        %893 = vmatmul.mubr.bf16.gmra.mrb[0].mxu0 %v835
        %v894 = vpop.f32.mrb[0].mxu0
        %v895 = vadd.f32 %v800, %v894
        %v896 = vpop.f32.mrb[0].mxu0
        %v897 = vpop.f32.mrb[0].mxu0
        %v898 = vadd.f32 %v800, %v897
        %v899 = vpop.f32.mrb[0].mxu0
        %900 = vmatprep.mubr.bf16.mxu0 0
        %901 = vmatmul.mubr.bf16.gmra.mrb[0].mxu0 %v838
        %v902 = vpop.f32.mrb[0].mxu0
        %v903 = vadd.f32 %v800, %v902
        %v904 = vpop.f32.mrb[0].mxu0
        %v905 = vpop.f32.mrb[0].mxu0
        %v906 = vadd.f32 %v800, %v905
        %v907 = vpop.f32.mrb[0].mxu0
        %908 = vdwg.mxu0
        %v909 = vld [vmem:[%s4] sm:$0x1]
        %v910 = vld [vmem:[%s5] sm:$0x1]
        %vm911 = vcmask 261120
        %v912 = vsel %vm911, %v879, 0.0
        %913 = vadd.xlane.f32.xlu0 %v912
        %v914 = vpop.xlane.xlu0 %913
        %v915 = vsel %vm911, %v882, 0.0
        %916 = vadd.xlane.f32.xlu0 %v915
        %v917 = vpop.xlane.xlu0 %916
        %v918 = vsel %vm911, %v887, 0.0
        %919 = vadd.xlane.f32.xlu0 %v918
        %v920 = vpop.xlane.xlu0 %919
        %v921 = vsel %vm911, %v890, 0.0
        %922 = vadd.xlane.f32.xlu0 %v921
        %v923 = vpop.xlane.xlu0 %922
        %v924 = vsel %vm911, %v895, 0.0
        %925 = vadd.xlane.f32.xlu0 %v924
        %v926 = vpop.xlane.xlu0 %925
        %v927 = vsel %vm911, %v898, 0.0
        %928 = vadd.xlane.f32.xlu0 %v927
        %v929 = vpop.xlane.xlu0 %928
        %v930 = vsel %vm911, %v903, 0.0
        %931 = vadd.xlane.f32.xlu0 %v930
        %v932 = vpop.xlane.xlu0 %931
        %v933 = vsel %vm911, %v906, 0.0
        %934 = vadd.xlane.f32.xlu0 %v933
        %v935 = vpop.xlane.xlu0 %934
        %v936 = vrcp.pop 32.0
        %v937 = vmul.f32 %v914, %v936
        %v938 = vmul.f32 %v917, %v936
        %v939 = vmul.f32 %v920, %v936
        %v940 = vmul.f32 %v923, %v936
        %v941 = vmul.f32 %v926, %v936
        %v942 = vmul.f32 %v929, %v936
        %v943 = vmul.f32 %v932, %v936
        %v944 = vmul.f32 %v935, %v936
        %v945 = vsub.f32 %v879, %v937
        %v946 = vsub.f32 %v882, %v938
        %v947 = vsub.f32 %v887, %v939
        %v948 = vsub.f32 %v890, %v940
        %v949 = vsub.f32 %v895, %v941
        %v950 = vsub.f32 %v898, %v942
        %v951 = vsub.f32 %v903, %v943
        %v952 = vsub.f32 %v906, %v944
        %v953 = vmul.f32 %v945, %v945
        %v954 = vmul.f32 %v946, %v946
        %v955 = vmul.f32 %v947, %v947
        %v956 = vmul.f32 %v948, %v948
        %v957 = vmul.f32 %v949, %v949
        %v958 = vmul.f32 %v950, %v950
        %v959 = vmul.f32 %v951, %v951
        %v960 = vmul.f32 %v952, %v952
        %v961 = vsel %vm911, %v953, 0.0
        %962 = vadd.xlane.f32.xlu0 %v961
        %v963 = vpop.xlane.xlu0 %962
        %v964 = vsel %vm911, %v954, 0.0
        %965 = vadd.xlane.f32.xlu0 %v964
        %v966 = vpop.xlane.xlu0 %965
        %v967 = vsel %vm911, %v955, 0.0
        %968 = vadd.xlane.f32.xlu0 %v967
        %v969 = vpop.xlane.xlu0 %968
        %v970 = vsel %vm911, %v956, 0.0
        %971 = vadd.xlane.f32.xlu0 %v970
        %v972 = vpop.xlane.xlu0 %971
        %v973 = vsel %vm911, %v957, 0.0
        %974 = vadd.xlane.f32.xlu0 %v973
        %v975 = vpop.xlane.xlu0 %974
        %v976 = vsel %vm911, %v958, 0.0
        %977 = vadd.xlane.f32.xlu0 %v976
        %v978 = vpop.xlane.xlu0 %977
        %v979 = vsel %vm911, %v959, 0.0
        %980 = vadd.xlane.f32.xlu0 %v979
        %v981 = vpop.xlane.xlu0 %980
        %v982 = vsel %vm911, %v960, 0.0
        %983 = vadd.xlane.f32.xlu0 %v982
        %v984 = vpop.xlane.xlu0 %983
        %v985 = vmul.f32 %v963, %v936
        %v986 = vmul.f32 %v966, %v936
        %v987 = vmul.f32 %v969, %v936
        %v988 = vmul.f32 %v972, %v936
        %v989 = vmul.f32 %v975, %v936
        %v990 = vmul.f32 %v978, %v936
        %v991 = vmul.f32 %v981, %v936
        %v992 = vmul.f32 %v984, %v936
        %v993 = vadd.f32 %v985, 1e-06
        %v994 = vadd.f32 %v986, 1e-06
        %v995 = vadd.f32 %v987, 1e-06
        %v996 = vadd.f32 %v988, 1e-06
        %v997 = vadd.f32 %v989, 1e-06
        %v998 = vadd.f32 %v990, 1e-06
        %v999 = vadd.f32 %v991, 1e-06
        %v1000 = vadd.f32 %v992, 1e-06
        %v1001 = vrsqrt.pop %v993
        %v1002 = vrsqrt.pop %v994
        %v1003 = vrsqrt.pop %v995
        %v1004 = vrsqrt.pop %v996
        %v1005 = vrsqrt.pop %v997
        %v1006 = vrsqrt.pop %v998
        %v1007 = vrsqrt.pop %v999
        %v1008 = vrsqrt.pop %v1000
        %v1009 = vmul.f32 %v945, %v1001
        %v1010 = vmul.f32 %v946, %v1002
        %v1011 = vmul.f32 %v947, %v1003
        %v1012 = vmul.f32 %v948, %v1004
        %v1013 = vmul.f32 %v949, %v1005
        %v1014 = vmul.f32 %v950, %v1006
        %v1015 = vmul.f32 %v951, %v1007
        %v1016 = vmul.f32 %v952, %v1008
        %v1018 = vlaneseq
        %v1019 = vshrl.u32 %v1018, 7
        %v1020 = vsub.s32 0, %v1019
        %v1021 = vrot.slane %v909, %v1020
        %v1023 = vmul.f32 %v1009, %v1021
        %v1024 = vmul.f32 %v1010, %v1021
        %v1025 = vmul.f32 %v1011, %v1021
        %v1026 = vmul.f32 %v1012, %v1021
        %v1027 = vmul.f32 %v1013, %v1021
        %v1028 = vmul.f32 %v1014, %v1021
        %v1029 = vmul.f32 %v1015, %v1021
        %v1030 = vmul.f32 %v1016, %v1021
        %v1032 = vlaneseq
        %v1033 = vshrl.u32 %v1032, 7
        %v1034 = vsub.s32 0, %v1033
        %v1035 = vrot.slane %v910, %v1034
        %v1037 = vadd.f32 %v1023, %v1035
        %v1038 = vadd.f32 %v1024, %v1035
        %v1039 = vadd.f32 %v1025, %v1035
        %v1040 = vadd.f32 %v1026, %v1035
        %v1041 = vadd.f32 %v1027, %v1035
        %v1042 = vadd.f32 %v1028, %v1035
        %v1043 = vadd.f32 %v1029, %v1035
        %v1044 = vadd.f32 %v1030, %v1035
        %v1045 = vld [vmem:[%s1] sm:$0xff]
        %v1046 = vld [vmem:[%s1 + $0x8] sm:$0xff]
        %v1047 = vld [vmem:[%s1 + $0x10] sm:$0xff]
        %v1048 = vld [vmem:[%s1 + $0x18] sm:$0xff]
        %v1049 = vld [vmem:[%s1 + $0x20] sm:$0xff]
        %v1050 = vld [vmem:[%s1 + $0x28] sm:$0xff]
        %v1051 = vld [vmem:[%s1 + $0x30] sm:$0xff]
        %v1052 = vld [vmem:[%s1 + $0x38] sm:$0xff]
        %v1053 = vadd.f32 %v1037, %v1045
        %v1054 = vadd.f32 %v1038, %v1046
        %v1055 = vadd.f32 %v1039, %v1047
        %v1056 = vadd.f32 %v1040, %v1048
        %v1057 = vadd.f32 %v1041, %v1049
        %v1058 = vadd.f32 %v1042, %v1050
        %v1059 = vadd.f32 %v1043, %v1051
        %v1060 = vadd.f32 %v1044, %v1052
        %1061 = vst.msk [vmem:[#allocation2] sm:$0xff] %vm911, %v1053
        %1062 = vst.msk [vmem:[#allocation2 + $0x8] sm:$0xff] %vm911, %v1054
        %1063 = vst.msk [vmem:[#allocation2 + $0x10] sm:$0xff] %vm911, %v1055
        %1064 = vst.msk [vmem:[#allocation2 + $0x18] sm:$0xff] %vm911, %v1056
        %1065 = vst.msk [vmem:[#allocation2 + $0x20] sm:$0xff] %vm911, %v1057
        %1066 = vst.msk [vmem:[#allocation2 + $0x28] sm:$0xff] %vm911, %v1058
        %1067 = vst.msk [vmem:[#allocation2 + $0x30] sm:$0xff] %vm911, %v1059
        %1068 = vst.msk [vmem:[#allocation2 + $0x38] sm:$0xff] %vm911, %v1060
      $region96: #{wavet_forward.2} parent=91 // pred_fallthru
        _
      %v1069 = vld [vmem:[#allocation2] sm:$0xff]
      %v1070 = vld [vmem:[#allocation2 + $0x8] sm:$0xff]
      %v1071 = vld [vmem:[#allocation2 + $0x10] sm:$0xff]
      %v1072 = vld [vmem:[#allocation2 + $0x18] sm:$0xff]
      %v1073 = vld [vmem:[#allocation2 + $0x20] sm:$0xff]
      %v1074 = vld [vmem:[#allocation2 + $0x28] sm:$0xff]
      %v1075 = vld [vmem:[#allocation2 + $0x30] sm:$0xff]
      %v1076 = vld [vmem:[#allocation2 + $0x38] sm:$0xff]
      %v1077 = vld [vmem:[%s733] sm:$0x1]
      %v1078 = vld [vmem:[%s736] sm:$0x1]
      %vm1079 = vcmask 261120
      %v1080 = vsel %vm1079, %v1069, 0.0
      %1081 = vadd.xlane.f32.xlu0 %v1080
      %v1082 = vpop.xlane.xlu0 %1081
      %v1083 = vsel %vm1079, %v1070, 0.0
      %1084 = vadd.xlane.f32.xlu0 %v1083
      %v1085 = vpop.xlane.xlu0 %1084
      %v1086 = vsel %vm1079, %v1071, 0.0
      %1087 = vadd.xlane.f32.xlu0 %v1086
      %v1088 = vpop.xlane.xlu0 %1087
      %v1089 = vsel %vm1079, %v1072, 0.0
      %1090 = vadd.xlane.f32.xlu0 %v1089
      %v1091 = vpop.xlane.xlu0 %1090
      %v1092 = vsel %vm1079, %v1073, 0.0
      %1093 = vadd.xlane.f32.xlu0 %v1092
      %v1094 = vpop.xlane.xlu0 %1093
      %v1095 = vsel %vm1079, %v1074, 0.0
      %1096 = vadd.xlane.f32.xlu0 %v1095
      %v1097 = vpop.xlane.xlu0 %1096
      %v1098 = vsel %vm1079, %v1075, 0.0
      %1099 = vadd.xlane.f32.xlu0 %v1098
      %v1100 = vpop.xlane.xlu0 %1099
      %v1101 = vsel %vm1079, %v1076, 0.0
      %1102 = vadd.xlane.f32.xlu0 %v1101
      %v1103 = vpop.xlane.xlu0 %1102
      %v1104 = vrcp.pop 32.0
      %v1105 = vmul.f32 %v1082, %v1104
      %v1106 = vmul.f32 %v1085, %v1104
      %v1107 = vmul.f32 %v1088, %v1104
      %v1108 = vmul.f32 %v1091, %v1104
      %v1109 = vmul.f32 %v1094, %v1104
      %v1110 = vmul.f32 %v1097, %v1104
      %v1111 = vmul.f32 %v1100, %v1104
      %v1112 = vmul.f32 %v1103, %v1104
      %v1113 = vsub.f32 %v1069, %v1105
      %v1114 = vsub.f32 %v1070, %v1106
      %v1115 = vsub.f32 %v1071, %v1107
      %v1116 = vsub.f32 %v1072, %v1108
      %v1117 = vsub.f32 %v1073, %v1109
      %v1118 = vsub.f32 %v1074, %v1110
      %v1119 = vsub.f32 %v1075, %v1111
      %v1120 = vsub.f32 %v1076, %v1112
      %v1121 = vmul.f32 %v1113, %v1113
      %v1122 = vmul.f32 %v1114, %v1114
      %v1123 = vmul.f32 %v1115, %v1115
      %v1124 = vmul.f32 %v1116, %v1116
      %v1125 = vmul.f32 %v1117, %v1117
      %v1126 = vmul.f32 %v1118, %v1118
      %v1127 = vmul.f32 %v1119, %v1119
      %v1128 = vmul.f32 %v1120, %v1120
      %v1129 = vsel %vm1079, %v1121, 0.0
      %1130 = vadd.xlane.f32.xlu0 %v1129
      %v1131 = vpop.xlane.xlu0 %1130
      %v1132 = vsel %vm1079, %v1122, 0.0
      %1133 = vadd.xlane.f32.xlu0 %v1132
      %v1134 = vpop.xlane.xlu0 %1133
      %v1135 = vsel %vm1079, %v1123, 0.0
      %1136 = vadd.xlane.f32.xlu0 %v1135
      %v1137 = vpop.xlane.xlu0 %1136
      %v1138 = vsel %vm1079, %v1124, 0.0
      %1139 = vadd.xlane.f32.xlu0 %v1138
      %v1140 = vpop.xlane.xlu0 %1139
      %v1141 = vsel %vm1079, %v1125, 0.0
      %1142 = vadd.xlane.f32.xlu0 %v1141
      %v1143 = vpop.xlane.xlu0 %1142
      %v1144 = vsel %vm1079, %v1126, 0.0
      %1145 = vadd.xlane.f32.xlu0 %v1144
      %v1146 = vpop.xlane.xlu0 %1145
      %v1147 = vsel %vm1079, %v1127, 0.0
      %1148 = vadd.xlane.f32.xlu0 %v1147
      %v1149 = vpop.xlane.xlu0 %1148
      %v1150 = vsel %vm1079, %v1128, 0.0
      %1151 = vadd.xlane.f32.xlu0 %v1150
      %v1152 = vpop.xlane.xlu0 %1151
      %v1153 = vmul.f32 %v1131, %v1104
      %v1154 = vmul.f32 %v1134, %v1104
      %v1155 = vmul.f32 %v1137, %v1104
      %v1156 = vmul.f32 %v1140, %v1104
      %v1157 = vmul.f32 %v1143, %v1104
      %v1158 = vmul.f32 %v1146, %v1104
      %v1159 = vmul.f32 %v1149, %v1104
      %v1160 = vmul.f32 %v1152, %v1104
      %v1161 = vadd.f32 %v1153, 1e-06
      %v1162 = vadd.f32 %v1154, 1e-06
      %v1163 = vadd.f32 %v1155, 1e-06
      %v1164 = vadd.f32 %v1156, 1e-06
      %v1165 = vadd.f32 %v1157, 1e-06
      %v1166 = vadd.f32 %v1158, 1e-06
      %v1167 = vadd.f32 %v1159, 1e-06
      %v1168 = vadd.f32 %v1160, 1e-06
      %v1169 = vrsqrt.pop %v1161
      %v1170 = vrsqrt.pop %v1162
      %v1171 = vrsqrt.pop %v1163
      %v1172 = vrsqrt.pop %v1164
      %v1173 = vrsqrt.pop %v1165
      %v1174 = vrsqrt.pop %v1166
      %v1175 = vrsqrt.pop %v1167
      %v1176 = vrsqrt.pop %v1168
      %v1177 = vmul.f32 %v1113, %v1169
      %v1178 = vmul.f32 %v1114, %v1170
      %v1179 = vmul.f32 %v1115, %v1171
      %v1180 = vmul.f32 %v1116, %v1172
      %v1181 = vmul.f32 %v1117, %v1173
      %v1182 = vmul.f32 %v1118, %v1174
      %v1183 = vmul.f32 %v1119, %v1175
      %v1184 = vmul.f32 %v1120, %v1176
      %v1186 = vlaneseq
      %v1187 = vshrl.u32 %v1186, 7
      %v1188 = vsub.s32 0, %v1187
      %v1189 = vrot.slane %v1077, %v1188
      %v1191 = vmul.f32 %v1177, %v1189
      %v1192 = vmul.f32 %v1178, %v1189
      %v1193 = vmul.f32 %v1179, %v1189
      %v1194 = vmul.f32 %v1180, %v1189
      %v1195 = vmul.f32 %v1181, %v1189
      %v1196 = vmul.f32 %v1182, %v1189
      %v1197 = vmul.f32 %v1183, %v1189
      %v1198 = vmul.f32 %v1184, %v1189
      %v1200 = vlaneseq
      %v1201 = vshrl.u32 %v1200, 7
      %v1202 = vsub.s32 0, %v1201
      %v1203 = vrot.slane %v1078, %v1202
      %v1205 = vadd.f32 %v1191, %v1203
      %v1206 = vadd.f32 %v1192, %v1203
      %v1207 = vadd.f32 %v1193, %v1203
      %v1208 = vadd.f32 %v1194, %v1203
      %v1209 = vadd.f32 %v1195, %v1203
      %v1210 = vadd.f32 %v1196, %v1203
      %v1211 = vadd.f32 %v1197, %v1203
      %v1212 = vadd.f32 %v1198, %v1203
      %v1213 = vpack.c.bf16 %v1206, %v1205
      %v1214 = vpack.c.bf16 %v1208, %v1207
      %v1215 = vpack.c.bf16 %v1210, %v1209
      %v1216 = vpack.c.bf16 %v1212, %v1211
      %v1217 = vld [vmem:[%s741] sm:$0xf]
      %v1218 = vld [vmem:[%s741 + $0x4] sm:$0xf]
      %v1219 = vld [vmem:[%s741 + $0x8] sm:$0xf]
      %v1220 = vld [vmem:[%s741 + $0xc] sm:$0xf]
      %v1221 = vld [vmem:[%s744] sm:$0x1]
      %v1223 = vlaneseq
      %v1224 = vshrl.u32 %v1223, 7
      %v1225 = vsub.s32 0, %v1224
      %v1226 = vrot.slane %v1221, %v1225
      %v1232 = vunpack.c.l.b16 %v1217
      %v1233 = vunpack.c.l.b16 %v1218
      %v1234 = vunpack.c.l.b16 %v1219
      %v1235 = vunpack.c.l.b16 %v1220
      %v1236 = vpack.c.b16 %v1233, %v1232
      %v1237 = vpack.c.b16 %v1235, %v1234
      %v1241 = vsel %vm1079, %v1213, 0
      %v1244 = vsel %vm1079, %v1214, 0
      %v1247 = vsel %vm1079, %v1215, 0
      %v1250 = vsel %vm1079, %v1216, 0
      %1252 = vmatprep.subr.bf16.mxu0 0
      %1253 = vmatpush1.bf16.msra.mxu0 %v1236
      %1254 = vmatprep.subr.bf16.mxu0 0
      %1255 = vmatpush1.bf16.msra.mxu0 %v1237
      %1256 = vmatprep.subr.bf16.mxu0 0
      %1257 = vmatpush1.bf16.msra.mxu0 0
      %1258 = vmatprep.subr.bf16.mxu0 0
      %1259 = vmatpush1.bf16.msra.mxu0 0
      %1260 = vmatprep.subr.bf16.mxu0 0
      %1261 = vmatpush1.bf16.msra.mxu0 0
      %1262 = vmatprep.subr.bf16.mxu0 0
      %1263 = vmatpush1.bf16.msra.mxu0 0
      %1264 = vmatprep.subr.bf16.mxu0 0
      %1265 = vmatpush1.bf16.msra.mxu0 0
      %1266 = vmatprep.subr.bf16.mxu0 0
      %1267 = vmatpush1.bf16.msra.mxu0 0
      %1268 = vmatprep.subr.bf16.mxu0 0
      %1269 = vmatpush1.bf16.msra.mxu0 0
      %1270 = vmatprep.subr.bf16.mxu0 0
      %1271 = vmatpush1.bf16.msra.mxu0 0
      %1272 = vmatprep.subr.bf16.mxu0 0
      %1273 = vmatpush1.bf16.msra.mxu0 0
      %1274 = vmatprep.subr.bf16.mxu0 0
      %1275 = vmatpush1.bf16.msra.mxu0 0
      %1276 = vmatprep.subr.bf16.mxu0 0
      %1277 = vmatpush1.bf16.msra.mxu0 0
      %1278 = vmatprep.subr.bf16.mxu0 0
      %1279 = vmatpush1.bf16.msra.mxu0 0
      %1280 = vmatprep.subr.bf16.mxu0 0
      %1281 = vmatpush1.bf16.msra.mxu0 0
      %1282 = vmatprep.subr.bf16.mxu0 0
      %1283 = vmatpush1.bf16.msra.mxu0 0
      %1284 = vmatprep.mubr.bf16.mxu0 0
      %1285 = vmatmul.mubr.bf16.gmra.mrb[0].mxu0 %v1241
      %v1286 = vpop.f32.mrb[0].mxu0
      %v1287 = vadd.f32 %v1226, %v1286
      %v1288 = vpop.f32.mrb[0].mxu0
      %v1289 = vpop.f32.mrb[0].mxu0
      %v1290 = vadd.f32 %v1226, %v1289
      %v1291 = vpop.f32.mrb[0].mxu0
      %1292 = vmatprep.mubr.bf16.mxu0 0
      %1293 = vmatmul.mubr.bf16.gmra.mrb[0].mxu0 %v1244
      %v1294 = vpop.f32.mrb[0].mxu0
      %v1295 = vadd.f32 %v1226, %v1294
      %v1296 = vpop.f32.mrb[0].mxu0
      %v1297 = vpop.f32.mrb[0].mxu0
      %v1298 = vadd.f32 %v1226, %v1297
      %v1299 = vpop.f32.mrb[0].mxu0
      %1300 = vmatprep.mubr.bf16.mxu0 0
      %1301 = vmatmul.mubr.bf16.gmra.mrb[0].mxu0 %v1247
      %v1302 = vpop.f32.mrb[0].mxu0
      %v1303 = vadd.f32 %v1226, %v1302
      %v1304 = vpop.f32.mrb[0].mxu0
      %v1305 = vpop.f32.mrb[0].mxu0
      %v1306 = vadd.f32 %v1226, %v1305
      %v1307 = vpop.f32.mrb[0].mxu0
      %1308 = vmatprep.mubr.bf16.mxu0 0
      %1309 = vmatmul.mubr.bf16.gmra.mrb[0].mxu0 %v1250
      %v1310 = vpop.f32.mrb[0].mxu0
      %v1311 = vadd.f32 %v1226, %v1310
      %v1312 = vpop.f32.mrb[0].mxu0
      %v1313 = vpop.f32.mrb[0].mxu0
      %v1314 = vadd.f32 %v1226, %v1313
      %v1315 = vpop.f32.mrb[0].mxu0
      %1316 = vdwg.mxu0
      %v1317 = vld [vmem:[%s749] sm:$0xf]
      %v1318 = vld [vmem:[%s749 + $0x4] sm:$0xf]
      %v1319 = vld [vmem:[%s749 + $0x8] sm:$0xf]
      %v1320 = vld [vmem:[%s749 + $0xc] sm:$0xf]
      %v1321 = vpack.c.bf16 %v1290, %v1287
      %v1322 = vpack.c.bf16 %v1298, %v1295
      %v1323 = vpack.c.bf16 %v1306, %v1303
      %v1324 = vpack.c.bf16 %v1314, %v1311
      %1329 = vrot.lane.b32.xlu0 %v1321, 96
      %v1330 = vpop.permute.xlu0 %1329
      %1331 = vrot.lane.b32.xlu0 %v1322, 96
      %v1332 = vpop.permute.xlu0 %1331
      %1333 = vrot.lane.b32.xlu0 %v1323, 96
      %v1334 = vpop.permute.xlu0 %1333
      %1335 = vrot.lane.b32.xlu0 %v1324, 96
      %v1336 = vpop.permute.xlu0 %1335
      %vm1337 = vcmask 64512
      %v1339 = vsel %vm1337, %v1321, 0
      %v1342 = vsel %vm1337, %v1322, 0
      %v1345 = vsel %vm1337, %v1323, 0
      %v1348 = vsel %vm1337, %v1324, 0
      %v1351 = vsel %vm1337, %v1330, 0
      %v1354 = vsel %vm1337, %v1332, 0
      %v1357 = vsel %vm1337, %v1334, 0
      %v1360 = vsel %vm1337, %v1336, 0
      %1362 = vmatprep.subr.bf16.mxu0 0
      %1363 = vmatpush1.bf16.xpose.msra.mxu0 %v1351
      %1364 = vmatprep.subr.bf16.mxu0 0
      %1365 = vmatpush1.bf16.xpose.msra.mxu0 %v1354
      %1366 = vmatprep.subr.bf16.mxu0 0
      %1367 = vmatpush1.bf16.xpose.msra.mxu0 %v1357
      %1368 = vmatprep.subr.bf16.mxu0 0
      %1369 = vmatpush1.bf16.xpose.msra.mxu0 %v1360
      %1370 = vmatprep.subr.bf16.mxu0 0
      %1371 = vmatpush1.bf16.xpose.msra.mxu0 0
      %1372 = vmatprep.subr.bf16.mxu0 0
      %1373 = vmatpush1.bf16.xpose.msra.mxu0 0
      %1374 = vmatprep.subr.bf16.mxu0 0
      %1375 = vmatpush1.bf16.xpose.msra.mxu0 0
      %1376 = vmatprep.subr.bf16.mxu0 0
      %1377 = vmatpush1.bf16.xpose.msra.mxu0 0
      %1378 = vmatprep.subr.bf16.mxu0 0
      %1379 = vmatpush1.bf16.xpose.msra.mxu0 0
      %1380 = vmatprep.subr.bf16.mxu0 0
      %1381 = vmatpush1.bf16.xpose.msra.mxu0 0
      %1382 = vmatprep.subr.bf16.mxu0 0
      %1383 = vmatpush1.bf16.xpose.msra.mxu0 0
      %1384 = vmatprep.subr.bf16.mxu0 0
      %1385 = vmatpush1.bf16.xpose.msra.mxu0 0
      %1386 = vmatprep.subr.bf16.mxu0 0
      %1387 = vmatpush1.bf16.xpose.msra.mxu0 0
      %1388 = vmatprep.subr.bf16.mxu0 0
      %1389 = vmatpush1.bf16.xpose.msra.mxu0 0
      %1390 = vmatprep.subr.bf16.mxu0 0
      %1391 = vmatpush1.bf16.xpose.msra.mxu0 0
      %1392 = vmatprep.subr.bf16.mxu0 0
      %1393 = vmatpush1.bf16.xpose.msra.mxu0 0
      %1394 = vmatprep.mubr.bf16.mxu0 0
      %1395 = vmatmul.mubr.bf16.gmra.mrb[0].mxu0 %v1339
      %v1396 = vpop.f32.mrb[0].mxu0
      %v1397 = vadd.f32 0.0, %v1396
      %v1398 = vpop.f32.mrb[0].mxu0
      %v1399 = vpop.f32.mrb[0].mxu0
      %v1400 = vadd.f32 0.0, %v1399
      %v1401 = vpop.f32.mrb[0].mxu0
      %1402 = vmatprep.mubr.bf16.mxu0 0
      %1403 = vmatmul.mubr.bf16.gmra.mrb[0].mxu0 %v1342
      %v1404 = vpop.f32.mrb[0].mxu0
      %v1405 = vadd.f32 0.0, %v1404
      %v1406 = vpop.f32.mrb[0].mxu0
      %v1407 = vpop.f32.mrb[0].mxu0
      %v1408 = vadd.f32 0.0, %v1407
      %v1409 = vpop.f32.mrb[0].mxu0
      %1410 = vmatprep.mubr.bf16.mxu0 0
      %1411 = vmatmul.mubr.bf16.gmra.mrb[0].mxu0 %v1345
      %v1412 = vpop.f32.mrb[0].mxu0
      %v1413 = vadd.f32 0.0, %v1412
      %v1414 = vpop.f32.mrb[0].mxu0
      %v1415 = vpop.f32.mrb[0].mxu0
      %v1416 = vadd.f32 0.0, %v1415
      %v1417 = vpop.f32.mrb[0].mxu0
      %1418 = vmatprep.mubr.bf16.mxu0 0
      %1419 = vmatmul.mubr.bf16.gmra.mrb[0].mxu0 %v1348
      %v1420 = vpop.f32.mrb[0].mxu0
      %v1421 = vadd.f32 0.0, %v1420
      %v1422 = vpop.f32.mrb[0].mxu0
      %v1423 = vpop.f32.mrb[0].mxu0
      %v1424 = vadd.f32 0.0, %v1423
      %v1425 = vpop.f32.mrb[0].mxu0
      %1426 = vdwg.mxu0
      %vm1427 = vcmask 523264
      %v1428 = vsel %vm1427, %v1397, -inf
      %1429 = vmax.xlane.f32.xlu0 %v1428
      %v1430 = vpop.xlane.xlu0 %1429
      %v1431 = vsel %vm1427, %v1400, -inf
      %1432 = vmax.xlane.f32.xlu0 %v1431
      %v1433 = vpop.xlane.xlu0 %1432
      %v1434 = vsel %vm1427, %v1405, -inf
      %1435 = vmax.xlane.f32.xlu0 %v1434
      %v1436 = vpop.xlane.xlu0 %1435
      %v1437 = vsel %vm1427, %v1408, -inf
      %1438 = vmax.xlane.f32.xlu0 %v1437
      %v1439 = vpop.xlane.xlu0 %1438
      %v1440 = vsel %vm1427, %v1413, -inf
      %1441 = vmax.xlane.f32.xlu0 %v1440
      %v1442 = vpop.xlane.xlu0 %1441
      %v1443 = vsel %vm1427, %v1416, -inf
      %1444 = vmax.xlane.f32.xlu0 %v1443
      %v1445 = vpop.xlane.xlu0 %1444
      %v1446 = vsel %vm1427, %v1421, -inf
      %1447 = vmax.xlane.f32.xlu0 %v1446
      %v1448 = vpop.xlane.xlu0 %1447
      %v1449 = vsel %vm1427, %v1424, -inf
      %1450 = vmax.xlane.f32.xlu0 %v1449
      %v1451 = vpop.xlane.xlu0 %1450
      %v1452 = vsub.f32 %v1397, %v1430
      %v1453 = vsub.f32 %v1400, %v1433
      %v1454 = vsub.f32 %v1405, %v1436
      %v1455 = vsub.f32 %v1408, %v1439
      %v1456 = vsub.f32 %v1413, %v1442
      %v1457 = vsub.f32 %v1416, %v1445
      %v1458 = vsub.f32 %v1421, %v1448
      %v1459 = vsub.f32 %v1424, %v1451
      %v1460 = vmul.f32 %v1452, 1.442695
      %v1461 = vpow.pop %v1460
      %v1462 = vmul.f32 %v1453, 1.442695
      %v1463 = vpow.pop %v1462
      %v1464 = vmul.f32 %v1454, 1.442695
      %v1465 = vpow.pop %v1464
      %v1466 = vmul.f32 %v1455, 1.442695
      %v1467 = vpow.pop %v1466
      %v1468 = vmul.f32 %v1456, 1.442695
      %v1469 = vpow.pop %v1468
      %v1470 = vmul.f32 %v1457, 1.442695
      %v1471 = vpow.pop %v1470
      %v1472 = vmul.f32 %v1458, 1.442695
      %v1473 = vpow.pop %v1472
      %v1474 = vmul.f32 %v1459, 1.442695
      %v1475 = vpow.pop %v1474
      %v1476 = vsel %vm1427, %v1461, 0.0
      %1477 = vadd.xlane.f32.xlu0 %v1476
      %v1478 = vpop.xlane.xlu0 %1477
      %v1479 = vsel %vm1427, %v1463, 0.0
      %1480 = vadd.xlane.f32.xlu0 %v1479
      %v1481 = vpop.xlane.xlu0 %1480
      %v1482 = vsel %vm1427, %v1465, 0.0
      %1483 = vadd.xlane.f32.xlu0 %v1482
      %v1484 = vpop.xlane.xlu0 %1483
      %v1485 = vsel %vm1427, %v1467, 0.0
      %1486 = vadd.xlane.f32.xlu0 %v1485
      %v1487 = vpop.xlane.xlu0 %1486
      %v1488 = vsel %vm1427, %v1469, 0.0
      %1489 = vadd.xlane.f32.xlu0 %v1488
      %v1490 = vpop.xlane.xlu0 %1489
      %v1491 = vsel %vm1427, %v1471, 0.0
      %1492 = vadd.xlane.f32.xlu0 %v1491
      %v1493 = vpop.xlane.xlu0 %1492
      %v1494 = vsel %vm1427, %v1473, 0.0
      %1495 = vadd.xlane.f32.xlu0 %v1494
      %v1496 = vpop.xlane.xlu0 %1495
      %v1497 = vsel %vm1427, %v1475, 0.0
      %1498 = vadd.xlane.f32.xlu0 %v1497
      %v1499 = vpop.xlane.xlu0 %1498
      %v1500 = vrcp.pop %v1478
      %v1501 = vrcp.pop %v1481
      %v1502 = vrcp.pop %v1484
      %v1503 = vrcp.pop %v1487
      %v1504 = vrcp.pop %v1490
      %v1505 = vrcp.pop %v1493
      %v1506 = vrcp.pop %v1496
      %v1507 = vrcp.pop %v1499
      %v1508 = vmul.f32 %v1461, %v1500
      %v1509 = vmul.f32 %v1463, %v1501
      %v1510 = vmul.f32 %v1465, %v1502
      %v1511 = vmul.f32 %v1467, %v1503
      %v1512 = vmul.f32 %v1469, %v1504
      %v1513 = vmul.f32 %v1471, %v1505
      %v1514 = vmul.f32 %v1473, %v1506
      %v1515 = vmul.f32 %v1475, %v1507
      %v1516 = vpack.c.bf16 %v1509, %v1508
      %v1517 = vpack.c.bf16 %v1511, %v1510
      %v1518 = vpack.c.bf16 %v1513, %v1512
      %v1519 = vpack.c.bf16 %v1515, %v1514
      %1520 = vrot.lane.b32.xlu0 %v1321, 64
      %v1521 = vpop.permute.xlu0 %1520
      %1522 = vrot.lane.b32.xlu0 %v1322, 64
      %v1523 = vpop.permute.xlu0 %1522
      %1524 = vrot.lane.b32.xlu0 %v1323, 64
      %v1525 = vpop.permute.xlu0 %1524
      %1526 = vrot.lane.b32.xlu0 %v1324, 64
      %v1527 = vpop.permute.xlu0 %1526
      %v1533 = vsel %vm1427, %v1516, 0
      %v1536 = vsel %vm1427, %v1517, 0
      %v1539 = vsel %vm1427, %v1518, 0
      %v1542 = vsel %vm1427, %v1519, 0
      %1544 = vmatprep.subr.bf16.mxu0 0
      %1545 = vmatpush1.bf16.msra.mxu0 %v1521
      %1546 = vmatprep.subr.bf16.mxu0 0
      %1547 = vmatpush1.bf16.msra.mxu0 %v1523
      %1548 = vmatprep.subr.bf16.mxu0 0
      %1549 = vmatpush1.bf16.msra.mxu0 %v1525
      %1550 = vmatprep.subr.bf16.mxu0 0
      %1551 = vmatpush1.bf16.msra.mxu0 %v1527
      %1552 = vmatprep.subr.bf16.mxu0 0
      %1553 = vmatpush1.bf16.msra.mxu0 0
      %1554 = vmatprep.subr.bf16.mxu0 0
      %1555 = vmatpush1.bf16.msra.mxu0 0
      %1556 = vmatprep.subr.bf16.mxu0 0
      %1557 = vmatpush1.bf16.msra.mxu0 0
      %1558 = vmatprep.subr.bf16.mxu0 0
      %1559 = vmatpush1.bf16.msra.mxu0 0
      %1560 = vmatprep.subr.bf16.mxu0 0
      %1561 = vmatpush1.bf16.msra.mxu0 0
      %1562 = vmatprep.subr.bf16.mxu0 0
      %1563 = vmatpush1.bf16.msra.mxu0 0
      %1564 = vmatprep.subr.bf16.mxu0 0
      %1565 = vmatpush1.bf16.msra.mxu0 0
      %1566 = vmatprep.subr.bf16.mxu0 0
      %1567 = vmatpush1.bf16.msra.mxu0 0
      %1568 = vmatprep.subr.bf16.mxu0 0
      %1569 = vmatpush1.bf16.msra.mxu0 0
      %1570 = vmatprep.subr.bf16.mxu0 0
      %1571 = vmatpush1.bf16.msra.mxu0 0
      %1572 = vmatprep.subr.bf16.mxu0 0
      %1573 = vmatpush1.bf16.msra.mxu0 0
      %1574 = vmatprep.subr.bf16.mxu0 0
      %1575 = vmatpush1.bf16.msra.mxu0 0
      %1576 = vmatprep.mubr.bf16.mxu0 0
      %1577 = vmatmul.mubr.bf16.gmra.mrb[0].mxu0 %v1533
      %v1578 = vpop.f32.mrb[0].mxu0
      %v1579 = vadd.f32 0.0, %v1578
      %v1580 = vpop.f32.mrb[0].mxu0
      %v1581 = vpop.f32.mrb[0].mxu0
      %v1582 = vadd.f32 0.0, %v1581
      %v1583 = vpop.f32.mrb[0].mxu0
      %1584 = vmatprep.mubr.bf16.mxu0 0
      %1585 = vmatmul.mubr.bf16.gmra.mrb[0].mxu0 %v1536
      %v1586 = vpop.f32.mrb[0].mxu0
      %v1587 = vadd.f32 0.0, %v1586
      %v1588 = vpop.f32.mrb[0].mxu0
      %v1589 = vpop.f32.mrb[0].mxu0
      %v1590 = vadd.f32 0.0, %v1589
      %v1591 = vpop.f32.mrb[0].mxu0
      %1592 = vmatprep.mubr.bf16.mxu0 0
      %1593 = vmatmul.mubr.bf16.gmra.mrb[0].mxu0 %v1539
      %v1594 = vpop.f32.mrb[0].mxu0
      %v1595 = vadd.f32 0.0, %v1594
      %v1596 = vpop.f32.mrb[0].mxu0
      %v1597 = vpop.f32.mrb[0].mxu0
      %v1598 = vadd.f32 0.0, %v1597
      %v1599 = vpop.f32.mrb[0].mxu0
      %1600 = vmatprep.mubr.bf16.mxu0 0
      %1601 = vmatmul.mubr.bf16.gmra.mrb[0].mxu0 %v1542
      %v1602 = vpop.f32.mrb[0].mxu0
      %v1603 = vadd.f32 0.0, %v1602
      %v1604 = vpop.f32.mrb[0].mxu0
      %v1605 = vpop.f32.mrb[0].mxu0
      %v1606 = vadd.f32 0.0, %v1605
      %v1607 = vpop.f32.mrb[0].mxu0
      %1608 = vdwg.mxu0
      %v1609 = vpack.c.bf16 %v1582, %v1579
      %v1610 = vpack.c.bf16 %v1590, %v1587
      %v1611 = vpack.c.bf16 %v1598, %v1595
      %v1612 = vpack.c.bf16 %v1606, %v1603
      %1613 = vrot.lane.b32.xlu0 %v1321, 120
      %v1614 = vpop.permute.xlu0 %1613
      %1615 = vrot.lane.b32.xlu0 %v1322, 120
      %v1616 = vpop.permute.xlu0 %1615
      %1617 = vrot.lane.b32.xlu0 %v1323, 120
      %v1618 = vpop.permute.xlu0 %1617
      %1619 = vrot.lane.b32.xlu0 %v1324, 120
      %v1620 = vpop.permute.xlu0 %1619
      %1621 = vrot.lane.b32.xlu0 %v1321, 88
      %v1622 = vpop.permute.xlu0 %1621
      %1623 = vrot.lane.b32.xlu0 %v1322, 88
      %v1624 = vpop.permute.xlu0 %1623
      %1625 = vrot.lane.b32.xlu0 %v1323, 88
      %v1626 = vpop.permute.xlu0 %1625
      %1627 = vrot.lane.b32.xlu0 %v1324, 88
      %v1628 = vpop.permute.xlu0 %1627
      %v1630 = vsel %vm1337, %v1614, 0
      %v1633 = vsel %vm1337, %v1616, 0
      %v1636 = vsel %vm1337, %v1618, 0
      %v1639 = vsel %vm1337, %v1620, 0
      %v1642 = vsel %vm1337, %v1622, 0
      %v1645 = vsel %vm1337, %v1624, 0
      %v1648 = vsel %vm1337, %v1626, 0
      %v1651 = vsel %vm1337, %v1628, 0
      %1653 = vmatprep.subr.bf16.mxu0 0
      %1654 = vmatpush1.bf16.xpose.msra.mxu0 %v1642
      %1655 = vmatprep.subr.bf16.mxu0 0
      %1656 = vmatpush1.bf16.xpose.msra.mxu0 %v1645
      %1657 = vmatprep.subr.bf16.mxu0 0
      %1658 = vmatpush1.bf16.xpose.msra.mxu0 %v1648
      %1659 = vmatprep.subr.bf16.mxu0 0
      %1660 = vmatpush1.bf16.xpose.msra.mxu0 %v1651
      %1661 = vmatprep.subr.bf16.mxu0 0
      %1662 = vmatpush1.bf16.xpose.msra.mxu0 0
      %1663 = vmatprep.subr.bf16.mxu0 0
      %1664 = vmatpush1.bf16.xpose.msra.mxu0 0
      %1665 = vmatprep.subr.bf16.mxu0 0
      %1666 = vmatpush1.bf16.xpose.msra.mxu0 0
      %1667 = vmatprep.subr.bf16.mxu0 0
      %1668 = vmatpush1.bf16.xpose.msra.mxu0 0
      %1669 = vmatprep.subr.bf16.mxu0 0
      %1670 = vmatpush1.bf16.xpose.msra.mxu0 0
      %1671 = vmatprep.subr.bf16.mxu0 0
      %1672 = vmatpush1.bf16.xpose.msra.mxu0 0
      %1673 = vmatprep.subr.bf16.mxu0 0
      %1674 = vmatpush1.bf16.xpose.msra.mxu0 0
      %1675 = vmatprep.subr.bf16.mxu0 0
      %1676 = vmatpush1.bf16.xpose.msra.mxu0 0
      %1677 = vmatprep.subr.bf16.mxu0 0
      %1678 = vmatpush1.bf16.xpose.msra.mxu0 0
      %1679 = vmatprep.subr.bf16.mxu0 0
      %1680 = vmatpush1.bf16.xpose.msra.mxu0 0
      %1681 = vmatprep.subr.bf16.mxu0 0
      %1682 = vmatpush1.bf16.xpose.msra.mxu0 0
      %1683 = vmatprep.subr.bf16.mxu0 0
      %1684 = vmatpush1.bf16.xpose.msra.mxu0 0
      %1685 = vmatprep.mubr.bf16.mxu0 0
      %1686 = vmatmul.mubr.bf16.gmra.mrb[0].mxu0 %v1630
      %v1687 = vpop.f32.mrb[0].mxu0
      %v1688 = vadd.f32 0.0, %v1687
      %v1689 = vpop.f32.mrb[0].mxu0
      %v1690 = vpop.f32.mrb[0].mxu0
      %v1691 = vadd.f32 0.0, %v1690
      %v1692 = vpop.f32.mrb[0].mxu0
      %1693 = vmatprep.mubr.bf16.mxu0 0
      %1694 = vmatmul.mubr.bf16.gmra.mrb[0].mxu0 %v1633
      %v1695 = vpop.f32.mrb[0].mxu0
      %v1696 = vadd.f32 0.0, %v1695
      %v1697 = vpop.f32.mrb[0].mxu0
      %v1698 = vpop.f32.mrb[0].mxu0
      %v1699 = vadd.f32 0.0, %v1698
      %v1700 = vpop.f32.mrb[0].mxu0
      %1701 = vmatprep.mubr.bf16.mxu0 0
      %1702 = vmatmul.mubr.bf16.gmra.mrb[0].mxu0 %v1636
      %v1703 = vpop.f32.mrb[0].mxu0
      %v1704 = vadd.f32 0.0, %v1703
      %v1705 = vpop.f32.mrb[0].mxu0
      %v1706 = vpop.f32.mrb[0].mxu0
      %v1707 = vadd.f32 0.0, %v1706
      %v1708 = vpop.f32.mrb[0].mxu0
      %1709 = vmatprep.mubr.bf16.mxu0 0
      %1710 = vmatmul.mubr.bf16.gmra.mrb[0].mxu0 %v1639
      %v1711 = vpop.f32.mrb[0].mxu0
      %v1712 = vadd.f32 0.0, %v1711
      %v1713 = vpop.f32.mrb[0].mxu0
      %v1714 = vpop.f32.mrb[0].mxu0
      %v1715 = vadd.f32 0.0, %v1714
      %v1716 = vpop.f32.mrb[0].mxu0
      %1717 = vdwg.mxu0
      %v1718 = vsel %vm1427, %v1688, -inf
      %1719 = vmax.xlane.f32.xlu0 %v1718
      %v1720 = vpop.xlane.xlu0 %1719
      %v1721 = vsel %vm1427, %v1691, -inf
      %1722 = vmax.xlane.f32.xlu0 %v1721
      %v1723 = vpop.xlane.xlu0 %1722
      %v1724 = vsel %vm1427, %v1696, -inf
      %1725 = vmax.xlane.f32.xlu0 %v1724
      %v1726 = vpop.xlane.xlu0 %1725
      %v1727 = vsel %vm1427, %v1699, -inf
      %1728 = vmax.xlane.f32.xlu0 %v1727
      %v1729 = vpop.xlane.xlu0 %1728
      %v1730 = vsel %vm1427, %v1704, -inf
      %1731 = vmax.xlane.f32.xlu0 %v1730
      %v1732 = vpop.xlane.xlu0 %1731
      %v1733 = vsel %vm1427, %v1707, -inf
      %1734 = vmax.xlane.f32.xlu0 %v1733
      %v1735 = vpop.xlane.xlu0 %1734
      %v1736 = vsel %vm1427, %v1712, -inf
      %1737 = vmax.xlane.f32.xlu0 %v1736
      %v1738 = vpop.xlane.xlu0 %1737
      %v1739 = vsel %vm1427, %v1715, -inf
      %1740 = vmax.xlane.f32.xlu0 %v1739
      %v1741 = vpop.xlane.xlu0 %1740
      %v1742 = vsub.f32 %v1688, %v1720
      %v1743 = vsub.f32 %v1691, %v1723
      %v1744 = vsub.f32 %v1696, %v1726
      %v1745 = vsub.f32 %v1699, %v1729
      %v1746 = vsub.f32 %v1704, %v1732
      %v1747 = vsub.f32 %v1707, %v1735
      %v1748 = vsub.f32 %v1712, %v1738
      %v1749 = vsub.f32 %v1715, %v1741
      %v1750 = vmul.f32 %v1742, 1.442695
      %v1751 = vpow.pop %v1750
      %v1752 = vmul.f32 %v1743, 1.442695
      %v1753 = vpow.pop %v1752
      %v1754 = vmul.f32 %v1744, 1.442695
      %v1755 = vpow.pop %v1754
      %v1756 = vmul.f32 %v1745, 1.442695
      %v1757 = vpow.pop %v1756
      %v1758 = vmul.f32 %v1746, 1.442695
      %v1759 = vpow.pop %v1758
      %v1760 = vmul.f32 %v1747, 1.442695
      %v1761 = vpow.pop %v1760
      %v1762 = vmul.f32 %v1748, 1.442695
      %v1763 = vpow.pop %v1762
      %v1764 = vmul.f32 %v1749, 1.442695
      %v1765 = vpow.pop %v1764
      %v1766 = vsel %vm1427, %v1751, 0.0
      %1767 = vadd.xlane.f32.xlu0 %v1766
      %v1768 = vpop.xlane.xlu0 %1767
      %v1769 = vsel %vm1427, %v1753, 0.0
      %1770 = vadd.xlane.f32.xlu0 %v1769
      %v1771 = vpop.xlane.xlu0 %1770
      %v1772 = vsel %vm1427, %v1755, 0.0
      %1773 = vadd.xlane.f32.xlu0 %v1772
      %v1774 = vpop.xlane.xlu0 %1773
      %v1775 = vsel %vm1427, %v1757, 0.0
      %1776 = vadd.xlane.f32.xlu0 %v1775
      %v1777 = vpop.xlane.xlu0 %1776
      %v1778 = vsel %vm1427, %v1759, 0.0
      %1779 = vadd.xlane.f32.xlu0 %v1778
      %v1780 = vpop.xlane.xlu0 %1779
      %v1781 = vsel %vm1427, %v1761, 0.0
      %1782 = vadd.xlane.f32.xlu0 %v1781
      %v1783 = vpop.xlane.xlu0 %1782
      %v1784 = vsel %vm1427, %v1763, 0.0
      %1785 = vadd.xlane.f32.xlu0 %v1784
      %v1786 = vpop.xlane.xlu0 %1785
      %v1787 = vsel %vm1427, %v1765, 0.0
      %1788 = vadd.xlane.f32.xlu0 %v1787
      %v1789 = vpop.xlane.xlu0 %1788
      %v1790 = vrcp.pop %v1768
      %v1791 = vrcp.pop %v1771
      %v1792 = vrcp.pop %v1774
      %v1793 = vrcp.pop %v1777
      %v1794 = vrcp.pop %v1780
      %v1795 = vrcp.pop %v1783
      %v1796 = vrcp.pop %v1786
      %v1797 = vrcp.pop %v1789
      %v1798 = vmul.f32 %v1751, %v1790
      %v1799 = vmul.f32 %v1753, %v1791
      %v1800 = vmul.f32 %v1755, %v1792
      %v1801 = vmul.f32 %v1757, %v1793
      %v1802 = vmul.f32 %v1759, %v1794
      %v1803 = vmul.f32 %v1761, %v1795
      %v1804 = vmul.f32 %v1763, %v1796
      %v1805 = vmul.f32 %v1765, %v1797
      %v1806 = vpack.c.bf16 %v1799, %v1798
      %v1807 = vpack.c.bf16 %v1801, %v1800
      %v1808 = vpack.c.bf16 %v1803, %v1802
      %v1809 = vpack.c.bf16 %v1805, %v1804
      %1810 = vrot.lane.b32.xlu0 %v1321, 56
      %v1811 = vpop.permute.xlu0 %1810
      %1812 = vrot.lane.b32.xlu0 %v1322, 56
      %v1813 = vpop.permute.xlu0 %1812
      %1814 = vrot.lane.b32.xlu0 %v1323, 56
      %v1815 = vpop.permute.xlu0 %1814
      %1816 = vrot.lane.b32.xlu0 %v1324, 56
      %v1817 = vpop.permute.xlu0 %1816
      %v1823 = vsel %vm1427, %v1806, 0
      %v1826 = vsel %vm1427, %v1807, 0
      %v1829 = vsel %vm1427, %v1808, 0
      %v1832 = vsel %vm1427, %v1809, 0
      %1834 = vmatprep.subr.bf16.mxu0 0
      %1835 = vmatpush1.bf16.msra.mxu0 %v1811
      %1836 = vmatprep.subr.bf16.mxu0 0
      %1837 = vmatpush1.bf16.msra.mxu0 %v1813
      %1838 = vmatprep.subr.bf16.mxu0 0
      %1839 = vmatpush1.bf16.msra.mxu0 %v1815
      %1840 = vmatprep.subr.bf16.mxu0 0
      %1841 = vmatpush1.bf16.msra.mxu0 %v1817
      %1842 = vmatprep.subr.bf16.mxu0 0
      %1843 = vmatpush1.bf16.msra.mxu0 0
      %1844 = vmatprep.subr.bf16.mxu0 0
      %1845 = vmatpush1.bf16.msra.mxu0 0
      %1846 = vmatprep.subr.bf16.mxu0 0
      %1847 = vmatpush1.bf16.msra.mxu0 0
      %1848 = vmatprep.subr.bf16.mxu0 0
      %1849 = vmatpush1.bf16.msra.mxu0 0
      %1850 = vmatprep.subr.bf16.mxu0 0
      %1851 = vmatpush1.bf16.msra.mxu0 0
      %1852 = vmatprep.subr.bf16.mxu0 0
      %1853 = vmatpush1.bf16.msra.mxu0 0
      %1854 = vmatprep.subr.bf16.mxu0 0
      %1855 = vmatpush1.bf16.msra.mxu0 0
      %1856 = vmatprep.subr.bf16.mxu0 0
      %1857 = vmatpush1.bf16.msra.mxu0 0
      %1858 = vmatprep.subr.bf16.mxu0 0
      %1859 = vmatpush1.bf16.msra.mxu0 0
      %1860 = vmatprep.subr.bf16.mxu0 0
      %1861 = vmatpush1.bf16.msra.mxu0 0
      %1862 = vmatprep.subr.bf16.mxu0 0
      %1863 = vmatpush1.bf16.msra.mxu0 0
      %1864 = vmatprep.subr.bf16.mxu0 0
      %1865 = vmatpush1.bf16.msra.mxu0 0
      %1866 = vmatprep.mubr.bf16.mxu0 0
      %1867 = vmatmul.mubr.bf16.gmra.mrb[0].mxu0 %v1823
      %v1868 = vpop.f32.mrb[0].mxu0
      %v1869 = vadd.f32 0.0, %v1868
      %v1870 = vpop.f32.mrb[0].mxu0
      %v1871 = vpop.f32.mrb[0].mxu0
      %v1872 = vadd.f32 0.0, %v1871
      %v1873 = vpop.f32.mrb[0].mxu0
      %1874 = vmatprep.mubr.bf16.mxu0 0
      %1875 = vmatmul.mubr.bf16.gmra.mrb[0].mxu0 %v1826
      %v1876 = vpop.f32.mrb[0].mxu0
      %v1877 = vadd.f32 0.0, %v1876
      %v1878 = vpop.f32.mrb[0].mxu0
      %v1879 = vpop.f32.mrb[0].mxu0
      %v1880 = vadd.f32 0.0, %v1879
      %v1881 = vpop.f32.mrb[0].mxu0
      %1882 = vmatprep.mubr.bf16.mxu0 0
      %1883 = vmatmul.mubr.bf16.gmra.mrb[0].mxu0 %v1829
      %v1884 = vpop.f32.mrb[0].mxu0
      %v1885 = vadd.f32 0.0, %v1884
      %v1886 = vpop.f32.mrb[0].mxu0
      %v1887 = vpop.f32.mrb[0].mxu0
      %v1888 = vadd.f32 0.0, %v1887
      %v1889 = vpop.f32.mrb[0].mxu0
      %1890 = vmatprep.mubr.bf16.mxu0 0
      %1891 = vmatmul.mubr.bf16.gmra.mrb[0].mxu0 %v1832
      %v1892 = vpop.f32.mrb[0].mxu0
      %v1893 = vadd.f32 0.0, %v1892
      %v1894 = vpop.f32.mrb[0].mxu0
      %v1895 = vpop.f32.mrb[0].mxu0
      %v1896 = vadd.f32 0.0, %v1895
      %v1897 = vpop.f32.mrb[0].mxu0
      %1898 = vdwg.mxu0
      %v1899 = vpack.c.bf16 %v1872, %v1869
      %v1900 = vpack.c.bf16 %v1880, %v1877
      %v1901 = vpack.c.bf16 %v1888, %v1885
      %v1902 = vpack.c.bf16 %v1896, %v1893
      %v1904 = vsel %vm1337, %v1899, 0
      %v1907 = vsel %vm1337, %v1900, 0
      %v1910 = vsel %vm1337, %v1901, 0
      %v1913 = vsel %vm1337, %v1902, 0
      %vm1915 = vcmask 1043456
      %v1917 = vsel %vm1915, %v1318, 0
      %1919 = vmatprep.subr.bf16.mxu0 0
      %1920 = vmatpush1.bf16.msra.mxu0 %v1917
      %1921 = vmatprep.subr.bf16.mxu0 0
      %1922 = vmatpush1.bf16.msra.mxu0 0
      %1923 = vmatprep.subr.bf16.mxu0 0
      %1924 = vmatpush1.bf16.msra.mxu0 0
      %1925 = vmatprep.subr.bf16.mxu0 0
      %1926 = vmatpush1.bf16.msra.mxu0 0
      %1927 = vmatprep.subr.bf16.mxu0 0
      %1928 = vmatpush1.bf16.msra.mxu0 0
      %1929 = vmatprep.subr.bf16.mxu0 0
      %1930 = vmatpush1.bf16.msra.mxu0 0
      %1931 = vmatprep.subr.bf16.mxu0 0
      %1932 = vmatpush1.bf16.msra.mxu0 0
      %1933 = vmatprep.subr.bf16.mxu0 0
      %1934 = vmatpush1.bf16.msra.mxu0 0
      %1935 = vmatprep.subr.bf16.mxu0 0
      %1936 = vmatpush1.bf16.msra.mxu0 0
      %1937 = vmatprep.subr.bf16.mxu0 0
      %1938 = vmatpush1.bf16.msra.mxu0 0
      %1939 = vmatprep.subr.bf16.mxu0 0
      %1940 = vmatpush1.bf16.msra.mxu0 0
      %1941 = vmatprep.subr.bf16.mxu0 0
      %1942 = vmatpush1.bf16.msra.mxu0 0
      %1943 = vmatprep.subr.bf16.mxu0 0
      %1944 = vmatpush1.bf16.msra.mxu0 0
      %1945 = vmatprep.subr.bf16.mxu0 0
      %1946 = vmatpush1.bf16.msra.mxu0 0
      %1947 = vmatprep.subr.bf16.mxu0 0
      %1948 = vmatpush1.bf16.msra.mxu0 0
      %1949 = vmatprep.subr.bf16.mxu0 0
      %1950 = vmatpush1.bf16.msra.mxu0 0
      %1951 = vmatprep.mubr.bf16.mxu0 0
      %1952 = vmatmul.mubr.bf16.gmra.mrb[0].mxu0 %v1904
      %v1953 = vpop.f32.mrb[0].mxu0
      %v1954 = vadd.f32 0.0, %v1953
      %v1955 = vpop.f32.mrb[0].mxu0
      %v1956 = vpop.f32.mrb[0].mxu0
      %v1957 = vadd.f32 0.0, %v1956
      %v1958 = vpop.f32.mrb[0].mxu0
      %1959 = vmatprep.mubr.bf16.mxu0 0
      %1960 = vmatmul.mubr.bf16.gmra.mrb[0].mxu0 %v1907
      %v1961 = vpop.f32.mrb[0].mxu0
      %v1962 = vadd.f32 0.0, %v1961
      %v1963 = vpop.f32.mrb[0].mxu0
      %v1964 = vpop.f32.mrb[0].mxu0
      %v1965 = vadd.f32 0.0, %v1964
      %v1966 = vpop.f32.mrb[0].mxu0
      %1967 = vmatprep.mubr.bf16.mxu0 0
      %1968 = vmatmul.mubr.bf16.gmra.mrb[0].mxu0 %v1910
      %v1969 = vpop.f32.mrb[0].mxu0
      %v1970 = vadd.f32 0.0, %v1969
      %v1971 = vpop.f32.mrb[0].mxu0
      %v1972 = vpop.f32.mrb[0].mxu0
      %v1973 = vadd.f32 0.0, %v1972
      %v1974 = vpop.f32.mrb[0].mxu0
      %1975 = vmatprep.mubr.bf16.mxu0 0
      %1976 = vmatmul.mubr.bf16.gmra.mrb[0].mxu0 %v1913
      %v1977 = vpop.f32.mrb[0].mxu0
      %v1978 = vadd.f32 0.0, %v1977
      %v1979 = vpop.f32.mrb[0].mxu0
      %v1980 = vpop.f32.mrb[0].mxu0
      %v1981 = vadd.f32 0.0, %v1980
      %v1982 = vpop.f32.mrb[0].mxu0
      %1983 = vdwg.mxu0
      %v1985 = vsel %vm1337, %v1609, 0
      %v1988 = vsel %vm1337, %v1610, 0
      %v1991 = vsel %vm1337, %v1611, 0
      %v1994 = vsel %vm1337, %v1612, 0
      %v1997 = vsel %vm1915, %v1317, 0
      %1999 = vmatprep.subr.bf16.mxu0 0
      %2000 = vmatpush1.bf16.msra.mxu0 %v1997
      %2001 = vmatprep.subr.bf16.mxu0 0
      %2002 = vmatpush1.bf16.msra.mxu0 0
      %2003 = vmatprep.subr.bf16.mxu0 0
      %2004 = vmatpush1.bf16.msra.mxu0 0
      %2005 = vmatprep.subr.bf16.mxu0 0
      %2006 = vmatpush1.bf16.msra.mxu0 0
      %2007 = vmatprep.subr.bf16.mxu0 0
      %2008 = vmatpush1.bf16.msra.mxu0 0
      %2009 = vmatprep.subr.bf16.mxu0 0
      %2010 = vmatpush1.bf16.msra.mxu0 0
      %2011 = vmatprep.subr.bf16.mxu0 0
      %2012 = vmatpush1.bf16.msra.mxu0 0
      %2013 = vmatprep.subr.bf16.mxu0 0
      %2014 = vmatpush1.bf16.msra.mxu0 0
      %2015 = vmatprep.subr.bf16.mxu0 0
      %2016 = vmatpush1.bf16.msra.mxu0 0
      %2017 = vmatprep.subr.bf16.mxu0 0
      %2018 = vmatpush1.bf16.msra.mxu0 0
      %2019 = vmatprep.subr.bf16.mxu0 0
      %2020 = vmatpush1.bf16.msra.mxu0 0
      %2021 = vmatprep.subr.bf16.mxu0 0
      %2022 = vmatpush1.bf16.msra.mxu0 0
      %2023 = vmatprep.subr.bf16.mxu0 0
      %2024 = vmatpush1.bf16.msra.mxu0 0
      %2025 = vmatprep.subr.bf16.mxu0 0
      %2026 = vmatpush1.bf16.msra.mxu0 0
      %2027 = vmatprep.subr.bf16.mxu0 0
      %2028 = vmatpush1.bf16.msra.mxu0 0
      %2029 = vmatprep.subr.bf16.mxu0 0
      %2030 = vmatpush1.bf16.msra.mxu0 0
      %2031 = vmatprep.mubr.bf16.mxu0 0
      %2032 = vmatmul.mubr.bf16.gmra.mrb[0].mxu0 %v1985
      %v2033 = vpop.f32.mrb[0].mxu0
      %v2034 = vadd.f32 %v1954, %v2033
      %v2035 = vpop.f32.mrb[0].mxu0
      %v2036 = vpop.f32.mrb[0].mxu0
      %v2037 = vadd.f32 %v1957, %v2036
      %v2038 = vpop.f32.mrb[0].mxu0
      %2039 = vmatprep.mubr.bf16.mxu0 0
      %2040 = vmatmul.mubr.bf16.gmra.mrb[0].mxu0 %v1988
      %v2041 = vpop.f32.mrb[0].mxu0
      %v2042 = vadd.f32 %v1962, %v2041
      %v2043 = vpop.f32.mrb[0].mxu0
      %v2044 = vpop.f32.mrb[0].mxu0
      %v2045 = vadd.f32 %v1965, %v2044
      %v2046 = vpop.f32.mrb[0].mxu0
      %2047 = vmatprep.mubr.bf16.mxu0 0
      %2048 = vmatmul.mubr.bf16.gmra.mrb[0].mxu0 %v1991
      %v2049 = vpop.f32.mrb[0].mxu0
      %v2050 = vadd.f32 %v1970, %v2049
      %v2051 = vpop.f32.mrb[0].mxu0
      %v2052 = vpop.f32.mrb[0].mxu0
      %v2053 = vadd.f32 %v1973, %v2052
      %v2054 = vpop.f32.mrb[0].mxu0
      %2055 = vmatprep.mubr.bf16.mxu0 0
      %2056 = vmatmul.mubr.bf16.gmra.mrb[0].mxu0 %v1994
      %v2057 = vpop.f32.mrb[0].mxu0
      %v2058 = vadd.f32 %v1978, %v2057
      %v2059 = vpop.f32.mrb[0].mxu0
      %v2060 = vpop.f32.mrb[0].mxu0
      %v2061 = vadd.f32 %v1981, %v2060
      %v2062 = vpop.f32.mrb[0].mxu0
      %2063 = vdwg.mxu0
      %2064 = vrot.lane.b32.xlu0 %v1321, 112
      %v2065 = vpop.permute.xlu0 %2064
      %2066 = vrot.lane.b32.xlu0 %v1322, 112
      %v2067 = vpop.permute.xlu0 %2066
      %2068 = vrot.lane.b32.xlu0 %v1323, 112
      %v2069 = vpop.permute.xlu0 %2068
      %2070 = vrot.lane.b32.xlu0 %v1324, 112
      %v2071 = vpop.permute.xlu0 %2070
      %2072 = vrot.lane.b32.xlu0 %v1321, 80
      %v2073 = vpop.permute.xlu0 %2072
      %2074 = vrot.lane.b32.xlu0 %v1322, 80
      %v2075 = vpop.permute.xlu0 %2074
      %2076 = vrot.lane.b32.xlu0 %v1323, 80
      %v2077 = vpop.permute.xlu0 %2076
      %2078 = vrot.lane.b32.xlu0 %v1324, 80
      %v2079 = vpop.permute.xlu0 %2078
      %v2081 = vsel %vm1337, %v2065, 0
      %v2084 = vsel %vm1337, %v2067, 0
      %v2087 = vsel %vm1337, %v2069, 0
      %v2090 = vsel %vm1337, %v2071, 0
      %v2093 = vsel %vm1337, %v2073, 0
      %v2096 = vsel %vm1337, %v2075, 0
      %v2099 = vsel %vm1337, %v2077, 0
      %v2102 = vsel %vm1337, %v2079, 0
      %2104 = vmatprep.subr.bf16.mxu0 0
      %2105 = vmatpush1.bf16.xpose.msra.mxu0 %v2093
      %2106 = vmatprep.subr.bf16.mxu0 0
      %2107 = vmatpush1.bf16.xpose.msra.mxu0 %v2096
      %2108 = vmatprep.subr.bf16.mxu0 0
      %2109 = vmatpush1.bf16.xpose.msra.mxu0 %v2099
      %2110 = vmatprep.subr.bf16.mxu0 0
      %2111 = vmatpush1.bf16.xpose.msra.mxu0 %v2102
      %2112 = vmatprep.subr.bf16.mxu0 0
      %2113 = vmatpush1.bf16.xpose.msra.mxu0 0
      %2114 = vmatprep.subr.bf16.mxu0 0
      %2115 = vmatpush1.bf16.xpose.msra.mxu0 0
      %2116 = vmatprep.subr.bf16.mxu0 0
      %2117 = vmatpush1.bf16.xpose.msra.mxu0 0
      %2118 = vmatprep.subr.bf16.mxu0 0
      %2119 = vmatpush1.bf16.xpose.msra.mxu0 0
      %2120 = vmatprep.subr.bf16.mxu0 0
      %2121 = vmatpush1.bf16.xpose.msra.mxu0 0
      %2122 = vmatprep.subr.bf16.mxu0 0
      %2123 = vmatpush1.bf16.xpose.msra.mxu0 0
      %2124 = vmatprep.subr.bf16.mxu0 0
      %2125 = vmatpush1.bf16.xpose.msra.mxu0 0
      %2126 = vmatprep.subr.bf16.mxu0 0
      %2127 = vmatpush1.bf16.xpose.msra.mxu0 0
      %2128 = vmatprep.subr.bf16.mxu0 0
      %2129 = vmatpush1.bf16.xpose.msra.mxu0 0
      %2130 = vmatprep.subr.bf16.mxu0 0
      %2131 = vmatpush1.bf16.xpose.msra.mxu0 0
      %2132 = vmatprep.subr.bf16.mxu0 0
      %2133 = vmatpush1.bf16.xpose.msra.mxu0 0
      %2134 = vmatprep.subr.bf16.mxu0 0
      %2135 = vmatpush1.bf16.xpose.msra.mxu0 0
      %2136 = vmatprep.mubr.bf16.mxu0 0
      %2137 = vmatmul.mubr.bf16.gmra.mrb[0].mxu0 %v2081
      %v2138 = vpop.f32.mrb[0].mxu0
      %v2139 = vadd.f32 0.0, %v2138
      %v2140 = vpop.f32.mrb[0].mxu0
      %v2141 = vpop.f32.mrb[0].mxu0
      %v2142 = vadd.f32 0.0, %v2141
      %v2143 = vpop.f32.mrb[0].mxu0
      %2144 = vmatprep.mubr.bf16.mxu0 0
      %2145 = vmatmul.mubr.bf16.gmra.mrb[0].mxu0 %v2084
      %v2146 = vpop.f32.mrb[0].mxu0
      %v2147 = vadd.f32 0.0, %v2146
      %v2148 = vpop.f32.mrb[0].mxu0
      %v2149 = vpop.f32.mrb[0].mxu0
      %v2150 = vadd.f32 0.0, %v2149
      %v2151 = vpop.f32.mrb[0].mxu0
      %2152 = vmatprep.mubr.bf16.mxu0 0
      %2153 = vmatmul.mubr.bf16.gmra.mrb[0].mxu0 %v2087
      %v2154 = vpop.f32.mrb[0].mxu0
      %v2155 = vadd.f32 0.0, %v2154
      %v2156 = vpop.f32.mrb[0].mxu0
      %v2157 = vpop.f32.mrb[0].mxu0
      %v2158 = vadd.f32 0.0, %v2157
      %v2159 = vpop.f32.mrb[0].mxu0
      %2160 = vmatprep.mubr.bf16.mxu0 0
      %2161 = vmatmul.mubr.bf16.gmra.mrb[0].mxu0 %v2090
      %v2162 = vpop.f32.mrb[0].mxu0
      %v2163 = vadd.f32 0.0, %v2162
      %v2164 = vpop.f32.mrb[0].mxu0
      %v2165 = vpop.f32.mrb[0].mxu0
      %v2166 = vadd.f32 0.0, %v2165
      %v2167 = vpop.f32.mrb[0].mxu0
      %2168 = vdwg.mxu0
      %v2169 = vsel %vm1427, %v2139, -inf
      %2170 = vmax.xlane.f32.xlu0 %v2169
      %v2171 = vpop.xlane.xlu0 %2170
      %v2172 = vsel %vm1427, %v2142, -inf
      %2173 = vmax.xlane.f32.xlu0 %v2172
      %v2174 = vpop.xlane.xlu0 %2173
      %v2175 = vsel %vm1427, %v2147, -inf
      %2176 = vmax.xlane.f32.xlu0 %v2175
      %v2177 = vpop.xlane.xlu0 %2176
      %v2178 = vsel %vm1427, %v2150, -inf
      %2179 = vmax.xlane.f32.xlu0 %v2178
      %v2180 = vpop.xlane.xlu0 %2179
      %v2181 = vsel %vm1427, %v2155, -inf
      %2182 = vmax.xlane.f32.xlu0 %v2181
      %v2183 = vpop.xlane.xlu0 %2182
      %v2184 = vsel %vm1427, %v2158, -inf
      %2185 = vmax.xlane.f32.xlu0 %v2184
      %v2186 = vpop.xlane.xlu0 %2185
      %v2187 = vsel %vm1427, %v2163, -inf
      %2188 = vmax.xlane.f32.xlu0 %v2187
      %v2189 = vpop.xlane.xlu0 %2188
      %v2190 = vsel %vm1427, %v2166, -inf
      %2191 = vmax.xlane.f32.xlu0 %v2190
      %v2192 = vpop.xlane.xlu0 %2191
      %v2193 = vsub.f32 %v2139, %v2171
      %v2194 = vsub.f32 %v2142, %v2174
      %v2195 = vsub.f32 %v2147, %v2177
      %v2196 = vsub.f32 %v2150, %v2180
      %v2197 = vsub.f32 %v2155, %v2183
      %v2198 = vsub.f32 %v2158, %v2186
      %v2199 = vsub.f32 %v2163, %v2189
      %v2200 = vsub.f32 %v2166, %v2192
      %v2201 = vmul.f32 %v2193, 1.442695
      %v2202 = vpow.pop %v2201
      %v2203 = vmul.f32 %v2194, 1.442695
      %v2204 = vpow.pop %v2203
      %v2205 = vmul.f32 %v2195, 1.442695
      %v2206 = vpow.pop %v2205
      %v2207 = vmul.f32 %v2196, 1.442695
      %v2208 = vpow.pop %v2207
      %v2209 = vmul.f32 %v2197, 1.442695
      %v2210 = vpow.pop %v2209
      %v2211 = vmul.f32 %v2198, 1.442695
      %v2212 = vpow.pop %v2211
      %v2213 = vmul.f32 %v2199, 1.442695
      %v2214 = vpow.pop %v2213
      %v2215 = vmul.f32 %v2200, 1.442695
      %v2216 = vpow.pop %v2215
      %v2217 = vsel %vm1427, %v2202, 0.0
      %2218 = vadd.xlane.f32.xlu0 %v2217
      %v2219 = vpop.xlane.xlu0 %2218
      %v2220 = vsel %vm1427, %v2204, 0.0
      %2221 = vadd.xlane.f32.xlu0 %v2220
      %v2222 = vpop.xlane.xlu0 %2221
      %v2223 = vsel %vm1427, %v2206, 0.0
      %2224 = vadd.xlane.f32.xlu0 %v2223
      %v2225 = vpop.xlane.xlu0 %2224
      %v2226 = vsel %vm1427, %v2208, 0.0
      %2227 = vadd.xlane.f32.xlu0 %v2226
      %v2228 = vpop.xlane.xlu0 %2227
      %v2229 = vsel %vm1427, %v2210, 0.0
      %2230 = vadd.xlane.f32.xlu0 %v2229
      %v2231 = vpop.xlane.xlu0 %2230
      %v2232 = vsel %vm1427, %v2212, 0.0
      %2233 = vadd.xlane.f32.xlu0 %v2232
      %v2234 = vpop.xlane.xlu0 %2233
      %v2235 = vsel %vm1427, %v2214, 0.0
      %2236 = vadd.xlane.f32.xlu0 %v2235
      %v2237 = vpop.xlane.xlu0 %2236
      %v2238 = vsel %vm1427, %v2216, 0.0
      %2239 = vadd.xlane.f32.xlu0 %v2238
      %v2240 = vpop.xlane.xlu0 %2239
      %v2241 = vrcp.pop %v2219
      %v2242 = vrcp.pop %v2222
      %v2243 = vrcp.pop %v2225
      %v2244 = vrcp.pop %v2228
      %v2245 = vrcp.pop %v2231
      %v2246 = vrcp.pop %v2234
      %v2247 = vrcp.pop %v2237
      %v2248 = vrcp.pop %v2240
      %v2249 = vmul.f32 %v2202, %v2241
      %v2250 = vmul.f32 %v2204, %v2242
      %v2251 = vmul.f32 %v2206, %v2243
      %v2252 = vmul.f32 %v2208, %v2244
      %v2253 = vmul.f32 %v2210, %v2245
      %v2254 = vmul.f32 %v2212, %v2246
      %v2255 = vmul.f32 %v2214, %v2247
      %v2256 = vmul.f32 %v2216, %v2248
      %v2257 = vpack.c.bf16 %v2250, %v2249
      %v2258 = vpack.c.bf16 %v2252, %v2251
      %v2259 = vpack.c.bf16 %v2254, %v2253
      %v2260 = vpack.c.bf16 %v2256, %v2255
      %2261 = vrot.lane.b32.xlu0 %v1321, 48
      %v2262 = vpop.permute.xlu0 %2261
      %2263 = vrot.lane.b32.xlu0 %v1322, 48
      %v2264 = vpop.permute.xlu0 %2263
      %2265 = vrot.lane.b32.xlu0 %v1323, 48
      %v2266 = vpop.permute.xlu0 %2265
      %2267 = vrot.lane.b32.xlu0 %v1324, 48
      %v2268 = vpop.permute.xlu0 %2267
      %v2274 = vsel %vm1427, %v2257, 0
      %v2277 = vsel %vm1427, %v2258, 0
      %v2280 = vsel %vm1427, %v2259, 0
      %v2283 = vsel %vm1427, %v2260, 0
      %2285 = vmatprep.subr.bf16.mxu0 0
      %2286 = vmatpush1.bf16.msra.mxu0 %v2262
      %2287 = vmatprep.subr.bf16.mxu0 0
      %2288 = vmatpush1.bf16.msra.mxu0 %v2264
      %2289 = vmatprep.subr.bf16.mxu0 0
      %2290 = vmatpush1.bf16.msra.mxu0 %v2266
      %2291 = vmatprep.subr.bf16.mxu0 0
      %2292 = vmatpush1.bf16.msra.mxu0 %v2268
      %2293 = vmatprep.subr.bf16.mxu0 0
      %2294 = vmatpush1.bf16.msra.mxu0 0
      %2295 = vmatprep.subr.bf16.mxu0 0
      %2296 = vmatpush1.bf16.msra.mxu0 0
      %2297 = vmatprep.subr.bf16.mxu0 0
      %2298 = vmatpush1.bf16.msra.mxu0 0
      %2299 = vmatprep.subr.bf16.mxu0 0
      %2300 = vmatpush1.bf16.msra.mxu0 0
      %2301 = vmatprep.subr.bf16.mxu0 0
      %2302 = vmatpush1.bf16.msra.mxu0 0
      %2303 = vmatprep.subr.bf16.mxu0 0
      %2304 = vmatpush1.bf16.msra.mxu0 0
      %2305 = vmatprep.subr.bf16.mxu0 0
      %2306 = vmatpush1.bf16.msra.mxu0 0
      %2307 = vmatprep.subr.bf16.mxu0 0
      %2308 = vmatpush1.bf16.msra.mxu0 0
      %2309 = vmatprep.subr.bf16.mxu0 0
      %2310 = vmatpush1.bf16.msra.mxu0 0
      %2311 = vmatprep.subr.bf16.mxu0 0
      %2312 = vmatpush1.bf16.msra.mxu0 0
      %2313 = vmatprep.subr.bf16.mxu0 0
      %2314 = vmatpush1.bf16.msra.mxu0 0
      %2315 = vmatprep.subr.bf16.mxu0 0
      %2316 = vmatpush1.bf16.msra.mxu0 0
      %2317 = vmatprep.mubr.bf16.mxu0 0
      %2318 = vmatmul.mubr.bf16.gmra.mrb[0].mxu0 %v2274
      %v2319 = vpop.f32.mrb[0].mxu0
      %v2320 = vadd.f32 0.0, %v2319
      %v2321 = vpop.f32.mrb[0].mxu0
      %v2322 = vpop.f32.mrb[0].mxu0
      %v2323 = vadd.f32 0.0, %v2322
      %v2324 = vpop.f32.mrb[0].mxu0
      %2325 = vmatprep.mubr.bf16.mxu0 0
      %2326 = vmatmul.mubr.bf16.gmra.mrb[0].mxu0 %v2277
      %v2327 = vpop.f32.mrb[0].mxu0
      %v2328 = vadd.f32 0.0, %v2327
      %v2329 = vpop.f32.mrb[0].mxu0
      %v2330 = vpop.f32.mrb[0].mxu0
      %v2331 = vadd.f32 0.0, %v2330
      %v2332 = vpop.f32.mrb[0].mxu0
      %2333 = vmatprep.mubr.bf16.mxu0 0
      %2334 = vmatmul.mubr.bf16.gmra.mrb[0].mxu0 %v2280
      %v2335 = vpop.f32.mrb[0].mxu0
      %v2336 = vadd.f32 0.0, %v2335
      %v2337 = vpop.f32.mrb[0].mxu0
      %v2338 = vpop.f32.mrb[0].mxu0
      %v2339 = vadd.f32 0.0, %v2338
      %v2340 = vpop.f32.mrb[0].mxu0
      %2341 = vmatprep.mubr.bf16.mxu0 0
      %2342 = vmatmul.mubr.bf16.gmra.mrb[0].mxu0 %v2283
      %v2343 = vpop.f32.mrb[0].mxu0
      %v2344 = vadd.f32 0.0, %v2343
      %v2345 = vpop.f32.mrb[0].mxu0
      %v2346 = vpop.f32.mrb[0].mxu0
      %v2347 = vadd.f32 0.0, %v2346
      %v2348 = vpop.f32.mrb[0].mxu0
      %2349 = vdwg.mxu0
      %v2350 = vpack.c.bf16 %v2323, %v2320
      %v2351 = vpack.c.bf16 %v2331, %v2328
      %v2352 = vpack.c.bf16 %v2339, %v2336
      %v2353 = vpack.c.bf16 %v2347, %v2344
      %v2355 = vsel %vm1337, %v2350, 0
      %v2358 = vsel %vm1337, %v2351, 0
      %v2361 = vsel %vm1337, %v2352, 0
      %v2364 = vsel %vm1337, %v2353, 0
      %v2367 = vsel %vm1915, %v1319, 0
      %2369 = vmatprep.subr.bf16.mxu0 0
      %2370 = vmatpush1.bf16.msra.mxu0 %v2367
      %2371 = vmatprep.subr.bf16.mxu0 0
      %2372 = vmatpush1.bf16.msra.mxu0 0
      %2373 = vmatprep.subr.bf16.mxu0 0
      %2374 = vmatpush1.bf16.msra.mxu0 0
      %2375 = vmatprep.subr.bf16.mxu0 0
      %2376 = vmatpush1.bf16.msra.mxu0 0
      %2377 = vmatprep.subr.bf16.mxu0 0
      %2378 = vmatpush1.bf16.msra.mxu0 0
      %2379 = vmatprep.subr.bf16.mxu0 0
      %2380 = vmatpush1.bf16.msra.mxu0 0
      %2381 = vmatprep.subr.bf16.mxu0 0
      %2382 = vmatpush1.bf16.msra.mxu0 0
      %2383 = vmatprep.subr.bf16.mxu0 0
      %2384 = vmatpush1.bf16.msra.mxu0 0
      %2385 = vmatprep.subr.bf16.mxu0 0
      %2386 = vmatpush1.bf16.msra.mxu0 0
      %2387 = vmatprep.subr.bf16.mxu0 0
      %2388 = vmatpush1.bf16.msra.mxu0 0
      %2389 = vmatprep.subr.bf16.mxu0 0
      %2390 = vmatpush1.bf16.msra.mxu0 0
      %2391 = vmatprep.subr.bf16.mxu0 0
      %2392 = vmatpush1.bf16.msra.mxu0 0
      %2393 = vmatprep.subr.bf16.mxu0 0
      %2394 = vmatpush1.bf16.msra.mxu0 0
      %2395 = vmatprep.subr.bf16.mxu0 0
      %2396 = vmatpush1.bf16.msra.mxu0 0
      %2397 = vmatprep.subr.bf16.mxu0 0
      %2398 = vmatpush1.bf16.msra.mxu0 0
      %2399 = vmatprep.subr.bf16.mxu0 0
      %2400 = vmatpush1.bf16.msra.mxu0 0
      %2401 = vmatprep.mubr.bf16.mxu0 0
      %2402 = vmatmul.mubr.bf16.gmra.mrb[0].mxu0 %v2355
      %v2403 = vpop.f32.mrb[0].mxu0
      %v2404 = vadd.f32 0.0, %v2403
      %v2405 = vpop.f32.mrb[0].mxu0
      %v2406 = vpop.f32.mrb[0].mxu0
      %v2407 = vadd.f32 0.0, %v2406
      %v2408 = vpop.f32.mrb[0].mxu0
      %2409 = vmatprep.mubr.bf16.mxu0 0
      %2410 = vmatmul.mubr.bf16.gmra.mrb[0].mxu0 %v2358
      %v2411 = vpop.f32.mrb[0].mxu0
      %v2412 = vadd.f32 0.0, %v2411
      %v2413 = vpop.f32.mrb[0].mxu0
      %v2414 = vpop.f32.mrb[0].mxu0
      %v2415 = vadd.f32 0.0, %v2414
      %v2416 = vpop.f32.mrb[0].mxu0
      %2417 = vmatprep.mubr.bf16.mxu0 0
      %2418 = vmatmul.mubr.bf16.gmra.mrb[0].mxu0 %v2361
      %v2419 = vpop.f32.mrb[0].mxu0
      %v2420 = vadd.f32 0.0, %v2419
      %v2421 = vpop.f32.mrb[0].mxu0
      %v2422 = vpop.f32.mrb[0].mxu0
      %v2423 = vadd.f32 0.0, %v2422
      %v2424 = vpop.f32.mrb[0].mxu0
      %2425 = vmatprep.mubr.bf16.mxu0 0
      %2426 = vmatmul.mubr.bf16.gmra.mrb[0].mxu0 %v2364
      %v2427 = vpop.f32.mrb[0].mxu0
      %v2428 = vadd.f32 0.0, %v2427
      %v2429 = vpop.f32.mrb[0].mxu0
      %v2430 = vpop.f32.mrb[0].mxu0
      %v2431 = vadd.f32 0.0, %v2430
      %v2432 = vpop.f32.mrb[0].mxu0
      %2433 = vdwg.mxu0
      %v2434 = vadd.f32 %v2034, %v2404
      %v2435 = vadd.f32 %v2037, %v2407
      %v2436 = vadd.f32 %v2042, %v2412
      %v2437 = vadd.f32 %v2045, %v2415
      %v2438 = vadd.f32 %v2050, %v2420
      %v2439 = vadd.f32 %v2053, %v2423
      %v2440 = vadd.f32 %v2058, %v2428
      %v2441 = vadd.f32 %v2061, %v2431
      %2442 = vrot.lane.b32.xlu0 %v1321, 104
      %v2443 = vpop.permute.xlu0 %2442
      %2444 = vrot.lane.b32.xlu0 %v1322, 104
      %v2445 = vpop.permute.xlu0 %2444
      %2446 = vrot.lane.b32.xlu0 %v1323, 104
      %v2447 = vpop.permute.xlu0 %2446
      %2448 = vrot.lane.b32.xlu0 %v1324, 104
      %v2449 = vpop.permute.xlu0 %2448
      %2450 = vrot.lane.b32.xlu0 %v1321, 72
      %v2451 = vpop.permute.xlu0 %2450
      %2452 = vrot.lane.b32.xlu0 %v1322, 72
      %v2453 = vpop.permute.xlu0 %2452
      %2454 = vrot.lane.b32.xlu0 %v1323, 72
      %v2455 = vpop.permute.xlu0 %2454
      %2456 = vrot.lane.b32.xlu0 %v1324, 72
      %v2457 = vpop.permute.xlu0 %2456
      %v2459 = vsel %vm1337, %v2443, 0
      %v2462 = vsel %vm1337, %v2445, 0
      %v2465 = vsel %vm1337, %v2447, 0
      %v2468 = vsel %vm1337, %v2449, 0
      %v2471 = vsel %vm1337, %v2451, 0
      %v2474 = vsel %vm1337, %v2453, 0
      %v2477 = vsel %vm1337, %v2455, 0
      %v2480 = vsel %vm1337, %v2457, 0
      %2482 = vmatprep.subr.bf16.mxu0 0
      %2483 = vmatpush1.bf16.xpose.msra.mxu0 %v2471
      %2484 = vmatprep.subr.bf16.mxu0 0
      %2485 = vmatpush1.bf16.xpose.msra.mxu0 %v2474
      %2486 = vmatprep.subr.bf16.mxu0 0
      %2487 = vmatpush1.bf16.xpose.msra.mxu0 %v2477
      %2488 = vmatprep.subr.bf16.mxu0 0
      %2489 = vmatpush1.bf16.xpose.msra.mxu0 %v2480
      %2490 = vmatprep.subr.bf16.mxu0 0
      %2491 = vmatpush1.bf16.xpose.msra.mxu0 0
      %2492 = vmatprep.subr.bf16.mxu0 0
      %2493 = vmatpush1.bf16.xpose.msra.mxu0 0
      %2494 = vmatprep.subr.bf16.mxu0 0
      %2495 = vmatpush1.bf16.xpose.msra.mxu0 0
      %2496 = vmatprep.subr.bf16.mxu0 0
      %2497 = vmatpush1.bf16.xpose.msra.mxu0 0
      %2498 = vmatprep.subr.bf16.mxu0 0
      %2499 = vmatpush1.bf16.xpose.msra.mxu0 0
      %2500 = vmatprep.subr.bf16.mxu0 0
      %2501 = vmatpush1.bf16.xpose.msra.mxu0 0
      %2502 = vmatprep.subr.bf16.mxu0 0
      %2503 = vmatpush1.bf16.xpose.msra.mxu0 0
      %2504 = vmatprep.subr.bf16.mxu0 0
      %2505 = vmatpush1.bf16.xpose.msra.mxu0 0
      %2506 = vmatprep.subr.bf16.mxu0 0
      %2507 = vmatpush1.bf16.xpose.msra.mxu0 0
      %2508 = vmatprep.subr.bf16.mxu0 0
      %2509 = vmatpush1.bf16.xpose.msra.mxu0 0
      %2510 = vmatprep.subr.bf16.mxu0 0
      %2511 = vmatpush1.bf16.xpose.msra.mxu0 0
      %2512 = vmatprep.subr.bf16.mxu0 0
      %2513 = vmatpush1.bf16.xpose.msra.mxu0 0
      %2514 = vmatprep.mubr.bf16.mxu0 0
      %2515 = vmatmul.mubr.bf16.gmra.mrb[0].mxu0 %v2459
      %v2516 = vpop.f32.mrb[0].mxu0
      %v2517 = vadd.f32 0.0, %v2516
      %v2518 = vpop.f32.mrb[0].mxu0
      %v2519 = vpop.f32.mrb[0].mxu0
      %v2520 = vadd.f32 0.0, %v2519
      %v2521 = vpop.f32.mrb[0].mxu0
      %2522 = vmatprep.mubr.bf16.mxu0 0
      %2523 = vmatmul.mubr.bf16.gmra.mrb[0].mxu0 %v2462
      %v2524 = vpop.f32.mrb[0].mxu0
      %v2525 = vadd.f32 0.0, %v2524
      %v2526 = vpop.f32.mrb[0].mxu0
      %v2527 = vpop.f32.mrb[0].mxu0
      %v2528 = vadd.f32 0.0, %v2527
      %v2529 = vpop.f32.mrb[0].mxu0
      %2530 = vmatprep.mubr.bf16.mxu0 0
      %2531 = vmatmul.mubr.bf16.gmra.mrb[0].mxu0 %v2465
      %v2532 = vpop.f32.mrb[0].mxu0
      %v2533 = vadd.f32 0.0, %v2532
      %v2534 = vpop.f32.mrb[0].mxu0
      %v2535 = vpop.f32.mrb[0].mxu0
      %v2536 = vadd.f32 0.0, %v2535
      %v2537 = vpop.f32.mrb[0].mxu0
      %2538 = vmatprep.mubr.bf16.mxu0 0
      %2539 = vmatmul.mubr.bf16.gmra.mrb[0].mxu0 %v2468
      %v2540 = vpop.f32.mrb[0].mxu0
      %v2541 = vadd.f32 0.0, %v2540
      %v2542 = vpop.f32.mrb[0].mxu0
      %v2543 = vpop.f32.mrb[0].mxu0
      %v2544 = vadd.f32 0.0, %v2543
      %v2545 = vpop.f32.mrb[0].mxu0
      %2546 = vdwg.mxu0
      %v2547 = vsel %vm1427, %v2517, -inf
      %2548 = vmax.xlane.f32.xlu0 %v2547
      %v2549 = vpop.xlane.xlu0 %2548
      %v2550 = vsel %vm1427, %v2520, -inf
      %2551 = vmax.xlane.f32.xlu0 %v2550
      %v2552 = vpop.xlane.xlu0 %2551
      %v2553 = vsel %vm1427, %v2525, -inf
      %2554 = vmax.xlane.f32.xlu0 %v2553
      %v2555 = vpop.xlane.xlu0 %2554
      %v2556 = vsel %vm1427, %v2528, -inf
      %2557 = vmax.xlane.f32.xlu0 %v2556
      %v2558 = vpop.xlane.xlu0 %2557
      %v2559 = vsel %vm1427, %v2533, -inf
      %2560 = vmax.xlane.f32.xlu0 %v2559
      %v2561 = vpop.xlane.xlu0 %2560
      %v2562 = vsel %vm1427, %v2536, -inf
      %2563 = vmax.xlane.f32.xlu0 %v2562
      %v2564 = vpop.xlane.xlu0 %2563
      %v2565 = vsel %vm1427, %v2541, -inf
      %2566 = vmax.xlane.f32.xlu0 %v2565
      %v2567 = vpop.xlane.xlu0 %2566
      %v2568 = vsel %vm1427, %v2544, -inf
      %2569 = vmax.xlane.f32.xlu0 %v2568
      %v2570 = vpop.xlane.xlu0 %2569
      %v2571 = vsub.f32 %v2517, %v2549
      %v2572 = vsub.f32 %v2520, %v2552
      %v2573 = vsub.f32 %v2525, %v2555
      %v2574 = vsub.f32 %v2528, %v2558
      %v2575 = vsub.f32 %v2533, %v2561
      %v2576 = vsub.f32 %v2536, %v2564
      %v2577 = vsub.f32 %v2541, %v2567
      %v2578 = vsub.f32 %v2544, %v2570
      %v2579 = vmul.f32 %v2571, 1.442695
      %v2580 = vpow.pop %v2579
      %v2581 = vmul.f32 %v2572, 1.442695
      %v2582 = vpow.pop %v2581
      %v2583 = vmul.f32 %v2573, 1.442695
      %v2584 = vpow.pop %v2583
      %v2585 = vmul.f32 %v2574, 1.442695
      %v2586 = vpow.pop %v2585
      %v2587 = vmul.f32 %v2575, 1.442695
      %v2588 = vpow.pop %v2587
      %v2589 = vmul.f32 %v2576, 1.442695
      %v2590 = vpow.pop %v2589
      %v2591 = vmul.f32 %v2577, 1.442695
      %v2592 = vpow.pop %v2591
      %v2593 = vmul.f32 %v2578, 1.442695
      %v2594 = vpow.pop %v2593
      %v2595 = vsel %vm1427, %v2580, 0.0
      %2596 = vadd.xlane.f32.xlu0 %v2595
      %v2597 = vpop.xlane.xlu0 %2596
      %v2598 = vsel %vm1427, %v2582, 0.0
      %2599 = vadd.xlane.f32.xlu0 %v2598
      %v2600 = vpop.xlane.xlu0 %2599
      %v2601 = vsel %vm1427, %v2584, 0.0
      %2602 = vadd.xlane.f32.xlu0 %v2601
      %v2603 = vpop.xlane.xlu0 %2602
      %v2604 = vsel %vm1427, %v2586, 0.0
      %2605 = vadd.xlane.f32.xlu0 %v2604
      %v2606 = vpop.xlane.xlu0 %2605
      %v2607 = vsel %vm1427, %v2588, 0.0
      %2608 = vadd.xlane.f32.xlu0 %v2607
      %v2609 = vpop.xlane.xlu0 %2608
      %v2610 = vsel %vm1427, %v2590, 0.0
      %2611 = vadd.xlane.f32.xlu0 %v2610
      %v2612 = vpop.xlane.xlu0 %2611
      %v2613 = vsel %vm1427, %v2592, 0.0
      %2614 = vadd.xlane.f32.xlu0 %v2613
      %v2615 = vpop.xlane.xlu0 %2614
      %v2616 = vsel %vm1427, %v2594, 0.0
      %2617 = vadd.xlane.f32.xlu0 %v2616
      %v2618 = vpop.xlane.xlu0 %2617
      %v2619 = vrcp.pop %v2597
      %v2620 = vrcp.pop %v2600
      %v2621 = vrcp.pop %v2603
      %v2622 = vrcp.pop %v2606
      %v2623 = vrcp.pop %v2609
      %v2624 = vrcp.pop %v2612
      %v2625 = vrcp.pop %v2615
      %v2626 = vrcp.pop %v2618
      %v2627 = vmul.f32 %v2580, %v2619
      %v2628 = vmul.f32 %v2582, %v2620
      %v2629 = vmul.f32 %v2584, %v2621
      %v2630 = vmul.f32 %v2586, %v2622
      %v2631 = vmul.f32 %v2588, %v2623
      %v2632 = vmul.f32 %v2590, %v2624
      %v2633 = vmul.f32 %v2592, %v2625
      %v2634 = vmul.f32 %v2594, %v2626
      %v2635 = vpack.c.bf16 %v2628, %v2627
      %v2636 = vpack.c.bf16 %v2630, %v2629
      %v2637 = vpack.c.bf16 %v2632, %v2631
      %v2638 = vpack.c.bf16 %v2634, %v2633
      %2639 = vrot.lane.b32.xlu0 %v1321, 40
      %v2640 = vpop.permute.xlu0 %2639
      %2641 = vrot.lane.b32.xlu0 %v1322, 40
      %v2642 = vpop.permute.xlu0 %2641
      %2643 = vrot.lane.b32.xlu0 %v1323, 40
      %v2644 = vpop.permute.xlu0 %2643
      %2645 = vrot.lane.b32.xlu0 %v1324, 40
      %v2646 = vpop.permute.xlu0 %2645
      %v2652 = vsel %vm1427, %v2635, 0
      %v2655 = vsel %vm1427, %v2636, 0
      %v2658 = vsel %vm1427, %v2637, 0
      %v2661 = vsel %vm1427, %v2638, 0
      %2663 = vmatprep.subr.bf16.mxu0 0
      %2664 = vmatpush1.bf16.msra.mxu0 %v2640
      %2665 = vmatprep.subr.bf16.mxu0 0
      %2666 = vmatpush1.bf16.msra.mxu0 %v2642
      %2667 = vmatprep.subr.bf16.mxu0 0
      %2668 = vmatpush1.bf16.msra.mxu0 %v2644
      %2669 = vmatprep.subr.bf16.mxu0 0
      %2670 = vmatpush1.bf16.msra.mxu0 %v2646
      %2671 = vmatprep.subr.bf16.mxu0 0
      %2672 = vmatpush1.bf16.msra.mxu0 0
      %2673 = vmatprep.subr.bf16.mxu0 0
      %2674 = vmatpush1.bf16.msra.mxu0 0
      %2675 = vmatprep.subr.bf16.mxu0 0
      %2676 = vmatpush1.bf16.msra.mxu0 0
      %2677 = vmatprep.subr.bf16.mxu0 0
      %2678 = vmatpush1.bf16.msra.mxu0 0
      %2679 = vmatprep.subr.bf16.mxu0 0
      %2680 = vmatpush1.bf16.msra.mxu0 0
      %2681 = vmatprep.subr.bf16.mxu0 0
      %2682 = vmatpush1.bf16.msra.mxu0 0
      %2683 = vmatprep.subr.bf16.mxu0 0
      %2684 = vmatpush1.bf16.msra.mxu0 0
      %2685 = vmatprep.subr.bf16.mxu0 0
      %2686 = vmatpush1.bf16.msra.mxu0 0
      %2687 = vmatprep.subr.bf16.mxu0 0
      %2688 = vmatpush1.bf16.msra.mxu0 0
      %2689 = vmatprep.subr.bf16.mxu0 0
      %2690 = vmatpush1.bf16.msra.mxu0 0
      %2691 = vmatprep.subr.bf16.mxu0 0
      %2692 = vmatpush1.bf16.msra.mxu0 0
      %2693 = vmatprep.subr.bf16.mxu0 0
      %2694 = vmatpush1.bf16.msra.mxu0 0
      %2695 = vmatprep.mubr.bf16.mxu0 0
      %2696 = vmatmul.mubr.bf16.gmra.mrb[0].mxu0 %v2652
      %v2697 = vpop.f32.mrb[0].mxu0
      %v2698 = vadd.f32 0.0, %v2697
      %v2699 = vpop.f32.mrb[0].mxu0
      %v2700 = vpop.f32.mrb[0].mxu0
      %v2701 = vadd.f32 0.0, %v2700
      %v2702 = vpop.f32.mrb[0].mxu0
      %2703 = vmatprep.mubr.bf16.mxu0 0
      %2704 = vmatmul.mubr.bf16.gmra.mrb[0].mxu0 %v2655
      %v2705 = vpop.f32.mrb[0].mxu0
      %v2706 = vadd.f32 0.0, %v2705
      %v2707 = vpop.f32.mrb[0].mxu0
      %v2708 = vpop.f32.mrb[0].mxu0
      %v2709 = vadd.f32 0.0, %v2708
      %v2710 = vpop.f32.mrb[0].mxu0
      %2711 = vmatprep.mubr.bf16.mxu0 0
      %2712 = vmatmul.mubr.bf16.gmra.mrb[0].mxu0 %v2658
      %v2713 = vpop.f32.mrb[0].mxu0
      %v2714 = vadd.f32 0.0, %v2713
      %v2715 = vpop.f32.mrb[0].mxu0
      %v2716 = vpop.f32.mrb[0].mxu0
      %v2717 = vadd.f32 0.0, %v2716
      %v2718 = vpop.f32.mrb[0].mxu0
      %2719 = vmatprep.mubr.bf16.mxu0 0
      %2720 = vmatmul.mubr.bf16.gmra.mrb[0].mxu0 %v2661
      %v2721 = vpop.f32.mrb[0].mxu0
      %v2722 = vadd.f32 0.0, %v2721
      %v2723 = vpop.f32.mrb[0].mxu0
      %v2724 = vpop.f32.mrb[0].mxu0
      %v2725 = vadd.f32 0.0, %v2724
      %v2726 = vpop.f32.mrb[0].mxu0
      %2727 = vdwg.mxu0
      %v2728 = vpack.c.bf16 %v2701, %v2698
      %v2729 = vpack.c.bf16 %v2709, %v2706
      %v2730 = vpack.c.bf16 %v2717, %v2714
      %v2731 = vpack.c.bf16 %v2725, %v2722
      %v2733 = vsel %vm1337, %v2728, 0
      %v2736 = vsel %vm1337, %v2729, 0
      %v2739 = vsel %vm1337, %v2730, 0
      %v2742 = vsel %vm1337, %v2731, 0
      %v2745 = vsel %vm1915, %v1320, 0
      %2747 = vmatprep.subr.bf16.mxu0 0
      %2748 = vmatpush1.bf16.msra.mxu0 %v2745
      %2749 = vmatprep.subr.bf16.mxu0 0
      %2750 = vmatpush1.bf16.msra.mxu0 0
      %2751 = vmatprep.subr.bf16.mxu0 0
      %2752 = vmatpush1.bf16.msra.mxu0 0
      %2753 = vmatprep.subr.bf16.mxu0 0
      %2754 = vmatpush1.bf16.msra.mxu0 0
      %2755 = vmatprep.subr.bf16.mxu0 0
      %2756 = vmatpush1.bf16.msra.mxu0 0
      %2757 = vmatprep.subr.bf16.mxu0 0
      %2758 = vmatpush1.bf16.msra.mxu0 0
      %2759 = vmatprep.subr.bf16.mxu0 0
      %2760 = vmatpush1.bf16.msra.mxu0 0
      %2761 = vmatprep.subr.bf16.mxu0 0
      %2762 = vmatpush1.bf16.msra.mxu0 0
      %2763 = vmatprep.subr.bf16.mxu0 0
      %2764 = vmatpush1.bf16.msra.mxu0 0
      %2765 = vmatprep.subr.bf16.mxu0 0
      %2766 = vmatpush1.bf16.msra.mxu0 0
      %2767 = vmatprep.subr.bf16.mxu0 0
      %2768 = vmatpush1.bf16.msra.mxu0 0
      %2769 = vmatprep.subr.bf16.mxu0 0
      %2770 = vmatpush1.bf16.msra.mxu0 0
      %2771 = vmatprep.subr.bf16.mxu0 0
      %2772 = vmatpush1.bf16.msra.mxu0 0
      %2773 = vmatprep.subr.bf16.mxu0 0
      %2774 = vmatpush1.bf16.msra.mxu0 0
      %2775 = vmatprep.subr.bf16.mxu0 0
      %2776 = vmatpush1.bf16.msra.mxu0 0
      %2777 = vmatprep.subr.bf16.mxu0 0
      %2778 = vmatpush1.bf16.msra.mxu0 0
      %2779 = vmatprep.mubr.bf16.mxu0 0
      %2780 = vmatmul.mubr.bf16.gmra.mrb[0].mxu0 %v2733
      %v2781 = vpop.f32.mrb[0].mxu0
      %v2782 = vadd.f32 0.0, %v2781
      %v2783 = vpop.f32.mrb[0].mxu0
      %v2784 = vpop.f32.mrb[0].mxu0
      %v2785 = vadd.f32 0.0, %v2784
      %v2786 = vpop.f32.mrb[0].mxu0
      %2787 = vmatprep.mubr.bf16.mxu0 0
      %2788 = vmatmul.mubr.bf16.gmra.mrb[0].mxu0 %v2736
      %v2789 = vpop.f32.mrb[0].mxu0
      %v2790 = vadd.f32 0.0, %v2789
      %v2791 = vpop.f32.mrb[0].mxu0
      %v2792 = vpop.f32.mrb[0].mxu0
      %v2793 = vadd.f32 0.0, %v2792
      %v2794 = vpop.f32.mrb[0].mxu0
      %2795 = vmatprep.mubr.bf16.mxu0 0
      %2796 = vmatmul.mubr.bf16.gmra.mrb[0].mxu0 %v2739
      %v2797 = vpop.f32.mrb[0].mxu0
      %v2798 = vadd.f32 0.0, %v2797
      %v2799 = vpop.f32.mrb[0].mxu0
      %v2800 = vpop.f32.mrb[0].mxu0
      %v2801 = vadd.f32 0.0, %v2800
      %v2802 = vpop.f32.mrb[0].mxu0
      %2803 = vmatprep.mubr.bf16.mxu0 0
      %2804 = vmatmul.mubr.bf16.gmra.mrb[0].mxu0 %v2742
      %v2805 = vpop.f32.mrb[0].mxu0
      %v2806 = vadd.f32 0.0, %v2805
      %v2807 = vpop.f32.mrb[0].mxu0
      %v2808 = vpop.f32.mrb[0].mxu0
      %v2809 = vadd.f32 0.0, %v2808
      %v2810 = vpop.f32.mrb[0].mxu0
      %2811 = vdwg.mxu0
      %v2812 = vadd.f32 %v2434, %v2782
      %v2813 = vadd.f32 %v2435, %v2785
      %v2814 = vadd.f32 %v2436, %v2790
      %v2815 = vadd.f32 %v2437, %v2793
      %v2816 = vadd.f32 %v2438, %v2798
      %v2817 = vadd.f32 %v2439, %v2801
      %v2818 = vadd.f32 %v2440, %v2806
      %v2819 = vadd.f32 %v2441, %v2809
      %v2820 = vadd.f32 %v1069, %v2812
      %v2821 = vadd.f32 %v1070, %v2813
      %v2822 = vadd.f32 %v1071, %v2814
      %v2823 = vadd.f32 %v1072, %v2815
      %v2824 = vadd.f32 %v1073, %v2816
      %v2825 = vadd.f32 %v1074, %v2817
      %v2826 = vadd.f32 %v1075, %v2818
      %v2827 = vadd.f32 %v1076, %v2819
      %v2828 = vld [vmem:[%s752] sm:$0x1]
      %v2830 = vlaneseq
      %v2831 = vshrl.u32 %v2830, 7
      %v2832 = vsub.s32 0, %v2831
      %v2833 = vrot.slane %v2828, %v2832
      %v2835 = vadd.f32 %v2820, %v2833
      %v2836 = vadd.f32 %v2821, %v2833
      %v2837 = vadd.f32 %v2822, %v2833
      %v2838 = vadd.f32 %v2823, %v2833
      %v2839 = vadd.f32 %v2824, %v2833
      %v2840 = vadd.f32 %v2825, %v2833
      %v2841 = vadd.f32 %v2826, %v2833
      %v2842 = vadd.f32 %v2827, %v2833
      %v2843 = vld [vmem:[%s755] sm:$0x1]
      %v2844 = vld [vmem:[%s758] sm:$0x1]
      %v2845 = vsel %vm1079, %v2835, 0.0
      %2846 = vadd.xlane.f32.xlu0 %v2845
      %v2847 = vpop.xlane.xlu0 %2846
      %v2848 = vsel %vm1079, %v2836, 0.0
      %2849 = vadd.xlane.f32.xlu0 %v2848
      %v2850 = vpop.xlane.xlu0 %2849
      %v2851 = vsel %vm1079, %v2837, 0.0
      %2852 = vadd.xlane.f32.xlu0 %v2851
      %v2853 = vpop.xlane.xlu0 %2852
      %v2854 = vsel %vm1079, %v2838, 0.0
      %2855 = vadd.xlane.f32.xlu0 %v2854
      %v2856 = vpop.xlane.xlu0 %2855
      %v2857 = vsel %vm1079, %v2839, 0.0
      %2858 = vadd.xlane.f32.xlu0 %v2857
      %v2859 = vpop.xlane.xlu0 %2858
      %v2860 = vsel %vm1079, %v2840, 0.0
      %2861 = vadd.xlane.f32.xlu0 %v2860
      %v2862 = vpop.xlane.xlu0 %2861
      %v2863 = vsel %vm1079, %v2841, 0.0
      %2864 = vadd.xlane.f32.xlu0 %v2863
      %v2865 = vpop.xlane.xlu0 %2864
      %v2866 = vsel %vm1079, %v2842, 0.0
      %2867 = vadd.xlane.f32.xlu0 %v2866
      %v2868 = vpop.xlane.xlu0 %2867
      %v2869 = vmul.f32 %v2847, %v1104
      %v2870 = vmul.f32 %v2850, %v1104
      %v2871 = vmul.f32 %v2853, %v1104
      %v2872 = vmul.f32 %v2856, %v1104
      %v2873 = vmul.f32 %v2859, %v1104
      %v2874 = vmul.f32 %v2862, %v1104
      %v2875 = vmul.f32 %v2865, %v1104
      %v2876 = vmul.f32 %v2868, %v1104
      %v2877 = vsub.f32 %v2835, %v2869
      %v2878 = vsub.f32 %v2836, %v2870
      %v2879 = vsub.f32 %v2837, %v2871
      %v2880 = vsub.f32 %v2838, %v2872
      %v2881 = vsub.f32 %v2839, %v2873
      %v2882 = vsub.f32 %v2840, %v2874
      %v2883 = vsub.f32 %v2841, %v2875
      %v2884 = vsub.f32 %v2842, %v2876
      %v2885 = vmul.f32 %v2877, %v2877
      %v2886 = vmul.f32 %v2878, %v2878
      %v2887 = vmul.f32 %v2879, %v2879
      %v2888 = vmul.f32 %v2880, %v2880
      %v2889 = vmul.f32 %v2881, %v2881
      %v2890 = vmul.f32 %v2882, %v2882
      %v2891 = vmul.f32 %v2883, %v2883
      %v2892 = vmul.f32 %v2884, %v2884
      %v2893 = vsel %vm1079, %v2885, 0.0
      %2894 = vadd.xlane.f32.xlu0 %v2893
      %v2895 = vpop.xlane.xlu0 %2894
      %v2896 = vsel %vm1079, %v2886, 0.0
      %2897 = vadd.xlane.f32.xlu0 %v2896
      %v2898 = vpop.xlane.xlu0 %2897
      %v2899 = vsel %vm1079, %v2887, 0.0
      %2900 = vadd.xlane.f32.xlu0 %v2899
      %v2901 = vpop.xlane.xlu0 %2900
      %v2902 = vsel %vm1079, %v2888, 0.0
      %2903 = vadd.xlane.f32.xlu0 %v2902
      %v2904 = vpop.xlane.xlu0 %2903
      %v2905 = vsel %vm1079, %v2889, 0.0
      %2906 = vadd.xlane.f32.xlu0 %v2905
      %v2907 = vpop.xlane.xlu0 %2906
      %v2908 = vsel %vm1079, %v2890, 0.0
      %2909 = vadd.xlane.f32.xlu0 %v2908
      %v2910 = vpop.xlane.xlu0 %2909
      %v2911 = vsel %vm1079, %v2891, 0.0
      %2912 = vadd.xlane.f32.xlu0 %v2911
      %v2913 = vpop.xlane.xlu0 %2912
      %v2914 = vsel %vm1079, %v2892, 0.0
      %2915 = vadd.xlane.f32.xlu0 %v2914
      %v2916 = vpop.xlane.xlu0 %2915
      %v2917 = vmul.f32 %v2895, %v1104
      %v2918 = vmul.f32 %v2898, %v1104
      %v2919 = vmul.f32 %v2901, %v1104
      %v2920 = vmul.f32 %v2904, %v1104
      %v2921 = vmul.f32 %v2907, %v1104
      %v2922 = vmul.f32 %v2910, %v1104
      %v2923 = vmul.f32 %v2913, %v1104
      %v2924 = vmul.f32 %v2916, %v1104
      %v2925 = vadd.f32 %v2917, 1e-06
      %v2926 = vadd.f32 %v2918, 1e-06
      %v2927 = vadd.f32 %v2919, 1e-06
      %v2928 = vadd.f32 %v2920, 1e-06
      %v2929 = vadd.f32 %v2921, 1e-06
      %v2930 = vadd.f32 %v2922, 1e-06
      %v2931 = vadd.f32 %v2923, 1e-06
      %v2932 = vadd.f32 %v2924, 1e-06
      %v2933 = vrsqrt.pop %v2925
      %v2934 = vrsqrt.pop %v2926
      %v2935 = vrsqrt.pop %v2927
      %v2936 = vrsqrt.pop %v2928
      %v2937 = vrsqrt.pop %v2929
      %v2938 = vrsqrt.pop %v2930
      %v2939 = vrsqrt.pop %v2931
      %v2940 = vrsqrt.pop %v2932
      %v2941 = vmul.f32 %v2877, %v2933
      %v2942 = vmul.f32 %v2878, %v2934
      %v2943 = vmul.f32 %v2879, %v2935
      %v2944 = vmul.f32 %v2880, %v2936
      %v2945 = vmul.f32 %v2881, %v2937
      %v2946 = vmul.f32 %v2882, %v2938
      %v2947 = vmul.f32 %v2883, %v2939
      %v2948 = vmul.f32 %v2884, %v2940
      %v2950 = vlaneseq
      %v2951 = vshrl.u32 %v2950, 7
      %v2952 = vsub.s32 0, %v2951
      %v2953 = vrot.slane %v2843, %v2952
      %v2955 = vmul.f32 %v2941, %v2953
      %v2956 = vmul.f32 %v2942, %v2953
      %v2957 = vmul.f32 %v2943, %v2953
      %v2958 = vmul.f32 %v2944, %v2953
      %v2959 = vmul.f32 %v2945, %v2953
      %v2960 = vmul.f32 %v2946, %v2953
      %v2961 = vmul.f32 %v2947, %v2953
      %v2962 = vmul.f32 %v2948, %v2953
      %v2964 = vlaneseq
      %v2965 = vshrl.u32 %v2964, 7
      %v2966 = vsub.s32 0, %v2965
      %v2967 = vrot.slane %v2844, %v2966
      %v2969 = vadd.f32 %v2955, %v2967
      %v2970 = vadd.f32 %v2956, %v2967
      %v2971 = vadd.f32 %v2957, %v2967
      %v2972 = vadd.f32 %v2958, %v2967
      %v2973 = vadd.f32 %v2959, %v2967
      %v2974 = vadd.f32 %v2960, %v2967
      %v2975 = vadd.f32 %v2961, %v2967
      %v2976 = vadd.f32 %v2962, %v2967
      %v2977 = vpack.c.bf16 %v2970, %v2969
      %v2978 = vpack.c.bf16 %v2972, %v2971
      %v2979 = vpack.c.bf16 %v2974, %v2973
      %v2980 = vpack.c.bf16 %v2976, %v2975
      %v2981 = vld [vmem:[%s763] sm:$0xf]
      %v2982 = vld [vmem:[%s763 + $0x4] sm:$0xf]
      %v2983 = vld [vmem:[%s763 + $0x8] sm:$0xf]
      %v2984 = vld [vmem:[%s763 + $0xc] sm:$0xf]
      %v2985 = vld [vmem:[%s766] sm:$0x1]
      %v2987 = vlaneseq
      %v2988 = vshrl.u32 %v2987, 7
      %v2989 = vsub.s32 0, %v2988
      %v2990 = vrot.slane %v2985, %v2989
      %v2996 = vunpack.c.l.b16 %v2981
      %v2997 = vunpack.c.l.b16 %v2982
      %v2998 = vunpack.c.l.b16 %v2983
      %v2999 = vunpack.c.l.b16 %v2984
      %v3000 = vpack.c.b16 %v2997, %v2996
      %v3001 = vpack.c.b16 %v2999, %v2998
      %v3005 = vsel %vm1079, %v2977, 0
      %v3008 = vsel %vm1079, %v2978, 0
      %v3011 = vsel %vm1079, %v2979, 0
      %v3014 = vsel %vm1079, %v2980, 0
      %3016 = vmatprep.subr.bf16.mxu0 0
      %3017 = vmatpush1.bf16.msra.mxu0 %v3000
      %3018 = vmatprep.subr.bf16.mxu0 0
      %3019 = vmatpush1.bf16.msra.mxu0 %v3001
      %3020 = vmatprep.subr.bf16.mxu0 0
      %3021 = vmatpush1.bf16.msra.mxu0 0
      %3022 = vmatprep.subr.bf16.mxu0 0
      %3023 = vmatpush1.bf16.msra.mxu0 0
      %3024 = vmatprep.subr.bf16.mxu0 0
      %3025 = vmatpush1.bf16.msra.mxu0 0
      %3026 = vmatprep.subr.bf16.mxu0 0
      %3027 = vmatpush1.bf16.msra.mxu0 0
      %3028 = vmatprep.subr.bf16.mxu0 0
      %3029 = vmatpush1.bf16.msra.mxu0 0
      %3030 = vmatprep.subr.bf16.mxu0 0
      %3031 = vmatpush1.bf16.msra.mxu0 0
      %3032 = vmatprep.subr.bf16.mxu0 0
      %3033 = vmatpush1.bf16.msra.mxu0 0
      %3034 = vmatprep.subr.bf16.mxu0 0
      %3035 = vmatpush1.bf16.msra.mxu0 0
      %3036 = vmatprep.subr.bf16.mxu0 0
      %3037 = vmatpush1.bf16.msra.mxu0 0
      %3038 = vmatprep.subr.bf16.mxu0 0
      %3039 = vmatpush1.bf16.msra.mxu0 0
      %3040 = vmatprep.subr.bf16.mxu0 0
      %3041 = vmatpush1.bf16.msra.mxu0 0
      %3042 = vmatprep.subr.bf16.mxu0 0
      %3043 = vmatpush1.bf16.msra.mxu0 0
      %3044 = vmatprep.subr.bf16.mxu0 0
      %3045 = vmatpush1.bf16.msra.mxu0 0
      %3046 = vmatprep.subr.bf16.mxu0 0
      %3047 = vmatpush1.bf16.msra.mxu0 0
      %3048 = vmatprep.mubr.bf16.mxu0 0
      %3049 = vmatmul.mubr.bf16.gmra.mrb[0].mxu0 %v3005
      %v3050 = vpop.f32.mrb[0].mxu0
      %v3051 = vadd.f32 %v2990, %v3050
      %v3052 = vpop.f32.mrb[0].mxu0
      %v3053 = vpop.f32.mrb[0].mxu0
      %v3054 = vadd.f32 %v2990, %v3053
      %v3055 = vpop.f32.mrb[0].mxu0
      %3056 = vmatprep.mubr.bf16.mxu0 0
      %3057 = vmatmul.mubr.bf16.gmra.mrb[0].mxu0 %v3008
      %v3058 = vpop.f32.mrb[0].mxu0
      %v3059 = vadd.f32 %v2990, %v3058
      %v3060 = vpop.f32.mrb[0].mxu0
      %v3061 = vpop.f32.mrb[0].mxu0
      %v3062 = vadd.f32 %v2990, %v3061
      %v3063 = vpop.f32.mrb[0].mxu0
      %3064 = vmatprep.mubr.bf16.mxu0 0
      %3065 = vmatmul.mubr.bf16.gmra.mrb[0].mxu0 %v3011
      %v3066 = vpop.f32.mrb[0].mxu0
      %v3067 = vadd.f32 %v2990, %v3066
      %v3068 = vpop.f32.mrb[0].mxu0
      %v3069 = vpop.f32.mrb[0].mxu0
      %v3070 = vadd.f32 %v2990, %v3069
      %v3071 = vpop.f32.mrb[0].mxu0
      %3072 = vmatprep.mubr.bf16.mxu0 0
      %3073 = vmatmul.mubr.bf16.gmra.mrb[0].mxu0 %v3014
      %v3074 = vpop.f32.mrb[0].mxu0
      %v3075 = vadd.f32 %v2990, %v3074
      %v3076 = vpop.f32.mrb[0].mxu0
      %v3077 = vpop.f32.mrb[0].mxu0
      %v3078 = vadd.f32 %v2990, %v3077
      %v3079 = vpop.f32.mrb[0].mxu0
      %3080 = vdwg.mxu0
      %v3081 = vmul.f32 %v3051, 0.5
      %v3082 = vmul.f32 %v3054, 0.5
      %v3083 = vmul.f32 %v3059, 0.5
      %v3084 = vmul.f32 %v3062, 0.5
      %v3085 = vmul.f32 %v3067, 0.5
      %v3086 = vmul.f32 %v3070, 0.5
      %v3087 = vmul.f32 %v3075, 0.5
      %v3088 = vmul.f32 %v3078, 0.5
      %v3089 = vmul.f32 %v3051, 0.044715
      %v3090 = vmul.f32 %v3054, 0.044715
      %v3091 = vmul.f32 %v3059, 0.044715
      %v3092 = vmul.f32 %v3062, 0.044715
      %v3093 = vmul.f32 %v3067, 0.044715
      %v3094 = vmul.f32 %v3070, 0.044715
      %v3095 = vmul.f32 %v3075, 0.044715
      %v3096 = vmul.f32 %v3078, 0.044715
      %v3097 = vmul.f32 %v3089, %v3051
      %v3098 = vmul.f32 %v3090, %v3054
      %v3099 = vmul.f32 %v3091, %v3059
      %v3100 = vmul.f32 %v3092, %v3062
      %v3101 = vmul.f32 %v3093, %v3067
      %v3102 = vmul.f32 %v3094, %v3070
      %v3103 = vmul.f32 %v3095, %v3075
      %v3104 = vmul.f32 %v3096, %v3078
      %v3105 = vmul.f32 %v3097, %v3051
      %v3106 = vmul.f32 %v3098, %v3054
      %v3107 = vmul.f32 %v3099, %v3059
      %v3108 = vmul.f32 %v3100, %v3062
      %v3109 = vmul.f32 %v3101, %v3067
      %v3110 = vmul.f32 %v3102, %v3070
      %v3111 = vmul.f32 %v3103, %v3075
      %v3112 = vmul.f32 %v3104, %v3078
      %v3113 = vadd.f32 %v3051, %v3105
      %v3114 = vadd.f32 %v3054, %v3106
      %v3115 = vadd.f32 %v3059, %v3107
      %v3116 = vadd.f32 %v3062, %v3108
      %v3117 = vadd.f32 %v3067, %v3109
      %v3118 = vadd.f32 %v3070, %v3110
      %v3119 = vadd.f32 %v3075, %v3111
      %v3120 = vadd.f32 %v3078, %v3112
      %v3121 = vmul.f32 %v3113, 0.7978846
      %v3122 = vmul.f32 %v3114, 0.7978846
      %v3123 = vmul.f32 %v3115, 0.7978846
      %v3124 = vmul.f32 %v3116, 0.7978846
      %v3125 = vmul.f32 %v3117, 0.7978846
      %v3126 = vmul.f32 %v3118, 0.7978846
      %v3127 = vmul.f32 %v3119, 0.7978846
      %v3128 = vmul.f32 %v3120, 0.7978846
      %v3129 = vtanh.pop %v3121
      %v3130 = vtanh.pop %v3122
      %v3131 = vtanh.pop %v3123
      %v3132 = vtanh.pop %v3124
      %v3133 = vtanh.pop %v3125
      %v3134 = vtanh.pop %v3126
      %v3135 = vtanh.pop %v3127
      %v3136 = vtanh.pop %v3128
      %v3137 = vadd.f32 %v3129, 1.0
      %v3138 = vadd.f32 %v3130, 1.0
      %v3139 = vadd.f32 %v3131, 1.0
      %v3140 = vadd.f32 %v3132, 1.0
      %v3141 = vadd.f32 %v3133, 1.0
      %v3142 = vadd.f32 %v3134, 1.0
      %v3143 = vadd.f32 %v3135, 1.0
      %v3144 = vadd.f32 %v3136, 1.0
      %v3145 = vmul.f32 %v3081, %v3137
      %v3146 = vmul.f32 %v3082, %v3138
      %v3147 = vmul.f32 %v3083, %v3139
      %v3148 = vmul.f32 %v3084, %v3140
      %v3149 = vmul.f32 %v3085, %v3141
      %v3150 = vmul.f32 %v3086, %v3142
      %v3151 = vmul.f32 %v3087, %v3143
      %v3152 = vmul.f32 %v3088, %v3144
      %v3153 = vpack.c.bf16 %v3146, %v3145
      %v3154 = vpack.c.bf16 %v3148, %v3147
      %v3155 = vpack.c.bf16 %v3150, %v3149
      %v3156 = vpack.c.bf16 %v3152, %v3151
      %v3157 = vld [vmem:[%s771] sm:$0xf]
      %v3158 = vld [vmem:[%s771 + $0x4] sm:$0xf]
      %v3159 = vld [vmem:[%s771 + $0x8] sm:$0xf]
      %v3160 = vld [vmem:[%s771 + $0xc] sm:$0xf]
      %v3161 = vld [vmem:[%s771 + $0x10] sm:$0xf]
      %v3162 = vld [vmem:[%s771 + $0x14] sm:$0xf]
      %v3163 = vld [vmem:[%s771 + $0x18] sm:$0xf]
      %v3164 = vld [vmem:[%s771 + $0x1c] sm:$0xf]
      %v3165 = vld [vmem:[%s771 + $0x20] sm:$0xf]
      %v3166 = vld [vmem:[%s771 + $0x24] sm:$0xf]
      %v3167 = vld [vmem:[%s771 + $0x28] sm:$0xf]
      %v3168 = vld [vmem:[%s771 + $0x2c] sm:$0xf]
      %v3169 = vld [vmem:[%s771 + $0x30] sm:$0xf]
      %v3170 = vld [vmem:[%s771 + $0x34] sm:$0xf]
      %v3171 = vld [vmem:[%s771 + $0x38] sm:$0xf]
      %v3172 = vld [vmem:[%s771 + $0x3c] sm:$0xf]
      %v3173 = vld [vmem:[%s774] sm:$0x1]
      %v3175 = vlaneseq
      %v3176 = vshrl.u32 %v3175, 7
      %v3177 = vsub.s32 0, %v3176
      %v3178 = vrot.slane %v3173, %v3177
      %v3196 = vunpack.c.l.b16 %v3157
      %v3197 = vunpack.c.l.b16 %v3158
      %v3198 = vunpack.c.l.b16 %v3159
      %v3199 = vunpack.c.l.b16 %v3160
      %v3200 = vunpack.c.l.b16 %v3161
      %v3201 = vunpack.c.l.b16 %v3162
      %v3202 = vunpack.c.l.b16 %v3163
      %v3203 = vunpack.c.l.b16 %v3164
      %v3204 = vunpack.c.l.b16 %v3165
      %v3205 = vunpack.c.l.b16 %v3166
      %v3206 = vunpack.c.l.b16 %v3167
      %v3207 = vunpack.c.l.b16 %v3168
      %v3208 = vunpack.c.l.b16 %v3169
      %v3209 = vunpack.c.l.b16 %v3170
      %v3210 = vunpack.c.l.b16 %v3171
      %v3211 = vunpack.c.l.b16 %v3172
      %v3212 = vpack.c.b16 %v3197, %v3196
      %v3213 = vpack.c.b16 %v3199, %v3198
      %v3214 = vpack.c.b16 %v3201, %v3200
      %v3215 = vpack.c.b16 %v3203, %v3202
      %v3216 = vpack.c.b16 %v3205, %v3204
      %v3217 = vpack.c.b16 %v3207, %v3206
      %v3218 = vpack.c.b16 %v3209, %v3208
      %v3219 = vpack.c.b16 %v3211, %v3210
      %3228 = vmatprep.subr.bf16.mxu0 0
      %3229 = vmatpush1.bf16.msra.mxu0 %v3212
      %3230 = vmatprep.subr.bf16.mxu0 0
      %3231 = vmatpush1.bf16.msra.mxu0 %v3213
      %3232 = vmatprep.subr.bf16.mxu0 0
      %3233 = vmatpush1.bf16.msra.mxu0 %v3214
      %3234 = vmatprep.subr.bf16.mxu0 0
      %3235 = vmatpush1.bf16.msra.mxu0 %v3215
      %3236 = vmatprep.subr.bf16.mxu0 0
      %3237 = vmatpush1.bf16.msra.mxu0 %v3216
      %3238 = vmatprep.subr.bf16.mxu0 0
      %3239 = vmatpush1.bf16.msra.mxu0 %v3217
      %3240 = vmatprep.subr.bf16.mxu0 0
      %3241 = vmatpush1.bf16.msra.mxu0 %v3218
      %3242 = vmatprep.subr.bf16.mxu0 0
      %3243 = vmatpush1.bf16.msra.mxu0 %v3219
      %3244 = vmatprep.subr.bf16.mxu0 0
      %3245 = vmatpush1.bf16.msra.mxu0 0
      %3246 = vmatprep.subr.bf16.mxu0 0
      %3247 = vmatpush1.bf16.msra.mxu0 0
      %3248 = vmatprep.subr.bf16.mxu0 0
      %3249 = vmatpush1.bf16.msra.mxu0 0
      %3250 = vmatprep.subr.bf16.mxu0 0
      %3251 = vmatpush1.bf16.msra.mxu0 0
      %3252 = vmatprep.subr.bf16.mxu0 0
      %3253 = vmatpush1.bf16.msra.mxu0 0
      %3254 = vmatprep.subr.bf16.mxu0 0
      %3255 = vmatpush1.bf16.msra.mxu0 0
      %3256 = vmatprep.subr.bf16.mxu0 0
      %3257 = vmatpush1.bf16.msra.mxu0 0
      %3258 = vmatprep.subr.bf16.mxu0 0
      %3259 = vmatpush1.bf16.msra.mxu0 0
      %3260 = vmatprep.mubr.bf16.mxu0 0
      %3261 = vmatmul.mubr.bf16.gmra.mrb[0].mxu0 %v3153
      %v3262 = vpop.f32.mrb[0].mxu0
      %v3263 = vadd.f32 %v3178, %v3262
      %v3264 = vpop.f32.mrb[0].mxu0
      %v3265 = vpop.f32.mrb[0].mxu0
      %v3266 = vadd.f32 %v3178, %v3265
      %v3267 = vpop.f32.mrb[0].mxu0
      %3268 = vmatprep.mubr.bf16.mxu0 0
      %3269 = vmatmul.mubr.bf16.gmra.mrb[0].mxu0 %v3154
      %v3270 = vpop.f32.mrb[0].mxu0
      %v3271 = vadd.f32 %v3178, %v3270
      %v3272 = vpop.f32.mrb[0].mxu0
      %v3273 = vpop.f32.mrb[0].mxu0
      %v3274 = vadd.f32 %v3178, %v3273
      %v3275 = vpop.f32.mrb[0].mxu0
      %3276 = vmatprep.mubr.bf16.mxu0 0
      %3277 = vmatmul.mubr.bf16.gmra.mrb[0].mxu0 %v3155
      %v3278 = vpop.f32.mrb[0].mxu0
      %v3279 = vadd.f32 %v3178, %v3278
      %v3280 = vpop.f32.mrb[0].mxu0
      %v3281 = vpop.f32.mrb[0].mxu0
      %v3282 = vadd.f32 %v3178, %v3281
      %v3283 = vpop.f32.mrb[0].mxu0
      %3284 = vmatprep.mubr.bf16.mxu0 0
      %3285 = vmatmul.mubr.bf16.gmra.mrb[0].mxu0 %v3156
      %v3286 = vpop.f32.mrb[0].mxu0
      %v3287 = vadd.f32 %v3178, %v3286
      %v3288 = vpop.f32.mrb[0].mxu0
      %v3289 = vpop.f32.mrb[0].mxu0
      %v3290 = vadd.f32 %v3178, %v3289
      %v3291 = vpop.f32.mrb[0].mxu0
      %3292 = vdwg.mxu0
      %v3293 = vadd.f32 %v2835, %v3263
      %v3294 = vadd.f32 %v2836, %v3266
      %v3295 = vadd.f32 %v2837, %v3271
      %v3296 = vadd.f32 %v2838, %v3274
      %v3297 = vadd.f32 %v2839, %v3279
      %v3298 = vadd.f32 %v2840, %v3282
      %v3299 = vadd.f32 %v2841, %v3287
      %v3300 = vadd.f32 %v2842, %v3290
      %3301 = vst.msk [vmem:[#allocation2] sm:$0xff] %vm1079, %v3293
      %3302 = vst.msk [vmem:[#allocation2 + $0x8] sm:$0xff] %vm1079, %v3294
      %3303 = vst.msk [vmem:[#allocation2 + $0x10] sm:$0xff] %vm1079, %v3295
      %3304 = vst.msk [vmem:[#allocation2 + $0x18] sm:$0xff] %vm1079, %v3296
      %3305 = vst.msk [vmem:[#allocation2 + $0x20] sm:$0xff] %vm1079, %v3297
      %3306 = vst.msk [vmem:[#allocation2 + $0x28] sm:$0xff] %vm1079, %v3298
      %3307 = vst.msk [vmem:[#allocation2 + $0x30] sm:$0xff] %vm1079, %v3299
      %3308 = vst.msk [vmem:[#allocation2 + $0x38] sm:$0xff] %vm1079, %v3300
      %p3309 = scmp.eq.s32.totalorder %s34, 1
      // Predicated region
      $region97: #{wavet_forward.2} parent=91 // pred_check
        %p3310 = pneg %p3309
      $region98: #{wavet_forward.2} parent=91 // pred_check_branch
        %3312 = sbr.rel (%p3310) target = $region100
      $region99: #{wavet_forward.2} parent=91 // pred_region
        %v3313 = vpack.c.bf16 %v3294, %v3293
        %v3314 = vpack.c.bf16 %v3296, %v3295
        %v3315 = vpack.c.bf16 %v3298, %v3297
        %v3316 = vpack.c.bf16 %v3300, %v3299
        %v3321 = vunpack.c.l.b16 %v3313
        %v3322 = vunpack.c.h.b16 %v3313
        %v3323 = vunpack.c.l.b16 %v3314
        %v3324 = vunpack.c.h.b16 %v3314
        %v3325 = vunpack.c.l.b16 %v3315
        %v3326 = vunpack.c.h.b16 %v3315
        %v3327 = vunpack.c.l.b16 %v3316
        %v3328 = vunpack.c.h.b16 %v3316
        %v3329 = vpack.c.b16 %v3321, %v3321
        %v3330 = vpack.c.b16 %v3322, %v3322
        %v3331 = vpack.c.b16 %v3323, %v3323
        %v3332 = vpack.c.b16 %v3324, %v3324
        %v3333 = vpack.c.b16 %v3325, %v3325
        %v3334 = vpack.c.b16 %v3326, %v3326
        %v3335 = vpack.c.b16 %v3327, %v3327
        %v3336 = vpack.c.b16 %v3328, %v3328
        %vm3345 = vcmask 257024
        %3346 = vst.msk [vmem:[%s779] sm:$0xf] %vm3345, %v3329
        %3347 = vst.msk [vmem:[%s779 + $0x4] sm:$0xf] %vm3345, %v3330
        %3348 = vst.msk [vmem:[%s779 + $0x8] sm:$0xf] %vm3345, %v3331
        %3349 = vst.msk [vmem:[%s779 + $0xc] sm:$0xf] %vm3345, %v3332
        %3350 = vst.msk [vmem:[%s779 + $0x10] sm:$0xf] %vm3345, %v3333
        %3351 = vst.msk [vmem:[%s779 + $0x14] sm:$0xf] %vm3345, %v3334
        %3352 = vst.msk [vmem:[%s779 + $0x18] sm:$0xf] %vm3345, %v3335
        %3353 = vst.msk [vmem:[%s779 + $0x1c] sm:$0xf] %vm3345, %v3336
      $region100: #{wavet_forward.2} parent=91 // pred_fallthru
        _
      %p3354 = scmp.lt.s32.totalorder %s33, 1
      %s3355 = scalar_select %p3354, %s33, 1
      %s3356 = smul.addr %s3355, 8
      %s3357 = smul.addr %s3356, 4
      %s3358 = scalar_lea.vmem %s18, %s3357
      // Predicated region
      $region101: #{wavet_forward.2} parent=91 // pred_check
        %p3359 = pneg %p502
      $region102: #{wavet_forward.2} parent=91 // pred_check_branch
        %3361 = sbr.rel (%p3359) target = $region104
      $region103: #{wavet_forward.2} parent=91 // pred_region
        _
      $region104: #{wavet_forward.2} parent=91 // pred_fallthru
        _
    $region92: #{wavet_forward.2} parent=5 // pred_fallthru
      _
    %p3362 = scmp.le.s32.totalorder 2, %s24
    // Predicated region
    $region105: #{wavet_forward.2} parent=5 // pred_check
      %p3363 = pneg %p3362
    $region106: #{wavet_forward.2} parent=5 // pred_check_branch
      %3365 = sbr.rel (%p3363) target = $region108
    $region107: #{wavet_forward.2} parent=5 // pred_region
      %s3366 = ssub.s32 %s24, 2
      // Predicated region
      $region109: #{wavet_forward.2} parent=107 // pred_check
        %p3367 = pneg %p508
      $region110: #{wavet_forward.2} parent=107 // pred_check_branch
        %3369 = sbr.rel (%p3367) target = $region112
      $region111: #{wavet_forward.2} parent=107 // pred_region
        %p3370 = scmp.lt.s32.totalorder %s35, 1
        %s3371 = scalar_select %p3370, %s35, 1
        %s3372 = smul.addr %s3371, 8
        %s3373 = smul.addr %s3372, 4
        %s3374 = scalar_lea.vmem %s18, %s3373
      $region112: #{wavet_forward.2} parent=107 // pred_fallthru
        _
    $region108: #{wavet_forward.2} parent=5 // pred_fallthru
      _
  $region6: #{wavet_forward.2} parent=0 // loop_footer
    %s28 = sadd.s32 1, %s24
  $region7: #{wavet_forward.2} parent=0 // loop_footer_branch
    %23 = sbr.rel target = $region3
  $region8: #{wavet_forward.2} parent=0 // loop_exit
    _

</llo_original>
